<compile_context>
chip_gen: v7x
topology: tpu7x:2x2x1
jax: 0.10.0
libtpu: 0.0.40
codegen_flags: <defaults>
</compile_context>

<pallas_src>
import jax
import jax.numpy as jnp
from jax import lax
from jax.experimental import pallas as pl
from jax.experimental.pallas import tpu as pltpu

HIDDEN = 128        # nn.LSTM hidden_size
SHIDDEN = 64        # sentence encoder output size (shidden = 32 * 2)
NUM_LAYERS = 2
NUM_CLASSES = 2     # h2s = nn.Linear(hidden * 2, 2)
OUT_PAD = 128       # lane-dense head output width (first NUM_CLASSES cols are real)
UNROLL_T_MAX = 16   # fully unroll the recurrence for short documents
B_TILE_CANDIDATES = (256, 128, 64, 32, 16)
VMEM_BUDGET = 40 * 1024 * 1024   # target footprint per grid step


def _gate_math(gates, h, c, keep):
    """One LSTM direction's gate math. gates: (B, 4H) f32, keep: (B, H) bool."""
    H = HIDDEN
    i_g = jax.nn.sigmoid(gates[:, 0 * H:1 * H])
    f_g = jax.nn.sigmoid(gates[:, 1 * H:2 * H])
    g_g = jnp.tanh(gates[:, 2 * H:3 * H])
    o_g = jax.nn.sigmoid(gates[:, 3 * H:4 * H])
    c_new = f_g * c + i_g * g_g
    h_new = o_g * jnp.tanh(c_new)
    # packed-sequence semantics: freeze state / zero output at padding
    c_nxt = jnp.where(keep, c_new, c)
    h_nxt = jnp.where(keep, h_new, h)
    h_out = jnp.where(keep, h_new, 0.0)
    return h_nxt, c_nxt, h_out


def _bilstm_h2s_kernel(x_ref, lens_ref,
                       wih0_ref, b0_ref, whh0_ref,
                       wih1f_ref, wih1b_ref, b1_ref, whh1_ref,
                       wof_ref, wob_ref, bo_ref,
                       out_ref,
                       pre_ref, buf0f, buf0b, buf1f, buf1b):
    T, B, D = x_ref.shape
    H = HIDDEN
    G = 4 * H

    # per-document sentence counts (B, 1) int32 — loaded once, masks built per step
    lens = lens_ref[...]

    # ---------------- layer 0: one hoisted input GEMM (fwd|bwd fused) -------
    x2d = x_ref[...].reshape(T * B, D)                               # bf16
    pre0 = (jnp.dot(x2d, wih0_ref[...], preferred_element_type=jnp.float32)
            + b0_ref[...])                                           # (T*B, 8H) f32
    pre_ref[...] = pre0.reshape(T, B, 2 * G).astype(jnp.bfloat16)

    def step(tf, tb, hf, cf, hb, cb, whh_blk, buf_f, buf_b):
        # masks broadcast once per step per direction (hoisted out of gate math)
        keep_f = jnp.broadcast_to(lens > tf, (B, H))
        keep_b = jnp.broadcast_to(lens > tb, (B, H))
        # one fused recurrent matmul: [hf|hb] @ block_diag(Whh_f, Whh_b)
        lhs = jnp.concatenate([hf, hb], axis=1).astype(jnp.bfloat16)  # (B, 2H)
        gates = jnp.dot(lhs, whh_blk,
                        preferred_element_type=jnp.float32)           # (B, 8H)
        gf = gates[:, :G] + pre_ref[tf, :, :G].astype(jnp.float32)
        gb = gates[:, G:] + pre_ref[tb, :, G:].astype(jnp.float32)
        hf, cf, of = _gate_math(gf, hf, cf, keep_f)
        hb, cb, ob = _gate_math(gb, hb, cb, keep_b)
        buf_f[tf] = of.astype(jnp.bfloat16)
        buf_b[tb] = ob.astype(jnp.bfloat16)
        return hf, cf, hb, cb

    def run_layer(whh_blk, buf_f, buf_b):
        z = jnp.zeros((B, H), jnp.float32)
        hf, cf, hb, cb = z, z, z, z
        if T <= UNROLL_T_MAX:
            # short documents: fully unrolled static loop
            for s in range(T):
                hf, cf, hb, cb = step(s, T - 1 - s, hf, cf, hb, cb,
                                      whh_blk, buf_f, buf_b)
        else:
            # long documents: fori_loop carrying 4 small state arrays
            def body(s, carry):
                chf, ccf, chb, ccb = carry
                return step(s, T - 1 - s, chf, ccf, chb, ccb,
                            whh_blk, buf_f, buf_b)
            _ = lax.fori_loop(0, T, body, (hf, cf, hb, cb), unroll=2)

    run_layer(whh0_ref[...], buf0f, buf0b)

    # ---------------- layer 1: hoisted input GEMM, no per-step concat -------
    f2d = buf0f[...].reshape(T * B, H)                               # bf16
    b2d = buf0b[...].reshape(T * B, H)                               # bf16
    pre1 = (jnp.dot(f2d, wih1f_ref[...], preferred_element_type=jnp.float32)
            + jnp.dot(b2d, wih1b_ref[...], preferred_element_type=jnp.float32)
            + b1_ref[...])                                           # (T*B, 8H) f32
    pre_ref[...] = pre1.reshape(T, B, 2 * G).astype(jnp.bfloat16)

    run_layer(whh1_ref[...], buf1f, buf1b)

    # ---------------- h2s head, lane-dense output (padded to OUT_PAD) -------
    f1c = buf1f[...].reshape(T * B, H)                               # bf16
    b1c = buf1b[...].reshape(T * B, H)                               # bf16
    logits = (jnp.dot(f1c, wof_ref[...], preferred_element_type=jnp.float32)
              + jnp.dot(b1c, wob_ref[...], preferred_element_type=jnp.float32)
              + bo_ref[...])                                         # (T*B, 128)
    out_ref[...] = logits.reshape(T, B, OUT_PAD).astype(out_ref.dtype)


def _block_diag_whh(whh_f, whh_b):
    """Build block-diagonal [[Whh_f, 0], [0, Whh_b]] (2H, 8H) in bf16."""
    H = HIDDEN
    G = 4 * H
    z = jnp.zeros((H, G), jnp.float32)
    top = jnp.concatenate([whh_f, z], axis=1)
    bot = jnp.concatenate([z, whh_b], axis=1)
    return jnp.concatenate([top, bot], axis=0).astype(jnp.bfloat16)


def _prep_params(params):
    """Fuse / split / cast raw per-direction LSTM params for the kernel."""
    (wih0f, whh0f, b0f, wih0b, whh0b, b0b,
     wih1f, whh1f, b1f, wih1b, whh1b, b1b, wo, bo) = params
    H = HIDDEN
    bf16 = jnp.bfloat16
    # layer 0: fuse fwd/bwd input weights along the output dim -> one GEMM
    wih0 = jnp.concatenate([wih0f, wih0b], axis=1).astype(bf16)       # (64, 8H)
    b0 = jnp.concatenate([b0f, b0b], axis=1)                          # (1, 8H) f32
    whh0_blk = _block_diag_whh(whh0f, whh0b)                          # (2H, 8H)
    # layer 1: split input weight by which half of concat(fwd0, bwd0) it reads
    wih1_from_f = jnp.concatenate([wih1f[:H], wih1b[:H]], axis=1).astype(bf16)  # (H, 8H)
    wih1_from_b = jnp.concatenate([wih1f[H:], wih1b[H:]], axis=1).astype(bf16)  # (H, 8H)
    b1 = jnp.concatenate([b1f, b1b], axis=1)                          # (1, 8H) f32
    whh1_blk = _block_diag_whh(whh1f, whh1b)                          # (2H, 8H)
    # head: split (2H,2) -> two (H,128) lane-dense blocks (extra cols zero)
    wof = jnp.zeros((H, OUT_PAD), jnp.float32).at[:, :NUM_CLASSES].set(wo[:H]).astype(bf16)
    wob = jnp.zeros((H, OUT_PAD), jnp.float32).at[:, :NUM_CLASSES].set(wo[H:]).astype(bf16)
    bo_p = jnp.zeros((1, OUT_PAD), jnp.float32).at[:, :NUM_CLASSES].set(bo)
    return (wih0, b0, whh0_blk,
            wih1_from_f, wih1_from_b, b1, whh1_blk,
            wof, wob, bo_p)


def _vmem_estimate(T, b_tile, d_in):
    """Approximate VMEM footprint of one grid step (bytes)."""
    H, g8 = HIDDEN, 8 * HIDDEN
    bf, f4 = 2, 4
    weights = (d_in * g8 * bf + g8 * f4          # wih0 + b0
               + 2 * H * g8 * bf                 # whh0 block-diag
               + 2 * H * g8 * bf + g8 * f4       # wih1_from_f/b + b1
               + 2 * H * g8 * bf                 # whh1 block-diag
               + 2 * H * OUT_PAD * bf + OUT_PAD * f4)   # head
    io_blk = (T * b_tile * d_in * bf             # docs block (bf16)
              + b_tile * 128 * f4                # lens block (lane-padded)
              + T * b_tile * OUT_PAD * f4)       # output block
    scratch = T * b_tile * g8 * bf + 4 * T * b_tile * H * bf
    return 2 * (weights + io_blk) + scratch      # x2 for double-buffered I/O


def bilstm_h2s(docs_tbd, doc_lens, params):
    """docs_tbd: (T, B, SHIDDEN) float, doc_lens: (B,) int. Returns (T, B, 2) f32."""
    T, B, D = docs_tbd.shape

    # batch tile: multiple of 16 (packed bf16 sublane tile), sized against VMEM budget
    b_pad = max(16, ((B + 15) // 16) * 16)
    b_tile = 16
    for cand in B_TILE_CANDIDATES:
        if cand <= b_pad and _vmem_estimate(T, cand, D) <= VMEM_BUDGET:
            b_tile = cand
            break
    b_pad = ((b_pad + b_tile - 1) // b_tile) * b_tile
    grid = (b_pad // b_tile,)

    docs = docs_tbd
    if b_pad != B:
        docs = jnp.pad(docs, ((0, 0), (0, b_pad - B), (0, 0)))
    docs = docs.astype(jnp.bfloat16)                     # halve docs DMA
    lens = jnp.zeros((b_pad, 1), jnp.int32).at[:B, 0].set(doc_lens.astype(jnp.int32))

    prepped = _prep_params(params)

    in_specs = [pl.BlockSpec((T, b_tile, D), lambda b: (0, b, 0)),
                pl.BlockSpec((b_tile, 1), lambda b: (b, 0))]
    in_specs += [pl.BlockSpec(w.shape, lambda b: (0, 0)) for w in prepped]
    out_spec = pl.BlockSpec((T, b_tile, OUT_PAD), lambda b: (0, b, 0))

    vmem_limit = max(16 * 1024 * 1024,
                     min(128 * 1024 * 1024,
                         int(1.3 * _vmem_estimate(T, b_tile, D)) + (2 << 20)))

    out = pl.pallas_call(
        _bilstm_h2s_kernel,
        out_shape=jax.ShapeDtypeStruct((T, b_pad, OUT_PAD), jnp.float32),
        grid_spec=pltpu.PrefetchScalarGridSpec(
            num_scalar_prefetch=0,
            grid=grid,
            in_specs=in_specs,
            out_specs=out_spec,
            scratch_shapes=[
                pltpu.VMEM((T, b_tile, 8 * HIDDEN), jnp.bfloat16),  # gate pre-acts
                pltpu.VMEM((T, b_tile, HIDDEN), jnp.bfloat16),      # layer0 fwd out
                pltpu.VMEM((T, b_tile, HIDDEN), jnp.bfloat16),      # layer0 bwd out
                pltpu.VMEM((T, b_tile, HIDDEN), jnp.bfloat16),      # layer1 fwd out
                pltpu.VMEM((T, b_tile, HIDDEN), jnp.bfloat16),      # layer1 bwd out
            ]),
        compiler_params=pltpu.CompilerParams(
            dimension_semantics=("parallel",),
            vmem_limit_bytes=vmem_limit),
    )(docs, lens, *prepped)
    return out[:, :B, :NUM_CLASSES]


def init_params(key):
    """Deterministic LSTM + h2s parameters (PyTorch-style uniform init)."""
    H = HIDDEN
    keys = jax.random.split(key, 32)
    idx = [0]

    def unif(shape, scale):
        k = keys[idx[0]]
        idx[0] += 1
        return jax.random.uniform(k, shape, jnp.float32, -scale, scale)

    k_lstm = 1.0 / jnp.sqrt(jnp.float32(H))
    params = []
    for layer in range(NUM_LAYERS):
        d_in = SHIDDEN if layer == 0 else 2 * H
        for _direction in range(2):
            w_ih = unif((d_in, 4 * H), k_lstm)             # stored pre-transposed: x @ w_ih
            w_hh = unif((H, 4 * H), k_lstm)
            b = unif((1, 4 * H), k_lstm) + unif((1, 4 * H), k_lstm)  # b_ih + b_hh
            params.extend([w_ih, w_hh, b])
    k_lin = 1.0 / jnp.sqrt(jnp.float32(2 * H))
    w_o = unif((2 * H, NUM_CLASSES), k_lin)
    b_o = unif((1, NUM_CLASSES), k_lin)
    params.extend([w_o, b_o])
    return params


if __name__ == "__main__":
    key = jax.random.PRNGKey(0)
    kdata, kparams, kenc = jax.random.split(key, 3)

    emb_dim = 16
    doc_sizes = [5, 3]                       # batch of 2 documents
    sent_lens = [[7, 4, 8, 3, 6], [5, 8, 2]]  # words per sentence (ragged)
    len_max_seq = 499

    # ---- build ragged word-level sentences, pad to max_length (forward() logic) ----
    all_lens = [l for d in sent_lens for l in d]
    n_sent = len(all_lens)
    max_length = max(all_lens) if max(all_lens) < len_max_seq else len_max_seq - 1
    skeys = jax.random.split(kdata, n_sent)
    padded = []
    for i, L in enumerate(all_lens):
        s = jax.random.normal(skeys[i], (L, emb_dim), jnp.float32)
        padded.append(jnp.zeros((max_length, emb_dim), jnp.float32).at[:L].set(s))
    sents = jnp.stack(padded)                # (n_sent, max_length, emb_dim)

    # TODO(synk): `sentence_encoder` is an external constructor argument in the
    # PyTorch module (not defined there); stand in with a deterministic
    # masked-mean + linear projection to shidden=64 (plain-JAX glue).
    w_enc = jax.random.normal(kenc, (emb_dim, SHIDDEN), jnp.float32) * 0.1
    lens_f = jnp.array(all_lens, jnp.float32)[:, None]
    word_mask = (jnp.arange(max_length)[None, :, None]
                 < jnp.array(all_lens)[:, None, None]).astype(jnp.float32)
    encodings = ((sents * word_mask).sum(axis=1) / lens_f) @ w_enc   # (n_sent, 64)

    # ---- group encodings back into documents, pad to max_doc_size (time-major) ----
    B = len(doc_sizes)
    T = max(doc_sizes)
    docs = jnp.zeros((T, B, SHIDDEN), jnp.float32)
    pos = 0
    for b, n in enumerate(doc_sizes):
        docs = docs.at[:n, b, :].set(encodings[pos:pos + n])
        pos += n
    doc_lens = jnp.array(doc_sizes, jnp.int32)

    params = init_params(kparams)
    lstm_out = bilstm_h2s(docs, doc_lens, params)      # (T, B, 2)
    lstm_out = jax.block_until_ready(lstm_out)

    # ---- forward() tail: keep positions 0..doc_len-2 per document, concat, done ----
    pieces = [lstm_out[:n - 1, b, :] for b, n in enumerate(doc_sizes)]
    x = jnp.concatenate(pieces, axis=0)                # (sum(doc_len-1), 2)
    x = jax.block_until_ready(x)
    assert x.shape == (sum(n - 1 for n in doc_sizes), NUM_CLASSES)
    print("KERNEL_OK")
</pallas_src>

<mosaic_0001>
module attributes {stable_mosaic.version = 11 : i64} {
  func.func @_bilstm_h2s_kernel(%arg0: i32, %arg1: memref<5x16x64xbf16, #tpu.memory_space<vmem>>, %arg2: memref<16x1xi32, #tpu.memory_space<vmem>>, %arg3: memref<64x1024xbf16, #tpu.memory_space<vmem>>, %arg4: memref<1x1024xf32, #tpu.memory_space<vmem>>, %arg5: memref<256x1024xbf16, #tpu.memory_space<vmem>>, %arg6: memref<128x1024xbf16, #tpu.memory_space<vmem>>, %arg7: memref<128x1024xbf16, #tpu.memory_space<vmem>>, %arg8: memref<1x1024xf32, #tpu.memory_space<vmem>>, %arg9: memref<256x1024xbf16, #tpu.memory_space<vmem>>, %arg10: memref<128x128xbf16, #tpu.memory_space<vmem>>, %arg11: memref<128x128xbf16, #tpu.memory_space<vmem>>, %arg12: memref<1x128xf32, #tpu.memory_space<vmem>>, %arg13: memref<5x16x128xf32, #tpu.memory_space<vmem>>, %arg14: memref<5x16x1024xbf16, #tpu.memory_space<vmem>>, %arg15: memref<5x16x128xbf16, #tpu.memory_space<vmem>>, %arg16: memref<5x16x128xbf16, #tpu.memory_space<vmem>>, %arg17: memref<5x16x128xbf16, #tpu.memory_space<vmem>>, %arg18: memref<5x16x128xbf16, #tpu.memory_space<vmem>>) attributes {dimension_semantics = [#tpu.dimension_semantics<parallel>], iteration_bounds = array<i64: 1>, scalar_prefetch = 0 : i64, scratch_operands = 5 : i64, tpu.core_type = #tpu.core_type<tc>, window_params = [{transform_indices = @transform_0, window_bounds = array<i64: 5, 16, 64>}, {transform_indices = @transform_1, window_bounds = array<i64: 16, 1>}, {pipeline_mode = #tpu.pipeline_mode<synchronous>, transform_indices = @transform_2, window_bounds = array<i64: 64, 1024>}, {pipeline_mode = #tpu.pipeline_mode<synchronous>, transform_indices = @transform_3, window_bounds = array<i64: 1, 1024>}, {pipeline_mode = #tpu.pipeline_mode<synchronous>, transform_indices = @transform_4, window_bounds = array<i64: 256, 1024>}, {pipeline_mode = #tpu.pipeline_mode<synchronous>, transform_indices = @transform_5, window_bounds = array<i64: 128, 1024>}, {pipeline_mode = #tpu.pipeline_mode<synchronous>, transform_indices = @transform_6, window_bounds = array<i64: 128, 1024>}, {pipeline_mode = #tpu.pipeline_mode<synchronous>, transform_indices = @transform_7, window_bounds = array<i64: 1, 1024>}, {pipeline_mode = #tpu.pipeline_mode<synchronous>, transform_indices = @transform_8, window_bounds = array<i64: 256, 1024>}, {pipeline_mode = #tpu.pipeline_mode<synchronous>, transform_indices = @transform_9, window_bounds = array<i64: 128, 128>}, {pipeline_mode = #tpu.pipeline_mode<synchronous>, transform_indices = @transform_10, window_bounds = array<i64: 128, 128>}, {pipeline_mode = #tpu.pipeline_mode<synchronous>, transform_indices = @transform_11, window_bounds = array<i64: 1, 128>}, {transform_indices = @transform_12, window_bounds = array<i64: 5, 16, 128>}]} {
    %c0 = arith.constant 0 : index
    %c0_0 = arith.constant 0 : index
    %0 = vector.load %arg2[%c0, %c0_0] : memref<16x1xi32, #tpu.memory_space<vmem>>, vector<16x1xi32>
    %c0_1 = arith.constant 0 : index
    %c0_2 = arith.constant 0 : index
    %c0_3 = arith.constant 0 : index
    %1 = vector.load %arg1[%c0_1, %c0_2, %c0_3] : memref<5x16x64xbf16, #tpu.memory_space<vmem>>, vector<5x16x64xbf16>
    %2 = vector.shape_cast %1 : vector<5x16x64xbf16> to vector<80x64xbf16>
    %c0_4 = arith.constant 0 : index
    %c0_5 = arith.constant 0 : index
    %3 = vector.load %arg3[%c0_4, %c0_5] : memref<64x1024xbf16, #tpu.memory_space<vmem>>, vector<64x1024xbf16>
    %cst = arith.constant dense<0.000000e+00> : vector<80x1024xf32>
    %4 = tpu.matmul %2, %3, %cst {dimension_numbers = #tpu.dot_dimension_numbers<[1], [0], [0], [1], [0, 0, 1, 1], [], []>} : vector<80x64xbf16>, vector<64x1024xbf16>, vector<80x1024xf32> -> vector<80x1024xf32>
    %c0_6 = arith.constant 0 : index
    %c0_7 = arith.constant 0 : index
    %5 = vector.load %arg4[%c0_6, %c0_7] : memref<1x1024xf32, #tpu.memory_space<vmem>>, vector<1x1024xf32>
    %6 = vector.broadcast %5 : vector<1x1024xf32> to vector<80x1024xf32>
    %7 = arith.addf %4, %6 : vector<80x1024xf32>
    %8 = vector.shape_cast %7 : vector<80x1024xf32> to vector<5x16x1024xf32>
    %9 = arith.truncf %8 : vector<5x16x1024xf32> to vector<5x16x1024xbf16>
    %c0_8 = arith.constant 0 : index
    %c0_9 = arith.constant 0 : index
    %c0_10 = arith.constant 0 : index
    %10 = vector.load %arg14[%c0_8, %c0_9, %c0_10] : memref<5x16x1024xbf16, #tpu.memory_space<vmem>>, vector<5x16x1024xbf16>
    tpu.vector_store %arg14[%c0_8, %c0_9, %c0_10], %9 {strides = array<i32>} : memref<5x16x1024xbf16, #tpu.memory_space<vmem>>, vector<5x16x1024xbf16>,
    %c0_11 = arith.constant 0 : index
    %c0_12 = arith.constant 0 : index
    %11 = vector.load %arg5[%c0_11, %c0_12] : memref<256x1024xbf16, #tpu.memory_space<vmem>>, vector<256x1024xbf16>
    %cst_13 = arith.constant 0.000000e+00 : f32
    %12 = vector.broadcast %cst_13 : f32 to vector<16x128xf32>
    %c0_i32 = arith.constant 0 : i32
    %13 = vector.broadcast %c0_i32 : i32 to vector<16x1xi32>
    %14 = arith.cmpi sgt, %0, %13 : vector<16x1xi32>
    %15 = vector.shape_cast %14 : vector<16x1xi1> to vector<16x1xi1>
    %16 = vector.broadcast %15 : vector<16x1xi1> to vector<16x128xi1>
    %c4_i32 = arith.constant 4 : i32
    %17 = vector.broadcast %c4_i32 : i32 to vector<16x1xi32>
    %18 = arith.cmpi sgt, %0, %17 : vector<16x1xi32>
    %19 = vector.shape_cast %18 : vector<16x1xi1> to vector<16x1xi1>
    %20 = vector.broadcast %19 : vector<16x1xi1> to vector<16x128xi1>
    %21 = tpu.concatenate %12, %12 in 1 : vector<16x128xf32>, vector<16x128xf32> -> vector<16x256xf32>
    %22 = arith.truncf %21 : vector<16x256xf32> to vector<16x256xbf16>
    %cst_14 = arith.constant dense<0.000000e+00> : vector<16x1024xf32>
    %23 = tpu.matmul %22, %11, %cst_14 {dimension_numbers = #tpu.dot_dimension_numbers<[1], [0], [0], [1], [0, 0, 1, 1], [], []>} : vector<16x256xbf16>, vector<256x1024xbf16>, vector<16x1024xf32> -> vector<16x1024xf32>
    %24 = vector.extract_strided_slice %23 {offsets = [0, 0], sizes = [16, 512], strides = [1, 1]} : vector<16x1024xf32> to vector<16x512xf32>
    %c0_15 = arith.constant 0 : index
    %c0_16 = arith.constant 0 : index
    %c0_17 = arith.constant 0 : index
    %25 = vector.load %arg14[%c0_15, %c0_16, %c0_17] : memref<5x16x1024xbf16, #tpu.memory_space<vmem>>, vector<1x16x512xbf16>
    %26 = vector.shape_cast %25 : vector<1x16x512xbf16> to vector<16x512xbf16>
    %27 = arith.extf %26 : vector<16x512xbf16> to vector<16x512xf32>
    %28 = arith.addf %24, %27 : vector<16x512xf32>
    %29 = vector.extract_strided_slice %23 {offsets = [0, 512], sizes = [16, 512], strides = [1, 1]} : vector<16x1024xf32> to vector<16x512xf32>
    %c4 = arith.constant 4 : index
    %c0_18 = arith.constant 0 : index
    %c512 = arith.constant 512 : index
    %30 = vector.load %arg14[%c4, %c0_18, %c512] : memref<5x16x1024xbf16, #tpu.memory_space<vmem>>, vector<1x16x512xbf16>
    %31 = vector.shape_cast %30 : vector<1x16x512xbf16> to vector<16x512xbf16>
    %32 = arith.extf %31 : vector<16x512xbf16> to vector<16x512xf32>
    %33 = arith.addf %29, %32 : vector<16x512xf32>
    %34 = vector.extract_strided_slice %28 {offsets = [0, 0], sizes = [16, 128], strides = [1, 1]} : vector<16x512xf32> to vector<16x128xf32>
    %35 = arith.negf %34 : vector<16x128xf32>
    %36 = math.exp %35 : vector<16x128xf32>
    %cst_19 = arith.constant 1.000000e+00 : f32
    %37 = vector.broadcast %cst_19 : f32 to vector<16x128xf32>
    %38 = arith.addf %37, %36 : vector<16x128xf32>
    %39 = arith.divf %37, %38 : vector<16x128xf32>
    %40 = vector.extract_strided_slice %28 {offsets = [0, 128], sizes = [16, 128], strides = [1, 1]} : vector<16x512xf32> to vector<16x128xf32>
    %41 = arith.negf %40 : vector<16x128xf32>
    %42 = math.exp %41 : vector<16x128xf32>
    %cst_20 = arith.constant 1.000000e+00 : f32
    %43 = vector.broadcast %cst_20 : f32 to vector<16x128xf32>
    %44 = arith.addf %43, %42 : vector<16x128xf32>
    %45 = arith.divf %43, %44 : vector<16x128xf32>
    %46 = vector.extract_strided_slice %28 {offsets = [0, 256], sizes = [16, 128], strides = [1, 1]} : vector<16x512xf32> to vector<16x128xf32>
    %47 = math.tanh %46 : vector<16x128xf32>
    %48 = vector.extract_strided_slice %28 {offsets = [0, 384], sizes = [16, 128], strides = [1, 1]} : vector<16x512xf32> to vector<16x128xf32>
    %49 = arith.negf %48 : vector<16x128xf32>
    %50 = math.exp %49 : vector<16x128xf32>
    %cst_21 = arith.constant 1.000000e+00 : f32
    %51 = vector.broadcast %cst_21 : f32 to vector<16x128xf32>
    %52 = arith.addf %51, %50 : vector<16x128xf32>
    %53 = arith.divf %51, %52 : vector<16x128xf32>
    %54 = arith.mulf %45, %12 : vector<16x128xf32>
    %55 = arith.mulf %39, %47 : vector<16x128xf32>
    %56 = arith.addf %54, %55 : vector<16x128xf32>
    %57 = math.tanh %56 : vector<16x128xf32>
    %58 = arith.mulf %53, %57 : vector<16x128xf32>
    %59 = arith.select %16, %56, %12 : vector<16x128xi1>, vector<16x128xf32>
    %60 = arith.select %16, %58, %12 : vector<16x128xi1>, vector<16x128xf32>
    %cst_22 = arith.constant 0.000000e+00 : f32
    %61 = vector.broadcast %cst_22 : f32 to vector<16x128xf32>
    %62 = arith.select %16, %58, %61 : vector<16x128xi1>, vector<16x128xf32>
    %63 = vector.extract_strided_slice %33 {offsets = [0, 0], sizes = [16, 128], strides = [1, 1]} : vector<16x512xf32> to vector<16x128xf32>
    %64 = arith.negf %63 : vector<16x128xf32>
    %65 = math.exp %64 : vector<16x128xf32>
    %cst_23 = arith.constant 1.000000e+00 : f32
    %66 = vector.broadcast %cst_23 : f32 to vector<16x128xf32>
    %67 = arith.addf %66, %65 : vector<16x128xf32>
    %68 = arith.divf %66, %67 : vector<16x128xf32>
    %69 = vector.extract_strided_slice %33 {offsets = [0, 128], sizes = [16, 128], strides = [1, 1]} : vector<16x512xf32> to vector<16x128xf32>
    %70 = arith.negf %69 : vector<16x128xf32>
    %71 = math.exp %70 : vector<16x128xf32>
    %cst_24 = arith.constant 1.000000e+00 : f32
    %72 = vector.broadcast %cst_24 : f32 to vector<16x128xf32>
    %73 = arith.addf %72, %71 : vector<16x128xf32>
    %74 = arith.divf %72, %73 : vector<16x128xf32>
    %75 = vector.extract_strided_slice %33 {offsets = [0, 256], sizes = [16, 128], strides = [1, 1]} : vector<16x512xf32> to vector<16x128xf32>
    %76 = math.tanh %75 : vector<16x128xf32>
    %77 = vector.extract_strided_slice %33 {offsets = [0, 384], sizes = [16, 128], strides = [1, 1]} : vector<16x512xf32> to vector<16x128xf32>
    %78 = arith.negf %77 : vector<16x128xf32>
    %79 = math.exp %78 : vector<16x128xf32>
    %cst_25 = arith.constant 1.000000e+00 : f32
    %80 = vector.broadcast %cst_25 : f32 to vector<16x128xf32>
    %81 = arith.addf %80, %79 : vector<16x128xf32>
    %82 = arith.divf %80, %81 : vector<16x128xf32>
    %83 = arith.mulf %74, %12 : vector<16x128xf32>
    %84 = arith.mulf %68, %76 : vector<16x128xf32>
    %85 = arith.addf %83, %84 : vector<16x128xf32>
    %86 = math.tanh %85 : vector<16x128xf32>
    %87 = arith.mulf %82, %86 : vector<16x128xf32>
    %88 = arith.select %20, %85, %12 : vector<16x128xi1>, vector<16x128xf32>
    %89 = arith.select %20, %87, %12 : vector<16x128xi1>, vector<16x128xf32>
    %cst_26 = arith.constant 0.000000e+00 : f32
    %90 = vector.broadcast %cst_26 : f32 to vector<16x128xf32>
    %91 = arith.select %20, %87, %90 : vector<16x128xi1>, vector<16x128xf32>
    %92 = arith.truncf %62 : vector<16x128xf32> to vector<16x128xbf16>
    %c0_27 = arith.constant 0 : index
    %c0_28 = arith.constant 0 : index
    %c0_29 = arith.constant 0 : index
    %93 = vector.load %arg15[%c0_27, %c0_28, %c0_29] : memref<5x16x128xbf16, #tpu.memory_space<vmem>>, vector<1x16x128xbf16>
    %94 = vector.shape_cast %93 : vector<1x16x128xbf16> to vector<16x128xbf16>
    %95 = vector.shape_cast %92 : vector<16x128xbf16> to vector<1x16x128xbf16>
    tpu.vector_store %arg15[%c0_27, %c0_28, %c0_29], %95 {strides = array<i32>} : memref<5x16x128xbf16, #tpu.memory_space<vmem>>, vector<1x16x128xbf16>,
    %96 = arith.truncf %91 : vector<16x128xf32> to vector<16x128xbf16>
    %c4_30 = arith.constant 4 : index
    %c0_31 = arith.constant 0 : index
    %c0_32 = arith.constant 0 : index
    %97 = vector.load %arg16[%c4_30, %c0_31, %c0_32] : memref<5x16x128xbf16, #tpu.memory_space<vmem>>, vector<1x16x128xbf16>
    %98 = vector.shape_cast %97 : vector<1x16x128xbf16> to vector<16x128xbf16>
    %99 = vector.shape_cast %96 : vector<16x128xbf16> to vector<1x16x128xbf16>
    tpu.vector_store %arg16[%c4_30, %c0_31, %c0_32], %99 {strides = array<i32>} : memref<5x16x128xbf16, #tpu.memory_space<vmem>>, vector<1x16x128xbf16>,
    %c1_i32 = arith.constant 1 : i32
    %100 = vector.broadcast %c1_i32 : i32 to vector<16x1xi32>
    %101 = arith.cmpi sgt, %0, %100 : vector<16x1xi32>
    %102 = vector.shape_cast %101 : vector<16x1xi1> to vector<16x1xi1>
    %103 = vector.broadcast %102 : vector<16x1xi1> to vector<16x128xi1>
    %c3_i32 = arith.constant 3 : i32
    %104 = vector.broadcast %c3_i32 : i32 to vector<16x1xi32>
    %105 = arith.cmpi sgt, %0, %104 : vector<16x1xi32>
    %106 = vector.shape_cast %105 : vector<16x1xi1> to vector<16x1xi1>
    %107 = vector.broadcast %106 : vector<16x1xi1> to vector<16x128xi1>
    %108 = tpu.concatenate %60, %89 in 1 : vector<16x128xf32>, vector<16x128xf32> -> vector<16x256xf32>
    %109 = arith.truncf %108 : vector<16x256xf32> to vector<16x256xbf16>
    %cst_33 = arith.constant dense<0.000000e+00> : vector<16x1024xf32>
    %110 = tpu.matmul %109, %11, %cst_33 {dimension_numbers = #tpu.dot_dimension_numbers<[1], [0], [0], [1], [0, 0, 1, 1], [], []>} : vector<16x256xbf16>, vector<256x1024xbf16>, vector<16x1024xf32> -> vector<16x1024xf32>
    %111 = vector.extract_strided_slice %110 {offsets = [0, 0], sizes = [16, 512], strides = [1, 1]} : vector<16x1024xf32> to vector<16x512xf32>
    %c1 = arith.constant 1 : index
    %c0_34 = arith.constant 0 : index
    %c0_35 = arith.constant 0 : index
    %112 = vector.load %arg14[%c1, %c0_34, %c0_35] : memref<5x16x1024xbf16, #tpu.memory_space<vmem>>, vector<1x16x512xbf16>
    %113 = vector.shape_cast %112 : vector<1x16x512xbf16> to vector<16x512xbf16>
    %114 = arith.extf %113 : vector<16x512xbf16> to vector<16x512xf32>
    %115 = arith.addf %111, %114 : vector<16x512xf32>
    %116 = vector.extract_strided_slice %110 {offsets = [0, 512], sizes = [16, 512], strides = [1, 1]} : vector<16x1024xf32> to vector<16x512xf32>
    %c3 = arith.constant 3 : index
    %c0_36 = arith.constant 0 : index
    %c512_37 = arith.constant 512 : index
    %117 = vector.load %arg14[%c3, %c0_36, %c512_37] : memref<5x16x1024xbf16, #tpu.memory_space<vmem>>, vector<1x16x512xbf16>
    %118 = vector.shape_cast %117 : vector<1x16x512xbf16> to vector<16x512xbf16>
    %119 = arith.extf %118 : vector<16x512xbf16> to vector<16x512xf32>
    %120 = arith.addf %116, %119 : vector<16x512xf32>
    %121 = vector.extract_strided_slice %115 {offsets = [0, 0], sizes = [16, 128], strides = [1, 1]} : vector<16x512xf32> to vector<16x128xf32>
    %122 = arith.negf %121 : vector<16x128xf32>
    %123 = math.exp %122 : vector<16x128xf32>
    %cst_38 = arith.constant 1.000000e+00 : f32
    %124 = vector.broadcast %cst_38 : f32 to vector<16x128xf32>
    %125 = arith.addf %124, %123 : vector<16x128xf32>
    %126 = arith.divf %124, %125 : vector<16x128xf32>
    %127 = vector.extract_strided_slice %115 {offsets = [0, 128], sizes = [16, 128], strides = [1, 1]} : vector<16x512xf32> to vector<16x128xf32>
    %128 = arith.negf %127 : vector<16x128xf32>
    %129 = math.exp %128 : vector<16x128xf32>
    %cst_39 = arith.constant 1.000000e+00 : f32
    %130 = vector.broadcast %cst_39 : f32 to vector<16x128xf32>
    %131 = arith.addf %130, %129 : vector<16x128xf32>
    %132 = arith.divf %130, %131 : vector<16x128xf32>
    %133 = vector.extract_strided_slice %115 {offsets = [0, 256], sizes = [16, 128], strides = [1, 1]} : vector<16x512xf32> to vector<16x128xf32>
    %134 = math.tanh %133 : vector<16x128xf32>
    %135 = vector.extract_strided_slice %115 {offsets = [0, 384], sizes = [16, 128], strides = [1, 1]} : vector<16x512xf32> to vector<16x128xf32>
    %136 = arith.negf %135 : vector<16x128xf32>
    %137 = math.exp %136 : vector<16x128xf32>
    %cst_40 = arith.constant 1.000000e+00 : f32
    %138 = vector.broadcast %cst_40 : f32 to vector<16x128xf32>
    %139 = arith.addf %138, %137 : vector<16x128xf32>
    %140 = arith.divf %138, %139 : vector<16x128xf32>
    %141 = arith.mulf %132, %59 : vector<16x128xf32>
    %142 = arith.mulf %126, %134 : vector<16x128xf32>
    %143 = arith.addf %141, %142 : vector<16x128xf32>
    %144 = math.tanh %143 : vector<16x128xf32>
    %145 = arith.mulf %140, %144 : vector<16x128xf32>
    %146 = arith.select %103, %143, %59 : vector<16x128xi1>, vector<16x128xf32>
    %147 = arith.select %103, %145, %60 : vector<16x128xi1>, vector<16x128xf32>
    %cst_41 = arith.constant 0.000000e+00 : f32
    %148 = vector.broadcast %cst_41 : f32 to vector<16x128xf32>
    %149 = arith.select %103, %145, %148 : vector<16x128xi1>, vector<16x128xf32>
    %150 = vector.extract_strided_slice %120 {offsets = [0, 0], sizes = [16, 128], strides = [1, 1]} : vector<16x512xf32> to vector<16x128xf32>
    %151 = arith.negf %150 : vector<16x128xf32>
    %152 = math.exp %151 : vector<16x128xf32>
    %cst_42 = arith.constant 1.000000e+00 : f32
    %153 = vector.broadcast %cst_42 : f32 to vector<16x128xf32>
    %154 = arith.addf %153, %152 : vector<16x128xf32>
    %155 = arith.divf %153, %154 : vector<16x128xf32>
    %156 = vector.extract_strided_slice %120 {offsets = [0, 128], sizes = [16, 128], strides = [1, 1]} : vector<16x512xf32> to vector<16x128xf32>
    %157 = arith.negf %156 : vector<16x128xf32>
    %158 = math.exp %157 : vector<16x128xf32>
    %cst_43 = arith.constant 1.000000e+00 : f32
    %159 = vector.broadcast %cst_43 : f32 to vector<16x128xf32>
    %160 = arith.addf %159, %158 : vector<16x128xf32>
    %161 = arith.divf %159, %160 : vector<16x128xf32>
    %162 = vector.extract_strided_slice %120 {offsets = [0, 256], sizes = [16, 128], strides = [1, 1]} : vector<16x512xf32> to vector<16x128xf32>
    %163 = math.tanh %162 : vector<16x128xf32>
    %164 = vector.extract_strided_slice %120 {offsets = [0, 384], sizes = [16, 128], strides = [1, 1]} : vector<16x512xf32> to vector<16x128xf32>
    %165 = arith.negf %164 : vector<16x128xf32>
    %166 = math.exp %165 : vector<16x128xf32>
    %cst_44 = arith.constant 1.000000e+00 : f32
    %167 = vector.broadcast %cst_44 : f32 to vector<16x128xf32>
    %168 = arith.addf %167, %166 : vector<16x128xf32>
    %169 = arith.divf %167, %168 : vector<16x128xf32>
    %170 = arith.mulf %161, %88 : vector<16x128xf32>
    %171 = arith.mulf %155, %163 : vector<16x128xf32>
    %172 = arith.addf %170, %171 : vector<16x128xf32>
    %173 = math.tanh %172 : vector<16x128xf32>
    %174 = arith.mulf %169, %173 : vector<16x128xf32>
    %175 = arith.select %107, %172, %88 : vector<16x128xi1>, vector<16x128xf32>
    %176 = arith.select %107, %174, %89 : vector<16x128xi1>, vector<16x128xf32>
    %cst_45 = arith.constant 0.000000e+00 : f32
    %177 = vector.broadcast %cst_45 : f32 to vector<16x128xf32>
    %178 = arith.select %107, %174, %177 : vector<16x128xi1>, vector<16x128xf32>
    %179 = arith.truncf %149 : vector<16x128xf32> to vector<16x128xbf16>
    %c1_46 = arith.constant 1 : index
    %c0_47 = arith.constant 0 : index
    %c0_48 = arith.constant 0 : index
    %180 = vector.load %arg15[%c1_46, %c0_47, %c0_48] : memref<5x16x128xbf16, #tpu.memory_space<vmem>>, vector<1x16x128xbf16>
    %181 = vector.shape_cast %180 : vector<1x16x128xbf16> to vector<16x128xbf16>
    %182 = vector.shape_cast %179 : vector<16x128xbf16> to vector<1x16x128xbf16>
    tpu.vector_store %arg15[%c1_46, %c0_47, %c0_48], %182 {strides = array<i32>} : memref<5x16x128xbf16, #tpu.memory_space<vmem>>, vector<1x16x128xbf16>,
    %183 = arith.truncf %178 : vector<16x128xf32> to vector<16x128xbf16>
    %c3_49 = arith.constant 3 : index
    %c0_50 = arith.constant 0 : index
    %c0_51 = arith.constant 0 : index
    %184 = vector.load %arg16[%c3_49, %c0_50, %c0_51] : memref<5x16x128xbf16, #tpu.memory_space<vmem>>, vector<1x16x128xbf16>
    %185 = vector.shape_cast %184 : vector<1x16x128xbf16> to vector<16x128xbf16>
    %186 = vector.shape_cast %183 : vector<16x128xbf16> to vector<1x16x128xbf16>
    tpu.vector_store %arg16[%c3_49, %c0_50, %c0_51], %186 {strides = array<i32>} : memref<5x16x128xbf16, #tpu.memory_space<vmem>>, vector<1x16x128xbf16>,
    %c2_i32 = arith.constant 2 : i32
    %187 = vector.broadcast %c2_i32 : i32 to vector<16x1xi32>
    %188 = arith.cmpi sgt, %0, %187 : vector<16x1xi32>
    %189 = vector.shape_cast %188 : vector<16x1xi1> to vector<16x1xi1>
    %190 = vector.broadcast %189 : vector<16x1xi1> to vector<16x128xi1>
    %c2_i32_52 = arith.constant 2 : i32
    %191 = vector.broadcast %c2_i32_52 : i32 to vector<16x1xi32>
    %192 = arith.cmpi sgt, %0, %191 : vector<16x1xi32>
    %193 = vector.shape_cast %192 : vector<16x1xi1> to vector<16x1xi1>
    %194 = vector.broadcast %193 : vector<16x1xi1> to vector<16x128xi1>
    %195 = tpu.concatenate %147, %176 in 1 : vector<16x128xf32>, vector<16x128xf32> -> vector<16x256xf32>
    %196 = arith.truncf %195 : vector<16x256xf32> to vector<16x256xbf16>
    %cst_53 = arith.constant dense<0.000000e+00> : vector<16x1024xf32>
    %197 = tpu.matmul %196, %11, %cst_53 {dimension_numbers = #tpu.dot_dimension_numbers<[1], [0], [0], [1], [0, 0, 1, 1], [], []>} : vector<16x256xbf16>, vector<256x1024xbf16>, vector<16x1024xf32> -> vector<16x1024xf32>
    %198 = vector.extract_strided_slice %197 {offsets = [0, 0], sizes = [16, 512], strides = [1, 1]} : vector<16x1024xf32> to vector<16x512xf32>
    %c2 = arith.constant 2 : index
    %c0_54 = arith.constant 0 : index
    %c0_55 = arith.constant 0 : index
    %199 = vector.load %arg14[%c2, %c0_54, %c0_55] : memref<5x16x1024xbf16, #tpu.memory_space<vmem>>, vector<1x16x512xbf16>
    %200 = vector.shape_cast %199 : vector<1x16x512xbf16> to vector<16x512xbf16>
    %201 = arith.extf %200 : vector<16x512xbf16> to vector<16x512xf32>
    %202 = arith.addf %198, %201 : vector<16x512xf32>
    %203 = vector.extract_strided_slice %197 {offsets = [0, 512], sizes = [16, 512], strides = [1, 1]} : vector<16x1024xf32> to vector<16x512xf32>
    %c2_56 = arith.constant 2 : index
    %c0_57 = arith.constant 0 : index
    %c512_58 = arith.constant 512 : index
    %204 = vector.load %arg14[%c2_56, %c0_57, %c512_58] : memref<5x16x1024xbf16, #tpu.memory_space<vmem>>, vector<1x16x512xbf16>
    %205 = vector.shape_cast %204 : vector<1x16x512xbf16> to vector<16x512xbf16>
    %206 = arith.extf %205 : vector<16x512xbf16> to vector<16x512xf32>
    %207 = arith.addf %203, %206 : vector<16x512xf32>
    %208 = vector.extract_strided_slice %202 {offsets = [0, 0], sizes = [16, 128], strides = [1, 1]} : vector<16x512xf32> to vector<16x128xf32>
    %209 = arith.negf %208 : vector<16x128xf32>
    %210 = math.exp %209 : vector<16x128xf32>
    %cst_59 = arith.constant 1.000000e+00 : f32
    %211 = vector.broadcast %cst_59 : f32 to vector<16x128xf32>
    %212 = arith.addf %211, %210 : vector<16x128xf32>
    %213 = arith.divf %211, %212 : vector<16x128xf32>
    %214 = vector.extract_strided_slice %202 {offsets = [0, 128], sizes = [16, 128], strides = [1, 1]} : vector<16x512xf32> to vector<16x128xf32>
    %215 = arith.negf %214 : vector<16x128xf32>
    %216 = math.exp %215 : vector<16x128xf32>
    %cst_60 = arith.constant 1.000000e+00 : f32
    %217 = vector.broadcast %cst_60 : f32 to vector<16x128xf32>
    %218 = arith.addf %217, %216 : vector<16x128xf32>
    %219 = arith.divf %217, %218 : vector<16x128xf32>
    %220 = vector.extract_strided_slice %202 {offsets = [0, 256], sizes = [16, 128], strides = [1, 1]} : vector<16x512xf32> to vector<16x128xf32>
    %221 = math.tanh %220 : vector<16x128xf32>
    %222 = vector.extract_strided_slice %202 {offsets = [0, 384], sizes = [16, 128], strides = [1, 1]} : vector<16x512xf32> to vector<16x128xf32>
    %223 = arith.negf %222 : vector<16x128xf32>
    %224 = math.exp %223 : vector<16x128xf32>
    %cst_61 = arith.constant 1.000000e+00 : f32
    %225 = vector.broadcast %cst_61 : f32 to vector<16x128xf32>
    %226 = arith.addf %225, %224 : vector<16x128xf32>
    %227 = arith.divf %225, %226 : vector<16x128xf32>
    %228 = arith.mulf %219, %146 : vector<16x128xf32>
    %229 = arith.mulf %213, %221 : vector<16x128xf32>
    %230 = arith.addf %228, %229 : vector<16x128xf32>
    %231 = math.tanh %230 : vector<16x128xf32>
    %232 = arith.mulf %227, %231 : vector<16x128xf32>
    %233 = arith.select %190, %230, %146 : vector<16x128xi1>, vector<16x128xf32>
    %234 = arith.select %190, %232, %147 : vector<16x128xi1>, vector<16x128xf32>
    %cst_62 = arith.constant 0.000000e+00 : f32
    %235 = vector.broadcast %cst_62 : f32 to vector<16x128xf32>
    %236 = arith.select %190, %232, %235 : vector<16x128xi1>, vector<16x128xf32>
    %237 = vector.extract_strided_slice %207 {offsets = [0, 0], sizes = [16, 128], strides = [1, 1]} : vector<16x512xf32> to vector<16x128xf32>
    %238 = arith.negf %237 : vector<16x128xf32>
    %239 = math.exp %238 : vector<16x128xf32>
    %cst_63 = arith.constant 1.000000e+00 : f32
    %240 = vector.broadcast %cst_63 : f32 to vector<16x128xf32>
    %241 = arith.addf %240, %239 : vector<16x128xf32>
    %242 = arith.divf %240, %241 : vector<16x128xf32>
    %243 = vector.extract_strided_slice %207 {offsets = [0, 128], sizes = [16, 128], strides = [1, 1]} : vector<16x512xf32> to vector<16x128xf32>
    %244 = arith.negf %243 : vector<16x128xf32>
    %245 = math.exp %244 : vector<16x128xf32>
    %cst_64 = arith.constant 1.000000e+00 : f32
    %246 = vector.broadcast %cst_64 : f32 to vector<16x128xf32>
    %247 = arith.addf %246, %245 : vector<16x128xf32>
    %248 = arith.divf %246, %247 : vector<16x128xf32>
    %249 = vector.extract_strided_slice %207 {offsets = [0, 256], sizes = [16, 128], strides = [1, 1]} : vector<16x512xf32> to vector<16x128xf32>
    %250 = math.tanh %249 : vector<16x128xf32>
    %251 = vector.extract_strided_slice %207 {offsets = [0, 384], sizes = [16, 128], strides = [1, 1]} : vector<16x512xf32> to vector<16x128xf32>
    %252 = arith.negf %251 : vector<16x128xf32>
    %253 = math.exp %252 : vector<16x128xf32>
    %cst_65 = arith.constant 1.000000e+00 : f32
    %254 = vector.broadcast %cst_65 : f32 to vector<16x128xf32>
    %255 = arith.addf %254, %253 : vector<16x128xf32>
    %256 = arith.divf %254, %255 : vector<16x128xf32>
    %257 = arith.mulf %248, %175 : vector<16x128xf32>
    %258 = arith.mulf %242, %250 : vector<16x128xf32>
    %259 = arith.addf %257, %258 : vector<16x128xf32>
    %260 = math.tanh %259 : vector<16x128xf32>
    %261 = arith.mulf %256, %260 : vector<16x128xf32>
    %262 = arith.select %194, %259, %175 : vector<16x128xi1>, vector<16x128xf32>
    %263 = arith.select %194, %261, %176 : vector<16x128xi1>, vector<16x128xf32>
    %cst_66 = arith.constant 0.000000e+00 : f32
    %264 = vector.broadcast %cst_66 : f32 to vector<16x128xf32>
    %265 = arith.select %194, %261, %264 : vector<16x128xi1>, vector<16x128xf32>
    %266 = arith.truncf %236 : vector<16x128xf32> to vector<16x128xbf16>
    %c2_67 = arith.constant 2 : index
    %c0_68 = arith.constant 0 : index
    %c0_69 = arith.constant 0 : index
    %267 = vector.load %arg15[%c2_67, %c0_68, %c0_69] : memref<5x16x128xbf16, #tpu.memory_space<vmem>>, vector<1x16x128xbf16>
    %268 = vector.shape_cast %267 : vector<1x16x128xbf16> to vector<16x128xbf16>
    %269 = vector.shape_cast %266 : vector<16x128xbf16> to vector<1x16x128xbf16>
    tpu.vector_store %arg15[%c2_67, %c0_68, %c0_69], %269 {strides = array<i32>} : memref<5x16x128xbf16, #tpu.memory_space<vmem>>, vector<1x16x128xbf16>,
    %270 = arith.truncf %265 : vector<16x128xf32> to vector<16x128xbf16>
    %c2_70 = arith.constant 2 : index
    %c0_71 = arith.constant 0 : index
    %c0_72 = arith.constant 0 : index
    %271 = vector.load %arg16[%c2_70, %c0_71, %c0_72] : memref<5x16x128xbf16, #tpu.memory_space<vmem>>, vector<1x16x128xbf16>
    %272 = vector.shape_cast %271 : vector<1x16x128xbf16> to vector<16x128xbf16>
    %273 = vector.shape_cast %270 : vector<16x128xbf16> to vector<1x16x128xbf16>
    tpu.vector_store %arg16[%c2_70, %c0_71, %c0_72], %273 {strides = array<i32>} : memref<5x16x128xbf16, #tpu.memory_space<vmem>>, vector<1x16x128xbf16>,
    %c3_i32_73 = arith.constant 3 : i32
    %274 = vector.broadcast %c3_i32_73 : i32 to vector<16x1xi32>
    %275 = arith.cmpi sgt, %0, %274 : vector<16x1xi32>
    %276 = vector.shape_cast %275 : vector<16x1xi1> to vector<16x1xi1>
    %277 = vector.broadcast %276 : vector<16x1xi1> to vector<16x128xi1>
    %c1_i32_74 = arith.constant 1 : i32
    %278 = vector.broadcast %c1_i32_74 : i32 to vector<16x1xi32>
    %279 = arith.cmpi sgt, %0, %278 : vector<16x1xi32>
    %280 = vector.shape_cast %279 : vector<16x1xi1> to vector<16x1xi1>
    %281 = vector.broadcast %280 : vector<16x1xi1> to vector<16x128xi1>
    %282 = tpu.concatenate %234, %263 in 1 : vector<16x128xf32>, vector<16x128xf32> -> vector<16x256xf32>
    %283 = arith.truncf %282 : vector<16x256xf32> to vector<16x256xbf16>
    %cst_75 = arith.constant dense<0.000000e+00> : vector<16x1024xf32>
    %284 = tpu.matmul %283, %11, %cst_75 {dimension_numbers = #tpu.dot_dimension_numbers<[1], [0], [0], [1], [0, 0, 1, 1], [], []>} : vector<16x256xbf16>, vector<256x1024xbf16>, vector<16x1024xf32> -> vector<16x1024xf32>
    %285 = vector.extract_strided_slice %284 {offsets = [0, 0], sizes = [16, 512], strides = [1, 1]} : vector<16x1024xf32> to vector<16x512xf32>
    %c3_76 = arith.constant 3 : index
    %c0_77 = arith.constant 0 : index
    %c0_78 = arith.constant 0 : index
    %286 = vector.load %arg14[%c3_76, %c0_77, %c0_78] : memref<5x16x1024xbf16, #tpu.memory_space<vmem>>, vector<1x16x512xbf16>
    %287 = vector.shape_cast %286 : vector<1x16x512xbf16> to vector<16x512xbf16>
    %288 = arith.extf %287 : vector<16x512xbf16> to vector<16x512xf32>
    %289 = arith.addf %285, %288 : vector<16x512xf32>
    %290 = vector.extract_strided_slice %284 {offsets = [0, 512], sizes = [16, 512], strides = [1, 1]} : vector<16x1024xf32> to vector<16x512xf32>
    %c1_79 = arith.constant 1 : index
    %c0_80 = arith.constant 0 : index
    %c512_81 = arith.constant 512 : index
    %291 = vector.load %arg14[%c1_79, %c0_80, %c512_81] : memref<5x16x1024xbf16, #tpu.memory_space<vmem>>, vector<1x16x512xbf16>
    %292 = vector.shape_cast %291 : vector<1x16x512xbf16> to vector<16x512xbf16>
    %293 = arith.extf %292 : vector<16x512xbf16> to vector<16x512xf32>
    %294 = arith.addf %290, %293 : vector<16x512xf32>
    %295 = vector.extract_strided_slice %289 {offsets = [0, 0], sizes = [16, 128], strides = [1, 1]} : vector<16x512xf32> to vector<16x128xf32>
    %296 = arith.negf %295 : vector<16x128xf32>
    %297 = math.exp %296 : vector<16x128xf32>
    %cst_82 = arith.constant 1.000000e+00 : f32
    %298 = vector.broadcast %cst_82 : f32 to vector<16x128xf32>
    %299 = arith.addf %298, %297 : vector<16x128xf32>
    %300 = arith.divf %298, %299 : vector<16x128xf32>
    %301 = vector.extract_strided_slice %289 {offsets = [0, 128], sizes = [16, 128], strides = [1, 1]} : vector<16x512xf32> to vector<16x128xf32>
    %302 = arith.negf %301 : vector<16x128xf32>
    %303 = math.exp %302 : vector<16x128xf32>
    %cst_83 = arith.constant 1.000000e+00 : f32
    %304 = vector.broadcast %cst_83 : f32 to vector<16x128xf32>
    %305 = arith.addf %304, %303 : vector<16x128xf32>
    %306 = arith.divf %304, %305 : vector<16x128xf32>
    %307 = vector.extract_strided_slice %289 {offsets = [0, 256], sizes = [16, 128], strides = [1, 1]} : vector<16x512xf32> to vector<16x128xf32>
    %308 = math.tanh %307 : vector<16x128xf32>
    %309 = vector.extract_strided_slice %289 {offsets = [0, 384], sizes = [16, 128], strides = [1, 1]} : vector<16x512xf32> to vector<16x128xf32>
    %310 = arith.negf %309 : vector<16x128xf32>
    %311 = math.exp %310 : vector<16x128xf32>
    %cst_84 = arith.constant 1.000000e+00 : f32
    %312 = vector.broadcast %cst_84 : f32 to vector<16x128xf32>
    %313 = arith.addf %312, %311 : vector<16x128xf32>
    %314 = arith.divf %312, %313 : vector<16x128xf32>
    %315 = arith.mulf %306, %233 : vector<16x128xf32>
    %316 = arith.mulf %300, %308 : vector<16x128xf32>
    %317 = arith.addf %315, %316 : vector<16x128xf32>
    %318 = math.tanh %317 : vector<16x128xf32>
    %319 = arith.mulf %314, %318 : vector<16x128xf32>
    %320 = arith.select %277, %317, %233 : vector<16x128xi1>, vector<16x128xf32>
    %321 = arith.select %277, %319, %234 : vector<16x128xi1>, vector<16x128xf32>
    %cst_85 = arith.constant 0.000000e+00 : f32
    %322 = vector.broadcast %cst_85 : f32 to vector<16x128xf32>
    %323 = arith.select %277, %319, %322 : vector<16x128xi1>, vector<16x128xf32>
    %324 = vector.extract_strided_slice %294 {offsets = [0, 0], sizes = [16, 128], strides = [1, 1]} : vector<16x512xf32> to vector<16x128xf32>
    %325 = arith.negf %324 : vector<16x128xf32>
    %326 = math.exp %325 : vector<16x128xf32>
    %cst_86 = arith.constant 1.000000e+00 : f32
    %327 = vector.broadcast %cst_86 : f32 to vector<16x128xf32>
    %328 = arith.addf %327, %326 : vector<16x128xf32>
    %329 = arith.divf %327, %328 : vector<16x128xf32>
    %330 = vector.extract_strided_slice %294 {offsets = [0, 128], sizes = [16, 128], strides = [1, 1]} : vector<16x512xf32> to vector<16x128xf32>
    %331 = arith.negf %330 : vector<16x128xf32>
    %332 = math.exp %331 : vector<16x128xf32>
    %cst_87 = arith.constant 1.000000e+00 : f32
    %333 = vector.broadcast %cst_87 : f32 to vector<16x128xf32>
    %334 = arith.addf %333, %332 : vector<16x128xf32>
    %335 = arith.divf %333, %334 : vector<16x128xf32>
    %336 = vector.extract_strided_slice %294 {offsets = [0, 256], sizes = [16, 128], strides = [1, 1]} : vector<16x512xf32> to vector<16x128xf32>
    %337 = math.tanh %336 : vector<16x128xf32>
    %338 = vector.extract_strided_slice %294 {offsets = [0, 384], sizes = [16, 128], strides = [1, 1]} : vector<16x512xf32> to vector<16x128xf32>
    %339 = arith.negf %338 : vector<16x128xf32>
    %340 = math.exp %339 : vector<16x128xf32>
    %cst_88 = arith.constant 1.000000e+00 : f32
    %341 = vector.broadcast %cst_88 : f32 to vector<16x128xf32>
    %342 = arith.addf %341, %340 : vector<16x128xf32>
    %343 = arith.divf %341, %342 : vector<16x128xf32>
    %344 = arith.mulf %335, %262 : vector<16x128xf32>
    %345 = arith.mulf %329, %337 : vector<16x128xf32>
    %346 = arith.addf %344, %345 : vector<16x128xf32>
    %347 = math.tanh %346 : vector<16x128xf32>
    %348 = arith.mulf %343, %347 : vector<16x128xf32>
    %349 = arith.select %281, %346, %262 : vector<16x128xi1>, vector<16x128xf32>
    %350 = arith.select %281, %348, %263 : vector<16x128xi1>, vector<16x128xf32>
    %cst_89 = arith.constant 0.000000e+00 : f32
    %351 = vector.broadcast %cst_89 : f32 to vector<16x128xf32>
    %352 = arith.select %281, %348, %351 : vector<16x128xi1>, vector<16x128xf32>
    %353 = arith.truncf %323 : vector<16x128xf32> to vector<16x128xbf16>
    %c3_90 = arith.constant 3 : index
    %c0_91 = arith.constant 0 : index
    %c0_92 = arith.constant 0 : index
    %354 = vector.load %arg15[%c3_90, %c0_91, %c0_92] : memref<5x16x128xbf16, #tpu.memory_space<vmem>>, vector<1x16x128xbf16>
    %355 = vector.shape_cast %354 : vector<1x16x128xbf16> to vector<16x128xbf16>
    %356 = vector.shape_cast %353 : vector<16x128xbf16> to vector<1x16x128xbf16>
    tpu.vector_store %arg15[%c3_90, %c0_91, %c0_92], %356 {strides = array<i32>} : memref<5x16x128xbf16, #tpu.memory_space<vmem>>, vector<1x16x128xbf16>,
    %357 = arith.truncf %352 : vector<16x128xf32> to vector<16x128xbf16>
    %c1_93 = arith.constant 1 : index
    %c0_94 = arith.constant 0 : index
    %c0_95 = arith.constant 0 : index
    %358 = vector.load %arg16[%c1_93, %c0_94, %c0_95] : memref<5x16x128xbf16, #tpu.memory_space<vmem>>, vector<1x16x128xbf16>
    %359 = vector.shape_cast %358 : vector<1x16x128xbf16> to vector<16x128xbf16>
    %360 = vector.shape_cast %357 : vector<16x128xbf16> to vector<1x16x128xbf16>
    tpu.vector_store %arg16[%c1_93, %c0_94, %c0_95], %360 {strides = array<i32>} : memref<5x16x128xbf16, #tpu.memory_space<vmem>>, vector<1x16x128xbf16>,
    %c4_i32_96 = arith.constant 4 : i32
    %361 = vector.broadcast %c4_i32_96 : i32 to vector<16x1xi32>
    %362 = arith.cmpi sgt, %0, %361 : vector<16x1xi32>
    %363 = vector.shape_cast %362 : vector<16x1xi1> to vector<16x1xi1>
    %364 = vector.broadcast %363 : vector<16x1xi1> to vector<16x128xi1>
    %c0_i32_97 = arith.constant 0 : i32
    %365 = vector.broadcast %c0_i32_97 : i32 to vector<16x1xi32>
    %366 = arith.cmpi sgt, %0, %365 : vector<16x1xi32>
    %367 = vector.shape_cast %366 : vector<16x1xi1> to vector<16x1xi1>
    %368 = vector.broadcast %367 : vector<16x1xi1> to vector<16x128xi1>
    %369 = tpu.concatenate %321, %350 in 1 : vector<16x128xf32>, vector<16x128xf32> -> vector<16x256xf32>
    %370 = arith.truncf %369 : vector<16x256xf32> to vector<16x256xbf16>
    %cst_98 = arith.constant dense<0.000000e+00> : vector<16x1024xf32>
    %371 = tpu.matmul %370, %11, %cst_98 {dimension_numbers = #tpu.dot_dimension_numbers<[1], [0], [0], [1], [0, 0, 1, 1], [], []>} : vector<16x256xbf16>, vector<256x1024xbf16>, vector<16x1024xf32> -> vector<16x1024xf32>
    %372 = vector.extract_strided_slice %371 {offsets = [0, 0], sizes = [16, 512], strides = [1, 1]} : vector<16x1024xf32> to vector<16x512xf32>
    %c4_99 = arith.constant 4 : index
    %c0_100 = arith.constant 0 : index
    %c0_101 = arith.constant 0 : index
    %373 = vector.load %arg14[%c4_99, %c0_100, %c0_101] : memref<5x16x1024xbf16, #tpu.memory_space<vmem>>, vector<1x16x512xbf16>
    %374 = vector.shape_cast %373 : vector<1x16x512xbf16> to vector<16x512xbf16>
    %375 = arith.extf %374 : vector<16x512xbf16> to vector<16x512xf32>
    %376 = arith.addf %372, %375 : vector<16x512xf32>
    %377 = vector.extract_strided_slice %371 {offsets = [0, 512], sizes = [16, 512], strides = [1, 1]} : vector<16x1024xf32> to vector<16x512xf32>
    %c0_102 = arith.constant 0 : index
    %c0_103 = arith.constant 0 : index
    %c512_104 = arith.constant 512 : index
    %378 = vector.load %arg14[%c0_102, %c0_103, %c512_104] : memref<5x16x1024xbf16, #tpu.memory_space<vmem>>, vector<1x16x512xbf16>
    %379 = vector.shape_cast %378 : vector<1x16x512xbf16> to vector<16x512xbf16>
    %380 = arith.extf %379 : vector<16x512xbf16> to vector<16x512xf32>
    %381 = arith.addf %377, %380 : vector<16x512xf32>
    %382 = vector.extract_strided_slice %376 {offsets = [0, 0], sizes = [16, 128], strides = [1, 1]} : vector<16x512xf32> to vector<16x128xf32>
    %383 = arith.negf %382 : vector<16x128xf32>
    %384 = math.exp %383 : vector<16x128xf32>
    %cst_105 = arith.constant 1.000000e+00 : f32
    %385 = vector.broadcast %cst_105 : f32 to vector<16x128xf32>
    %386 = arith.addf %385, %384 : vector<16x128xf32>
    %387 = arith.divf %385, %386 : vector<16x128xf32>
    %388 = vector.extract_strided_slice %376 {offsets = [0, 128], sizes = [16, 128], strides = [1, 1]} : vector<16x512xf32> to vector<16x128xf32>
    %389 = arith.negf %388 : vector<16x128xf32>
    %390 = math.exp %389 : vector<16x128xf32>
    %cst_106 = arith.constant 1.000000e+00 : f32
    %391 = vector.broadcast %cst_106 : f32 to vector<16x128xf32>
    %392 = arith.addf %391, %390 : vector<16x128xf32>
    %393 = arith.divf %391, %392 : vector<16x128xf32>
    %394 = vector.extract_strided_slice %376 {offsets = [0, 256], sizes = [16, 128], strides = [1, 1]} : vector<16x512xf32> to vector<16x128xf32>
    %395 = math.tanh %394 : vector<16x128xf32>
    %396 = vector.extract_strided_slice %376 {offsets = [0, 384], sizes = [16, 128], strides = [1, 1]} : vector<16x512xf32> to vector<16x128xf32>
    %397 = arith.negf %396 : vector<16x128xf32>
    %398 = math.exp %397 : vector<16x128xf32>
    %cst_107 = arith.constant 1.000000e+00 : f32
    %399 = vector.broadcast %cst_107 : f32 to vector<16x128xf32>
    %400 = arith.addf %399, %398 : vector<16x128xf32>
    %401 = arith.divf %399, %400 : vector<16x128xf32>
    %402 = arith.mulf %393, %320 : vector<16x128xf32>
    %403 = arith.mulf %387, %395 : vector<16x128xf32>
    %404 = arith.addf %402, %403 : vector<16x128xf32>
    %405 = math.tanh %404 : vector<16x128xf32>
    %406 = arith.mulf %401, %405 : vector<16x128xf32>
    %cst_108 = arith.constant 0.000000e+00 : f32
    %407 = vector.broadcast %cst_108 : f32 to vector<16x128xf32>
    %408 = arith.select %364, %406, %407 : vector<16x128xi1>, vector<16x128xf32>
    %409 = vector.extract_strided_slice %381 {offsets = [0, 0], sizes = [16, 128], strides = [1, 1]} : vector<16x512xf32> to vector<16x128xf32>
    %410 = arith.negf %409 : vector<16x128xf32>
    %411 = math.exp %410 : vector<16x128xf32>
    %cst_109 = arith.constant 1.000000e+00 : f32
    %412 = vector.broadcast %cst_109 : f32 to vector<16x128xf32>
    %413 = arith.addf %412, %411 : vector<16x128xf32>
    %414 = arith.divf %412, %413 : vector<16x128xf32>
    %415 = vector.extract_strided_slice %381 {offsets = [0, 128], sizes = [16, 128], strides = [1, 1]} : vector<16x512xf32> to vector<16x128xf32>
    %416 = arith.negf %415 : vector<16x128xf32>
    %417 = math.exp %416 : vector<16x128xf32>
    %cst_110 = arith.constant 1.000000e+00 : f32
    %418 = vector.broadcast %cst_110 : f32 to vector<16x128xf32>
    %419 = arith.addf %418, %417 : vector<16x128xf32>
    %420 = arith.divf %418, %419 : vector<16x128xf32>
    %421 = vector.extract_strided_slice %381 {offsets = [0, 256], sizes = [16, 128], strides = [1, 1]} : vector<16x512xf32> to vector<16x128xf32>
    %422 = math.tanh %421 : vector<16x128xf32>
    %423 = vector.extract_strided_slice %381 {offsets = [0, 384], sizes = [16, 128], strides = [1, 1]} : vector<16x512xf32> to vector<16x128xf32>
    %424 = arith.negf %423 : vector<16x128xf32>
    %425 = math.exp %424 : vector<16x128xf32>
    %cst_111 = arith.constant 1.000000e+00 : f32
    %426 = vector.broadcast %cst_111 : f32 to vector<16x128xf32>
    %427 = arith.addf %426, %425 : vector<16x128xf32>
    %428 = arith.divf %426, %427 : vector<16x128xf32>
    %429 = arith.mulf %420, %349 : vector<16x128xf32>
    %430 = arith.mulf %414, %422 : vector<16x128xf32>
    %431 = arith.addf %429, %430 : vector<16x128xf32>
    %432 = math.tanh %431 : vector<16x128xf32>
    %433 = arith.mulf %428, %432 : vector<16x128xf32>
    %cst_112 = arith.constant 0.000000e+00 : f32
    %434 = vector.broadcast %cst_112 : f32 to vector<16x128xf32>
    %435 = arith.select %368, %433, %434 : vector<16x128xi1>, vector<16x128xf32>
    %436 = arith.truncf %408 : vector<16x128xf32> to vector<16x128xbf16>
    %c4_113 = arith.constant 4 : index
    %c0_114 = arith.constant 0 : index
    %c0_115 = arith.constant 0 : index
    %437 = vector.load %arg15[%c4_113, %c0_114, %c0_115] : memref<5x16x128xbf16, #tpu.memory_space<vmem>>, vector<1x16x128xbf16>
    %438 = vector.shape_cast %437 : vector<1x16x128xbf16> to vector<16x128xbf16>
    %439 = vector.shape_cast %436 : vector<16x128xbf16> to vector<1x16x128xbf16>
    tpu.vector_store %arg15[%c4_113, %c0_114, %c0_115], %439 {strides = array<i32>} : memref<5x16x128xbf16, #tpu.memory_space<vmem>>, vector<1x16x128xbf16>,
    %440 = arith.truncf %435 : vector<16x128xf32> to vector<16x128xbf16>
    %c0_116 = arith.constant 0 : index
    %c0_117 = arith.constant 0 : index
    %c0_118 = arith.constant 0 : index
    %441 = vector.load %arg16[%c0_116, %c0_117, %c0_118] : memref<5x16x128xbf16, #tpu.memory_space<vmem>>, vector<1x16x128xbf16>
    %442 = vector.shape_cast %441 : vector<1x16x128xbf16> to vector<16x128xbf16>
    %443 = vector.shape_cast %440 : vector<16x128xbf16> to vector<1x16x128xbf16>
    tpu.vector_store %arg16[%c0_116, %c0_117, %c0_118], %443 {strides = array<i32>} : memref<5x16x128xbf16, #tpu.memory_space<vmem>>, vector<1x16x128xbf16>,
    %c0_119 = arith.constant 0 : index
    %c0_120 = arith.constant 0 : index
    %c0_121 = arith.constant 0 : index
    %444 = vector.load %arg15[%c0_119, %c0_120, %c0_121] : memref<5x16x128xbf16, #tpu.memory_space<vmem>>, vector<5x16x128xbf16>
    %445 = vector.shape_cast %444 : vector<5x16x128xbf16> to vector<80x128xbf16>
    %c0_122 = arith.constant 0 : index
    %c0_123 = arith.constant 0 : index
    %c0_124 = arith.constant 0 : index
    %446 = vector.load %arg16[%c0_122, %c0_123, %c0_124] : memref<5x16x128xbf16, #tpu.memory_space<vmem>>, vector<5x16x128xbf16>
    %447 = vector.shape_cast %446 : vector<5x16x128xbf16> to vector<80x128xbf16>
    %c0_125 = arith.constant 0 : index
    %c0_126 = arith.constant 0 : index
    %448 = vector.load %arg6[%c0_125, %c0_126] : memref<128x1024xbf16, #tpu.memory_space<vmem>>, vector<128x1024xbf16>
    %cst_127 = arith.constant dense<0.000000e+00> : vector<80x1024xf32>
    %449 = tpu.matmul %445, %448, %cst_127 {dimension_numbers = #tpu.dot_dimension_numbers<[1], [0], [0], [1], [0, 0, 1, 1], [], []>} : vector<80x128xbf16>, vector<128x1024xbf16>, vector<80x1024xf32> -> vector<80x1024xf32>
    %c0_128 = arith.constant 0 : index
    %c0_129 = arith.constant 0 : index
    %450 = vector.load %arg7[%c0_128, %c0_129] : memref<128x1024xbf16, #tpu.memory_space<vmem>>, vector<128x1024xbf16>
    %cst_130 = arith.constant dense<0.000000e+00> : vector<80x1024xf32>
    %451 = tpu.matmul %447, %450, %cst_130 {dimension_numbers = #tpu.dot_dimension_numbers<[1], [0], [0], [1], [0, 0, 1, 1], [], []>} : vector<80x128xbf16>, vector<128x1024xbf16>, vector<80x1024xf32> -> vector<80x1024xf32>
    %452 = arith.addf %449, %451 : vector<80x1024xf32>
    %c0_131 = arith.constant 0 : index
    %c0_132 = arith.constant 0 : index
    %453 = vector.load %arg8[%c0_131, %c0_132] : memref<1x1024xf32, #tpu.memory_space<vmem>>, vector<1x1024xf32>
    %454 = vector.broadcast %453 : vector<1x1024xf32> to vector<80x1024xf32>
    %455 = arith.addf %452, %454 : vector<80x1024xf32>
    %456 = vector.shape_cast %455 : vector<80x1024xf32> to vector<5x16x1024xf32>
    %457 = arith.truncf %456 : vector<5x16x1024xf32> to vector<5x16x1024xbf16>
    %c0_133 = arith.constant 0 : index
    %c0_134 = arith.constant 0 : index
    %c0_135 = arith.constant 0 : index
    %458 = vector.load %arg14[%c0_133, %c0_134, %c0_135] : memref<5x16x1024xbf16, #tpu.memory_space<vmem>>, vector<5x16x1024xbf16>
    tpu.vector_store %arg14[%c0_133, %c0_134, %c0_135], %457 {strides = array<i32>} : memref<5x16x1024xbf16, #tpu.memory_space<vmem>>, vector<5x16x1024xbf16>,
    %c0_136 = arith.constant 0 : index
    %c0_137 = arith.constant 0 : index
    %459 = vector.load %arg9[%c0_136, %c0_137] : memref<256x1024xbf16, #tpu.memory_space<vmem>>, vector<256x1024xbf16>
    %cst_138 = arith.constant 0.000000e+00 : f32
    %460 = vector.broadcast %cst_138 : f32 to vector<16x128xf32>
    %c0_i32_139 = arith.constant 0 : i32
    %461 = vector.broadcast %c0_i32_139 : i32 to vector<16x1xi32>
    %462 = arith.cmpi sgt, %0, %461 : vector<16x1xi32>
    %463 = vector.shape_cast %462 : vector<16x1xi1> to vector<16x1xi1>
    %464 = vector.broadcast %463 : vector<16x1xi1> to vector<16x128xi1>
    %c4_i32_140 = arith.constant 4 : i32
    %465 = vector.broadcast %c4_i32_140 : i32 to vector<16x1xi32>
    %466 = arith.cmpi sgt, %0, %465 : vector<16x1xi32>
    %467 = vector.shape_cast %466 : vector<16x1xi1> to vector<16x1xi1>
    %468 = vector.broadcast %467 : vector<16x1xi1> to vector<16x128xi1>
    %469 = tpu.concatenate %460, %460 in 1 : vector<16x128xf32>, vector<16x128xf32> -> vector<16x256xf32>
    %470 = arith.truncf %469 : vector<16x256xf32> to vector<16x256xbf16>
    %cst_141 = arith.constant dense<0.000000e+00> : vector<16x1024xf32>
    %471 = tpu.matmul %470, %459, %cst_141 {dimension_numbers = #tpu.dot_dimension_numbers<[1], [0], [0], [1], [0, 0, 1, 1], [], []>} : vector<16x256xbf16>, vector<256x1024xbf16>, vector<16x1024xf32> -> vector<16x1024xf32>
    %472 = vector.extract_strided_slice %471 {offsets = [0, 0], sizes = [16, 512], strides = [1, 1]} : vector<16x1024xf32> to vector<16x512xf32>
    %c0_142 = arith.constant 0 : index
    %c0_143 = arith.constant 0 : index
    %c0_144 = arith.constant 0 : index
    %473 = vector.load %arg14[%c0_142, %c0_143, %c0_144] : memref<5x16x1024xbf16, #tpu.memory_space<vmem>>, vector<1x16x512xbf16>
    %474 = vector.shape_cast %473 : vector<1x16x512xbf16> to vector<16x512xbf16>
    %475 = arith.extf %474 : vector<16x512xbf16> to vector<16x512xf32>
    %476 = arith.addf %472, %475 : vector<16x512xf32>
    %477 = vector.extract_strided_slice %471 {offsets = [0, 512], sizes = [16, 512], strides = [1, 1]} : vector<16x1024xf32> to vector<16x512xf32>
    %c4_145 = arith.constant 4 : index
    %c0_146 = arith.constant 0 : index
    %c512_147 = arith.constant 512 : index
    %478 = vector.load %arg14[%c4_145, %c0_146, %c512_147] : memref<5x16x1024xbf16, #tpu.memory_space<vmem>>, vector<1x16x512xbf16>
    %479 = vector.shape_cast %478 : vector<1x16x512xbf16> to vector<16x512xbf16>
    %480 = arith.extf %479 : vector<16x512xbf16> to vector<16x512xf32>
    %481 = arith.addf %477, %480 : vector<16x512xf32>
    %482 = vector.extract_strided_slice %476 {offsets = [0, 0], sizes = [16, 128], strides = [1, 1]} : vector<16x512xf32> to vector<16x128xf32>
    %483 = arith.negf %482 : vector<16x128xf32>
    %484 = math.exp %483 : vector<16x128xf32>
    %cst_148 = arith.constant 1.000000e+00 : f32
    %485 = vector.broadcast %cst_148 : f32 to vector<16x128xf32>
    %486 = arith.addf %485, %484 : vector<16x128xf32>
    %487 = arith.divf %485, %486 : vector<16x128xf32>
    %488 = vector.extract_strided_slice %476 {offsets = [0, 128], sizes = [16, 128], strides = [1, 1]} : vector<16x512xf32> to vector<16x128xf32>
    %489 = arith.negf %488 : vector<16x128xf32>
    %490 = math.exp %489 : vector<16x128xf32>
    %cst_149 = arith.constant 1.000000e+00 : f32
    %491 = vector.broadcast %cst_149 : f32 to vector<16x128xf32>
    %492 = arith.addf %491, %490 : vector<16x128xf32>
    %493 = arith.divf %491, %492 : vector<16x128xf32>
    %494 = vector.extract_strided_slice %476 {offsets = [0, 256], sizes = [16, 128], strides = [1, 1]} : vector<16x512xf32> to vector<16x128xf32>
    %495 = math.tanh %494 : vector<16x128xf32>
    %496 = vector.extract_strided_slice %476 {offsets = [0, 384], sizes = [16, 128], strides = [1, 1]} : vector<16x512xf32> to vector<16x128xf32>
    %497 = arith.negf %496 : vector<16x128xf32>
    %498 = math.exp %497 : vector<16x128xf32>
    %cst_150 = arith.constant 1.000000e+00 : f32
    %499 = vector.broadcast %cst_150 : f32 to vector<16x128xf32>
    %500 = arith.addf %499, %498 : vector<16x128xf32>
    %501 = arith.divf %499, %500 : vector<16x128xf32>
    %502 = arith.mulf %493, %460 : vector<16x128xf32>
    %503 = arith.mulf %487, %495 : vector<16x128xf32>
    %504 = arith.addf %502, %503 : vector<16x128xf32>
    %505 = math.tanh %504 : vector<16x128xf32>
    %506 = arith.mulf %501, %505 : vector<16x128xf32>
    %507 = arith.select %464, %504, %460 : vector<16x128xi1>, vector<16x128xf32>
    %508 = arith.select %464, %506, %460 : vector<16x128xi1>, vector<16x128xf32>
    %cst_151 = arith.constant 0.000000e+00 : f32
    %509 = vector.broadcast %cst_151 : f32 to vector<16x128xf32>
    %510 = arith.select %464, %506, %509 : vector<16x128xi1>, vector<16x128xf32>
    %511 = vector.extract_strided_slice %481 {offsets = [0, 0], sizes = [16, 128], strides = [1, 1]} : vector<16x512xf32> to vector<16x128xf32>
    %512 = arith.negf %511 : vector<16x128xf32>
    %513 = math.exp %512 : vector<16x128xf32>
    %cst_152 = arith.constant 1.000000e+00 : f32
    %514 = vector.broadcast %cst_152 : f32 to vector<16x128xf32>
    %515 = arith.addf %514, %513 : vector<16x128xf32>
    %516 = arith.divf %514, %515 : vector<16x128xf32>
    %517 = vector.extract_strided_slice %481 {offsets = [0, 128], sizes = [16, 128], strides = [1, 1]} : vector<16x512xf32> to vector<16x128xf32>
    %518 = arith.negf %517 : vector<16x128xf32>
    %519 = math.exp %518 : vector<16x128xf32>
    %cst_153 = arith.constant 1.000000e+00 : f32
    %520 = vector.broadcast %cst_153 : f32 to vector<16x128xf32>
    %521 = arith.addf %520, %519 : vector<16x128xf32>
    %522 = arith.divf %520, %521 : vector<16x128xf32>
    %523 = vector.extract_strided_slice %481 {offsets = [0, 256], sizes = [16, 128], strides = [1, 1]} : vector<16x512xf32> to vector<16x128xf32>
    %524 = math.tanh %523 : vector<16x128xf32>
    %525 = vector.extract_strided_slice %481 {offsets = [0, 384], sizes = [16, 128], strides = [1, 1]} : vector<16x512xf32> to vector<16x128xf32>
    %526 = arith.negf %525 : vector<16x128xf32>
    %527 = math.exp %526 : vector<16x128xf32>
    %cst_154 = arith.constant 1.000000e+00 : f32
    %528 = vector.broadcast %cst_154 : f32 to vector<16x128xf32>
    %529 = arith.addf %528, %527 : vector<16x128xf32>
    %530 = arith.divf %528, %529 : vector<16x128xf32>
    %531 = arith.mulf %522, %460 : vector<16x128xf32>
    %532 = arith.mulf %516, %524 : vector<16x128xf32>
    %533 = arith.addf %531, %532 : vector<16x128xf32>
    %534 = math.tanh %533 : vector<16x128xf32>
    %535 = arith.mulf %530, %534 : vector<16x128xf32>
    %536 = arith.select %468, %533, %460 : vector<16x128xi1>, vector<16x128xf32>
    %537 = arith.select %468, %535, %460 : vector<16x128xi1>, vector<16x128xf32>
    %cst_155 = arith.constant 0.000000e+00 : f32
    %538 = vector.broadcast %cst_155 : f32 to vector<16x128xf32>
    %539 = arith.select %468, %535, %538 : vector<16x128xi1>, vector<16x128xf32>
    %540 = arith.truncf %510 : vector<16x128xf32> to vector<16x128xbf16>
    %c0_156 = arith.constant 0 : index
    %c0_157 = arith.constant 0 : index
    %c0_158 = arith.constant 0 : index
    %541 = vector.load %arg17[%c0_156, %c0_157, %c0_158] : memref<5x16x128xbf16, #tpu.memory_space<vmem>>, vector<1x16x128xbf16>
    %542 = vector.shape_cast %541 : vector<1x16x128xbf16> to vector<16x128xbf16>
    %543 = vector.shape_cast %540 : vector<16x128xbf16> to vector<1x16x128xbf16>
    tpu.vector_store %arg17[%c0_156, %c0_157, %c0_158], %543 {strides = array<i32>} : memref<5x16x128xbf16, #tpu.memory_space<vmem>>, vector<1x16x128xbf16>,
    %544 = arith.truncf %539 : vector<16x128xf32> to vector<16x128xbf16>
    %c4_159 = arith.constant 4 : index
    %c0_160 = arith.constant 0 : index
    %c0_161 = arith.constant 0 : index
    %545 = vector.load %arg18[%c4_159, %c0_160, %c0_161] : memref<5x16x128xbf16, #tpu.memory_space<vmem>>, vector<1x16x128xbf16>
    %546 = vector.shape_cast %545 : vector<1x16x128xbf16> to vector<16x128xbf16>
    %547 = vector.shape_cast %544 : vector<16x128xbf16> to vector<1x16x128xbf16>
    tpu.vector_store %arg18[%c4_159, %c0_160, %c0_161], %547 {strides = array<i32>} : memref<5x16x128xbf16, #tpu.memory_space<vmem>>, vector<1x16x128xbf16>,
    %c1_i32_162 = arith.constant 1 : i32
    %548 = vector.broadcast %c1_i32_162 : i32 to vector<16x1xi32>
    %549 = arith.cmpi sgt, %0, %548 : vector<16x1xi32>
    %550 = vector.shape_cast %549 : vector<16x1xi1> to vector<16x1xi1>
    %551 = vector.broadcast %550 : vector<16x1xi1> to vector<16x128xi1>
    %c3_i32_163 = arith.constant 3 : i32
    %552 = vector.broadcast %c3_i32_163 : i32 to vector<16x1xi32>
    %553 = arith.cmpi sgt, %0, %552 : vector<16x1xi32>
    %554 = vector.shape_cast %553 : vector<16x1xi1> to vector<16x1xi1>
    %555 = vector.broadcast %554 : vector<16x1xi1> to vector<16x128xi1>
    %556 = tpu.concatenate %508, %537 in 1 : vector<16x128xf32>, vector<16x128xf32> -> vector<16x256xf32>
    %557 = arith.truncf %556 : vector<16x256xf32> to vector<16x256xbf16>
    %cst_164 = arith.constant dense<0.000000e+00> : vector<16x1024xf32>
    %558 = tpu.matmul %557, %459, %cst_164 {dimension_numbers = #tpu.dot_dimension_numbers<[1], [0], [0], [1], [0, 0, 1, 1], [], []>} : vector<16x256xbf16>, vector<256x1024xbf16>, vector<16x1024xf32> -> vector<16x1024xf32>
    %559 = vector.extract_strided_slice %558 {offsets = [0, 0], sizes = [16, 512], strides = [1, 1]} : vector<16x1024xf32> to vector<16x512xf32>
    %c1_165 = arith.constant 1 : index
    %c0_166 = arith.constant 0 : index
    %c0_167 = arith.constant 0 : index
    %560 = vector.load %arg14[%c1_165, %c0_166, %c0_167] : memref<5x16x1024xbf16, #tpu.memory_space<vmem>>, vector<1x16x512xbf16>
    %561 = vector.shape_cast %560 : vector<1x16x512xbf16> to vector<16x512xbf16>
    %562 = arith.extf %561 : vector<16x512xbf16> to vector<16x512xf32>
    %563 = arith.addf %559, %562 : vector<16x512xf32>
    %564 = vector.extract_strided_slice %558 {offsets = [0, 512], sizes = [16, 512], strides = [1, 1]} : vector<16x1024xf32> to vector<16x512xf32>
    %c3_168 = arith.constant 3 : index
    %c0_169 = arith.constant 0 : index
    %c512_170 = arith.constant 512 : index
    %565 = vector.load %arg14[%c3_168, %c0_169, %c512_170] : memref<5x16x1024xbf16, #tpu.memory_space<vmem>>, vector<1x16x512xbf16>
    %566 = vector.shape_cast %565 : vector<1x16x512xbf16> to vector<16x512xbf16>
    %567 = arith.extf %566 : vector<16x512xbf16> to vector<16x512xf32>
    %568 = arith.addf %564, %567 : vector<16x512xf32>
    %569 = vector.extract_strided_slice %563 {offsets = [0, 0], sizes = [16, 128], strides = [1, 1]} : vector<16x512xf32> to vector<16x128xf32>
    %570 = arith.negf %569 : vector<16x128xf32>
    %571 = math.exp %570 : vector<16x128xf32>
    %cst_171 = arith.constant 1.000000e+00 : f32
    %572 = vector.broadcast %cst_171 : f32 to vector<16x128xf32>
    %573 = arith.addf %572, %571 : vector<16x128xf32>
    %574 = arith.divf %572, %573 : vector<16x128xf32>
    %575 = vector.extract_strided_slice %563 {offsets = [0, 128], sizes = [16, 128], strides = [1, 1]} : vector<16x512xf32> to vector<16x128xf32>
    %576 = arith.negf %575 : vector<16x128xf32>
    %577 = math.exp %576 : vector<16x128xf32>
    %cst_172 = arith.constant 1.000000e+00 : f32
    %578 = vector.broadcast %cst_172 : f32 to vector<16x128xf32>
    %579 = arith.addf %578, %577 : vector<16x128xf32>
    %580 = arith.divf %578, %579 : vector<16x128xf32>
    %581 = vector.extract_strided_slice %563 {offsets = [0, 256], sizes = [16, 128], strides = [1, 1]} : vector<16x512xf32> to vector<16x128xf32>
    %582 = math.tanh %581 : vector<16x128xf32>
    %583 = vector.extract_strided_slice %563 {offsets = [0, 384], sizes = [16, 128], strides = [1, 1]} : vector<16x512xf32> to vector<16x128xf32>
    %584 = arith.negf %583 : vector<16x128xf32>
    %585 = math.exp %584 : vector<16x128xf32>
    %cst_173 = arith.constant 1.000000e+00 : f32
    %586 = vector.broadcast %cst_173 : f32 to vector<16x128xf32>
    %587 = arith.addf %586, %585 : vector<16x128xf32>
    %588 = arith.divf %586, %587 : vector<16x128xf32>
    %589 = arith.mulf %580, %507 : vector<16x128xf32>
    %590 = arith.mulf %574, %582 : vector<16x128xf32>
    %591 = arith.addf %589, %590 : vector<16x128xf32>
    %592 = math.tanh %591 : vector<16x128xf32>
    %593 = arith.mulf %588, %592 : vector<16x128xf32>
    %594 = arith.select %551, %591, %507 : vector<16x128xi1>, vector<16x128xf32>
    %595 = arith.select %551, %593, %508 : vector<16x128xi1>, vector<16x128xf32>
    %cst_174 = arith.constant 0.000000e+00 : f32
    %596 = vector.broadcast %cst_174 : f32 to vector<16x128xf32>
    %597 = arith.select %551, %593, %596 : vector<16x128xi1>, vector<16x128xf32>
    %598 = vector.extract_strided_slice %568 {offsets = [0, 0], sizes = [16, 128], strides = [1, 1]} : vector<16x512xf32> to vector<16x128xf32>
    %599 = arith.negf %598 : vector<16x128xf32>
    %600 = math.exp %599 : vector<16x128xf32>
    %cst_175 = arith.constant 1.000000e+00 : f32
    %601 = vector.broadcast %cst_175 : f32 to vector<16x128xf32>
    %602 = arith.addf %601, %600 : vector<16x128xf32>
    %603 = arith.divf %601, %602 : vector<16x128xf32>
    %604 = vector.extract_strided_slice %568 {offsets = [0, 128], sizes = [16, 128], strides = [1, 1]} : vector<16x512xf32> to vector<16x128xf32>
    %605 = arith.negf %604 : vector<16x128xf32>
    %606 = math.exp %605 : vector<16x128xf32>
    %cst_176 = arith.constant 1.000000e+00 : f32
    %607 = vector.broadcast %cst_176 : f32 to vector<16x128xf32>
    %608 = arith.addf %607, %606 : vector<16x128xf32>
    %609 = arith.divf %607, %608 : vector<16x128xf32>
    %610 = vector.extract_strided_slice %568 {offsets = [0, 256], sizes = [16, 128], strides = [1, 1]} : vector<16x512xf32> to vector<16x128xf32>
    %611 = math.tanh %610 : vector<16x128xf32>
    %612 = vector.extract_strided_slice %568 {offsets = [0, 384], sizes = [16, 128], strides = [1, 1]} : vector<16x512xf32> to vector<16x128xf32>
    %613 = arith.negf %612 : vector<16x128xf32>
    %614 = math.exp %613 : vector<16x128xf32>
    %cst_177 = arith.constant 1.000000e+00 : f32
    %615 = vector.broadcast %cst_177 : f32 to vector<16x128xf32>
    %616 = arith.addf %615, %614 : vector<16x128xf32>
    %617 = arith.divf %615, %616 : vector<16x128xf32>
    %618 = arith.mulf %609, %536 : vector<16x128xf32>
    %619 = arith.mulf %603, %611 : vector<16x128xf32>
    %620 = arith.addf %618, %619 : vector<16x128xf32>
    %621 = math.tanh %620 : vector<16x128xf32>
    %622 = arith.mulf %617, %621 : vector<16x128xf32>
    %623 = arith.select %555, %620, %536 : vector<16x128xi1>, vector<16x128xf32>
    %624 = arith.select %555, %622, %537 : vector<16x128xi1>, vector<16x128xf32>
    %cst_178 = arith.constant 0.000000e+00 : f32
    %625 = vector.broadcast %cst_178 : f32 to vector<16x128xf32>
    %626 = arith.select %555, %622, %625 : vector<16x128xi1>, vector<16x128xf32>
    %627 = arith.truncf %597 : vector<16x128xf32> to vector<16x128xbf16>
    %c1_179 = arith.constant 1 : index
    %c0_180 = arith.constant 0 : index
    %c0_181 = arith.constant 0 : index
    %628 = vector.load %arg17[%c1_179, %c0_180, %c0_181] : memref<5x16x128xbf16, #tpu.memory_space<vmem>>, vector<1x16x128xbf16>
    %629 = vector.shape_cast %628 : vector<1x16x128xbf16> to vector<16x128xbf16>
    %630 = vector.shape_cast %627 : vector<16x128xbf16> to vector<1x16x128xbf16>
    tpu.vector_store %arg17[%c1_179, %c0_180, %c0_181], %630 {strides = array<i32>} : memref<5x16x128xbf16, #tpu.memory_space<vmem>>, vector<1x16x128xbf16>,
    %631 = arith.truncf %626 : vector<16x128xf32> to vector<16x128xbf16>
    %c3_182 = arith.constant 3 : index
    %c0_183 = arith.constant 0 : index
    %c0_184 = arith.constant 0 : index
    %632 = vector.load %arg18[%c3_182, %c0_183, %c0_184] : memref<5x16x128xbf16, #tpu.memory_space<vmem>>, vector<1x16x128xbf16>
    %633 = vector.shape_cast %632 : vector<1x16x128xbf16> to vector<16x128xbf16>
    %634 = vector.shape_cast %631 : vector<16x128xbf16> to vector<1x16x128xbf16>
    tpu.vector_store %arg18[%c3_182, %c0_183, %c0_184], %634 {strides = array<i32>} : memref<5x16x128xbf16, #tpu.memory_space<vmem>>, vector<1x16x128xbf16>,
    %c2_i32_185 = arith.constant 2 : i32
    %635 = vector.broadcast %c2_i32_185 : i32 to vector<16x1xi32>
    %636 = arith.cmpi sgt, %0, %635 : vector<16x1xi32>
    %637 = vector.shape_cast %636 : vector<16x1xi1> to vector<16x1xi1>
    %638 = vector.broadcast %637 : vector<16x1xi1> to vector<16x128xi1>
    %c2_i32_186 = arith.constant 2 : i32
    %639 = vector.broadcast %c2_i32_186 : i32 to vector<16x1xi32>
    %640 = arith.cmpi sgt, %0, %639 : vector<16x1xi32>
    %641 = vector.shape_cast %640 : vector<16x1xi1> to vector<16x1xi1>
    %642 = vector.broadcast %641 : vector<16x1xi1> to vector<16x128xi1>
    %643 = tpu.concatenate %595, %624 in 1 : vector<16x128xf32>, vector<16x128xf32> -> vector<16x256xf32>
    %644 = arith.truncf %643 : vector<16x256xf32> to vector<16x256xbf16>
    %cst_187 = arith.constant dense<0.000000e+00> : vector<16x1024xf32>
    %645 = tpu.matmul %644, %459, %cst_187 {dimension_numbers = #tpu.dot_dimension_numbers<[1], [0], [0], [1], [0, 0, 1, 1], [], []>} : vector<16x256xbf16>, vector<256x1024xbf16>, vector<16x1024xf32> -> vector<16x1024xf32>
    %646 = vector.extract_strided_slice %645 {offsets = [0, 0], sizes = [16, 512], strides = [1, 1]} : vector<16x1024xf32> to vector<16x512xf32>
    %c2_188 = arith.constant 2 : index
    %c0_189 = arith.constant 0 : index
    %c0_190 = arith.constant 0 : index
    %647 = vector.load %arg14[%c2_188, %c0_189, %c0_190] : memref<5x16x1024xbf16, #tpu.memory_space<vmem>>, vector<1x16x512xbf16>
    %648 = vector.shape_cast %647 : vector<1x16x512xbf16> to vector<16x512xbf16>
    %649 = arith.extf %648 : vector<16x512xbf16> to vector<16x512xf32>
    %650 = arith.addf %646, %649 : vector<16x512xf32>
    %651 = vector.extract_strided_slice %645 {offsets = [0, 512], sizes = [16, 512], strides = [1, 1]} : vector<16x1024xf32> to vector<16x512xf32>
    %c2_191 = arith.constant 2 : index
    %c0_192 = arith.constant 0 : index
    %c512_193 = arith.constant 512 : index
    %652 = vector.load %arg14[%c2_191, %c0_192, %c512_193] : memref<5x16x1024xbf16, #tpu.memory_space<vmem>>, vector<1x16x512xbf16>
    %653 = vector.shape_cast %652 : vector<1x16x512xbf16> to vector<16x512xbf16>
    %654 = arith.extf %653 : vector<16x512xbf16> to vector<16x512xf32>
    %655 = arith.addf %651, %654 : vector<16x512xf32>
    %656 = vector.extract_strided_slice %650 {offsets = [0, 0], sizes = [16, 128], strides = [1, 1]} : vector<16x512xf32> to vector<16x128xf32>
    %657 = arith.negf %656 : vector<16x128xf32>
    %658 = math.exp %657 : vector<16x128xf32>
    %cst_194 = arith.constant 1.000000e+00 : f32
    %659 = vector.broadcast %cst_194 : f32 to vector<16x128xf32>
    %660 = arith.addf %659, %658 : vector<16x128xf32>
    %661 = arith.divf %659, %660 : vector<16x128xf32>
    %662 = vector.extract_strided_slice %650 {offsets = [0, 128], sizes = [16, 128], strides = [1, 1]} : vector<16x512xf32> to vector<16x128xf32>
    %663 = arith.negf %662 : vector<16x128xf32>
    %664 = math.exp %663 : vector<16x128xf32>
    %cst_195 = arith.constant 1.000000e+00 : f32
    %665 = vector.broadcast %cst_195 : f32 to vector<16x128xf32>
    %666 = arith.addf %665, %664 : vector<16x128xf32>
    %667 = arith.divf %665, %666 : vector<16x128xf32>
    %668 = vector.extract_strided_slice %650 {offsets = [0, 256], sizes = [16, 128], strides = [1, 1]} : vector<16x512xf32> to vector<16x128xf32>
    %669 = math.tanh %668 : vector<16x128xf32>
    %670 = vector.extract_strided_slice %650 {offsets = [0, 384], sizes = [16, 128], strides = [1, 1]} : vector<16x512xf32> to vector<16x128xf32>
    %671 = arith.negf %670 : vector<16x128xf32>
    %672 = math.exp %671 : vector<16x128xf32>
    %cst_196 = arith.constant 1.000000e+00 : f32
    %673 = vector.broadcast %cst_196 : f32 to vector<16x128xf32>
    %674 = arith.addf %673, %672 : vector<16x128xf32>
    %675 = arith.divf %673, %674 : vector<16x128xf32>
    %676 = arith.mulf %667, %594 : vector<16x128xf32>
    %677 = arith.mulf %661, %669 : vector<16x128xf32>
    %678 = arith.addf %676, %677 : vector<16x128xf32>
    %679 = math.tanh %678 : vector<16x128xf32>
    %680 = arith.mulf %675, %679 : vector<16x128xf32>
    %681 = arith.select %638, %678, %594 : vector<16x128xi1>, vector<16x128xf32>
    %682 = arith.select %638, %680, %595 : vector<16x128xi1>, vector<16x128xf32>
    %cst_197 = arith.constant 0.000000e+00 : f32
    %683 = vector.broadcast %cst_197 : f32 to vector<16x128xf32>
    %684 = arith.select %638, %680, %683 : vector<16x128xi1>, vector<16x128xf32>
    %685 = vector.extract_strided_slice %655 {offsets = [0, 0], sizes = [16, 128], strides = [1, 1]} : vector<16x512xf32> to vector<16x128xf32>
    %686 = arith.negf %685 : vector<16x128xf32>
    %687 = math.exp %686 : vector<16x128xf32>
    %cst_198 = arith.constant 1.000000e+00 : f32
    %688 = vector.broadcast %cst_198 : f32 to vector<16x128xf32>
    %689 = arith.addf %688, %687 : vector<16x128xf32>
    %690 = arith.divf %688, %689 : vector<16x128xf32>
    %691 = vector.extract_strided_slice %655 {offsets = [0, 128], sizes = [16, 128], strides = [1, 1]} : vector<16x512xf32> to vector<16x128xf32>
    %692 = arith.negf %691 : vector<16x128xf32>
    %693 = math.exp %692 : vector<16x128xf32>
    %cst_199 = arith.constant 1.000000e+00 : f32
    %694 = vector.broadcast %cst_199 : f32 to vector<16x128xf32>
    %695 = arith.addf %694, %693 : vector<16x128xf32>
    %696 = arith.divf %694, %695 : vector<16x128xf32>
    %697 = vector.extract_strided_slice %655 {offsets = [0, 256], sizes = [16, 128], strides = [1, 1]} : vector<16x512xf32> to vector<16x128xf32>
    %698 = math.tanh %697 : vector<16x128xf32>
    %699 = vector.extract_strided_slice %655 {offsets = [0, 384], sizes = [16, 128], strides = [1, 1]} : vector<16x512xf32> to vector<16x128xf32>
    %700 = arith.negf %699 : vector<16x128xf32>
    %701 = math.exp %700 : vector<16x128xf32>
    %cst_200 = arith.constant 1.000000e+00 : f32
    %702 = vector.broadcast %cst_200 : f32 to vector<16x128xf32>
    %703 = arith.addf %702, %701 : vector<16x128xf32>
    %704 = arith.divf %702, %703 : vector<16x128xf32>
    %705 = arith.mulf %696, %623 : vector<16x128xf32>
    %706 = arith.mulf %690, %698 : vector<16x128xf32>
    %707 = arith.addf %705, %706 : vector<16x128xf32>
    %708 = math.tanh %707 : vector<16x128xf32>
    %709 = arith.mulf %704, %708 : vector<16x128xf32>
    %710 = arith.select %642, %707, %623 : vector<16x128xi1>, vector<16x128xf32>
    %711 = arith.select %642, %709, %624 : vector<16x128xi1>, vector<16x128xf32>
    %cst_201 = arith.constant 0.000000e+00 : f32
    %712 = vector.broadcast %cst_201 : f32 to vector<16x128xf32>
    %713 = arith.select %642, %709, %712 : vector<16x128xi1>, vector<16x128xf32>
    %714 = arith.truncf %684 : vector<16x128xf32> to vector<16x128xbf16>
    %c2_202 = arith.constant 2 : index
    %c0_203 = arith.constant 0 : index
    %c0_204 = arith.constant 0 : index
    %715 = vector.load %arg17[%c2_202, %c0_203, %c0_204] : memref<5x16x128xbf16, #tpu.memory_space<vmem>>, vector<1x16x128xbf16>
    %716 = vector.shape_cast %715 : vector<1x16x128xbf16> to vector<16x128xbf16>
    %717 = vector.shape_cast %714 : vector<16x128xbf16> to vector<1x16x128xbf16>
    tpu.vector_store %arg17[%c2_202, %c0_203, %c0_204], %717 {strides = array<i32>} : memref<5x16x128xbf16, #tpu.memory_space<vmem>>, vector<1x16x128xbf16>,
    %718 = arith.truncf %713 : vector<16x128xf32> to vector<16x128xbf16>
    %c2_205 = arith.constant 2 : index
    %c0_206 = arith.constant 0 : index
    %c0_207 = arith.constant 0 : index
    %719 = vector.load %arg18[%c2_205, %c0_206, %c0_207] : memref<5x16x128xbf16, #tpu.memory_space<vmem>>, vector<1x16x128xbf16>
    %720 = vector.shape_cast %719 : vector<1x16x128xbf16> to vector<16x128xbf16>
    %721 = vector.shape_cast %718 : vector<16x128xbf16> to vector<1x16x128xbf16>
    tpu.vector_store %arg18[%c2_205, %c0_206, %c0_207], %721 {strides = array<i32>} : memref<5x16x128xbf16, #tpu.memory_space<vmem>>, vector<1x16x128xbf16>,
    %c3_i32_208 = arith.constant 3 : i32
    %722 = vector.broadcast %c3_i32_208 : i32 to vector<16x1xi32>
    %723 = arith.cmpi sgt, %0, %722 : vector<16x1xi32>
    %724 = vector.shape_cast %723 : vector<16x1xi1> to vector<16x1xi1>
    %725 = vector.broadcast %724 : vector<16x1xi1> to vector<16x128xi1>
    %c1_i32_209 = arith.constant 1 : i32
    %726 = vector.broadcast %c1_i32_209 : i32 to vector<16x1xi32>
    %727 = arith.cmpi sgt, %0, %726 : vector<16x1xi32>
    %728 = vector.shape_cast %727 : vector<16x1xi1> to vector<16x1xi1>
    %729 = vector.broadcast %728 : vector<16x1xi1> to vector<16x128xi1>
    %730 = tpu.concatenate %682, %711 in 1 : vector<16x128xf32>, vector<16x128xf32> -> vector<16x256xf32>
    %731 = arith.truncf %730 : vector<16x256xf32> to vector<16x256xbf16>
    %cst_210 = arith.constant dense<0.000000e+00> : vector<16x1024xf32>
    %732 = tpu.matmul %731, %459, %cst_210 {dimension_numbers = #tpu.dot_dimension_numbers<[1], [0], [0], [1], [0, 0, 1, 1], [], []>} : vector<16x256xbf16>, vector<256x1024xbf16>, vector<16x1024xf32> -> vector<16x1024xf32>
    %733 = vector.extract_strided_slice %732 {offsets = [0, 0], sizes = [16, 512], strides = [1, 1]} : vector<16x1024xf32> to vector<16x512xf32>
    %c3_211 = arith.constant 3 : index
    %c0_212 = arith.constant 0 : index
    %c0_213 = arith.constant 0 : index
    %734 = vector.load %arg14[%c3_211, %c0_212, %c0_213] : memref<5x16x1024xbf16, #tpu.memory_space<vmem>>, vector<1x16x512xbf16>
    %735 = vector.shape_cast %734 : vector<1x16x512xbf16> to vector<16x512xbf16>
    %736 = arith.extf %735 : vector<16x512xbf16> to vector<16x512xf32>
    %737 = arith.addf %733, %736 : vector<16x512xf32>
    %738 = vector.extract_strided_slice %732 {offsets = [0, 512], sizes = [16, 512], strides = [1, 1]} : vector<16x1024xf32> to vector<16x512xf32>
    %c1_214 = arith.constant 1 : index
    %c0_215 = arith.constant 0 : index
    %c512_216 = arith.constant 512 : index
    %739 = vector.load %arg14[%c1_214, %c0_215, %c512_216] : memref<5x16x1024xbf16, #tpu.memory_space<vmem>>, vector<1x16x512xbf16>
    %740 = vector.shape_cast %739 : vector<1x16x512xbf16> to vector<16x512xbf16>
    %741 = arith.extf %740 : vector<16x512xbf16> to vector<16x512xf32>
    %742 = arith.addf %738, %741 : vector<16x512xf32>
    %743 = vector.extract_strided_slice %737 {offsets = [0, 0], sizes = [16, 128], strides = [1, 1]} : vector<16x512xf32> to vector<16x128xf32>
    %744 = arith.negf %743 : vector<16x128xf32>
    %745 = math.exp %744 : vector<16x128xf32>
    %cst_217 = arith.constant 1.000000e+00 : f32
    %746 = vector.broadcast %cst_217 : f32 to vector<16x128xf32>
    %747 = arith.addf %746, %745 : vector<16x128xf32>
    %748 = arith.divf %746, %747 : vector<16x128xf32>
    %749 = vector.extract_strided_slice %737 {offsets = [0, 128], sizes = [16, 128], strides = [1, 1]} : vector<16x512xf32> to vector<16x128xf32>
    %750 = arith.negf %749 : vector<16x128xf32>
    %751 = math.exp %750 : vector<16x128xf32>
    %cst_218 = arith.constant 1.000000e+00 : f32
    %752 = vector.broadcast %cst_218 : f32 to vector<16x128xf32>
    %753 = arith.addf %752, %751 : vector<16x128xf32>
    %754 = arith.divf %752, %753 : vector<16x128xf32>
    %755 = vector.extract_strided_slice %737 {offsets = [0, 256], sizes = [16, 128], strides = [1, 1]} : vector<16x512xf32> to vector<16x128xf32>
    %756 = math.tanh %755 : vector<16x128xf32>
    %757 = vector.extract_strided_slice %737 {offsets = [0, 384], sizes = [16, 128], strides = [1, 1]} : vector<16x512xf32> to vector<16x128xf32>
    %758 = arith.negf %757 : vector<16x128xf32>
    %759 = math.exp %758 : vector<16x128xf32>
    %cst_219 = arith.constant 1.000000e+00 : f32
    %760 = vector.broadcast %cst_219 : f32 to vector<16x128xf32>
    %761 = arith.addf %760, %759 : vector<16x128xf32>
    %762 = arith.divf %760, %761 : vector<16x128xf32>
    %763 = arith.mulf %754, %681 : vector<16x128xf32>
    %764 = arith.mulf %748, %756 : vector<16x128xf32>
    %765 = arith.addf %763, %764 : vector<16x128xf32>
    %766 = math.tanh %765 : vector<16x128xf32>
    %767 = arith.mulf %762, %766 : vector<16x128xf32>
    %768 = arith.select %725, %765, %681 : vector<16x128xi1>, vector<16x128xf32>
    %769 = arith.select %725, %767, %682 : vector<16x128xi1>, vector<16x128xf32>
    %cst_220 = arith.constant 0.000000e+00 : f32
    %770 = vector.broadcast %cst_220 : f32 to vector<16x128xf32>
    %771 = arith.select %725, %767, %770 : vector<16x128xi1>, vector<16x128xf32>
    %772 = vector.extract_strided_slice %742 {offsets = [0, 0], sizes = [16, 128], strides = [1, 1]} : vector<16x512xf32> to vector<16x128xf32>
    %773 = arith.negf %772 : vector<16x128xf32>
    %774 = math.exp %773 : vector<16x128xf32>
    %cst_221 = arith.constant 1.000000e+00 : f32
    %775 = vector.broadcast %cst_221 : f32 to vector<16x128xf32>
    %776 = arith.addf %775, %774 : vector<16x128xf32>
    %777 = arith.divf %775, %776 : vector<16x128xf32>
    %778 = vector.extract_strided_slice %742 {offsets = [0, 128], sizes = [16, 128], strides = [1, 1]} : vector<16x512xf32> to vector<16x128xf32>
    %779 = arith.negf %778 : vector<16x128xf32>
    %780 = math.exp %779 : vector<16x128xf32>
    %cst_222 = arith.constant 1.000000e+00 : f32
    %781 = vector.broadcast %cst_222 : f32 to vector<16x128xf32>
    %782 = arith.addf %781, %780 : vector<16x128xf32>
    %783 = arith.divf %781, %782 : vector<16x128xf32>
    %784 = vector.extract_strided_slice %742 {offsets = [0, 256], sizes = [16, 128], strides = [1, 1]} : vector<16x512xf32> to vector<16x128xf32>
    %785 = math.tanh %784 : vector<16x128xf32>
    %786 = vector.extract_strided_slice %742 {offsets = [0, 384], sizes = [16, 128], strides = [1, 1]} : vector<16x512xf32> to vector<16x128xf32>
    %787 = arith.negf %786 : vector<16x128xf32>
    %788 = math.exp %787 : vector<16x128xf32>
    %cst_223 = arith.constant 1.000000e+00 : f32
    %789 = vector.broadcast %cst_223 : f32 to vector<16x128xf32>
    %790 = arith.addf %789, %788 : vector<16x128xf32>
    %791 = arith.divf %789, %790 : vector<16x128xf32>
    %792 = arith.mulf %783, %710 : vector<16x128xf32>
    %793 = arith.mulf %777, %785 : vector<16x128xf32>
    %794 = arith.addf %792, %793 : vector<16x128xf32>
    %795 = math.tanh %794 : vector<16x128xf32>
    %796 = arith.mulf %791, %795 : vector<16x128xf32>
    %797 = arith.select %729, %794, %710 : vector<16x128xi1>, vector<16x128xf32>
    %798 = arith.select %729, %796, %711 : vector<16x128xi1>, vector<16x128xf32>
    %cst_224 = arith.constant 0.000000e+00 : f32
    %799 = vector.broadcast %cst_224 : f32 to vector<16x128xf32>
    %800 = arith.select %729, %796, %799 : vector<16x128xi1>, vector<16x128xf32>
    %801 = arith.truncf %771 : vector<16x128xf32> to vector<16x128xbf16>
    %c3_225 = arith.constant 3 : index
    %c0_226 = arith.constant 0 : index
    %c0_227 = arith.constant 0 : index
    %802 = vector.load %arg17[%c3_225, %c0_226, %c0_227] : memref<5x16x128xbf16, #tpu.memory_space<vmem>>, vector<1x16x128xbf16>
    %803 = vector.shape_cast %802 : vector<1x16x128xbf16> to vector<16x128xbf16>
    %804 = vector.shape_cast %801 : vector<16x128xbf16> to vector<1x16x128xbf16>
    tpu.vector_store %arg17[%c3_225, %c0_226, %c0_227], %804 {strides = array<i32>} : memref<5x16x128xbf16, #tpu.memory_space<vmem>>, vector<1x16x128xbf16>,
    %805 = arith.truncf %800 : vector<16x128xf32> to vector<16x128xbf16>
    %c1_228 = arith.constant 1 : index
    %c0_229 = arith.constant 0 : index
    %c0_230 = arith.constant 0 : index
    %806 = vector.load %arg18[%c1_228, %c0_229, %c0_230] : memref<5x16x128xbf16, #tpu.memory_space<vmem>>, vector<1x16x128xbf16>
    %807 = vector.shape_cast %806 : vector<1x16x128xbf16> to vector<16x128xbf16>
    %808 = vector.shape_cast %805 : vector<16x128xbf16> to vector<1x16x128xbf16>
    tpu.vector_store %arg18[%c1_228, %c0_229, %c0_230], %808 {strides = array<i32>} : memref<5x16x128xbf16, #tpu.memory_space<vmem>>, vector<1x16x128xbf16>,
    %c4_i32_231 = arith.constant 4 : i32
    %809 = vector.broadcast %c4_i32_231 : i32 to vector<16x1xi32>
    %810 = arith.cmpi sgt, %0, %809 : vector<16x1xi32>
    %811 = vector.shape_cast %810 : vector<16x1xi1> to vector<16x1xi1>
    %812 = vector.broadcast %811 : vector<16x1xi1> to vector<16x128xi1>
    %c0_i32_232 = arith.constant 0 : i32
    %813 = vector.broadcast %c0_i32_232 : i32 to vector<16x1xi32>
    %814 = arith.cmpi sgt, %0, %813 : vector<16x1xi32>
    %815 = vector.shape_cast %814 : vector<16x1xi1> to vector<16x1xi1>
    %816 = vector.broadcast %815 : vector<16x1xi1> to vector<16x128xi1>
    %817 = tpu.concatenate %769, %798 in 1 : vector<16x128xf32>, vector<16x128xf32> -> vector<16x256xf32>
    %818 = arith.truncf %817 : vector<16x256xf32> to vector<16x256xbf16>
    %cst_233 = arith.constant dense<0.000000e+00> : vector<16x1024xf32>
    %819 = tpu.matmul %818, %459, %cst_233 {dimension_numbers = #tpu.dot_dimension_numbers<[1], [0], [0], [1], [0, 0, 1, 1], [], []>} : vector<16x256xbf16>, vector<256x1024xbf16>, vector<16x1024xf32> -> vector<16x1024xf32>
    %820 = vector.extract_strided_slice %819 {offsets = [0, 0], sizes = [16, 512], strides = [1, 1]} : vector<16x1024xf32> to vector<16x512xf32>
    %c4_234 = arith.constant 4 : index
    %c0_235 = arith.constant 0 : index
    %c0_236 = arith.constant 0 : index
    %821 = vector.load %arg14[%c4_234, %c0_235, %c0_236] : memref<5x16x1024xbf16, #tpu.memory_space<vmem>>, vector<1x16x512xbf16>
    %822 = vector.shape_cast %821 : vector<1x16x512xbf16> to vector<16x512xbf16>
    %823 = arith.extf %822 : vector<16x512xbf16> to vector<16x512xf32>
    %824 = arith.addf %820, %823 : vector<16x512xf32>
    %825 = vector.extract_strided_slice %819 {offsets = [0, 512], sizes = [16, 512], strides = [1, 1]} : vector<16x1024xf32> to vector<16x512xf32>
    %c0_237 = arith.constant 0 : index
    %c0_238 = arith.constant 0 : index
    %c512_239 = arith.constant 512 : index
    %826 = vector.load %arg14[%c0_237, %c0_238, %c512_239] : memref<5x16x1024xbf16, #tpu.memory_space<vmem>>, vector<1x16x512xbf16>
    %827 = vector.shape_cast %826 : vector<1x16x512xbf16> to vector<16x512xbf16>
    %828 = arith.extf %827 : vector<16x512xbf16> to vector<16x512xf32>
    %829 = arith.addf %825, %828 : vector<16x512xf32>
    %830 = vector.extract_strided_slice %824 {offsets = [0, 0], sizes = [16, 128], strides = [1, 1]} : vector<16x512xf32> to vector<16x128xf32>
    %831 = arith.negf %830 : vector<16x128xf32>
    %832 = math.exp %831 : vector<16x128xf32>
    %cst_240 = arith.constant 1.000000e+00 : f32
    %833 = vector.broadcast %cst_240 : f32 to vector<16x128xf32>
    %834 = arith.addf %833, %832 : vector<16x128xf32>
    %835 = arith.divf %833, %834 : vector<16x128xf32>
    %836 = vector.extract_strided_slice %824 {offsets = [0, 128], sizes = [16, 128], strides = [1, 1]} : vector<16x512xf32> to vector<16x128xf32>
    %837 = arith.negf %836 : vector<16x128xf32>
    %838 = math.exp %837 : vector<16x128xf32>
    %cst_241 = arith.constant 1.000000e+00 : f32
    %839 = vector.broadcast %cst_241 : f32 to vector<16x128xf32>
    %840 = arith.addf %839, %838 : vector<16x128xf32>
    %841 = arith.divf %839, %840 : vector<16x128xf32>
    %842 = vector.extract_strided_slice %824 {offsets = [0, 256], sizes = [16, 128], strides = [1, 1]} : vector<16x512xf32> to vector<16x128xf32>
    %843 = math.tanh %842 : vector<16x128xf32>
    %844 = vector.extract_strided_slice %824 {offsets = [0, 384], sizes = [16, 128], strides = [1, 1]} : vector<16x512xf32> to vector<16x128xf32>
    %845 = arith.negf %844 : vector<16x128xf32>
    %846 = math.exp %845 : vector<16x128xf32>
    %cst_242 = arith.constant 1.000000e+00 : f32
    %847 = vector.broadcast %cst_242 : f32 to vector<16x128xf32>
    %848 = arith.addf %847, %846 : vector<16x128xf32>
    %849 = arith.divf %847, %848 : vector<16x128xf32>
    %850 = arith.mulf %841, %768 : vector<16x128xf32>
    %851 = arith.mulf %835, %843 : vector<16x128xf32>
    %852 = arith.addf %850, %851 : vector<16x128xf32>
    %853 = math.tanh %852 : vector<16x128xf32>
    %854 = arith.mulf %849, %853 : vector<16x128xf32>
    %cst_243 = arith.constant 0.000000e+00 : f32
    %855 = vector.broadcast %cst_243 : f32 to vector<16x128xf32>
    %856 = arith.select %812, %854, %855 : vector<16x128xi1>, vector<16x128xf32>
    %857 = vector.extract_strided_slice %829 {offsets = [0, 0], sizes = [16, 128], strides = [1, 1]} : vector<16x512xf32> to vector<16x128xf32>
    %858 = arith.negf %857 : vector<16x128xf32>
    %859 = math.exp %858 : vector<16x128xf32>
    %cst_244 = arith.constant 1.000000e+00 : f32
    %860 = vector.broadcast %cst_244 : f32 to vector<16x128xf32>
    %861 = arith.addf %860, %859 : vector<16x128xf32>
    %862 = arith.divf %860, %861 : vector<16x128xf32>
    %863 = vector.extract_strided_slice %829 {offsets = [0, 128], sizes = [16, 128], strides = [1, 1]} : vector<16x512xf32> to vector<16x128xf32>
    %864 = arith.negf %863 : vector<16x128xf32>
    %865 = math.exp %864 : vector<16x128xf32>
    %cst_245 = arith.constant 1.000000e+00 : f32
    %866 = vector.broadcast %cst_245 : f32 to vector<16x128xf32>
    %867 = arith.addf %866, %865 : vector<16x128xf32>
    %868 = arith.divf %866, %867 : vector<16x128xf32>
    %869 = vector.extract_strided_slice %829 {offsets = [0, 256], sizes = [16, 128], strides = [1, 1]} : vector<16x512xf32> to vector<16x128xf32>
    %870 = math.tanh %869 : vector<16x128xf32>
    %871 = vector.extract_strided_slice %829 {offsets = [0, 384], sizes = [16, 128], strides = [1, 1]} : vector<16x512xf32> to vector<16x128xf32>
    %872 = arith.negf %871 : vector<16x128xf32>
    %873 = math.exp %872 : vector<16x128xf32>
    %cst_246 = arith.constant 1.000000e+00 : f32
    %874 = vector.broadcast %cst_246 : f32 to vector<16x128xf32>
    %875 = arith.addf %874, %873 : vector<16x128xf32>
    %876 = arith.divf %874, %875 : vector<16x128xf32>
    %877 = arith.mulf %868, %797 : vector<16x128xf32>
    %878 = arith.mulf %862, %870 : vector<16x128xf32>
    %879 = arith.addf %877, %878 : vector<16x128xf32>
    %880 = math.tanh %879 : vector<16x128xf32>
    %881 = arith.mulf %876, %880 : vector<16x128xf32>
    %cst_247 = arith.constant 0.000000e+00 : f32
    %882 = vector.broadcast %cst_247 : f32 to vector<16x128xf32>
    %883 = arith.select %816, %881, %882 : vector<16x128xi1>, vector<16x128xf32>
    %884 = arith.truncf %856 : vector<16x128xf32> to vector<16x128xbf16>
    %c4_248 = arith.constant 4 : index
    %c0_249 = arith.constant 0 : index
    %c0_250 = arith.constant 0 : index
    %885 = vector.load %arg17[%c4_248, %c0_249, %c0_250] : memref<5x16x128xbf16, #tpu.memory_space<vmem>>, vector<1x16x128xbf16>
    %886 = vector.shape_cast %885 : vector<1x16x128xbf16> to vector<16x128xbf16>
    %887 = vector.shape_cast %884 : vector<16x128xbf16> to vector<1x16x128xbf16>
    tpu.vector_store %arg17[%c4_248, %c0_249, %c0_250], %887 {strides = array<i32>} : memref<5x16x128xbf16, #tpu.memory_space<vmem>>, vector<1x16x128xbf16>,
    %888 = arith.truncf %883 : vector<16x128xf32> to vector<16x128xbf16>
    %c0_251 = arith.constant 0 : index
    %c0_252 = arith.constant 0 : index
    %c0_253 = arith.constant 0 : index
    %889 = vector.load %arg18[%c0_251, %c0_252, %c0_253] : memref<5x16x128xbf16, #tpu.memory_space<vmem>>, vector<1x16x128xbf16>
    %890 = vector.shape_cast %889 : vector<1x16x128xbf16> to vector<16x128xbf16>
    %891 = vector.shape_cast %888 : vector<16x128xbf16> to vector<1x16x128xbf16>
    tpu.vector_store %arg18[%c0_251, %c0_252, %c0_253], %891 {strides = array<i32>} : memref<5x16x128xbf16, #tpu.memory_space<vmem>>, vector<1x16x128xbf16>,
    %c0_254 = arith.constant 0 : index
    %c0_255 = arith.constant 0 : index
    %c0_256 = arith.constant 0 : index
    %892 = vector.load %arg17[%c0_254, %c0_255, %c0_256] : memref<5x16x128xbf16, #tpu.memory_space<vmem>>, vector<5x16x128xbf16>
    %893 = vector.shape_cast %892 : vector<5x16x128xbf16> to vector<80x128xbf16>
    %c0_257 = arith.constant 0 : index
    %c0_258 = arith.constant 0 : index
    %c0_259 = arith.constant 0 : index
    %894 = vector.load %arg18[%c0_257, %c0_258, %c0_259] : memref<5x16x128xbf16, #tpu.memory_space<vmem>>, vector<5x16x128xbf16>
    %895 = vector.shape_cast %894 : vector<5x16x128xbf16> to vector<80x128xbf16>
    %c0_260 = arith.constant 0 : index
    %c0_261 = arith.constant 0 : index
    %896 = vector.load %arg10[%c0_260, %c0_261] : memref<128x128xbf16, #tpu.memory_space<vmem>>, vector<128x128xbf16>
    %cst_262 = arith.constant dense<0.000000e+00> : vector<80x128xf32>
    %897 = tpu.matmul %893, %896, %cst_262 {dimension_numbers = #tpu.dot_dimension_numbers<[1], [0], [0], [1], [0, 0, 1, 1], [], []>} : vector<80x128xbf16>, vector<128x128xbf16>, vector<80x128xf32> -> vector<80x128xf32>
    %c0_263 = arith.constant 0 : index
    %c0_264 = arith.constant 0 : index
    %898 = vector.load %arg11[%c0_263, %c0_264] : memref<128x128xbf16, #tpu.memory_space<vmem>>, vector<128x128xbf16>
    %cst_265 = arith.constant dense<0.000000e+00> : vector<80x128xf32>
    %899 = tpu.matmul %895, %898, %cst_265 {dimension_numbers = #tpu.dot_dimension_numbers<[1], [0], [0], [1], [0, 0, 1, 1], [], []>} : vector<80x128xbf16>, vector<128x128xbf16>, vector<80x128xf32> -> vector<80x128xf32>
    %900 = arith.addf %897, %899 : vector<80x128xf32>
    %c0_266 = arith.constant 0 : index
    %c0_267 = arith.constant 0 : index
    %901 = vector.load %arg12[%c0_266, %c0_267] : memref<1x128xf32, #tpu.memory_space<vmem>>, vector<1x128xf32>
    %902 = vector.broadcast %901 : vector<1x128xf32> to vector<80x128xf32>
    %903 = arith.addf %900, %902 : vector<80x128xf32>
    %904 = vector.shape_cast %903 : vector<80x128xf32> to vector<5x16x128xf32>
    %c0_268 = arith.constant 0 : index
    %c0_269 = arith.constant 0 : index
    %c0_270 = arith.constant 0 : index
    %905 = vector.load %arg13[%c0_268, %c0_269, %c0_270] : memref<5x16x128xf32, #tpu.memory_space<vmem>>, vector<5x16x128xf32>
    tpu.vector_store %arg13[%c0_268, %c0_269, %c0_270], %904 {strides = array<i32>} : memref<5x16x128xf32, #tpu.memory_space<vmem>>, vector<5x16x128xf32>,
    return
  }
  func.func @transform_0(%arg0: i32) -> (i32, i32, i32) {
    %c0_i32 = arith.constant 0 : i32
    %c0_i32_0 = arith.constant 0 : i32
    %c0_i32_1 = arith.constant 0 : i32
    return %c0_i32, %arg0, %c0_i32_0 : i32, i32, i32
  }
  func.func @transform_1(%arg0: i32) -> (i32, i32) {
    %c0_i32 = arith.constant 0 : i32
    %c0_i32_0 = arith.constant 0 : i32
    return %arg0, %c0_i32 : i32, i32
  }
  func.func @transform_2(%arg0: i32) -> (i32, i32) {
    %c0_i32 = arith.constant 0 : i32
    %c0_i32_0 = arith.constant 0 : i32
    %c0_i32_1 = arith.constant 0 : i32
    return %c0_i32, %c0_i32_0 : i32, i32
  }
  func.func @transform_3(%arg0: i32) -> (i32, i32) {
    %c0_i32 = arith.constant 0 : i32
    %c0_i32_0 = arith.constant 0 : i32
    %c0_i32_1 = arith.constant 0 : i32
    return %c0_i32, %c0_i32_0 : i32, i32
  }
  func.func @transform_4(%arg0: i32) -> (i32, i32) {
    %c0_i32 = arith.constant 0 : i32
    %c0_i32_0 = arith.constant 0 : i32
    %c0_i32_1 = arith.constant 0 : i32
    return %c0_i32, %c0_i32_0 : i32, i32
  }
  func.func @transform_5(%arg0: i32) -> (i32, i32) {
    %c0_i32 = arith.constant 0 : i32
    %c0_i32_0 = arith.constant 0 : i32
    %c0_i32_1 = arith.constant 0 : i32
    return %c0_i32, %c0_i32_0 : i32, i32
  }
  func.func @transform_6(%arg0: i32) -> (i32, i32) {
    %c0_i32 = arith.constant 0 : i32
    %c0_i32_0 = arith.constant 0 : i32
    %c0_i32_1 = arith.constant 0 : i32
    return %c0_i32, %c0_i32_0 : i32, i32
  }
  func.func @transform_7(%arg0: i32) -> (i32, i32) {
    %c0_i32 = arith.constant 0 : i32
    %c0_i32_0 = arith.constant 0 : i32
    %c0_i32_1 = arith.constant 0 : i32
    return %c0_i32, %c0_i32_0 : i32, i32
  }
  func.func @transform_8(%arg0: i32) -> (i32, i32) {
    %c0_i32 = arith.constant 0 : i32
    %c0_i32_0 = arith.constant 0 : i32
    %c0_i32_1 = arith.constant 0 : i32
    return %c0_i32, %c0_i32_0 : i32, i32
  }
  func.func @transform_9(%arg0: i32) -> (i32, i32) {
    %c0_i32 = arith.constant 0 : i32
    %c0_i32_0 = arith.constant 0 : i32
    %c0_i32_1 = arith.constant 0 : i32
    return %c0_i32, %c0_i32_0 : i32, i32
  }
  func.func @transform_10(%arg0: i32) -> (i32, i32) {
    %c0_i32 = arith.constant 0 : i32
    %c0_i32_0 = arith.constant 0 : i32
    %c0_i32_1 = arith.constant 0 : i32
    return %c0_i32, %c0_i32_0 : i32, i32
  }
  func.func @transform_11(%arg0: i32) -> (i32, i32) {
    %c0_i32 = arith.constant 0 : i32
    %c0_i32_0 = arith.constant 0 : i32
    %c0_i32_1 = arith.constant 0 : i32
    return %c0_i32, %c0_i32_0 : i32, i32
  }
  func.func @transform_12(%arg0: i32) -> (i32, i32, i32) {
    %c0_i32 = arith.constant 0 : i32
    %c0_i32_0 = arith.constant 0 : i32
    %c0_i32_1 = arith.constant 0 : i32
    return %c0_i32, %arg0, %c0_i32_0 : i32, i32, i32
  }
}

</mosaic_0001>

<llo_original>
// kernel: tpu_custom_call.1
$region0: #{tpu_custom_call.1}
  #allocation0 [shape = 'u32[]', space=smem, size = 0x4, offset = 0x4, fixed_abs, tag = 'smem constant byte address 0x4 - core index']
  #allocation1 [shape = 'u32[144,128]{1,0:T(1,128)}', space=vmem, size = 0x12000, scoped, tag = 'internal scratch']
  #allocation2 [shape = 'bf16[5,16,1024]{2,1,0:T(16,128)(2,1)}', space=vmem, size = 0x28000, scoped, tag = 'scratch operand']
  #allocation3 [shape = 'bf16[5,16,128]{2,1,0:T(16,128)(2,1)}', space=vmem, size = 0x5000, scoped, tag = 'scratch operand']
  #allocation4 [shape = 'bf16[5,16,128]{2,1,0:T(16,128)(2,1)}', space=vmem, size = 0x5000, scoped, tag = 'scratch operand']
  #allocation5 [shape = 'bf16[5,16,128]{2,1,0:T(16,128)(2,1)}', space=vmem, size = 0x5000, scoped, tag = 'scratch operand']
  #allocation6 [shape = 'bf16[5,16,128]{2,1,0:T(16,128)(2,1)}', space=vmem, size = 0x5000, scoped, tag = 'scratch operand']
  %s0 = inlined_call_operand.hbm [shape: bf16[5,16,64], index: 0, kind: input, shape index: {}]
  %s1 = inlined_call_operand.vmem [shape: s32[16,1], index: 1, kind: input, shape index: {}]
  %s2 = inlined_call_operand.hbm [shape: bf16[64,1024], index: 2, kind: input, shape index: {}]
  %s3 = inlined_call_operand.vmem [shape: f32[1,1024], index: 3, kind: input, shape index: {}]
  %s4 = inlined_call_operand.hbm [shape: bf16[256,1024], index: 4, kind: input, shape index: {}]
  %s5 = inlined_call_operand.hbm [shape: bf16[128,1024], index: 5, kind: input, shape index: {}]
  %s6 = inlined_call_operand.hbm [shape: bf16[128,1024], index: 6, kind: input, shape index: {}]
  %s7 = inlined_call_operand.vmem [shape: f32[1,1024], index: 7, kind: input, shape index: {}]
  %s8 = inlined_call_operand.hbm [shape: bf16[256,1024], index: 8, kind: input, shape index: {}]
  %s9 = inlined_call_operand.hbm [shape: bf16[128,128], index: 9, kind: input, shape index: {}]
  %s10 = inlined_call_operand.hbm [shape: bf16[128,128], index: 10, kind: input, shape index: {}]
  %s11 = inlined_call_operand.vmem [shape: f32[1,128], index: 11, kind: input, shape index: {}]
  %s12 = inlined_call_operand.hbm [shape: f32[5,16,128], index: 12, kind: output, shape index: {}]
  %s13 = sld [smem:[#allocation0]]
  $region90: #{tpu_custom_call.1} parent=0
    _
  %s15 = ssub.s32 1, %s13
  %s16 = scalar_select 0, %s15, %s13
  $region1: #{tpu_custom_call.1} parent=0
    #allocation7 [shape = 'u8[20480]{0}', space=vmem, size = 0x5000, scoped, tag = 'input window, operand 0, single buffered']
    #allocation8 [shape = 's32[1]{0}', space=sflag, size = 0x4, scoped, tag = 'scoped memory for tpu_custom_call.1']
    #allocation9 [shape = 's32[1]{0}', space=sflag, size = 0x4, scoped, tag = 'scoped memory for tpu_custom_call.1']
    #allocation10 [shape = 'u8[131072]{0}', space=vmem, size = 0x20000, scoped, tag = 'input window, operand 2, single buffered']
    #allocation11 [shape = 's32[1]{0}', space=sflag, size = 0x4, scoped, tag = 'scoped memory for tpu_custom_call.1']
    #allocation12 [shape = 'u8[524288]{0}', space=vmem, size = 0x80000, scoped, tag = 'input window, operand 4, single buffered']
    #allocation13 [shape = 'u8[262144]{0}', space=vmem, size = 0x40000, scoped, tag = 'input window, operand 5, single buffered']
    #allocation14 [shape = 's32[1]{0}', space=sflag, size = 0x4, scoped, tag = 'scoped memory for tpu_custom_call.1']
    #allocation15 [shape = 'u8[262144]{0}', space=vmem, size = 0x40000, scoped, tag = 'input window, operand 6, single buffered']
    #allocation16 [shape = 'u8[524288]{0}', space=vmem, size = 0x80000, scoped, tag = 'input window, operand 8, single buffered']
    #allocation17 [shape = 's32[1]{0}', space=sflag, size = 0x4, scoped, tag = 'scoped memory for tpu_custom_call.1']
    #allocation18 [shape = 'u8[32768]{0}', space=vmem, size = 0x8000, scoped, tag = 'input window, operand 9, single buffered']
    #allocation19 [shape = 'u8[32768]{0}', space=vmem, size = 0x8000, scoped, tag = 'input window, operand 10, single buffered']
    #allocation20 [shape = 's32[1]{0}', space=sflag, size = 0x4, scoped, tag = 'scoped memory for tpu_custom_call.1']
    #allocation21 [shape = 'u8[40960]{0}', space=vmem, size = 0xa000, scoped, tag = 'output window, operand 0, single buffered']
    %17 = vsyncpa [#allocation8], 0
    %18 = vsyncpa [#allocation11], 0
    %19 = vsyncpa [#allocation14], 0
    %20 = vsyncpa [#allocation17], 0
    %21 = vsyncpa [#allocation20], 0
    %22 = vsyncpa [#allocation9], 0
    // Predicated region
    $region2: #{tpu_custom_call.1} parent=1 // pred_check
      _
    $region3: #{tpu_custom_call.1} parent=1 // pred_check_branch
      %24 = sbr.rel (0) target = $region5
    $region4: #{tpu_custom_call.1} parent=1 // pred_region
      %s26 = ssub.s32 640, 640
      %27 = vsyncadd [#allocation8], %s26
      %s28 = sshll.u32 [#allocation7], 4
      %s29 = int_to_ptr.vmem [resolvable:$true] %s28
      %34 = dma.hbm_to_vmem [thread:$0]  %s0, 640, %s29, [#allocation8], 64, 64, 4
    $region5: #{tpu_custom_call.1} parent=1 // pred_fallthru
      _
    // Predicated region
    $region6: #{tpu_custom_call.1} parent=1 // pred_check
      _
    $region7: #{tpu_custom_call.1} parent=1 // pred_check_branch
      %36 = sbr.rel (0) target = $region9
    $region8: #{tpu_custom_call.1} parent=1 // pred_region
      _
    $region9: #{tpu_custom_call.1} parent=1 // pred_fallthru
      _
    // Predicated region
    $region10: #{tpu_custom_call.1} parent=1 // pred_check
      _
    $region11: #{tpu_custom_call.1} parent=1 // pred_check_branch
      %38 = sbr.rel (0) target = $region13
    $region12: #{tpu_custom_call.1} parent=1 // pred_region
      %s40 = ssub.s32 4096, 4096
      %41 = vsyncadd [#allocation11], %s40
      %s42 = sshll.u32 [#allocation10], 4
      %s43 = int_to_ptr.vmem [resolvable:$true] %s42
      %48 = dma.hbm_to_vmem [thread:$0]  %s2, 4096, %s43, [#allocation11], 512, 512, 32
    $region13: #{tpu_custom_call.1} parent=1 // pred_fallthru
      _
    // Predicated region
    $region14: #{tpu_custom_call.1} parent=1 // pred_check
      _
    $region15: #{tpu_custom_call.1} parent=1 // pred_check_branch
      %50 = sbr.rel (0) target = $region17
    $region16: #{tpu_custom_call.1} parent=1 // pred_region
      _
    $region17: #{tpu_custom_call.1} parent=1 // pred_fallthru
      _
    // Predicated region
    $region18: #{tpu_custom_call.1} parent=1 // pred_check
      _
    $region19: #{tpu_custom_call.1} parent=1 // pred_check_branch
      %52 = sbr.rel (0) target = $region21
    $region20: #{tpu_custom_call.1} parent=1 // pred_region
      %s54 = ssub.s32 16384, 16384
      %55 = vsyncadd [#allocation11], %s54
      %s56 = sshll.u32 [#allocation12], 4
      %s57 = int_to_ptr.vmem [resolvable:$true] %s56
      %62 = dma.hbm_to_vmem [thread:$0]  %s4, 16384, %s57, [#allocation11], 512, 512, 32
    $region21: #{tpu_custom_call.1} parent=1 // pred_fallthru
      _
    // Predicated region
    $region22: #{tpu_custom_call.1} parent=1 // pred_check
      _
    $region23: #{tpu_custom_call.1} parent=1 // pred_check_branch
      %64 = sbr.rel (0) target = $region25
    $region24: #{tpu_custom_call.1} parent=1 // pred_region
      %s66 = ssub.s32 8192, 8192
      %67 = vsyncadd [#allocation14], %s66
      %s68 = sshll.u32 [#allocation13], 4
      %s69 = int_to_ptr.vmem [resolvable:$true] %s68
      %74 = dma.hbm_to_vmem [thread:$0]  %s5, 8192, %s69, [#allocation14], 512, 512, 32
    $region25: #{tpu_custom_call.1} parent=1 // pred_fallthru
      _
    // Predicated region
    $region26: #{tpu_custom_call.1} parent=1 // pred_check
      _
    $region27: #{tpu_custom_call.1} parent=1 // pred_check_branch
      %76 = sbr.rel (0) target = $region29
    $region28: #{tpu_custom_call.1} parent=1 // pred_region
      %s78 = ssub.s32 8192, 8192
      %79 = vsyncadd [#allocation14], %s78
      %s80 = sshll.u32 [#allocation15], 4
      %s81 = int_to_ptr.vmem [resolvable:$true] %s80
      %86 = dma.hbm_to_vmem [thread:$0]  %s6, 8192, %s81, [#allocation14], 512, 512, 32
    $region29: #{tpu_custom_call.1} parent=1 // pred_fallthru
      _
    // Predicated region
    $region30: #{tpu_custom_call.1} parent=1 // pred_check
      _
    $region31: #{tpu_custom_call.1} parent=1 // pred_check_branch
      %88 = sbr.rel (0) target = $region33
    $region32: #{tpu_custom_call.1} parent=1 // pred_region
      _
    $region33: #{tpu_custom_call.1} parent=1 // pred_fallthru
      _
    // Predicated region
    $region34: #{tpu_custom_call.1} parent=1 // pred_check
      _
    $region35: #{tpu_custom_call.1} parent=1 // pred_check_branch
      %90 = sbr.rel (0) target = $region37
    $region36: #{tpu_custom_call.1} parent=1 // pred_region
      %s92 = ssub.s32 16384, 16384
      %93 = vsyncadd [#allocation17], %s92
      %s94 = sshll.u32 [#allocation16], 4
      %s95 = int_to_ptr.vmem [resolvable:$true] %s94
      %100 = dma.hbm_to_vmem [thread:$0]  %s8, 16384, %s95, [#allocation17], 512, 512, 32
    $region37: #{tpu_custom_call.1} parent=1 // pred_fallthru
      _
    // Predicated region
    $region38: #{tpu_custom_call.1} parent=1 // pred_check
      _
    $region39: #{tpu_custom_call.1} parent=1 // pred_check_branch
      %102 = sbr.rel (0) target = $region41
    $region40: #{tpu_custom_call.1} parent=1 // pred_region
      %s104 = ssub.s32 1024, 1024
      %105 = vsyncadd [#allocation17], %s104
      %s106 = sshll.u32 [#allocation18], 4
      %s107 = int_to_ptr.vmem [resolvable:$true] %s106
      %112 = dma.hbm_to_vmem [thread:$0]  %s9, 1024, %s107, [#allocation17], 64, 64, 4
    $region41: #{tpu_custom_call.1} parent=1 // pred_fallthru
      _
    // Predicated region
    $region42: #{tpu_custom_call.1} parent=1 // pred_check
      _
    $region43: #{tpu_custom_call.1} parent=1 // pred_check_branch
      %114 = sbr.rel (0) target = $region45
    $region44: #{tpu_custom_call.1} parent=1 // pred_region
      %s116 = ssub.s32 1024, 1024
      %117 = vsyncadd [#allocation20], %s116
      %s118 = sshll.u32 [#allocation19], 4
      %s119 = int_to_ptr.vmem [resolvable:$true] %s118
      %124 = dma.hbm_to_vmem [thread:$0]  %s10, 1024, %s119, [#allocation20], 64, 64, 4
    $region45: #{tpu_custom_call.1} parent=1 // pred_fallthru
      _
    // Predicated region
    $region46: #{tpu_custom_call.1} parent=1 // pred_check
      _
    $region47: #{tpu_custom_call.1} parent=1 // pred_check_branch
      %126 = sbr.rel (0) target = $region49
    $region48: #{tpu_custom_call.1} parent=1 // pred_region
      _
    $region49: #{tpu_custom_call.1} parent=1 // pred_fallthru
      _
    // Predicated region
    $region50: #{tpu_custom_call.1} parent=1 // pred_check
      _
    $region51: #{tpu_custom_call.1} parent=1 // pred_check_branch
      %128 = sbr.rel (0) target = $region53
    $region52: #{tpu_custom_call.1} parent=1 // pred_region
      %129 = dma.done [#allocation8], 640
    $region53: #{tpu_custom_call.1} parent=1 // pred_fallthru
      _
    // Predicated region
    $region54: #{tpu_custom_call.1} parent=1 // pred_check
      _
    $region55: #{tpu_custom_call.1} parent=1 // pred_check_branch
      %131 = sbr.rel (0) target = $region57
    $region56: #{tpu_custom_call.1} parent=1 // pred_region
      %132 = dma.done [#allocation11], 4096
    $region57: #{tpu_custom_call.1} parent=1 // pred_fallthru
      _
    // Predicated region
    $region58: #{tpu_custom_call.1} parent=1 // pred_check
      _
    $region59: #{tpu_custom_call.1} parent=1 // pred_check_branch
      %134 = sbr.rel (0) target = $region61
    $region60: #{tpu_custom_call.1} parent=1 // pred_region
      %135 = dma.done [#allocation11], 16384
    $region61: #{tpu_custom_call.1} parent=1 // pred_fallthru
      _
    // Predicated region
    $region62: #{tpu_custom_call.1} parent=1 // pred_check
      _
    $region63: #{tpu_custom_call.1} parent=1 // pred_check_branch
      %137 = sbr.rel (0) target = $region65
    $region64: #{tpu_custom_call.1} parent=1 // pred_region
      %138 = dma.done [#allocation14], 8192
    $region65: #{tpu_custom_call.1} parent=1 // pred_fallthru
      _
    // Predicated region
    $region66: #{tpu_custom_call.1} parent=1 // pred_check
      _
    $region67: #{tpu_custom_call.1} parent=1 // pred_check_branch
      %140 = sbr.rel (0) target = $region69
    $region68: #{tpu_custom_call.1} parent=1 // pred_region
      %141 = dma.done [#allocation14], 8192
    $region69: #{tpu_custom_call.1} parent=1 // pred_fallthru
      _
    // Predicated region
    $region70: #{tpu_custom_call.1} parent=1 // pred_check
      _
    $region71: #{tpu_custom_call.1} parent=1 // pred_check_branch
      %143 = sbr.rel (0) target = $region73
    $region72: #{tpu_custom_call.1} parent=1 // pred_region
      %144 = dma.done [#allocation17], 16384
    $region73: #{tpu_custom_call.1} parent=1 // pred_fallthru
      _
    // Predicated region
    $region74: #{tpu_custom_call.1} parent=1 // pred_check
      _
    $region75: #{tpu_custom_call.1} parent=1 // pred_check_branch
      %146 = sbr.rel (0) target = $region77
    $region76: #{tpu_custom_call.1} parent=1 // pred_region
      %147 = dma.done [#allocation17], 1024
    $region77: #{tpu_custom_call.1} parent=1 // pred_fallthru
      _
    // Predicated region
    $region78: #{tpu_custom_call.1} parent=1 // pred_check
      _
    $region79: #{tpu_custom_call.1} parent=1 // pred_check_branch
      %149 = sbr.rel (0) target = $region81
    $region80: #{tpu_custom_call.1} parent=1 // pred_region
      %150 = dma.done [#allocation20], 1024
    $region81: #{tpu_custom_call.1} parent=1 // pred_fallthru
      _
    %v152 = vld [vmem:[%s1] sm:$0xff]
    %v153 = vld [vmem:[%s1 + $0x8] sm:$0xff]
    %v154 = vld [vmem:[#allocation7] sm:$0xf]
    %v155 = vld [vmem:[#allocation7 + $0x4] sm:$0xf]
    %v156 = vld [vmem:[#allocation7 + $0x8] sm:$0xf]
    %v157 = vld [vmem:[#allocation7 + $0xc] sm:$0xf]
    %v158 = vld [vmem:[#allocation7 + $0x10] sm:$0xf]
    %v159 = vld [vmem:[#allocation7 + $0x14] sm:$0xf]
    %v160 = vld [vmem:[#allocation7 + $0x18] sm:$0xf]
    %v161 = vld [vmem:[#allocation7 + $0x1c] sm:$0xf]
    %v162 = vld [vmem:[#allocation7 + $0x20] sm:$0xf]
    %v163 = vld [vmem:[#allocation7 + $0x24] sm:$0xf]
    %v164 = vld [vmem:[#allocation10] sm:$0xff]
    %v165 = vld [vmem:[#allocation10 + $0x8] sm:$0xff]
    %v166 = vld [vmem:[#allocation10 + $0x10] sm:$0xff]
    %v167 = vld [vmem:[#allocation10 + $0x18] sm:$0xff]
    %v168 = vld [vmem:[#allocation10 + $0x20] sm:$0xff]
    %v169 = vld [vmem:[#allocation10 + $0x28] sm:$0xff]
    %v170 = vld [vmem:[#allocation10 + $0x30] sm:$0xff]
    %v171 = vld [vmem:[#allocation10 + $0x38] sm:$0xff]
    %v172 = vld [vmem:[#allocation10 + $0x40] sm:$0xff]
    %v173 = vld [vmem:[#allocation10 + $0x48] sm:$0xff]
    %v174 = vld [vmem:[#allocation10 + $0x50] sm:$0xff]
    %v175 = vld [vmem:[#allocation10 + $0x58] sm:$0xff]
    %v176 = vld [vmem:[#allocation10 + $0x60] sm:$0xff]
    %v177 = vld [vmem:[#allocation10 + $0x68] sm:$0xff]
    %v178 = vld [vmem:[#allocation10 + $0x70] sm:$0xff]
    %v179 = vld [vmem:[#allocation10 + $0x78] sm:$0xff]
    %v180 = vld [vmem:[#allocation10 + $0x80] sm:$0xff]
    %v181 = vld [vmem:[#allocation10 + $0x88] sm:$0xff]
    %v182 = vld [vmem:[#allocation10 + $0x90] sm:$0xff]
    %v183 = vld [vmem:[#allocation10 + $0x98] sm:$0xff]
    %v184 = vld [vmem:[#allocation10 + $0xa0] sm:$0xff]
    %v185 = vld [vmem:[#allocation10 + $0xa8] sm:$0xff]
    %v186 = vld [vmem:[#allocation10 + $0xb0] sm:$0xff]
    %v187 = vld [vmem:[#allocation10 + $0xb8] sm:$0xff]
    %v188 = vld [vmem:[#allocation10 + $0xc0] sm:$0xff]
    %v189 = vld [vmem:[#allocation10 + $0xc8] sm:$0xff]
    %v190 = vld [vmem:[#allocation10 + $0xd0] sm:$0xff]
    %v191 = vld [vmem:[#allocation10 + $0xd8] sm:$0xff]
    %v192 = vld [vmem:[#allocation10 + $0xe0] sm:$0xff]
    %v193 = vld [vmem:[#allocation10 + $0xe8] sm:$0xff]
    %v194 = vld [vmem:[#allocation10 + $0xf0] sm:$0xff]
    %v195 = vld [vmem:[#allocation10 + $0xf8] sm:$0xff]
    %v196 = vld [vmem:[%s3] sm:$0xff]
    %v198 = vlaneseq
    %v199 = vshrl.u32 %v198, 7
    %v200 = vsub.s32 0, %v199
    %v201 = vrot.slane %v196, %v200
    %v202 = vlaneseq
    %v203 = vshrl.u32 %v202, 7
    %v204 = vsub.s32 1, %v203
    %v205 = vrot.slane %v196, %v204
    %v206 = vlaneseq
    %v207 = vshrl.u32 %v206, 7
    %v208 = vsub.s32 2, %v207
    %v209 = vrot.slane %v196, %v208
    %v210 = vlaneseq
    %v211 = vshrl.u32 %v210, 7
    %v212 = vsub.s32 3, %v211
    %v213 = vrot.slane %v196, %v212
    %v214 = vlaneseq
    %v215 = vshrl.u32 %v214, 7
    %v216 = vsub.s32 4, %v215
    %v217 = vrot.slane %v196, %v216
    %v218 = vlaneseq
    %v219 = vshrl.u32 %v218, 7
    %v220 = vsub.s32 5, %v219
    %v221 = vrot.slane %v196, %v220
    %v222 = vlaneseq
    %v223 = vshrl.u32 %v222, 7
    %v224 = vsub.s32 6, %v223
    %v225 = vrot.slane %v196, %v224
    %v226 = vlaneseq
    %v227 = vshrl.u32 %v226, 7
    %v228 = vsub.s32 7, %v227
    %v229 = vrot.slane %v196, %v228
    %v248 = vunpack.c.l.b16 %v154
    %v249 = vunpack.c.l.b16 %v155
    %v250 = vunpack.c.l.b16 %v156
    %v251 = vunpack.c.l.b16 %v157
    %v252 = vunpack.c.l.b16 %v158
    %v253 = vunpack.c.l.b16 %v159
    %v254 = vunpack.c.l.b16 %v160
    %v255 = vunpack.c.l.b16 %v161
    %v256 = vunpack.c.l.b16 %v162
    %v257 = vunpack.c.l.b16 %v163
    %v258 = vpack.c.b16 %v249, %v248
    %v259 = vpack.c.b16 %v251, %v250
    %v260 = vpack.c.b16 %v253, %v252
    %v261 = vpack.c.b16 %v255, %v254
    %v262 = vpack.c.b16 %v257, %v256
    %v295 = vunpack.c.l.b16 %v164
    %v296 = vunpack.c.h.b16 %v164
    %v297 = vunpack.c.l.b16 %v165
    %v298 = vunpack.c.h.b16 %v165
    %v299 = vunpack.c.l.b16 %v166
    %v300 = vunpack.c.h.b16 %v166
    %v301 = vunpack.c.l.b16 %v167
    %v302 = vunpack.c.h.b16 %v167
    %v303 = vunpack.c.l.b16 %v168
    %v304 = vunpack.c.h.b16 %v168
    %v305 = vunpack.c.l.b16 %v169
    %v306 = vunpack.c.h.b16 %v169
    %v307 = vunpack.c.l.b16 %v170
    %v308 = vunpack.c.h.b16 %v170
    %v309 = vunpack.c.l.b16 %v171
    %v310 = vunpack.c.h.b16 %v171
    %v311 = vunpack.c.l.b16 %v172
    %v312 = vunpack.c.h.b16 %v172
    %v313 = vunpack.c.l.b16 %v173
    %v314 = vunpack.c.h.b16 %v173
    %v315 = vunpack.c.l.b16 %v174
    %v316 = vunpack.c.h.b16 %v174
    %v317 = vunpack.c.l.b16 %v175
    %v318 = vunpack.c.h.b16 %v175
    %v319 = vunpack.c.l.b16 %v176
    %v320 = vunpack.c.h.b16 %v176
    %v321 = vunpack.c.l.b16 %v177
    %v322 = vunpack.c.h.b16 %v177
    %v323 = vunpack.c.l.b16 %v178
    %v324 = vunpack.c.h.b16 %v178
    %v325 = vunpack.c.l.b16 %v179
    %v326 = vunpack.c.h.b16 %v179
    %v327 = vunpack.c.l.b16 %v180
    %v328 = vunpack.c.h.b16 %v180
    %v329 = vunpack.c.l.b16 %v181
    %v330 = vunpack.c.h.b16 %v181
    %v331 = vunpack.c.l.b16 %v182
    %v332 = vunpack.c.h.b16 %v182
    %v333 = vunpack.c.l.b16 %v183
    %v334 = vunpack.c.h.b16 %v183
    %v335 = vunpack.c.l.b16 %v184
    %v336 = vunpack.c.h.b16 %v184
    %v337 = vunpack.c.l.b16 %v185
    %v338 = vunpack.c.h.b16 %v185
    %v339 = vunpack.c.l.b16 %v186
    %v340 = vunpack.c.h.b16 %v186
    %v341 = vunpack.c.l.b16 %v187
    %v342 = vunpack.c.h.b16 %v187
    %v343 = vunpack.c.l.b16 %v188
    %v344 = vunpack.c.h.b16 %v188
    %v345 = vunpack.c.l.b16 %v189
    %v346 = vunpack.c.h.b16 %v189
    %v347 = vunpack.c.l.b16 %v190
    %v348 = vunpack.c.h.b16 %v190
    %v349 = vunpack.c.l.b16 %v191
    %v350 = vunpack.c.h.b16 %v191
    %v351 = vunpack.c.l.b16 %v192
    %v352 = vunpack.c.h.b16 %v192
    %v353 = vunpack.c.l.b16 %v193
    %v354 = vunpack.c.h.b16 %v193
    %v355 = vunpack.c.l.b16 %v194
    %v356 = vunpack.c.h.b16 %v194
    %v357 = vunpack.c.l.b16 %v195
    %v358 = vunpack.c.h.b16 %v195
    %v359 = vpack.c.b16 %v303, %v295
    %v360 = vpack.c.b16 %v304, %v296
    %v361 = vpack.c.b16 %v305, %v297
    %v362 = vpack.c.b16 %v306, %v298
    %v363 = vpack.c.b16 %v307, %v299
    %v364 = vpack.c.b16 %v308, %v300
    %v365 = vpack.c.b16 %v309, %v301
    %v366 = vpack.c.b16 %v310, %v302
    %v367 = vpack.c.b16 %v319, %v311
    %v368 = vpack.c.b16 %v320, %v312
    %v369 = vpack.c.b16 %v321, %v313
    %v370 = vpack.c.b16 %v322, %v314
    %v371 = vpack.c.b16 %v323, %v315
    %v372 = vpack.c.b16 %v324, %v316
    %v373 = vpack.c.b16 %v325, %v317
    %v374 = vpack.c.b16 %v326, %v318
    %v375 = vpack.c.b16 %v335, %v327
    %v376 = vpack.c.b16 %v336, %v328
    %v377 = vpack.c.b16 %v337, %v329
    %v378 = vpack.c.b16 %v338, %v330
    %v379 = vpack.c.b16 %v339, %v331
    %v380 = vpack.c.b16 %v340, %v332
    %v381 = vpack.c.b16 %v341, %v333
    %v382 = vpack.c.b16 %v342, %v334
    %v383 = vpack.c.b16 %v351, %v343
    %v384 = vpack.c.b16 %v352, %v344
    %v385 = vpack.c.b16 %v353, %v345
    %v386 = vpack.c.b16 %v354, %v346
    %v387 = vpack.c.b16 %v355, %v347
    %v388 = vpack.c.b16 %v356, %v348
    %v389 = vpack.c.b16 %v357, %v349
    %v390 = vpack.c.b16 %v358, %v350
    %vm423 = vcmask 523264
    %v425 = vsel %vm423, %v258, 0
    %v428 = vsel %vm423, %v259, 0
    %v431 = vsel %vm423, %v260, 0
    %v434 = vsel %vm423, %v261, 0
    %v437 = vsel %vm423, %v262, 0
    %439 = vmatprep.subr.bf16.mxu0 %v360
    %440 = vmatpush1.bf16.msra.mxu0 %v359
    %441 = vmatprep.subr.bf16.mxu0 %v368
    %442 = vmatpush1.bf16.msra.mxu0 %v367
    %443 = vmatprep.subr.bf16.mxu0 %v376
    %444 = vmatpush1.bf16.msra.mxu0 %v375
    %445 = vmatprep.subr.bf16.mxu0 %v384
    %446 = vmatpush1.bf16.msra.mxu0 %v383
    %447 = vmatprep.subr.bf16.mxu0 0
    %448 = vmatpush1.bf16.msra.mxu0 0
    %449 = vmatprep.subr.bf16.mxu0 0
    %450 = vmatpush1.bf16.msra.mxu0 0
    %451 = vmatprep.subr.bf16.mxu0 0
    %452 = vmatpush1.bf16.msra.mxu0 0
    %453 = vmatprep.subr.bf16.mxu0 0
    %454 = vmatpush1.bf16.msra.mxu0 0
    %455 = vmatprep.subr.bf16.mxu0 0
    %456 = vmatpush1.bf16.msra.mxu0 0
    %457 = vmatprep.subr.bf16.mxu0 0
    %458 = vmatpush1.bf16.msra.mxu0 0
    %459 = vmatprep.subr.bf16.mxu0 0
    %460 = vmatpush1.bf16.msra.mxu0 0
    %461 = vmatprep.subr.bf16.mxu0 0
    %462 = vmatpush1.bf16.msra.mxu0 0
    %463 = vmatprep.subr.bf16.mxu0 0
    %464 = vmatpush1.bf16.msra.mxu0 0
    %465 = vmatprep.subr.bf16.mxu0 0
    %466 = vmatpush1.bf16.msra.mxu0 0
    %467 = vmatprep.subr.bf16.mxu0 0
    %468 = vmatpush1.bf16.msra.mxu0 0
    %469 = vmatprep.subr.bf16.mxu0 0
    %470 = vmatpush1.bf16.msra.mxu0 0
    %471 = vmatprep.mubr.bf16.mxu0 0
    %472 = vmatmul.mubr.bf16.gmra.mrb[0].mxu0 %v425
    %v473 = vpop.f32.mrb[0].mxu0
    %v474 = vadd.f32 %v201, %v473
    %v475 = vpop.f32.mrb[0].mxu0
    %v476 = vadd.f32 %v205, %v475
    %v477 = vpop.f32.mrb[0].mxu0
    %v478 = vadd.f32 %v201, %v477
    %v479 = vpop.f32.mrb[0].mxu0
    %v480 = vadd.f32 %v205, %v479
    %481 = vmatprep.mubr.bf16.mxu0 0
    %482 = vmatmul.mubr.bf16.gmra.mrb[0].mxu0 %v428
    %v483 = vpop.f32.mrb[0].mxu0
    %v484 = vadd.f32 %v201, %v483
    %v485 = vpop.f32.mrb[0].mxu0
    %v486 = vadd.f32 %v205, %v485
    %v487 = vpop.f32.mrb[0].mxu0
    %v488 = vadd.f32 %v201, %v487
    %v489 = vpop.f32.mrb[0].mxu0
    %v490 = vadd.f32 %v205, %v489
    %491 = vmatprep.mubr.bf16.mxu0 0
    %492 = vmatmul.mubr.bf16.gmra.mrb[0].mxu0 %v431
    %v493 = vpop.f32.mrb[0].mxu0
    %v494 = vadd.f32 %v201, %v493
    %v495 = vpop.f32.mrb[0].mxu0
    %v496 = vadd.f32 %v205, %v495
    %v497 = vpop.f32.mrb[0].mxu0
    %v498 = vadd.f32 %v201, %v497
    %v499 = vpop.f32.mrb[0].mxu0
    %v500 = vadd.f32 %v205, %v499
    %501 = vmatprep.mubr.bf16.mxu0 0
    %502 = vmatmul.mubr.bf16.gmra.mrb[0].mxu0 %v434
    %v503 = vpop.f32.mrb[0].mxu0
    %v504 = vadd.f32 %v201, %v503
    %v505 = vpop.f32.mrb[0].mxu0
    %v506 = vadd.f32 %v205, %v505
    %v507 = vpop.f32.mrb[0].mxu0
    %v508 = vadd.f32 %v201, %v507
    %v509 = vpop.f32.mrb[0].mxu0
    %v510 = vadd.f32 %v205, %v509
    %511 = vmatprep.mubr.bf16.mxu0 0
    %512 = vmatmul.mubr.bf16.gmra.mrb[0].mxu0 %v437
    %v513 = vpop.f32.mrb[0].mxu0
    %v514 = vadd.f32 %v201, %v513
    %v515 = vpop.f32.mrb[0].mxu0
    %v516 = vadd.f32 %v205, %v515
    %v517 = vpop.f32.mrb[0].mxu0
    %v518 = vadd.f32 %v201, %v517
    %v519 = vpop.f32.mrb[0].mxu0
    %v520 = vadd.f32 %v205, %v519
    %521 = vdwg.mxu0
    %522 = vmatprep.subr.bf16.mxu0 %v362
    %523 = vmatpush1.bf16.msra.mxu0 %v361
    %524 = vmatprep.subr.bf16.mxu0 %v370
    %525 = vmatpush1.bf16.msra.mxu0 %v369
    %526 = vmatprep.subr.bf16.mxu0 %v378
    %527 = vmatpush1.bf16.msra.mxu0 %v377
    %528 = vmatprep.subr.bf16.mxu0 %v386
    %529 = vmatpush1.bf16.msra.mxu0 %v385
    %530 = vmatprep.subr.bf16.mxu0 0
    %531 = vmatpush1.bf16.msra.mxu0 0
    %532 = vmatprep.subr.bf16.mxu0 0
    %533 = vmatpush1.bf16.msra.mxu0 0
    %534 = vmatprep.subr.bf16.mxu0 0
    %535 = vmatpush1.bf16.msra.mxu0 0
    %536 = vmatprep.subr.bf16.mxu0 0
    %537 = vmatpush1.bf16.msra.mxu0 0
    %538 = vmatprep.subr.bf16.mxu0 0
    %539 = vmatpush1.bf16.msra.mxu0 0
    %540 = vmatprep.subr.bf16.mxu0 0
    %541 = vmatpush1.bf16.msra.mxu0 0
    %542 = vmatprep.subr.bf16.mxu0 0
    %543 = vmatpush1.bf16.msra.mxu0 0
    %544 = vmatprep.subr.bf16.mxu0 0
    %545 = vmatpush1.bf16.msra.mxu0 0
    %546 = vmatprep.subr.bf16.mxu0 0
    %547 = vmatpush1.bf16.msra.mxu0 0
    %548 = vmatprep.subr.bf16.mxu0 0
    %549 = vmatpush1.bf16.msra.mxu0 0
    %550 = vmatprep.subr.bf16.mxu0 0
    %551 = vmatpush1.bf16.msra.mxu0 0
    %552 = vmatprep.subr.bf16.mxu0 0
    %553 = vmatpush1.bf16.msra.mxu0 0
    %554 = vmatprep.mubr.bf16.mxu0 0
    %555 = vmatmul.mubr.bf16.gmra.mrb[0].mxu0 %v425
    %v556 = vpop.f32.mrb[0].mxu0
    %v557 = vadd.f32 %v209, %v556
    %v558 = vpop.f32.mrb[0].mxu0
    %v559 = vadd.f32 %v213, %v558
    %v560 = vpop.f32.mrb[0].mxu0
    %v561 = vadd.f32 %v209, %v560
    %v562 = vpop.f32.mrb[0].mxu0
    %v563 = vadd.f32 %v213, %v562
    %564 = vmatprep.mubr.bf16.mxu0 0
    %565 = vmatmul.mubr.bf16.gmra.mrb[0].mxu0 %v428
    %v566 = vpop.f32.mrb[0].mxu0
    %v567 = vadd.f32 %v209, %v566
    %v568 = vpop.f32.mrb[0].mxu0
    %v569 = vadd.f32 %v213, %v568
    %v570 = vpop.f32.mrb[0].mxu0
    %v571 = vadd.f32 %v209, %v570
    %v572 = vpop.f32.mrb[0].mxu0
    %v573 = vadd.f32 %v213, %v572
    %574 = vmatprep.mubr.bf16.mxu0 0
    %575 = vmatmul.mubr.bf16.gmra.mrb[0].mxu0 %v431
    %v576 = vpop.f32.mrb[0].mxu0
    %v577 = vadd.f32 %v209, %v576
    %v578 = vpop.f32.mrb[0].mxu0
    %v579 = vadd.f32 %v213, %v578
    %v580 = vpop.f32.mrb[0].mxu0
    %v581 = vadd.f32 %v209, %v580
    %v582 = vpop.f32.mrb[0].mxu0
    %v583 = vadd.f32 %v213, %v582
    %584 = vmatprep.mubr.bf16.mxu0 0
    %585 = vmatmul.mubr.bf16.gmra.mrb[0].mxu0 %v434
    %v586 = vpop.f32.mrb[0].mxu0
    %v587 = vadd.f32 %v209, %v586
    %v588 = vpop.f32.mrb[0].mxu0
    %v589 = vadd.f32 %v213, %v588
    %v590 = vpop.f32.mrb[0].mxu0
    %v591 = vadd.f32 %v209, %v590
    %v592 = vpop.f32.mrb[0].mxu0
    %v593 = vadd.f32 %v213, %v592
    %594 = vmatprep.mubr.bf16.mxu0 0
    %595 = vmatmul.mubr.bf16.gmra.mrb[0].mxu0 %v437
    %v596 = vpop.f32.mrb[0].mxu0
    %v597 = vadd.f32 %v209, %v596
    %v598 = vpop.f32.mrb[0].mxu0
    %v599 = vadd.f32 %v213, %v598
    %v600 = vpop.f32.mrb[0].mxu0
    %v601 = vadd.f32 %v209, %v600
    %v602 = vpop.f32.mrb[0].mxu0
    %v603 = vadd.f32 %v213, %v602
    %604 = vdwg.mxu0
    %605 = vmatprep.subr.bf16.mxu0 %v364
    %606 = vmatpush1.bf16.msra.mxu0 %v363
    %607 = vmatprep.subr.bf16.mxu0 %v372
    %608 = vmatpush1.bf16.msra.mxu0 %v371
    %609 = vmatprep.subr.bf16.mxu0 %v380
    %610 = vmatpush1.bf16.msra.mxu0 %v379
    %611 = vmatprep.subr.bf16.mxu0 %v388
    %612 = vmatpush1.bf16.msra.mxu0 %v387
    %613 = vmatprep.subr.bf16.mxu0 0
    %614 = vmatpush1.bf16.msra.mxu0 0
    %615 = vmatprep.subr.bf16.mxu0 0
    %616 = vmatpush1.bf16.msra.mxu0 0
    %617 = vmatprep.subr.bf16.mxu0 0
    %618 = vmatpush1.bf16.msra.mxu0 0
    %619 = vmatprep.subr.bf16.mxu0 0
    %620 = vmatpush1.bf16.msra.mxu0 0
    %621 = vmatprep.subr.bf16.mxu0 0
    %622 = vmatpush1.bf16.msra.mxu0 0
    %623 = vmatprep.subr.bf16.mxu0 0
    %624 = vmatpush1.bf16.msra.mxu0 0
    %625 = vmatprep.subr.bf16.mxu0 0
    %626 = vmatpush1.bf16.msra.mxu0 0
    %627 = vmatprep.subr.bf16.mxu0 0
    %628 = vmatpush1.bf16.msra.mxu0 0
    %629 = vmatprep.subr.bf16.mxu0 0
    %630 = vmatpush1.bf16.msra.mxu0 0
    %631 = vmatprep.subr.bf16.mxu0 0
    %632 = vmatpush1.bf16.msra.mxu0 0
    %633 = vmatprep.subr.bf16.mxu0 0
    %634 = vmatpush1.bf16.msra.mxu0 0
    %635 = vmatprep.subr.bf16.mxu0 0
    %636 = vmatpush1.bf16.msra.mxu0 0
    %637 = vmatprep.mubr.bf16.mxu0 0
    %638 = vmatmul.mubr.bf16.gmra.mrb[0].mxu0 %v425
    %v639 = vpop.f32.mrb[0].mxu0
    %v640 = vadd.f32 %v217, %v639
    %v641 = vpop.f32.mrb[0].mxu0
    %v642 = vadd.f32 %v221, %v641
    %v643 = vpop.f32.mrb[0].mxu0
    %v644 = vadd.f32 %v217, %v643
    %v645 = vpop.f32.mrb[0].mxu0
    %v646 = vadd.f32 %v221, %v645
    %647 = vmatprep.mubr.bf16.mxu0 0
    %648 = vmatmul.mubr.bf16.gmra.mrb[0].mxu0 %v428
    %v649 = vpop.f32.mrb[0].mxu0
    %v650 = vadd.f32 %v217, %v649
    %v651 = vpop.f32.mrb[0].mxu0
    %v652 = vadd.f32 %v221, %v651
    %v653 = vpop.f32.mrb[0].mxu0
    %v654 = vadd.f32 %v217, %v653
    %v655 = vpop.f32.mrb[0].mxu0
    %v656 = vadd.f32 %v221, %v655
    %657 = vmatprep.mubr.bf16.mxu0 0
    %658 = vmatmul.mubr.bf16.gmra.mrb[0].mxu0 %v431
    %v659 = vpop.f32.mrb[0].mxu0
    %v660 = vadd.f32 %v217, %v659
    %v661 = vpop.f32.mrb[0].mxu0
    %v662 = vadd.f32 %v221, %v661
    %v663 = vpop.f32.mrb[0].mxu0
    %v664 = vadd.f32 %v217, %v663
    %v665 = vpop.f32.mrb[0].mxu0
    %v666 = vadd.f32 %v221, %v665
    %667 = vmatprep.mubr.bf16.mxu0 0
    %668 = vmatmul.mubr.bf16.gmra.mrb[0].mxu0 %v434
    %v669 = vpop.f32.mrb[0].mxu0
    %v670 = vadd.f32 %v217, %v669
    %v671 = vpop.f32.mrb[0].mxu0
    %v672 = vadd.f32 %v221, %v671
    %v673 = vpop.f32.mrb[0].mxu0
    %v674 = vadd.f32 %v217, %v673
    %v675 = vpop.f32.mrb[0].mxu0
    %v676 = vadd.f32 %v221, %v675
    %677 = vmatprep.mubr.bf16.mxu0 0
    %678 = vmatmul.mubr.bf16.gmra.mrb[0].mxu0 %v437
    %v679 = vpop.f32.mrb[0].mxu0
    %v680 = vadd.f32 %v217, %v679
    %v681 = vpop.f32.mrb[0].mxu0
    %v682 = vadd.f32 %v221, %v681
    %v683 = vpop.f32.mrb[0].mxu0
    %v684 = vadd.f32 %v217, %v683
    %v685 = vpop.f32.mrb[0].mxu0
    %v686 = vadd.f32 %v221, %v685
    %687 = vdwg.mxu0
    %688 = vmatprep.subr.bf16.mxu0 %v366
    %689 = vmatpush1.bf16.msra.mxu0 %v365
    %690 = vmatprep.subr.bf16.mxu0 %v374
    %691 = vmatpush1.bf16.msra.mxu0 %v373
    %692 = vmatprep.subr.bf16.mxu0 %v382
    %693 = vmatpush1.bf16.msra.mxu0 %v381
    %694 = vmatprep.subr.bf16.mxu0 %v390
    %695 = vmatpush1.bf16.msra.mxu0 %v389
    %696 = vmatprep.subr.bf16.mxu0 0
    %697 = vmatpush1.bf16.msra.mxu0 0
    %698 = vmatprep.subr.bf16.mxu0 0
    %699 = vmatpush1.bf16.msra.mxu0 0
    %700 = vmatprep.subr.bf16.mxu0 0
    %701 = vmatpush1.bf16.msra.mxu0 0
    %702 = vmatprep.subr.bf16.mxu0 0
    %703 = vmatpush1.bf16.msra.mxu0 0
    %704 = vmatprep.subr.bf16.mxu0 0
    %705 = vmatpush1.bf16.msra.mxu0 0
    %706 = vmatprep.subr.bf16.mxu0 0
    %707 = vmatpush1.bf16.msra.mxu0 0
    %708 = vmatprep.subr.bf16.mxu0 0
    %709 = vmatpush1.bf16.msra.mxu0 0
    %710 = vmatprep.subr.bf16.mxu0 0
    %711 = vmatpush1.bf16.msra.mxu0 0
    %712 = vmatprep.subr.bf16.mxu0 0
    %713 = vmatpush1.bf16.msra.mxu0 0
    %714 = vmatprep.subr.bf16.mxu0 0
    %715 = vmatpush1.bf16.msra.mxu0 0
    %716 = vmatprep.subr.bf16.mxu0 0
    %717 = vmatpush1.bf16.msra.mxu0 0
    %718 = vmatprep.subr.bf16.mxu0 0
    %719 = vmatpush1.bf16.msra.mxu0 0
    %720 = vmatprep.mubr.bf16.mxu0 0
    %721 = vmatmul.mubr.bf16.gmra.mrb[0].mxu0 %v425
    %v722 = vpop.f32.mrb[0].mxu0
    %v723 = vadd.f32 %v225, %v722
    %v724 = vpop.f32.mrb[0].mxu0
    %v725 = vadd.f32 %v229, %v724
    %v726 = vpop.f32.mrb[0].mxu0
    %v727 = vadd.f32 %v225, %v726
    %v728 = vpop.f32.mrb[0].mxu0
    %v729 = vadd.f32 %v229, %v728
    %730 = vmatprep.mubr.bf16.mxu0 0
    %731 = vmatmul.mubr.bf16.gmra.mrb[0].mxu0 %v428
    %v732 = vpop.f32.mrb[0].mxu0
    %v733 = vadd.f32 %v225, %v732
    %v734 = vpop.f32.mrb[0].mxu0
    %v735 = vadd.f32 %v229, %v734
    %v736 = vpop.f32.mrb[0].mxu0
    %v737 = vadd.f32 %v225, %v736
    %v738 = vpop.f32.mrb[0].mxu0
    %v739 = vadd.f32 %v229, %v738
    %740 = vmatprep.mubr.bf16.mxu0 0
    %741 = vmatmul.mubr.bf16.gmra.mrb[0].mxu0 %v431
    %v742 = vpop.f32.mrb[0].mxu0
    %v743 = vadd.f32 %v225, %v742
    %v744 = vpop.f32.mrb[0].mxu0
    %v745 = vadd.f32 %v229, %v744
    %v746 = vpop.f32.mrb[0].mxu0
    %v747 = vadd.f32 %v225, %v746
    %v748 = vpop.f32.mrb[0].mxu0
    %v749 = vadd.f32 %v229, %v748
    %750 = vmatprep.mubr.bf16.mxu0 0
    %751 = vmatmul.mubr.bf16.gmra.mrb[0].mxu0 %v434
    %v752 = vpop.f32.mrb[0].mxu0
    %v753 = vadd.f32 %v225, %v752
    %v754 = vpop.f32.mrb[0].mxu0
    %v755 = vadd.f32 %v229, %v754
    %v756 = vpop.f32.mrb[0].mxu0
    %v757 = vadd.f32 %v225, %v756
    %v758 = vpop.f32.mrb[0].mxu0
    %v759 = vadd.f32 %v229, %v758
    %760 = vmatprep.mubr.bf16.mxu0 0
    %761 = vmatmul.mubr.bf16.gmra.mrb[0].mxu0 %v437
    %v762 = vpop.f32.mrb[0].mxu0
    %v763 = vadd.f32 %v225, %v762
    %v764 = vpop.f32.mrb[0].mxu0
    %v765 = vadd.f32 %v229, %v764
    %v766 = vpop.f32.mrb[0].mxu0
    %v767 = vadd.f32 %v225, %v766
    %v768 = vpop.f32.mrb[0].mxu0
    %v769 = vadd.f32 %v229, %v768
    %770 = vdwg.mxu0
    %v771 = vpack.c.bf16 %v478, %v474
    %v772 = vpack.c.bf16 %v480, %v476
    %v773 = vpack.c.bf16 %v561, %v557
    %v774 = vpack.c.bf16 %v563, %v559
    %v775 = vpack.c.bf16 %v644, %v640
    %v776 = vpack.c.bf16 %v646, %v642
    %v777 = vpack.c.bf16 %v727, %v723
    %v778 = vpack.c.bf16 %v729, %v725
    %v779 = vpack.c.bf16 %v488, %v484
    %v780 = vpack.c.bf16 %v490, %v486
    %v781 = vpack.c.bf16 %v571, %v567
    %v782 = vpack.c.bf16 %v573, %v569
    %v783 = vpack.c.bf16 %v654, %v650
    %v784 = vpack.c.bf16 %v656, %v652
    %v785 = vpack.c.bf16 %v737, %v733
    %v786 = vpack.c.bf16 %v739, %v735
    %v787 = vpack.c.bf16 %v498, %v494
    %v788 = vpack.c.bf16 %v500, %v496
    %v789 = vpack.c.bf16 %v581, %v577
    %v790 = vpack.c.bf16 %v583, %v579
    %v791 = vpack.c.bf16 %v664, %v660
    %v792 = vpack.c.bf16 %v666, %v662
    %v793 = vpack.c.bf16 %v747, %v743
    %v794 = vpack.c.bf16 %v749, %v745
    %v795 = vpack.c.bf16 %v508, %v504
    %v796 = vpack.c.bf16 %v510, %v506
    %v797 = vpack.c.bf16 %v591, %v587
    %v798 = vpack.c.bf16 %v593, %v589
    %v799 = vpack.c.bf16 %v674, %v670
    %v800 = vpack.c.bf16 %v676, %v672
    %v801 = vpack.c.bf16 %v757, %v753
    %v802 = vpack.c.bf16 %v759, %v755
    %v803 = vpack.c.bf16 %v518, %v514
    %v804 = vpack.c.bf16 %v520, %v516
    %v805 = vpack.c.bf16 %v601, %v597
    %v806 = vpack.c.bf16 %v603, %v599
    %v807 = vpack.c.bf16 %v684, %v680
    %v808 = vpack.c.bf16 %v686, %v682
    %v809 = vpack.c.bf16 %v767, %v763
    %v810 = vpack.c.bf16 %v769, %v765
    %811 = vst [vmem:[#allocation2] sm:$0xff] %v771
    %812 = vst [vmem:[#allocation2 + $0x8] sm:$0xff] %v772
    %813 = vst [vmem:[#allocation2 + $0x10] sm:$0xff] %v773
    %814 = vst [vmem:[#allocation2 + $0x18] sm:$0xff] %v774
    %815 = vst [vmem:[#allocation2 + $0x20] sm:$0xff] %v775
    %816 = vst [vmem:[#allocation2 + $0x28] sm:$0xff] %v776
    %817 = vst [vmem:[#allocation2 + $0x30] sm:$0xff] %v777
    %818 = vst [vmem:[#allocation2 + $0x38] sm:$0xff] %v778
    %819 = vst [vmem:[#allocation2 + $0x40] sm:$0xff] %v779
    %820 = vst [vmem:[#allocation2 + $0x48] sm:$0xff] %v780
    %821 = vst [vmem:[#allocation2 + $0x50] sm:$0xff] %v781
    %822 = vst [vmem:[#allocation2 + $0x58] sm:$0xff] %v782
    %823 = vst [vmem:[#allocation2 + $0x60] sm:$0xff] %v783
    %824 = vst [vmem:[#allocation2 + $0x68] sm:$0xff] %v784
    %825 = vst [vmem:[#allocation2 + $0x70] sm:$0xff] %v785
    %826 = vst [vmem:[#allocation2 + $0x78] sm:$0xff] %v786
    %827 = vst [vmem:[#allocation2 + $0x80] sm:$0xff] %v787
    %828 = vst [vmem:[#allocation2 + $0x88] sm:$0xff] %v788
    %829 = vst [vmem:[#allocation2 + $0x90] sm:$0xff] %v789
    %830 = vst [vmem:[#allocation2 + $0x98] sm:$0xff] %v790
    %831 = vst [vmem:[#allocation2 + $0xa0] sm:$0xff] %v791
    %832 = vst [vmem:[#allocation2 + $0xa8] sm:$0xff] %v792
    %833 = vst [vmem:[#allocation2 + $0xb0] sm:$0xff] %v793
    %834 = vst [vmem:[#allocation2 + $0xb8] sm:$0xff] %v794
    %835 = vst [vmem:[#allocation2 + $0xc0] sm:$0xff] %v795
    %836 = vst [vmem:[#allocation2 + $0xc8] sm:$0xff] %v796
    %837 = vst [vmem:[#allocation2 + $0xd0] sm:$0xff] %v797
    %838 = vst [vmem:[#allocation2 + $0xd8] sm:$0xff] %v798
    %839 = vst [vmem:[#allocation2 + $0xe0] sm:$0xff] %v799
    %840 = vst [vmem:[#allocation2 + $0xe8] sm:$0xff] %v800
    %841 = vst [vmem:[#allocation2 + $0xf0] sm:$0xff] %v801
    %842 = vst [vmem:[#allocation2 + $0xf8] sm:$0xff] %v802
    %843 = vst [vmem:[#allocation2 + $0x100] sm:$0xff] %v803
    %844 = vst [vmem:[#allocation2 + $0x108] sm:$0xff] %v804
    %845 = vst [vmem:[#allocation2 + $0x110] sm:$0xff] %v805
    %846 = vst [vmem:[#allocation2 + $0x118] sm:$0xff] %v806
    %847 = vst [vmem:[#allocation2 + $0x120] sm:$0xff] %v807
    %848 = vst [vmem:[#allocation2 + $0x128] sm:$0xff] %v808
    %849 = vst [vmem:[#allocation2 + $0x130] sm:$0xff] %v809
    %850 = vst [vmem:[#allocation2 + $0x138] sm:$0xff] %v810
    %v851 = vld [vmem:[#allocation12] sm:$0xff]
    %v852 = vld [vmem:[#allocation12 + $0x8] sm:$0xff]
    %v853 = vld [vmem:[#allocation12 + $0x10] sm:$0xff]
    %v854 = vld [vmem:[#allocation12 + $0x18] sm:$0xff]
    %v855 = vld [vmem:[#allocation12 + $0x20] sm:$0xff]
    %v856 = vld [vmem:[#allocation12 + $0x28] sm:$0xff]
    %v857 = vld [vmem:[#allocation12 + $0x30] sm:$0xff]
    %v858 = vld [vmem:[#allocation12 + $0x38] sm:$0xff]
    %v859 = vld [vmem:[#allocation12 + $0x40] sm:$0xff]
    %v860 = vld [vmem:[#allocation12 + $0x48] sm:$0xff]
    %v861 = vld [vmem:[#allocation12 + $0x50] sm:$0xff]
    %v862 = vld [vmem:[#allocation12 + $0x58] sm:$0xff]
    %v863 = vld [vmem:[#allocation12 + $0x60] sm:$0xff]
    %v864 = vld [vmem:[#allocation12 + $0x68] sm:$0xff]
    %v865 = vld [vmem:[#allocation12 + $0x70] sm:$0xff]
    %v866 = vld [vmem:[#allocation12 + $0x78] sm:$0xff]
    %v867 = vld [vmem:[#allocation12 + $0x80] sm:$0xff]
    %v868 = vld [vmem:[#allocation12 + $0x88] sm:$0xff]
    %v869 = vld [vmem:[#allocation12 + $0x90] sm:$0xff]
    %v870 = vld [vmem:[#allocation12 + $0x98] sm:$0xff]
    %v871 = vld [vmem:[#allocation12 + $0xa0] sm:$0xff]
    %v872 = vld [vmem:[#allocation12 + $0xa8] sm:$0xff]
    %v873 = vld [vmem:[#allocation12 + $0xb0] sm:$0xff]
    %v874 = vld [vmem:[#allocation12 + $0xb8] sm:$0xff]
    %v875 = vld [vmem:[#allocation12 + $0xc0] sm:$0xff]
    %v876 = vld [vmem:[#allocation12 + $0xc8] sm:$0xff]
    %v877 = vld [vmem:[#allocation12 + $0xd0] sm:$0xff]
    %v878 = vld [vmem:[#allocation12 + $0xd8] sm:$0xff]
    %v879 = vld [vmem:[#allocation12 + $0xe0] sm:$0xff]
    %v880 = vld [vmem:[#allocation12 + $0xe8] sm:$0xff]
    %v881 = vld [vmem:[#allocation12 + $0xf0] sm:$0xff]
    %v882 = vld [vmem:[#allocation12 + $0xf8] sm:$0xff]
    %v883 = vld [vmem:[#allocation12 + $0x100] sm:$0xff]
    %v884 = vld [vmem:[#allocation12 + $0x108] sm:$0xff]
    %v885 = vld [vmem:[#allocation12 + $0x110] sm:$0xff]
    %v886 = vld [vmem:[#allocation12 + $0x118] sm:$0xff]
    %v887 = vld [vmem:[#allocation12 + $0x120] sm:$0xff]
    %v888 = vld [vmem:[#allocation12 + $0x128] sm:$0xff]
    %v889 = vld [vmem:[#allocation12 + $0x130] sm:$0xff]
    %v890 = vld [vmem:[#allocation12 + $0x138] sm:$0xff]
    %v891 = vld [vmem:[#allocation12 + $0x140] sm:$0xff]
    %v892 = vld [vmem:[#allocation12 + $0x148] sm:$0xff]
    %v893 = vld [vmem:[#allocation12 + $0x150] sm:$0xff]
    %v894 = vld [vmem:[#allocation12 + $0x158] sm:$0xff]
    %v895 = vld [vmem:[#allocation12 + $0x160] sm:$0xff]
    %v896 = vld [vmem:[#allocation12 + $0x168] sm:$0xff]
    %v897 = vld [vmem:[#allocation12 + $0x170] sm:$0xff]
    %v898 = vld [vmem:[#allocation12 + $0x178] sm:$0xff]
    %v899 = vld [vmem:[#allocation12 + $0x180] sm:$0xff]
    %v900 = vld [vmem:[#allocation12 + $0x188] sm:$0xff]
    %v901 = vld [vmem:[#allocation12 + $0x190] sm:$0xff]
    %v902 = vld [vmem:[#allocation12 + $0x198] sm:$0xff]
    %v903 = vld [vmem:[#allocation12 + $0x1a0] sm:$0xff]
    %v904 = vld [vmem:[#allocation12 + $0x1a8] sm:$0xff]
    %v905 = vld [vmem:[#allocation12 + $0x1b0] sm:$0xff]
    %v906 = vld [vmem:[#allocation12 + $0x1b8] sm:$0xff]
    %v907 = vld [vmem:[#allocation12 + $0x1c0] sm:$0xff]
    %v908 = vld [vmem:[#allocation12 + $0x1c8] sm:$0xff]
    %v909 = vld [vmem:[#allocation12 + $0x1d0] sm:$0xff]
    %v910 = vld [vmem:[#allocation12 + $0x1d8] sm:$0xff]
    %v911 = vld [vmem:[#allocation12 + $0x1e0] sm:$0xff]
    %v912 = vld [vmem:[#allocation12 + $0x1e8] sm:$0xff]
    %v913 = vld [vmem:[#allocation12 + $0x1f0] sm:$0xff]
    %v914 = vld [vmem:[#allocation12 + $0x1f8] sm:$0xff]
    %v915 = vld [vmem:[#allocation12 + $0x200] sm:$0xff]
    %v916 = vld [vmem:[#allocation12 + $0x208] sm:$0xff]
    %v917 = vld [vmem:[#allocation12 + $0x210] sm:$0xff]
    %v918 = vld [vmem:[#allocation12 + $0x218] sm:$0xff]
    %v919 = vld [vmem:[#allocation12 + $0x220] sm:$0xff]
    %v920 = vld [vmem:[#allocation12 + $0x228] sm:$0xff]
    %v921 = vld [vmem:[#allocation12 + $0x230] sm:$0xff]
    %v922 = vld [vmem:[#allocation12 + $0x238] sm:$0xff]
    %v923 = vld [vmem:[#allocation12 + $0x240] sm:$0xff]
    %v924 = vld [vmem:[#allocation12 + $0x248] sm:$0xff]
    %v925 = vld [vmem:[#allocation12 + $0x250] sm:$0xff]
    %v926 = vld [vmem:[#allocation12 + $0x258] sm:$0xff]
    %v927 = vld [vmem:[#allocation12 + $0x260] sm:$0xff]
    %v928 = vld [vmem:[#allocation12 + $0x268] sm:$0xff]
    %v929 = vld [vmem:[#allocation12 + $0x270] sm:$0xff]
    %v930 = vld [vmem:[#allocation12 + $0x278] sm:$0xff]
    %v931 = vld [vmem:[#allocation12 + $0x280] sm:$0xff]
    %v932 = vld [vmem:[#allocation12 + $0x288] sm:$0xff]
    %v933 = vld [vmem:[#allocation12 + $0x290] sm:$0xff]
    %v934 = vld [vmem:[#allocation12 + $0x298] sm:$0xff]
    %v935 = vld [vmem:[#allocation12 + $0x2a0] sm:$0xff]
    %v936 = vld [vmem:[#allocation12 + $0x2a8] sm:$0xff]
    %v937 = vld [vmem:[#allocation12 + $0x2b0] sm:$0xff]
    %v938 = vld [vmem:[#allocation12 + $0x2b8] sm:$0xff]
    %v939 = vld [vmem:[#allocation12 + $0x2c0] sm:$0xff]
    %v940 = vld [vmem:[#allocation12 + $0x2c8] sm:$0xff]
    %v941 = vld [vmem:[#allocation12 + $0x2d0] sm:$0xff]
    %v942 = vld [vmem:[#allocation12 + $0x2d8] sm:$0xff]
    %v943 = vld [vmem:[#allocation12 + $0x2e0] sm:$0xff]
    %v944 = vld [vmem:[#allocation12 + $0x2e8] sm:$0xff]
    %v945 = vld [vmem:[#allocation12 + $0x2f0] sm:$0xff]
    %v946 = vld [vmem:[#allocation12 + $0x2f8] sm:$0xff]
    %v947 = vld [vmem:[#allocation12 + $0x300] sm:$0xff]
    %v948 = vld [vmem:[#allocation12 + $0x308] sm:$0xff]
    %v949 = vld [vmem:[#allocation12 + $0x310] sm:$0xff]
    %v950 = vld [vmem:[#allocation12 + $0x318] sm:$0xff]
    %v951 = vld [vmem:[#allocation12 + $0x320] sm:$0xff]
    %v952 = vld [vmem:[#allocation12 + $0x328] sm:$0xff]
    %v953 = vld [vmem:[#allocation12 + $0x330] sm:$0xff]
    %v954 = vld [vmem:[#allocation12 + $0x338] sm:$0xff]
    %v955 = vld [vmem:[#allocation12 + $0x340] sm:$0xff]
    %v956 = vld [vmem:[#allocation12 + $0x348] sm:$0xff]
    %v957 = vld [vmem:[#allocation12 + $0x350] sm:$0xff]
    %v958 = vld [vmem:[#allocation12 + $0x358] sm:$0xff]
    %v959 = vld [vmem:[#allocation12 + $0x360] sm:$0xff]
    %v960 = vld [vmem:[#allocation12 + $0x368] sm:$0xff]
    %v961 = vld [vmem:[#allocation12 + $0x370] sm:$0xff]
    %v962 = vld [vmem:[#allocation12 + $0x378] sm:$0xff]
    %v963 = vld [vmem:[#allocation12 + $0x380] sm:$0xff]
    %v964 = vld [vmem:[#allocation12 + $0x388] sm:$0xff]
    %v965 = vld [vmem:[#allocation12 + $0x390] sm:$0xff]
    %v966 = vld [vmem:[#allocation12 + $0x398] sm:$0xff]
    %v967 = vld [vmem:[#allocation12 + $0x3a0] sm:$0xff]
    %v968 = vld [vmem:[#allocation12 + $0x3a8] sm:$0xff]
    %v969 = vld [vmem:[#allocation12 + $0x3b0] sm:$0xff]
    %v970 = vld [vmem:[#allocation12 + $0x3b8] sm:$0xff]
    %v971 = vld [vmem:[#allocation12 + $0x3c0] sm:$0xff]
    %v972 = vld [vmem:[#allocation12 + $0x3c8] sm:$0xff]
    %v973 = vld [vmem:[#allocation12 + $0x3d0] sm:$0xff]
    %v974 = vld [vmem:[#allocation12 + $0x3d8] sm:$0xff]
    %v975 = vld [vmem:[#allocation12 + $0x3e0] sm:$0xff]
    %v976 = vld [vmem:[#allocation12 + $0x3e8] sm:$0xff]
    %v977 = vld [vmem:[#allocation12 + $0x3f0] sm:$0xff]
    %v978 = vld [vmem:[#allocation12 + $0x3f8] sm:$0xff]
    %vm979 = vcmp.gt.s32.totalorder %v152, 0
    %vm980 = vcmp.gt.s32.totalorder %v153, 0
    %v981 = vsel %vm979, 1, 0
    %v982 = vsel %vm980, 1, 0
    %983 = vset.pattern.permute.xlu0 0
    %984 = vperm.xlu0 %983, %v981
    %v985 = vpop.permute.xlu0 %984
    %986 = vset.pattern.permute.xlu0 0
    %987 = vperm.xlu0 %986, %v982
    %v988 = vpop.permute.xlu0 %987
    %vm989 = vcmp.eq.s32.totalorder %v985, 1
    %vm990 = vcmp.eq.s32.totalorder %v988, 1
    %vm991 = vcmp.gt.s32.totalorder %v152, 4
    %vm992 = vcmp.gt.s32.totalorder %v153, 4
    %v993 = vsel %vm991, 1, 0
    %v994 = vsel %vm992, 1, 0
    %995 = vset.pattern.permute.xlu0 0
    %996 = vperm.xlu0 %995, %v993
    %v997 = vpop.permute.xlu0 %996
    %998 = vset.pattern.permute.xlu0 0
    %999 = vperm.xlu0 %998, %v994
    %v1000 = vpop.permute.xlu0 %999
    %vm1001 = vcmp.eq.s32.totalorder %v997, 1
    %vm1002 = vcmp.eq.s32.totalorder %v1000, 1
    %v1003 = vpack.c.bf16 0.0, 0.0
    %v1132 = vunpack.c.l.b16 %v851
    %v1133 = vunpack.c.h.b16 %v851
    %v1134 = vunpack.c.l.b16 %v852
    %v1135 = vunpack.c.h.b16 %v852
    %v1136 = vunpack.c.l.b16 %v853
    %v1137 = vunpack.c.h.b16 %v853
    %v1138 = vunpack.c.l.b16 %v854
    %v1139 = vunpack.c.h.b16 %v854
    %v1140 = vunpack.c.l.b16 %v855
    %v1141 = vunpack.c.h.b16 %v855
    %v1142 = vunpack.c.l.b16 %v856
    %v1143 = vunpack.c.h.b16 %v856
    %v1144 = vunpack.c.l.b16 %v857
    %v1145 = vunpack.c.h.b16 %v857
    %v1146 = vunpack.c.l.b16 %v858
    %v1147 = vunpack.c.h.b16 %v858
    %v1148 = vunpack.c.l.b16 %v859
    %v1149 = vunpack.c.h.b16 %v859
    %v1150 = vunpack.c.l.b16 %v860
    %v1151 = vunpack.c.h.b16 %v860
    %v1152 = vunpack.c.l.b16 %v861
    %v1153 = vunpack.c.h.b16 %v861
    %v1154 = vunpack.c.l.b16 %v862
    %v1155 = vunpack.c.h.b16 %v862
    %v1156 = vunpack.c.l.b16 %v863
    %v1157 = vunpack.c.h.b16 %v863
    %v1158 = vunpack.c.l.b16 %v864
    %v1159 = vunpack.c.h.b16 %v864
    %v1160 = vunpack.c.l.b16 %v865
    %v1161 = vunpack.c.h.b16 %v865
    %v1162 = vunpack.c.l.b16 %v866
    %v1163 = vunpack.c.h.b16 %v866
    %v1164 = vunpack.c.l.b16 %v867
    %v1165 = vunpack.c.h.b16 %v867
    %v1166 = vunpack.c.l.b16 %v868
    %v1167 = vunpack.c.h.b16 %v868
    %v1168 = vunpack.c.l.b16 %v869
    %v1169 = vunpack.c.h.b16 %v869
    %v1170 = vunpack.c.l.b16 %v870
    %v1171 = vunpack.c.h.b16 %v870
    %v1172 = vunpack.c.l.b16 %v871
    %v1173 = vunpack.c.h.b16 %v871
    %v1174 = vunpack.c.l.b16 %v872
    %v1175 = vunpack.c.h.b16 %v872
    %v1176 = vunpack.c.l.b16 %v873
    %v1177 = vunpack.c.h.b16 %v873
    %v1178 = vunpack.c.l.b16 %v874
    %v1179 = vunpack.c.h.b16 %v874
    %v1180 = vunpack.c.l.b16 %v875
    %v1181 = vunpack.c.h.b16 %v875
    %v1182 = vunpack.c.l.b16 %v876
    %v1183 = vunpack.c.h.b16 %v876
    %v1184 = vunpack.c.l.b16 %v877
    %v1185 = vunpack.c.h.b16 %v877
    %v1186 = vunpack.c.l.b16 %v878
    %v1187 = vunpack.c.h.b16 %v878
    %v1188 = vunpack.c.l.b16 %v879
    %v1189 = vunpack.c.h.b16 %v879
    %v1190 = vunpack.c.l.b16 %v880
    %v1191 = vunpack.c.h.b16 %v880
    %v1192 = vunpack.c.l.b16 %v881
    %v1193 = vunpack.c.h.b16 %v881
    %v1194 = vunpack.c.l.b16 %v882
    %v1195 = vunpack.c.h.b16 %v882
    %v1196 = vunpack.c.l.b16 %v883
    %v1197 = vunpack.c.h.b16 %v883
    %v1198 = vunpack.c.l.b16 %v884
    %v1199 = vunpack.c.h.b16 %v884
    %v1200 = vunpack.c.l.b16 %v885
    %v1201 = vunpack.c.h.b16 %v885
    %v1202 = vunpack.c.l.b16 %v886
    %v1203 = vunpack.c.h.b16 %v886
    %v1204 = vunpack.c.l.b16 %v887
    %v1205 = vunpack.c.h.b16 %v887
    %v1206 = vunpack.c.l.b16 %v888
    %v1207 = vunpack.c.h.b16 %v888
    %v1208 = vunpack.c.l.b16 %v889
    %v1209 = vunpack.c.h.b16 %v889
    %v1210 = vunpack.c.l.b16 %v890
    %v1211 = vunpack.c.h.b16 %v890
    %v1212 = vunpack.c.l.b16 %v891
    %v1213 = vunpack.c.h.b16 %v891
    %v1214 = vunpack.c.l.b16 %v892
    %v1215 = vunpack.c.h.b16 %v892
    %v1216 = vunpack.c.l.b16 %v893
    %v1217 = vunpack.c.h.b16 %v893
    %v1218 = vunpack.c.l.b16 %v894
    %v1219 = vunpack.c.h.b16 %v894
    %v1220 = vunpack.c.l.b16 %v895
    %v1221 = vunpack.c.h.b16 %v895
    %v1222 = vunpack.c.l.b16 %v896
    %v1223 = vunpack.c.h.b16 %v896
    %v1224 = vunpack.c.l.b16 %v897
    %v1225 = vunpack.c.h.b16 %v897
    %v1226 = vunpack.c.l.b16 %v898
    %v1227 = vunpack.c.h.b16 %v898
    %v1228 = vunpack.c.l.b16 %v899
    %v1229 = vunpack.c.h.b16 %v899
    %v1230 = vunpack.c.l.b16 %v900
    %v1231 = vunpack.c.h.b16 %v900
    %v1232 = vunpack.c.l.b16 %v901
    %v1233 = vunpack.c.h.b16 %v901
    %v1234 = vunpack.c.l.b16 %v902
    %v1235 = vunpack.c.h.b16 %v902
    %v1236 = vunpack.c.l.b16 %v903
    %v1237 = vunpack.c.h.b16 %v903
    %v1238 = vunpack.c.l.b16 %v904
    %v1239 = vunpack.c.h.b16 %v904
    %v1240 = vunpack.c.l.b16 %v905
    %v1241 = vunpack.c.h.b16 %v905
    %v1242 = vunpack.c.l.b16 %v906
    %v1243 = vunpack.c.h.b16 %v906
    %v1244 = vunpack.c.l.b16 %v907
    %v1245 = vunpack.c.h.b16 %v907
    %v1246 = vunpack.c.l.b16 %v908
    %v1247 = vunpack.c.h.b16 %v908
    %v1248 = vunpack.c.l.b16 %v909
    %v1249 = vunpack.c.h.b16 %v909
    %v1250 = vunpack.c.l.b16 %v910
    %v1251 = vunpack.c.h.b16 %v910
    %v1252 = vunpack.c.l.b16 %v911
    %v1253 = vunpack.c.h.b16 %v911
    %v1254 = vunpack.c.l.b16 %v912
    %v1255 = vunpack.c.h.b16 %v912
    %v1256 = vunpack.c.l.b16 %v913
    %v1257 = vunpack.c.h.b16 %v913
    %v1258 = vunpack.c.l.b16 %v914
    %v1259 = vunpack.c.h.b16 %v914
    %v1260 = vunpack.c.l.b16 %v915
    %v1261 = vunpack.c.h.b16 %v915
    %v1262 = vunpack.c.l.b16 %v916
    %v1263 = vunpack.c.h.b16 %v916
    %v1264 = vunpack.c.l.b16 %v917
    %v1265 = vunpack.c.h.b16 %v917
    %v1266 = vunpack.c.l.b16 %v918
    %v1267 = vunpack.c.h.b16 %v918
    %v1268 = vunpack.c.l.b16 %v919
    %v1269 = vunpack.c.h.b16 %v919
    %v1270 = vunpack.c.l.b16 %v920
    %v1271 = vunpack.c.h.b16 %v920
    %v1272 = vunpack.c.l.b16 %v921
    %v1273 = vunpack.c.h.b16 %v921
    %v1274 = vunpack.c.l.b16 %v922
    %v1275 = vunpack.c.h.b16 %v922
    %v1276 = vunpack.c.l.b16 %v923
    %v1277 = vunpack.c.h.b16 %v923
    %v1278 = vunpack.c.l.b16 %v924
    %v1279 = vunpack.c.h.b16 %v924
    %v1280 = vunpack.c.l.b16 %v925
    %v1281 = vunpack.c.h.b16 %v925
    %v1282 = vunpack.c.l.b16 %v926
    %v1283 = vunpack.c.h.b16 %v926
    %v1284 = vunpack.c.l.b16 %v927
    %v1285 = vunpack.c.h.b16 %v927
    %v1286 = vunpack.c.l.b16 %v928
    %v1287 = vunpack.c.h.b16 %v928
    %v1288 = vunpack.c.l.b16 %v929
    %v1289 = vunpack.c.h.b16 %v929
    %v1290 = vunpack.c.l.b16 %v930
    %v1291 = vunpack.c.h.b16 %v930
    %v1292 = vunpack.c.l.b16 %v931
    %v1293 = vunpack.c.h.b16 %v931
    %v1294 = vunpack.c.l.b16 %v932
    %v1295 = vunpack.c.h.b16 %v932
    %v1296 = vunpack.c.l.b16 %v933
    %v1297 = vunpack.c.h.b16 %v933
    %v1298 = vunpack.c.l.b16 %v934
    %v1299 = vunpack.c.h.b16 %v934
    %v1300 = vunpack.c.l.b16 %v935
    %v1301 = vunpack.c.h.b16 %v935
    %v1302 = vunpack.c.l.b16 %v936
    %v1303 = vunpack.c.h.b16 %v936
    %v1304 = vunpack.c.l.b16 %v937
    %v1305 = vunpack.c.h.b16 %v937
    %v1306 = vunpack.c.l.b16 %v938
    %v1307 = vunpack.c.h.b16 %v938
    %v1308 = vunpack.c.l.b16 %v939
    %v1309 = vunpack.c.h.b16 %v939
    %v1310 = vunpack.c.l.b16 %v940
    %v1311 = vunpack.c.h.b16 %v940
    %v1312 = vunpack.c.l.b16 %v941
    %v1313 = vunpack.c.h.b16 %v941
    %v1314 = vunpack.c.l.b16 %v942
    %v1315 = vunpack.c.h.b16 %v942
    %v1316 = vunpack.c.l.b16 %v943
    %v1317 = vunpack.c.h.b16 %v943
    %v1318 = vunpack.c.l.b16 %v944
    %v1319 = vunpack.c.h.b16 %v944
    %v1320 = vunpack.c.l.b16 %v945
    %v1321 = vunpack.c.h.b16 %v945
    %v1322 = vunpack.c.l.b16 %v946
    %v1323 = vunpack.c.h.b16 %v946
    %v1324 = vunpack.c.l.b16 %v947
    %v1325 = vunpack.c.h.b16 %v947
    %v1326 = vunpack.c.l.b16 %v948
    %v1327 = vunpack.c.h.b16 %v948
    %v1328 = vunpack.c.l.b16 %v949
    %v1329 = vunpack.c.h.b16 %v949
    %v1330 = vunpack.c.l.b16 %v950
    %v1331 = vunpack.c.h.b16 %v950
    %v1332 = vunpack.c.l.b16 %v951
    %v1333 = vunpack.c.h.b16 %v951
    %v1334 = vunpack.c.l.b16 %v952
    %v1335 = vunpack.c.h.b16 %v952
    %v1336 = vunpack.c.l.b16 %v953
    %v1337 = vunpack.c.h.b16 %v953
    %v1338 = vunpack.c.l.b16 %v954
    %v1339 = vunpack.c.h.b16 %v954
    %v1340 = vunpack.c.l.b16 %v955
    %v1341 = vunpack.c.h.b16 %v955
    %v1342 = vunpack.c.l.b16 %v956
    %v1343 = vunpack.c.h.b16 %v956
    %v1344 = vunpack.c.l.b16 %v957
    %v1345 = vunpack.c.h.b16 %v957
    %v1346 = vunpack.c.l.b16 %v958
    %v1347 = vunpack.c.h.b16 %v958
    %v1348 = vunpack.c.l.b16 %v959
    %v1349 = vunpack.c.h.b16 %v959
    %v1350 = vunpack.c.l.b16 %v960
    %v1351 = vunpack.c.h.b16 %v960
    %v1352 = vunpack.c.l.b16 %v961
    %v1353 = vunpack.c.h.b16 %v961
    %v1354 = vunpack.c.l.b16 %v962
    %v1355 = vunpack.c.h.b16 %v962
    %v1356 = vunpack.c.l.b16 %v963
    %v1357 = vunpack.c.h.b16 %v963
    %v1358 = vunpack.c.l.b16 %v964
    %v1359 = vunpack.c.h.b16 %v964
    %v1360 = vunpack.c.l.b16 %v965
    %v1361 = vunpack.c.h.b16 %v965
    %v1362 = vunpack.c.l.b16 %v966
    %v1363 = vunpack.c.h.b16 %v966
    %v1364 = vunpack.c.l.b16 %v967
    %v1365 = vunpack.c.h.b16 %v967
    %v1366 = vunpack.c.l.b16 %v968
    %v1367 = vunpack.c.h.b16 %v968
    %v1368 = vunpack.c.l.b16 %v969
    %v1369 = vunpack.c.h.b16 %v969
    %v1370 = vunpack.c.l.b16 %v970
    %v1371 = vunpack.c.h.b16 %v970
    %v1372 = vunpack.c.l.b16 %v971
    %v1373 = vunpack.c.h.b16 %v971
    %v1374 = vunpack.c.l.b16 %v972
    %v1375 = vunpack.c.h.b16 %v972
    %v1376 = vunpack.c.l.b16 %v973
    %v1377 = vunpack.c.h.b16 %v973
    %v1378 = vunpack.c.l.b16 %v974
    %v1379 = vunpack.c.h.b16 %v974
    %v1380 = vunpack.c.l.b16 %v975
    %v1381 = vunpack.c.h.b16 %v975
    %v1382 = vunpack.c.l.b16 %v976
    %v1383 = vunpack.c.h.b16 %v976
    %v1384 = vunpack.c.l.b16 %v977
    %v1385 = vunpack.c.h.b16 %v977
    %v1386 = vunpack.c.l.b16 %v978
    %v1387 = vunpack.c.h.b16 %v978
    %v1388 = vpack.c.b16 %v1140, %v1132
    %v1389 = vpack.c.b16 %v1141, %v1133
    %v1390 = vpack.c.b16 %v1142, %v1134
    %v1391 = vpack.c.b16 %v1143, %v1135
    %v1392 = vpack.c.b16 %v1144, %v1136
    %v1393 = vpack.c.b16 %v1145, %v1137
    %v1394 = vpack.c.b16 %v1146, %v1138
    %v1395 = vpack.c.b16 %v1147, %v1139
    %v1396 = vpack.c.b16 %v1156, %v1148
    %v1397 = vpack.c.b16 %v1157, %v1149
    %v1398 = vpack.c.b16 %v1158, %v1150
    %v1399 = vpack.c.b16 %v1159, %v1151
    %v1400 = vpack.c.b16 %v1160, %v1152
    %v1401 = vpack.c.b16 %v1161, %v1153
    %v1402 = vpack.c.b16 %v1162, %v1154
    %v1403 = vpack.c.b16 %v1163, %v1155
    %v1404 = vpack.c.b16 %v1172, %v1164
    %v1405 = vpack.c.b16 %v1173, %v1165
    %v1406 = vpack.c.b16 %v1174, %v1166
    %v1407 = vpack.c.b16 %v1175, %v1167
    %v1408 = vpack.c.b16 %v1176, %v1168
    %v1409 = vpack.c.b16 %v1177, %v1169
    %v1410 = vpack.c.b16 %v1178, %v1170
    %v1411 = vpack.c.b16 %v1179, %v1171
    %v1412 = vpack.c.b16 %v1188, %v1180
    %v1413 = vpack.c.b16 %v1189, %v1181
    %v1414 = vpack.c.b16 %v1190, %v1182
    %v1415 = vpack.c.b16 %v1191, %v1183
    %v1416 = vpack.c.b16 %v1192, %v1184
    %v1417 = vpack.c.b16 %v1193, %v1185
    %v1418 = vpack.c.b16 %v1194, %v1186
    %v1419 = vpack.c.b16 %v1195, %v1187
    %v1420 = vpack.c.b16 %v1204, %v1196
    %v1421 = vpack.c.b16 %v1205, %v1197
    %v1422 = vpack.c.b16 %v1206, %v1198
    %v1423 = vpack.c.b16 %v1207, %v1199
    %v1424 = vpack.c.b16 %v1208, %v1200
    %v1425 = vpack.c.b16 %v1209, %v1201
    %v1426 = vpack.c.b16 %v1210, %v1202
    %v1427 = vpack.c.b16 %v1211, %v1203
    %v1428 = vpack.c.b16 %v1220, %v1212
    %v1429 = vpack.c.b16 %v1221, %v1213
    %v1430 = vpack.c.b16 %v1222, %v1214
    %v1431 = vpack.c.b16 %v1223, %v1215
    %v1432 = vpack.c.b16 %v1224, %v1216
    %v1433 = vpack.c.b16 %v1225, %v1217
    %v1434 = vpack.c.b16 %v1226, %v1218
    %v1435 = vpack.c.b16 %v1227, %v1219
    %v1436 = vpack.c.b16 %v1236, %v1228
    %v1437 = vpack.c.b16 %v1237, %v1229
    %v1438 = vpack.c.b16 %v1238, %v1230
    %v1439 = vpack.c.b16 %v1239, %v1231
    %v1440 = vpack.c.b16 %v1240, %v1232
    %v1441 = vpack.c.b16 %v1241, %v1233
    %v1442 = vpack.c.b16 %v1242, %v1234
    %v1443 = vpack.c.b16 %v1243, %v1235
    %v1444 = vpack.c.b16 %v1252, %v1244
    %v1445 = vpack.c.b16 %v1253, %v1245
    %v1446 = vpack.c.b16 %v1254, %v1246
    %v1447 = vpack.c.b16 %v1255, %v1247
    %v1448 = vpack.c.b16 %v1256, %v1248
    %v1449 = vpack.c.b16 %v1257, %v1249
    %v1450 = vpack.c.b16 %v1258, %v1250
    %v1451 = vpack.c.b16 %v1259, %v1251
    %v1452 = vpack.c.b16 %v1268, %v1260
    %v1453 = vpack.c.b16 %v1269, %v1261
    %v1454 = vpack.c.b16 %v1270, %v1262
    %v1455 = vpack.c.b16 %v1271, %v1263
    %v1456 = vpack.c.b16 %v1272, %v1264
    %v1457 = vpack.c.b16 %v1273, %v1265
    %v1458 = vpack.c.b16 %v1274, %v1266
    %v1459 = vpack.c.b16 %v1275, %v1267
    %v1460 = vpack.c.b16 %v1284, %v1276
    %v1461 = vpack.c.b16 %v1285, %v1277
    %v1462 = vpack.c.b16 %v1286, %v1278
    %v1463 = vpack.c.b16 %v1287, %v1279
    %v1464 = vpack.c.b16 %v1288, %v1280
    %v1465 = vpack.c.b16 %v1289, %v1281
    %v1466 = vpack.c.b16 %v1290, %v1282
    %v1467 = vpack.c.b16 %v1291, %v1283
    %v1468 = vpack.c.b16 %v1300, %v1292
    %v1469 = vpack.c.b16 %v1301, %v1293
    %v1470 = vpack.c.b16 %v1302, %v1294
    %v1471 = vpack.c.b16 %v1303, %v1295
    %v1472 = vpack.c.b16 %v1304, %v1296
    %v1473 = vpack.c.b16 %v1305, %v1297
    %v1474 = vpack.c.b16 %v1306, %v1298
    %v1475 = vpack.c.b16 %v1307, %v1299
    %v1476 = vpack.c.b16 %v1316, %v1308
    %v1477 = vpack.c.b16 %v1317, %v1309
    %v1478 = vpack.c.b16 %v1318, %v1310
    %v1479 = vpack.c.b16 %v1319, %v1311
    %v1480 = vpack.c.b16 %v1320, %v1312
    %v1481 = vpack.c.b16 %v1321, %v1313
    %v1482 = vpack.c.b16 %v1322, %v1314
    %v1483 = vpack.c.b16 %v1323, %v1315
    %v1484 = vpack.c.b16 %v1332, %v1324
    %v1485 = vpack.c.b16 %v1333, %v1325
    %v1486 = vpack.c.b16 %v1334, %v1326
    %v1487 = vpack.c.b16 %v1335, %v1327
    %v1488 = vpack.c.b16 %v1336, %v1328
    %v1489 = vpack.c.b16 %v1337, %v1329
    %v1490 = vpack.c.b16 %v1338, %v1330
    %v1491 = vpack.c.b16 %v1339, %v1331
    %v1492 = vpack.c.b16 %v1348, %v1340
    %v1493 = vpack.c.b16 %v1349, %v1341
    %v1494 = vpack.c.b16 %v1350, %v1342
    %v1495 = vpack.c.b16 %v1351, %v1343
    %v1496 = vpack.c.b16 %v1352, %v1344
    %v1497 = vpack.c.b16 %v1353, %v1345
    %v1498 = vpack.c.b16 %v1354, %v1346
    %v1499 = vpack.c.b16 %v1355, %v1347
    %v1500 = vpack.c.b16 %v1364, %v1356
    %v1501 = vpack.c.b16 %v1365, %v1357
    %v1502 = vpack.c.b16 %v1366, %v1358
    %v1503 = vpack.c.b16 %v1367, %v1359
    %v1504 = vpack.c.b16 %v1368, %v1360
    %v1505 = vpack.c.b16 %v1369, %v1361
    %v1506 = vpack.c.b16 %v1370, %v1362
    %v1507 = vpack.c.b16 %v1371, %v1363
    %v1508 = vpack.c.b16 %v1380, %v1372
    %v1509 = vpack.c.b16 %v1381, %v1373
    %v1510 = vpack.c.b16 %v1382, %v1374
    %v1511 = vpack.c.b16 %v1383, %v1375
    %v1512 = vpack.c.b16 %v1384, %v1376
    %v1513 = vpack.c.b16 %v1385, %v1377
    %v1514 = vpack.c.b16 %v1386, %v1378
    %v1515 = vpack.c.b16 %v1387, %v1379
    %1644 = vmatprep.subr.bf16.mxu0 %v1389
    %1645 = vmatpush1.bf16.msra.mxu0 %v1388
    %1646 = vmatprep.subr.bf16.mxu0 %v1397
    %1647 = vmatpush1.bf16.msra.mxu0 %v1396
    %1648 = vmatprep.subr.bf16.mxu0 %v1405
    %1649 = vmatpush1.bf16.msra.mxu0 %v1404
    %1650 = vmatprep.subr.bf16.mxu0 %v1413
    %1651 = vmatpush1.bf16.msra.mxu0 %v1412
    %1652 = vmatprep.subr.bf16.mxu0 %v1421
    %1653 = vmatpush1.bf16.msra.mxu0 %v1420
    %1654 = vmatprep.subr.bf16.mxu0 %v1429
    %1655 = vmatpush1.bf16.msra.mxu0 %v1428
    %1656 = vmatprep.subr.bf16.mxu0 %v1437
    %1657 = vmatpush1.bf16.msra.mxu0 %v1436
    %1658 = vmatprep.subr.bf16.mxu0 %v1445
    %1659 = vmatpush1.bf16.msra.mxu0 %v1444
    %1660 = vmatprep.subr.bf16.mxu0 %v1453
    %1661 = vmatpush1.bf16.msra.mxu0 %v1452
    %1662 = vmatprep.subr.bf16.mxu0 %v1461
    %1663 = vmatpush1.bf16.msra.mxu0 %v1460
    %1664 = vmatprep.subr.bf16.mxu0 %v1469
    %1665 = vmatpush1.bf16.msra.mxu0 %v1468
    %1666 = vmatprep.subr.bf16.mxu0 %v1477
    %1667 = vmatpush1.bf16.msra.mxu0 %v1476
    %1668 = vmatprep.subr.bf16.mxu0 %v1485
    %1669 = vmatpush1.bf16.msra.mxu0 %v1484
    %1670 = vmatprep.subr.bf16.mxu0 %v1493
    %1671 = vmatpush1.bf16.msra.mxu0 %v1492
    %1672 = vmatprep.subr.bf16.mxu0 %v1501
    %1673 = vmatpush1.bf16.msra.mxu0 %v1500
    %1674 = vmatprep.subr.bf16.mxu0 %v1509
    %1675 = vmatpush1.bf16.msra.mxu0 %v1508
    %1676 = vmatprep.mubr.bf16.mxu0 %v1003
    %1677 = vmatmul.mubr.bf16.gmra.mrb[0].mxu0 %v1003
    %v1678 = vpop.f32.mrb[0].mxu0
    %v1679 = vadd.f32 0.0, %v1678
    %v1680 = vpop.f32.mrb[0].mxu0
    %v1681 = vadd.f32 0.0, %v1680
    %v1682 = vpop.f32.mrb[0].mxu0
    %v1683 = vadd.f32 0.0, %v1682
    %v1684 = vpop.f32.mrb[0].mxu0
    %v1685 = vadd.f32 0.0, %v1684
    %1686 = vdwg.mxu0
    %1687 = vmatprep.subr.bf16.mxu0 %v1391
    %1688 = vmatpush1.bf16.msra.mxu0 %v1390
    %1689 = vmatprep.subr.bf16.mxu0 %v1399
    %1690 = vmatpush1.bf16.msra.mxu0 %v1398
    %1691 = vmatprep.subr.bf16.mxu0 %v1407
    %1692 = vmatpush1.bf16.msra.mxu0 %v1406
    %1693 = vmatprep.subr.bf16.mxu0 %v1415
    %1694 = vmatpush1.bf16.msra.mxu0 %v1414
    %1695 = vmatprep.subr.bf16.mxu0 %v1423
    %1696 = vmatpush1.bf16.msra.mxu0 %v1422
    %1697 = vmatprep.subr.bf16.mxu0 %v1431
    %1698 = vmatpush1.bf16.msra.mxu0 %v1430
    %1699 = vmatprep.subr.bf16.mxu0 %v1439
    %1700 = vmatpush1.bf16.msra.mxu0 %v1438
    %1701 = vmatprep.subr.bf16.mxu0 %v1447
    %1702 = vmatpush1.bf16.msra.mxu0 %v1446
    %1703 = vmatprep.subr.bf16.mxu0 %v1455
    %1704 = vmatpush1.bf16.msra.mxu0 %v1454
    %1705 = vmatprep.subr.bf16.mxu0 %v1463
    %1706 = vmatpush1.bf16.msra.mxu0 %v1462
    %1707 = vmatprep.subr.bf16.mxu0 %v1471
    %1708 = vmatpush1.bf16.msra.mxu0 %v1470
    %1709 = vmatprep.subr.bf16.mxu0 %v1479
    %1710 = vmatpush1.bf16.msra.mxu0 %v1478
    %1711 = vmatprep.subr.bf16.mxu0 %v1487
    %1712 = vmatpush1.bf16.msra.mxu0 %v1486
    %1713 = vmatprep.subr.bf16.mxu0 %v1495
    %1714 = vmatpush1.bf16.msra.mxu0 %v1494
    %1715 = vmatprep.subr.bf16.mxu0 %v1503
    %1716 = vmatpush1.bf16.msra.mxu0 %v1502
    %1717 = vmatprep.subr.bf16.mxu0 %v1511
    %1718 = vmatpush1.bf16.msra.mxu0 %v1510
    %1719 = vmatprep.mubr.bf16.mxu0 %v1003
    %1720 = vmatmul.mubr.bf16.gmra.mrb[0].mxu0 %v1003
    %v1721 = vpop.f32.mrb[0].mxu0
    %v1722 = vadd.f32 0.0, %v1721
    %v1723 = vpop.f32.mrb[0].mxu0
    %v1724 = vadd.f32 0.0, %v1723
    %v1725 = vpop.f32.mrb[0].mxu0
    %v1726 = vadd.f32 0.0, %v1725
    %v1727 = vpop.f32.mrb[0].mxu0
    %v1728 = vadd.f32 0.0, %v1727
    %1729 = vdwg.mxu0
    %1730 = vmatprep.subr.bf16.mxu0 %v1393
    %1731 = vmatpush1.bf16.msra.mxu0 %v1392
    %1732 = vmatprep.subr.bf16.mxu0 %v1401
    %1733 = vmatpush1.bf16.msra.mxu0 %v1400
    %1734 = vmatprep.subr.bf16.mxu0 %v1409
    %1735 = vmatpush1.bf16.msra.mxu0 %v1408
    %1736 = vmatprep.subr.bf16.mxu0 %v1417
    %1737 = vmatpush1.bf16.msra.mxu0 %v1416
    %1738 = vmatprep.subr.bf16.mxu0 %v1425
    %1739 = vmatpush1.bf16.msra.mxu0 %v1424
    %1740 = vmatprep.subr.bf16.mxu0 %v1433
    %1741 = vmatpush1.bf16.msra.mxu0 %v1432
    %1742 = vmatprep.subr.bf16.mxu0 %v1441
    %1743 = vmatpush1.bf16.msra.mxu0 %v1440
    %1744 = vmatprep.subr.bf16.mxu0 %v1449
    %1745 = vmatpush1.bf16.msra.mxu0 %v1448
    %1746 = vmatprep.subr.bf16.mxu0 %v1457
    %1747 = vmatpush1.bf16.msra.mxu0 %v1456
    %1748 = vmatprep.subr.bf16.mxu0 %v1465
    %1749 = vmatpush1.bf16.msra.mxu0 %v1464
    %1750 = vmatprep.subr.bf16.mxu0 %v1473
    %1751 = vmatpush1.bf16.msra.mxu0 %v1472
    %1752 = vmatprep.subr.bf16.mxu0 %v1481
    %1753 = vmatpush1.bf16.msra.mxu0 %v1480
    %1754 = vmatprep.subr.bf16.mxu0 %v1489
    %1755 = vmatpush1.bf16.msra.mxu0 %v1488
    %1756 = vmatprep.subr.bf16.mxu0 %v1497
    %1757 = vmatpush1.bf16.msra.mxu0 %v1496
    %1758 = vmatprep.subr.bf16.mxu0 %v1505
    %1759 = vmatpush1.bf16.msra.mxu0 %v1504
    %1760 = vmatprep.subr.bf16.mxu0 %v1513
    %1761 = vmatpush1.bf16.msra.mxu0 %v1512
    %1762 = vmatprep.mubr.bf16.mxu0 %v1003
    %1763 = vmatmul.mubr.bf16.gmra.mrb[0].mxu0 %v1003
    %v1764 = vpop.f32.mrb[0].mxu0
    %v1765 = vadd.f32 0.0, %v1764
    %v1766 = vpop.f32.mrb[0].mxu0
    %v1767 = vadd.f32 0.0, %v1766
    %v1768 = vpop.f32.mrb[0].mxu0
    %v1769 = vadd.f32 0.0, %v1768
    %v1770 = vpop.f32.mrb[0].mxu0
    %v1771 = vadd.f32 0.0, %v1770
    %1772 = vdwg.mxu0
    %1773 = vmatprep.subr.bf16.mxu0 %v1395
    %1774 = vmatpush1.bf16.msra.mxu0 %v1394
    %1775 = vmatprep.subr.bf16.mxu0 %v1403
    %1776 = vmatpush1.bf16.msra.mxu0 %v1402
    %1777 = vmatprep.subr.bf16.mxu0 %v1411
    %1778 = vmatpush1.bf16.msra.mxu0 %v1410
    %1779 = vmatprep.subr.bf16.mxu0 %v1419
    %1780 = vmatpush1.bf16.msra.mxu0 %v1418
    %1781 = vmatprep.subr.bf16.mxu0 %v1427
    %1782 = vmatpush1.bf16.msra.mxu0 %v1426
    %1783 = vmatprep.subr.bf16.mxu0 %v1435
    %1784 = vmatpush1.bf16.msra.mxu0 %v1434
    %1785 = vmatprep.subr.bf16.mxu0 %v1443
    %1786 = vmatpush1.bf16.msra.mxu0 %v1442
    %1787 = vmatprep.subr.bf16.mxu0 %v1451
    %1788 = vmatpush1.bf16.msra.mxu0 %v1450
    %1789 = vmatprep.subr.bf16.mxu0 %v1459
    %1790 = vmatpush1.bf16.msra.mxu0 %v1458
    %1791 = vmatprep.subr.bf16.mxu0 %v1467
    %1792 = vmatpush1.bf16.msra.mxu0 %v1466
    %1793 = vmatprep.subr.bf16.mxu0 %v1475
    %1794 = vmatpush1.bf16.msra.mxu0 %v1474
    %1795 = vmatprep.subr.bf16.mxu0 %v1483
    %1796 = vmatpush1.bf16.msra.mxu0 %v1482
    %1797 = vmatprep.subr.bf16.mxu0 %v1491
    %1798 = vmatpush1.bf16.msra.mxu0 %v1490
    %1799 = vmatprep.subr.bf16.mxu0 %v1499
    %1800 = vmatpush1.bf16.msra.mxu0 %v1498
    %1801 = vmatprep.subr.bf16.mxu0 %v1507
    %1802 = vmatpush1.bf16.msra.mxu0 %v1506
    %1803 = vmatprep.subr.bf16.mxu0 %v1515
    %1804 = vmatpush1.bf16.msra.mxu0 %v1514
    %1805 = vmatprep.mubr.bf16.mxu0 %v1003
    %1806 = vmatmul.mubr.bf16.gmra.mrb[0].mxu0 %v1003
    %v1807 = vpop.f32.mrb[0].mxu0
    %v1808 = vadd.f32 0.0, %v1807
    %v1809 = vpop.f32.mrb[0].mxu0
    %v1810 = vadd.f32 0.0, %v1809
    %v1811 = vpop.f32.mrb[0].mxu0
    %v1812 = vadd.f32 0.0, %v1811
    %v1813 = vpop.f32.mrb[0].mxu0
    %v1814 = vadd.f32 0.0, %v1813
    %1815 = vdwg.mxu0
    %v1816 = vld [vmem:[#allocation2] sm:$0xff]
    %v1817 = vld [vmem:[#allocation2 + $0x8] sm:$0xff]
    %v1818 = vld [vmem:[#allocation2 + $0x10] sm:$0xff]
    %v1819 = vld [vmem:[#allocation2 + $0x18] sm:$0xff]
    %v1820 = vunpack.c.l.bf16 %v1816
    %v1821 = vunpack.c.l.bf16 %v1817
    %v1822 = vunpack.c.l.bf16 %v1818
    %v1823 = vunpack.c.l.bf16 %v1819
    %v1824 = vunpack.c.h.bf16 %v1816
    %v1825 = vunpack.c.h.bf16 %v1817
    %v1826 = vunpack.c.h.bf16 %v1818
    %v1827 = vunpack.c.h.bf16 %v1819
    %v1828 = vadd.f32 %v1679, %v1820
    %v1829 = vadd.f32 %v1681, %v1821
    %v1830 = vadd.f32 %v1722, %v1822
    %v1831 = vadd.f32 %v1724, %v1823
    %v1832 = vadd.f32 %v1683, %v1824
    %v1833 = vadd.f32 %v1685, %v1825
    %v1834 = vadd.f32 %v1726, %v1826
    %v1835 = vadd.f32 %v1728, %v1827
    %s1836 = scalar_lea.vmem [#allocation2], 256
    %v1837 = vld [vmem:[%s1836 + $0x20] sm:$0xff]
    %v1838 = vld [vmem:[%s1836 + $0x28] sm:$0xff]
    %v1839 = vld [vmem:[%s1836 + $0x30] sm:$0xff]
    %v1840 = vld [vmem:[%s1836 + $0x38] sm:$0xff]
    %v1841 = vunpack.c.l.bf16 %v1837
    %v1842 = vunpack.c.l.bf16 %v1838
    %v1843 = vunpack.c.l.bf16 %v1839
    %v1844 = vunpack.c.l.bf16 %v1840
    %v1845 = vunpack.c.h.bf16 %v1837
    %v1846 = vunpack.c.h.bf16 %v1838
    %v1847 = vunpack.c.h.bf16 %v1839
    %v1848 = vunpack.c.h.bf16 %v1840
    %v1849 = vadd.f32 %v1765, %v1841
    %v1850 = vadd.f32 %v1767, %v1842
    %v1851 = vadd.f32 %v1808, %v1843
    %v1852 = vadd.f32 %v1810, %v1844
    %v1853 = vadd.f32 %v1769, %v1845
    %v1854 = vadd.f32 %v1771, %v1846
    %v1855 = vadd.f32 %v1812, %v1847
    %v1856 = vadd.f32 %v1814, %v1848
    %v1857 = vxor.u32 %v1828, 2147483648
    %v1858 = vxor.u32 %v1832, 2147483648
    %v1859 = vmul.f32 %v1857, 1.442695
    %v1860 = vpow.pop %v1859
    %v1861 = vmul.f32 %v1858, 1.442695
    %v1862 = vpow.pop %v1861
    %v1863 = vadd.f32 %v1860, 1.0
    %v1864 = vadd.f32 %v1862, 1.0
    %v1865 = vrcp.pop %v1863
    %v1866 = vmul.f32 1.0, %v1865
    %v1867 = vrcp.pop %v1864
    %v1868 = vmul.f32 1.0, %v1867
    %v1869 = vxor.u32 %v1829, 2147483648
    %v1870 = vxor.u32 %v1833, 2147483648
    %v1871 = vmul.f32 %v1869, 1.442695
    %v1872 = vpow.pop %v1871
    %v1873 = vmul.f32 %v1870, 1.442695
    %v1874 = vpow.pop %v1873
    %v1875 = vadd.f32 %v1872, 1.0
    %v1876 = vadd.f32 %v1874, 1.0
    %v1877 = vrcp.pop %v1875
    %v1878 = vmul.f32 1.0, %v1877
    %v1879 = vrcp.pop %v1876
    %v1880 = vmul.f32 1.0, %v1879
    %v1881 = vtanh.pop %v1830
    %v1882 = vtanh.pop %v1834
    %v1883 = vxor.u32 %v1831, 2147483648
    %v1884 = vxor.u32 %v1835, 2147483648
    %v1885 = vmul.f32 %v1883, 1.442695
    %v1886 = vpow.pop %v1885
    %v1887 = vmul.f32 %v1884, 1.442695
    %v1888 = vpow.pop %v1887
    %v1889 = vadd.f32 %v1886, 1.0
    %v1890 = vadd.f32 %v1888, 1.0
    %v1891 = vrcp.pop %v1889
    %v1892 = vmul.f32 1.0, %v1891
    %v1893 = vrcp.pop %v1890
    %v1894 = vmul.f32 1.0, %v1893
    %v1895 = vmul.f32 %v1878, 0.0
    %v1896 = vmul.f32 %v1880, 0.0
    %v1897 = vmul.f32 %v1866, %v1881
    %v1898 = vmul.f32 %v1868, %v1882
    %v1899 = vadd.f32 %v1895, %v1897
    %v1900 = vadd.f32 %v1896, %v1898
    %v1901 = vtanh.pop %v1899
    %v1902 = vtanh.pop %v1900
    %v1903 = vmul.f32 %v1892, %v1901
    %v1904 = vmul.f32 %v1894, %v1902
    %v1905 = vsel %vm989, %v1899, 0.0
    %v1906 = vsel %vm990, %v1900, 0.0
    %v1907 = vsel %vm989, %v1903, 0.0
    %v1908 = vsel %vm990, %v1904, 0.0
    %v1909 = vxor.u32 %v1849, 2147483648
    %v1910 = vxor.u32 %v1853, 2147483648
    %v1911 = vmul.f32 %v1909, 1.442695
    %v1912 = vpow.pop %v1911
    %v1913 = vmul.f32 %v1910, 1.442695
    %v1914 = vpow.pop %v1913
    %v1915 = vadd.f32 %v1912, 1.0
    %v1916 = vadd.f32 %v1914, 1.0
    %v1917 = vrcp.pop %v1915
    %v1918 = vmul.f32 1.0, %v1917
    %v1919 = vrcp.pop %v1916
    %v1920 = vmul.f32 1.0, %v1919
    %v1921 = vxor.u32 %v1850, 2147483648
    %v1922 = vxor.u32 %v1854, 2147483648
    %v1923 = vmul.f32 %v1921, 1.442695
    %v1924 = vpow.pop %v1923
    %v1925 = vmul.f32 %v1922, 1.442695
    %v1926 = vpow.pop %v1925
    %v1927 = vadd.f32 %v1924, 1.0
    %v1928 = vadd.f32 %v1926, 1.0
    %v1929 = vrcp.pop %v1927
    %v1930 = vmul.f32 1.0, %v1929
    %v1931 = vrcp.pop %v1928
    %v1932 = vmul.f32 1.0, %v1931
    %v1933 = vtanh.pop %v1851
    %v1934 = vtanh.pop %v1855
    %v1935 = vxor.u32 %v1852, 2147483648
    %v1936 = vxor.u32 %v1856, 2147483648
    %v1937 = vmul.f32 %v1935, 1.442695
    %v1938 = vpow.pop %v1937
    %v1939 = vmul.f32 %v1936, 1.442695
    %v1940 = vpow.pop %v1939
    %v1941 = vadd.f32 %v1938, 1.0
    %v1942 = vadd.f32 %v1940, 1.0
    %v1943 = vrcp.pop %v1941
    %v1944 = vmul.f32 1.0, %v1943
    %v1945 = vrcp.pop %v1942
    %v1946 = vmul.f32 1.0, %v1945
    %v1947 = vmul.f32 %v1930, 0.0
    %v1948 = vmul.f32 %v1932, 0.0
    %v1949 = vmul.f32 %v1918, %v1933
    %v1950 = vmul.f32 %v1920, %v1934
    %v1951 = vadd.f32 %v1947, %v1949
    %v1952 = vadd.f32 %v1948, %v1950
    %v1953 = vtanh.pop %v1951
    %v1954 = vtanh.pop %v1952
    %v1955 = vmul.f32 %v1944, %v1953
    %v1956 = vmul.f32 %v1946, %v1954
    %v1957 = vsel %vm1001, %v1951, 0.0
    %v1958 = vsel %vm1002, %v1952, 0.0
    %v1959 = vsel %vm1001, %v1955, 0.0
    %v1960 = vsel %vm1002, %v1956, 0.0
    %v1961 = vpack.c.bf16 %v1908, %v1907
    %1962 = vst [vmem:[#allocation3] sm:$0xff] %v1961
    %v1963 = vpack.c.bf16 %v1960, %v1959
    %s1964 = scalar_lea.vmem [#allocation4], 32
    %1965 = vst [vmem:[%s1964] sm:$0xff] %v1963
    %vm1966 = vcmp.gt.s32.totalorder %v152, 1
    %vm1967 = vcmp.gt.s32.totalorder %v153, 1
    %v1968 = vsel %vm1966, 1, 0
    %v1969 = vsel %vm1967, 1, 0
    %1970 = vset.pattern.permute.xlu0 0
    %1971 = vperm.xlu0 %1970, %v1968
    %v1972 = vpop.permute.xlu0 %1971
    %1973 = vset.pattern.permute.xlu0 0
    %1974 = vperm.xlu0 %1973, %v1969
    %v1975 = vpop.permute.xlu0 %1974
    %vm1976 = vcmp.eq.s32.totalorder %v1972, 1
    %vm1977 = vcmp.eq.s32.totalorder %v1975, 1
    %vm1978 = vcmp.gt.s32.totalorder %v152, 3
    %vm1979 = vcmp.gt.s32.totalorder %v153, 3
    %v1980 = vsel %vm1978, 1, 0
    %v1981 = vsel %vm1979, 1, 0
    %1982 = vset.pattern.permute.xlu0 0
    %1983 = vperm.xlu0 %1982, %v1980
    %v1984 = vpop.permute.xlu0 %1983
    %1985 = vset.pattern.permute.xlu0 0
    %1986 = vperm.xlu0 %1985, %v1981
    %v1987 = vpop.permute.xlu0 %1986
    %vm1988 = vcmp.eq.s32.totalorder %v1984, 1
    %vm1989 = vcmp.eq.s32.totalorder %v1987, 1
    %1990 = vmatprep.subr.bf16.mxu0 %v1389
    %1991 = vmatpush1.bf16.msra.mxu0 %v1388
    %1992 = vmatprep.subr.bf16.mxu0 %v1397
    %1993 = vmatpush1.bf16.msra.mxu0 %v1396
    %1994 = vmatprep.subr.bf16.mxu0 %v1405
    %1995 = vmatpush1.bf16.msra.mxu0 %v1404
    %1996 = vmatprep.subr.bf16.mxu0 %v1413
    %1997 = vmatpush1.bf16.msra.mxu0 %v1412
    %1998 = vmatprep.subr.bf16.mxu0 %v1421
    %1999 = vmatpush1.bf16.msra.mxu0 %v1420
    %2000 = vmatprep.subr.bf16.mxu0 %v1429
    %2001 = vmatpush1.bf16.msra.mxu0 %v1428
    %2002 = vmatprep.subr.bf16.mxu0 %v1437
    %2003 = vmatpush1.bf16.msra.mxu0 %v1436
    %2004 = vmatprep.subr.bf16.mxu0 %v1445
    %2005 = vmatpush1.bf16.msra.mxu0 %v1444
    %2006 = vmatprep.subr.bf16.mxu0 %v1453
    %2007 = vmatpush1.bf16.msra.mxu0 %v1452
    %2008 = vmatprep.subr.bf16.mxu0 %v1461
    %2009 = vmatpush1.bf16.msra.mxu0 %v1460
    %2010 = vmatprep.subr.bf16.mxu0 %v1469
    %2011 = vmatpush1.bf16.msra.mxu0 %v1468
    %2012 = vmatprep.subr.bf16.mxu0 %v1477
    %2013 = vmatpush1.bf16.msra.mxu0 %v1476
    %2014 = vmatprep.subr.bf16.mxu0 %v1485
    %2015 = vmatpush1.bf16.msra.mxu0 %v1484
    %2016 = vmatprep.subr.bf16.mxu0 %v1493
    %2017 = vmatpush1.bf16.msra.mxu0 %v1492
    %2018 = vmatprep.subr.bf16.mxu0 %v1501
    %2019 = vmatpush1.bf16.msra.mxu0 %v1500
    %2020 = vmatprep.subr.bf16.mxu0 %v1509
    %2021 = vmatpush1.bf16.msra.mxu0 %v1508
    %2022 = vmatprep.mubr.bf16.mxu0 %v1963
    %2023 = vmatmul.mubr.bf16.gmra.mrb[0].mxu0 %v1961
    %v2024 = vpop.f32.mrb[0].mxu0
    %v2025 = vadd.f32 0.0, %v2024
    %v2026 = vpop.f32.mrb[0].mxu0
    %v2027 = vadd.f32 0.0, %v2026
    %v2028 = vpop.f32.mrb[0].mxu0
    %v2029 = vadd.f32 0.0, %v2028
    %v2030 = vpop.f32.mrb[0].mxu0
    %v2031 = vadd.f32 0.0, %v2030
    %2032 = vdwg.mxu0
    %2033 = vmatprep.subr.bf16.mxu0 %v1391
    %2034 = vmatpush1.bf16.msra.mxu0 %v1390
    %2035 = vmatprep.subr.bf16.mxu0 %v1399
    %2036 = vmatpush1.bf16.msra.mxu0 %v1398
    %2037 = vmatprep.subr.bf16.mxu0 %v1407
    %2038 = vmatpush1.bf16.msra.mxu0 %v1406
    %2039 = vmatprep.subr.bf16.mxu0 %v1415
    %2040 = vmatpush1.bf16.msra.mxu0 %v1414
    %2041 = vmatprep.subr.bf16.mxu0 %v1423
    %2042 = vmatpush1.bf16.msra.mxu0 %v1422
    %2043 = vmatprep.subr.bf16.mxu0 %v1431
    %2044 = vmatpush1.bf16.msra.mxu0 %v1430
    %2045 = vmatprep.subr.bf16.mxu0 %v1439
    %2046 = vmatpush1.bf16.msra.mxu0 %v1438
    %2047 = vmatprep.subr.bf16.mxu0 %v1447
    %2048 = vmatpush1.bf16.msra.mxu0 %v1446
    %2049 = vmatprep.subr.bf16.mxu0 %v1455
    %2050 = vmatpush1.bf16.msra.mxu0 %v1454
    %2051 = vmatprep.subr.bf16.mxu0 %v1463
    %2052 = vmatpush1.bf16.msra.mxu0 %v1462
    %2053 = vmatprep.subr.bf16.mxu0 %v1471
    %2054 = vmatpush1.bf16.msra.mxu0 %v1470
    %2055 = vmatprep.subr.bf16.mxu0 %v1479
    %2056 = vmatpush1.bf16.msra.mxu0 %v1478
    %2057 = vmatprep.subr.bf16.mxu0 %v1487
    %2058 = vmatpush1.bf16.msra.mxu0 %v1486
    %2059 = vmatprep.subr.bf16.mxu0 %v1495
    %2060 = vmatpush1.bf16.msra.mxu0 %v1494
    %2061 = vmatprep.subr.bf16.mxu0 %v1503
    %2062 = vmatpush1.bf16.msra.mxu0 %v1502
    %2063 = vmatprep.subr.bf16.mxu0 %v1511
    %2064 = vmatpush1.bf16.msra.mxu0 %v1510
    %2065 = vmatprep.mubr.bf16.mxu0 %v1963
    %2066 = vmatmul.mubr.bf16.gmra.mrb[0].mxu0 %v1961
    %v2067 = vpop.f32.mrb[0].mxu0
    %v2068 = vadd.f32 0.0, %v2067
    %v2069 = vpop.f32.mrb[0].mxu0
    %v2070 = vadd.f32 0.0, %v2069
    %v2071 = vpop.f32.mrb[0].mxu0
    %v2072 = vadd.f32 0.0, %v2071
    %v2073 = vpop.f32.mrb[0].mxu0
    %v2074 = vadd.f32 0.0, %v2073
    %2075 = vdwg.mxu0
    %2076 = vmatprep.subr.bf16.mxu0 %v1393
    %2077 = vmatpush1.bf16.msra.mxu0 %v1392
    %2078 = vmatprep.subr.bf16.mxu0 %v1401
    %2079 = vmatpush1.bf16.msra.mxu0 %v1400
    %2080 = vmatprep.subr.bf16.mxu0 %v1409
    %2081 = vmatpush1.bf16.msra.mxu0 %v1408
    %2082 = vmatprep.subr.bf16.mxu0 %v1417
    %2083 = vmatpush1.bf16.msra.mxu0 %v1416
    %2084 = vmatprep.subr.bf16.mxu0 %v1425
    %2085 = vmatpush1.bf16.msra.mxu0 %v1424
    %2086 = vmatprep.subr.bf16.mxu0 %v1433
    %2087 = vmatpush1.bf16.msra.mxu0 %v1432
    %2088 = vmatprep.subr.bf16.mxu0 %v1441
    %2089 = vmatpush1.bf16.msra.mxu0 %v1440
    %2090 = vmatprep.subr.bf16.mxu0 %v1449
    %2091 = vmatpush1.bf16.msra.mxu0 %v1448
    %2092 = vmatprep.subr.bf16.mxu0 %v1457
    %2093 = vmatpush1.bf16.msra.mxu0 %v1456
    %2094 = vmatprep.subr.bf16.mxu0 %v1465
    %2095 = vmatpush1.bf16.msra.mxu0 %v1464
    %2096 = vmatprep.subr.bf16.mxu0 %v1473
    %2097 = vmatpush1.bf16.msra.mxu0 %v1472
    %2098 = vmatprep.subr.bf16.mxu0 %v1481
    %2099 = vmatpush1.bf16.msra.mxu0 %v1480
    %2100 = vmatprep.subr.bf16.mxu0 %v1489
    %2101 = vmatpush1.bf16.msra.mxu0 %v1488
    %2102 = vmatprep.subr.bf16.mxu0 %v1497
    %2103 = vmatpush1.bf16.msra.mxu0 %v1496
    %2104 = vmatprep.subr.bf16.mxu0 %v1505
    %2105 = vmatpush1.bf16.msra.mxu0 %v1504
    %2106 = vmatprep.subr.bf16.mxu0 %v1513
    %2107 = vmatpush1.bf16.msra.mxu0 %v1512
    %2108 = vmatprep.mubr.bf16.mxu0 %v1963
    %2109 = vmatmul.mubr.bf16.gmra.mrb[0].mxu0 %v1961
    %v2110 = vpop.f32.mrb[0].mxu0
    %v2111 = vadd.f32 0.0, %v2110
    %v2112 = vpop.f32.mrb[0].mxu0
    %v2113 = vadd.f32 0.0, %v2112
    %v2114 = vpop.f32.mrb[0].mxu0
    %v2115 = vadd.f32 0.0, %v2114
    %v2116 = vpop.f32.mrb[0].mxu0
    %v2117 = vadd.f32 0.0, %v2116
    %2118 = vdwg.mxu0
    %2119 = vmatprep.subr.bf16.mxu0 %v1395
    %2120 = vmatpush1.bf16.msra.mxu0 %v1394
    %2121 = vmatprep.subr.bf16.mxu0 %v1403
    %2122 = vmatpush1.bf16.msra.mxu0 %v1402
    %2123 = vmatprep.subr.bf16.mxu0 %v1411
    %2124 = vmatpush1.bf16.msra.mxu0 %v1410
    %2125 = vmatprep.subr.bf16.mxu0 %v1419
    %2126 = vmatpush1.bf16.msra.mxu0 %v1418
    %2127 = vmatprep.subr.bf16.mxu0 %v1427
    %2128 = vmatpush1.bf16.msra.mxu0 %v1426
    %2129 = vmatprep.subr.bf16.mxu0 %v1435
    %2130 = vmatpush1.bf16.msra.mxu0 %v1434
    %2131 = vmatprep.subr.bf16.mxu0 %v1443
    %2132 = vmatpush1.bf16.msra.mxu0 %v1442
    %2133 = vmatprep.subr.bf16.mxu0 %v1451
    %2134 = vmatpush1.bf16.msra.mxu0 %v1450
    %2135 = vmatprep.subr.bf16.mxu0 %v1459
    %2136 = vmatpush1.bf16.msra.mxu0 %v1458
    %2137 = vmatprep.subr.bf16.mxu0 %v1467
    %2138 = vmatpush1.bf16.msra.mxu0 %v1466
    %2139 = vmatprep.subr.bf16.mxu0 %v1475
    %2140 = vmatpush1.bf16.msra.mxu0 %v1474
    %2141 = vmatprep.subr.bf16.mxu0 %v1483
    %2142 = vmatpush1.bf16.msra.mxu0 %v1482
    %2143 = vmatprep.subr.bf16.mxu0 %v1491
    %2144 = vmatpush1.bf16.msra.mxu0 %v1490
    %2145 = vmatprep.subr.bf16.mxu0 %v1499
    %2146 = vmatpush1.bf16.msra.mxu0 %v1498
    %2147 = vmatprep.subr.bf16.mxu0 %v1507
    %2148 = vmatpush1.bf16.msra.mxu0 %v1506
    %2149 = vmatprep.subr.bf16.mxu0 %v1515
    %2150 = vmatpush1.bf16.msra.mxu0 %v1514
    %2151 = vmatprep.mubr.bf16.mxu0 %v1963
    %2152 = vmatmul.mubr.bf16.gmra.mrb[0].mxu0 %v1961
    %v2153 = vpop.f32.mrb[0].mxu0
    %v2154 = vadd.f32 0.0, %v2153
    %v2155 = vpop.f32.mrb[0].mxu0
    %v2156 = vadd.f32 0.0, %v2155
    %v2157 = vpop.f32.mrb[0].mxu0
    %v2158 = vadd.f32 0.0, %v2157
    %v2159 = vpop.f32.mrb[0].mxu0
    %v2160 = vadd.f32 0.0, %v2159
    %2161 = vdwg.mxu0
    %s2162 = scalar_lea.vmem [#allocation2], 64
    %v2163 = vld [vmem:[%s2162] sm:$0xff]
    %v2164 = vld [vmem:[%s2162 + $0x8] sm:$0xff]
    %v2165 = vld [vmem:[%s2162 + $0x10] sm:$0xff]
    %v2166 = vld [vmem:[%s2162 + $0x18] sm:$0xff]
    %v2167 = vunpack.c.l.bf16 %v2163
    %v2168 = vunpack.c.l.bf16 %v2164
    %v2169 = vunpack.c.l.bf16 %v2165
    %v2170 = vunpack.c.l.bf16 %v2166
    %v2171 = vunpack.c.h.bf16 %v2163
    %v2172 = vunpack.c.h.bf16 %v2164
    %v2173 = vunpack.c.h.bf16 %v2165
    %v2174 = vunpack.c.h.bf16 %v2166
    %v2175 = vadd.f32 %v2025, %v2167
    %v2176 = vadd.f32 %v2027, %v2168
    %v2177 = vadd.f32 %v2068, %v2169
    %v2178 = vadd.f32 %v2070, %v2170
    %v2179 = vadd.f32 %v2029, %v2171
    %v2180 = vadd.f32 %v2031, %v2172
    %v2181 = vadd.f32 %v2072, %v2173
    %v2182 = vadd.f32 %v2074, %v2174
    %s2183 = scalar_lea.vmem [#allocation2], 192
    %v2184 = vld [vmem:[%s2183 + $0x20] sm:$0xff]
    %v2185 = vld [vmem:[%s2183 + $0x28] sm:$0xff]
    %v2186 = vld [vmem:[%s2183 + $0x30] sm:$0xff]
    %v2187 = vld [vmem:[%s2183 + $0x38] sm:$0xff]
    %v2188 = vunpack.c.l.bf16 %v2184
    %v2189 = vunpack.c.l.bf16 %v2185
    %v2190 = vunpack.c.l.bf16 %v2186
    %v2191 = vunpack.c.l.bf16 %v2187
    %v2192 = vunpack.c.h.bf16 %v2184
    %v2193 = vunpack.c.h.bf16 %v2185
    %v2194 = vunpack.c.h.bf16 %v2186
    %v2195 = vunpack.c.h.bf16 %v2187
    %v2196 = vadd.f32 %v2111, %v2188
    %v2197 = vadd.f32 %v2113, %v2189
    %v2198 = vadd.f32 %v2154, %v2190
    %v2199 = vadd.f32 %v2156, %v2191
    %v2200 = vadd.f32 %v2115, %v2192
    %v2201 = vadd.f32 %v2117, %v2193
    %v2202 = vadd.f32 %v2158, %v2194
    %v2203 = vadd.f32 %v2160, %v2195
    %v2204 = vxor.u32 %v2175, 2147483648
    %v2205 = vxor.u32 %v2179, 2147483648
    %v2206 = vmul.f32 %v2204, 1.442695
    %v2207 = vpow.pop %v2206
    %v2208 = vmul.f32 %v2205, 1.442695
    %v2209 = vpow.pop %v2208
    %v2210 = vadd.f32 %v2207, 1.0
    %v2211 = vadd.f32 %v2209, 1.0
    %v2212 = vrcp.pop %v2210
    %v2213 = vmul.f32 1.0, %v2212
    %v2214 = vrcp.pop %v2211
    %v2215 = vmul.f32 1.0, %v2214
    %v2216 = vxor.u32 %v2176, 2147483648
    %v2217 = vxor.u32 %v2180, 2147483648
    %v2218 = vmul.f32 %v2216, 1.442695
    %v2219 = vpow.pop %v2218
    %v2220 = vmul.f32 %v2217, 1.442695
    %v2221 = vpow.pop %v2220
    %v2222 = vadd.f32 %v2219, 1.0
    %v2223 = vadd.f32 %v2221, 1.0
    %v2224 = vrcp.pop %v2222
    %v2225 = vmul.f32 1.0, %v2224
    %v2226 = vrcp.pop %v2223
    %v2227 = vmul.f32 1.0, %v2226
    %v2228 = vtanh.pop %v2177
    %v2229 = vtanh.pop %v2181
    %v2230 = vxor.u32 %v2178, 2147483648
    %v2231 = vxor.u32 %v2182, 2147483648
    %v2232 = vmul.f32 %v2230, 1.442695
    %v2233 = vpow.pop %v2232
    %v2234 = vmul.f32 %v2231, 1.442695
    %v2235 = vpow.pop %v2234
    %v2236 = vadd.f32 %v2233, 1.0
    %v2237 = vadd.f32 %v2235, 1.0
    %v2238 = vrcp.pop %v2236
    %v2239 = vmul.f32 1.0, %v2238
    %v2240 = vrcp.pop %v2237
    %v2241 = vmul.f32 1.0, %v2240
    %v2242 = vmul.f32 %v2225, %v1905
    %v2243 = vmul.f32 %v2227, %v1906
    %v2244 = vmul.f32 %v2213, %v2228
    %v2245 = vmul.f32 %v2215, %v2229
    %v2246 = vadd.f32 %v2242, %v2244
    %v2247 = vadd.f32 %v2243, %v2245
    %v2248 = vtanh.pop %v2246
    %v2249 = vtanh.pop %v2247
    %v2250 = vmul.f32 %v2239, %v2248
    %v2251 = vmul.f32 %v2241, %v2249
    %v2252 = vsel %vm1976, %v2246, %v1905
    %v2253 = vsel %vm1977, %v2247, %v1906
    %v2254 = vsel %vm1976, %v2250, %v1907
    %v2255 = vsel %vm1977, %v2251, %v1908
    %v2256 = vsel %vm1976, %v2250, 0.0
    %v2257 = vsel %vm1977, %v2251, 0.0
    %v2258 = vxor.u32 %v2196, 2147483648
    %v2259 = vxor.u32 %v2200, 2147483648
    %v2260 = vmul.f32 %v2258, 1.442695
    %v2261 = vpow.pop %v2260
    %v2262 = vmul.f32 %v2259, 1.442695
    %v2263 = vpow.pop %v2262
    %v2264 = vadd.f32 %v2261, 1.0
    %v2265 = vadd.f32 %v2263, 1.0
    %v2266 = vrcp.pop %v2264
    %v2267 = vmul.f32 1.0, %v2266
    %v2268 = vrcp.pop %v2265
    %v2269 = vmul.f32 1.0, %v2268
    %v2270 = vxor.u32 %v2197, 2147483648
    %v2271 = vxor.u32 %v2201, 2147483648
    %v2272 = vmul.f32 %v2270, 1.442695
    %v2273 = vpow.pop %v2272
    %v2274 = vmul.f32 %v2271, 1.442695
    %v2275 = vpow.pop %v2274
    %v2276 = vadd.f32 %v2273, 1.0
    %v2277 = vadd.f32 %v2275, 1.0
    %v2278 = vrcp.pop %v2276
    %v2279 = vmul.f32 1.0, %v2278
    %v2280 = vrcp.pop %v2277
    %v2281 = vmul.f32 1.0, %v2280
    %v2282 = vtanh.pop %v2198
    %v2283 = vtanh.pop %v2202
    %v2284 = vxor.u32 %v2199, 2147483648
    %v2285 = vxor.u32 %v2203, 2147483648
    %v2286 = vmul.f32 %v2284, 1.442695
    %v2287 = vpow.pop %v2286
    %v2288 = vmul.f32 %v2285, 1.442695
    %v2289 = vpow.pop %v2288
    %v2290 = vadd.f32 %v2287, 1.0
    %v2291 = vadd.f32 %v2289, 1.0
    %v2292 = vrcp.pop %v2290
    %v2293 = vmul.f32 1.0, %v2292
    %v2294 = vrcp.pop %v2291
    %v2295 = vmul.f32 1.0, %v2294
    %v2296 = vmul.f32 %v2279, %v1957
    %v2297 = vmul.f32 %v2281, %v1958
    %v2298 = vmul.f32 %v2267, %v2282
    %v2299 = vmul.f32 %v2269, %v2283
    %v2300 = vadd.f32 %v2296, %v2298
    %v2301 = vadd.f32 %v2297, %v2299
    %v2302 = vtanh.pop %v2300
    %v2303 = vtanh.pop %v2301
    %v2304 = vmul.f32 %v2293, %v2302
    %v2305 = vmul.f32 %v2295, %v2303
    %v2306 = vsel %vm1988, %v2300, %v1957
    %v2307 = vsel %vm1989, %v2301, %v1958
    %v2308 = vsel %vm1988, %v2304, %v1959
    %v2309 = vsel %vm1989, %v2305, %v1960
    %v2310 = vsel %vm1988, %v2304, 0.0
    %v2311 = vsel %vm1989, %v2305, 0.0
    %v2312 = vpack.c.bf16 %v2257, %v2256
    %s2313 = scalar_lea.vmem [#allocation3], 8
    %2314 = vst [vmem:[%s2313] sm:$0xff] %v2312
    %v2315 = vpack.c.bf16 %v2311, %v2310
    %s2316 = scalar_lea.vmem [#allocation4], 24
    %2317 = vst [vmem:[%s2316] sm:$0xff] %v2315
    %vm2318 = vcmp.gt.s32.totalorder %v152, 2
    %vm2319 = vcmp.gt.s32.totalorder %v153, 2
    %v2320 = vsel %vm2318, 1, 0
    %v2321 = vsel %vm2319, 1, 0
    %2322 = vset.pattern.permute.xlu0 0
    %2323 = vperm.xlu0 %2322, %v2320
    %v2324 = vpop.permute.xlu0 %2323
    %2325 = vset.pattern.permute.xlu0 0
    %2326 = vperm.xlu0 %2325, %v2321
    %v2327 = vpop.permute.xlu0 %2326
    %vm2328 = vcmp.eq.s32.totalorder %v2324, 1
    %vm2329 = vcmp.eq.s32.totalorder %v2327, 1
    %v2330 = vpack.c.bf16 %v2255, %v2254
    %v2331 = vpack.c.bf16 %v2309, %v2308
    %2332 = vmatprep.subr.bf16.mxu0 %v1389
    %2333 = vmatpush1.bf16.msra.mxu0 %v1388
    %2334 = vmatprep.subr.bf16.mxu0 %v1397
    %2335 = vmatpush1.bf16.msra.mxu0 %v1396
    %2336 = vmatprep.subr.bf16.mxu0 %v1405
    %2337 = vmatpush1.bf16.msra.mxu0 %v1404
    %2338 = vmatprep.subr.bf16.mxu0 %v1413
    %2339 = vmatpush1.bf16.msra.mxu0 %v1412
    %2340 = vmatprep.subr.bf16.mxu0 %v1421
    %2341 = vmatpush1.bf16.msra.mxu0 %v1420
    %2342 = vmatprep.subr.bf16.mxu0 %v1429
    %2343 = vmatpush1.bf16.msra.mxu0 %v1428
    %2344 = vmatprep.subr.bf16.mxu0 %v1437
    %2345 = vmatpush1.bf16.msra.mxu0 %v1436
    %2346 = vmatprep.subr.bf16.mxu0 %v1445
    %2347 = vmatpush1.bf16.msra.mxu0 %v1444
    %2348 = vmatprep.subr.bf16.mxu0 %v1453
    %2349 = vmatpush1.bf16.msra.mxu0 %v1452
    %2350 = vmatprep.subr.bf16.mxu0 %v1461
    %2351 = vmatpush1.bf16.msra.mxu0 %v1460
    %2352 = vmatprep.subr.bf16.mxu0 %v1469
    %2353 = vmatpush1.bf16.msra.mxu0 %v1468
    %2354 = vmatprep.subr.bf16.mxu0 %v1477
    %2355 = vmatpush1.bf16.msra.mxu0 %v1476
    %2356 = vmatprep.subr.bf16.mxu0 %v1485
    %2357 = vmatpush1.bf16.msra.mxu0 %v1484
    %2358 = vmatprep.subr.bf16.mxu0 %v1493
    %2359 = vmatpush1.bf16.msra.mxu0 %v1492
    %2360 = vmatprep.subr.bf16.mxu0 %v1501
    %2361 = vmatpush1.bf16.msra.mxu0 %v1500
    %2362 = vmatprep.subr.bf16.mxu0 %v1509
    %2363 = vmatpush1.bf16.msra.mxu0 %v1508
    %2364 = vmatprep.mubr.bf16.mxu0 %v2331
    %2365 = vmatmul.mubr.bf16.gmra.mrb[0].mxu0 %v2330
    %v2366 = vpop.f32.mrb[0].mxu0
    %v2367 = vadd.f32 0.0, %v2366
    %v2368 = vpop.f32.mrb[0].mxu0
    %v2369 = vadd.f32 0.0, %v2368
    %v2370 = vpop.f32.mrb[0].mxu0
    %v2371 = vadd.f32 0.0, %v2370
    %v2372 = vpop.f32.mrb[0].mxu0
    %v2373 = vadd.f32 0.0, %v2372
    %2374 = vdwg.mxu0
    %2375 = vmatprep.subr.bf16.mxu0 %v1391
    %2376 = vmatpush1.bf16.msra.mxu0 %v1390
    %2377 = vmatprep.subr.bf16.mxu0 %v1399
    %2378 = vmatpush1.bf16.msra.mxu0 %v1398
    %2379 = vmatprep.subr.bf16.mxu0 %v1407
    %2380 = vmatpush1.bf16.msra.mxu0 %v1406
    %2381 = vmatprep.subr.bf16.mxu0 %v1415
    %2382 = vmatpush1.bf16.msra.mxu0 %v1414
    %2383 = vmatprep.subr.bf16.mxu0 %v1423
    %2384 = vmatpush1.bf16.msra.mxu0 %v1422
    %2385 = vmatprep.subr.bf16.mxu0 %v1431
    %2386 = vmatpush1.bf16.msra.mxu0 %v1430
    %2387 = vmatprep.subr.bf16.mxu0 %v1439
    %2388 = vmatpush1.bf16.msra.mxu0 %v1438
    %2389 = vmatprep.subr.bf16.mxu0 %v1447
    %2390 = vmatpush1.bf16.msra.mxu0 %v1446
    %2391 = vmatprep.subr.bf16.mxu0 %v1455
    %2392 = vmatpush1.bf16.msra.mxu0 %v1454
    %2393 = vmatprep.subr.bf16.mxu0 %v1463
    %2394 = vmatpush1.bf16.msra.mxu0 %v1462
    %2395 = vmatprep.subr.bf16.mxu0 %v1471
    %2396 = vmatpush1.bf16.msra.mxu0 %v1470
    %2397 = vmatprep.subr.bf16.mxu0 %v1479
    %2398 = vmatpush1.bf16.msra.mxu0 %v1478
    %2399 = vmatprep.subr.bf16.mxu0 %v1487
    %2400 = vmatpush1.bf16.msra.mxu0 %v1486
    %2401 = vmatprep.subr.bf16.mxu0 %v1495
    %2402 = vmatpush1.bf16.msra.mxu0 %v1494
    %2403 = vmatprep.subr.bf16.mxu0 %v1503
    %2404 = vmatpush1.bf16.msra.mxu0 %v1502
    %2405 = vmatprep.subr.bf16.mxu0 %v1511
    %2406 = vmatpush1.bf16.msra.mxu0 %v1510
    %2407 = vmatprep.mubr.bf16.mxu0 %v2331
    %2408 = vmatmul.mubr.bf16.gmra.mrb[0].mxu0 %v2330
    %v2409 = vpop.f32.mrb[0].mxu0
    %v2410 = vadd.f32 0.0, %v2409
    %v2411 = vpop.f32.mrb[0].mxu0
    %v2412 = vadd.f32 0.0, %v2411
    %v2413 = vpop.f32.mrb[0].mxu0
    %v2414 = vadd.f32 0.0, %v2413
    %v2415 = vpop.f32.mrb[0].mxu0
    %v2416 = vadd.f32 0.0, %v2415
    %2417 = vdwg.mxu0
    %2418 = vmatprep.subr.bf16.mxu0 %v1393
    %2419 = vmatpush1.bf16.msra.mxu0 %v1392
    %2420 = vmatprep.subr.bf16.mxu0 %v1401
    %2421 = vmatpush1.bf16.msra.mxu0 %v1400
    %2422 = vmatprep.subr.bf16.mxu0 %v1409
    %2423 = vmatpush1.bf16.msra.mxu0 %v1408
    %2424 = vmatprep.subr.bf16.mxu0 %v1417
    %2425 = vmatpush1.bf16.msra.mxu0 %v1416
    %2426 = vmatprep.subr.bf16.mxu0 %v1425
    %2427 = vmatpush1.bf16.msra.mxu0 %v1424
    %2428 = vmatprep.subr.bf16.mxu0 %v1433
    %2429 = vmatpush1.bf16.msra.mxu0 %v1432
    %2430 = vmatprep.subr.bf16.mxu0 %v1441
    %2431 = vmatpush1.bf16.msra.mxu0 %v1440
    %2432 = vmatprep.subr.bf16.mxu0 %v1449
    %2433 = vmatpush1.bf16.msra.mxu0 %v1448
    %2434 = vmatprep.subr.bf16.mxu0 %v1457
    %2435 = vmatpush1.bf16.msra.mxu0 %v1456
    %2436 = vmatprep.subr.bf16.mxu0 %v1465
    %2437 = vmatpush1.bf16.msra.mxu0 %v1464
    %2438 = vmatprep.subr.bf16.mxu0 %v1473
    %2439 = vmatpush1.bf16.msra.mxu0 %v1472
    %2440 = vmatprep.subr.bf16.mxu0 %v1481
    %2441 = vmatpush1.bf16.msra.mxu0 %v1480
    %2442 = vmatprep.subr.bf16.mxu0 %v1489
    %2443 = vmatpush1.bf16.msra.mxu0 %v1488
    %2444 = vmatprep.subr.bf16.mxu0 %v1497
    %2445 = vmatpush1.bf16.msra.mxu0 %v1496
    %2446 = vmatprep.subr.bf16.mxu0 %v1505
    %2447 = vmatpush1.bf16.msra.mxu0 %v1504
    %2448 = vmatprep.subr.bf16.mxu0 %v1513
    %2449 = vmatpush1.bf16.msra.mxu0 %v1512
    %2450 = vmatprep.mubr.bf16.mxu0 %v2331
    %2451 = vmatmul.mubr.bf16.gmra.mrb[0].mxu0 %v2330
    %v2452 = vpop.f32.mrb[0].mxu0
    %v2453 = vadd.f32 0.0, %v2452
    %v2454 = vpop.f32.mrb[0].mxu0
    %v2455 = vadd.f32 0.0, %v2454
    %v2456 = vpop.f32.mrb[0].mxu0
    %v2457 = vadd.f32 0.0, %v2456
    %v2458 = vpop.f32.mrb[0].mxu0
    %v2459 = vadd.f32 0.0, %v2458
    %2460 = vdwg.mxu0
    %2461 = vmatprep.subr.bf16.mxu0 %v1395
    %2462 = vmatpush1.bf16.msra.mxu0 %v1394
    %2463 = vmatprep.subr.bf16.mxu0 %v1403
    %2464 = vmatpush1.bf16.msra.mxu0 %v1402
    %2465 = vmatprep.subr.bf16.mxu0 %v1411
    %2466 = vmatpush1.bf16.msra.mxu0 %v1410
    %2467 = vmatprep.subr.bf16.mxu0 %v1419
    %2468 = vmatpush1.bf16.msra.mxu0 %v1418
    %2469 = vmatprep.subr.bf16.mxu0 %v1427
    %2470 = vmatpush1.bf16.msra.mxu0 %v1426
    %2471 = vmatprep.subr.bf16.mxu0 %v1435
    %2472 = vmatpush1.bf16.msra.mxu0 %v1434
    %2473 = vmatprep.subr.bf16.mxu0 %v1443
    %2474 = vmatpush1.bf16.msra.mxu0 %v1442
    %2475 = vmatprep.subr.bf16.mxu0 %v1451
    %2476 = vmatpush1.bf16.msra.mxu0 %v1450
    %2477 = vmatprep.subr.bf16.mxu0 %v1459
    %2478 = vmatpush1.bf16.msra.mxu0 %v1458
    %2479 = vmatprep.subr.bf16.mxu0 %v1467
    %2480 = vmatpush1.bf16.msra.mxu0 %v1466
    %2481 = vmatprep.subr.bf16.mxu0 %v1475
    %2482 = vmatpush1.bf16.msra.mxu0 %v1474
    %2483 = vmatprep.subr.bf16.mxu0 %v1483
    %2484 = vmatpush1.bf16.msra.mxu0 %v1482
    %2485 = vmatprep.subr.bf16.mxu0 %v1491
    %2486 = vmatpush1.bf16.msra.mxu0 %v1490
    %2487 = vmatprep.subr.bf16.mxu0 %v1499
    %2488 = vmatpush1.bf16.msra.mxu0 %v1498
    %2489 = vmatprep.subr.bf16.mxu0 %v1507
    %2490 = vmatpush1.bf16.msra.mxu0 %v1506
    %2491 = vmatprep.subr.bf16.mxu0 %v1515
    %2492 = vmatpush1.bf16.msra.mxu0 %v1514
    %2493 = vmatprep.mubr.bf16.mxu0 %v2331
    %2494 = vmatmul.mubr.bf16.gmra.mrb[0].mxu0 %v2330
    %v2495 = vpop.f32.mrb[0].mxu0
    %v2496 = vadd.f32 0.0, %v2495
    %v2497 = vpop.f32.mrb[0].mxu0
    %v2498 = vadd.f32 0.0, %v2497
    %v2499 = vpop.f32.mrb[0].mxu0
    %v2500 = vadd.f32 0.0, %v2499
    %v2501 = vpop.f32.mrb[0].mxu0
    %v2502 = vadd.f32 0.0, %v2501
    %2503 = vdwg.mxu0
    %s2504 = scalar_lea.vmem [#allocation2], 128
    %v2505 = vld [vmem:[%s2504] sm:$0xff]
    %v2506 = vld [vmem:[%s2504 + $0x8] sm:$0xff]
    %v2507 = vld [vmem:[%s2504 + $0x10] sm:$0xff]
    %v2508 = vld [vmem:[%s2504 + $0x18] sm:$0xff]
    %v2509 = vunpack.c.l.bf16 %v2505
    %v2510 = vunpack.c.l.bf16 %v2506
    %v2511 = vunpack.c.l.bf16 %v2507
    %v2512 = vunpack.c.l.bf16 %v2508
    %v2513 = vunpack.c.h.bf16 %v2505
    %v2514 = vunpack.c.h.bf16 %v2506
    %v2515 = vunpack.c.h.bf16 %v2507
    %v2516 = vunpack.c.h.bf16 %v2508
    %v2517 = vadd.f32 %v2367, %v2509
    %v2518 = vadd.f32 %v2369, %v2510
    %v2519 = vadd.f32 %v2410, %v2511
    %v2520 = vadd.f32 %v2412, %v2512
    %v2521 = vadd.f32 %v2371, %v2513
    %v2522 = vadd.f32 %v2373, %v2514
    %v2523 = vadd.f32 %v2414, %v2515
    %v2524 = vadd.f32 %v2416, %v2516
    %v2525 = vld [vmem:[%s2504 + $0x20] sm:$0xff]
    %v2526 = vld [vmem:[%s2504 + $0x28] sm:$0xff]
    %v2527 = vld [vmem:[%s2504 + $0x30] sm:$0xff]
    %v2528 = vld [vmem:[%s2504 + $0x38] sm:$0xff]
    %v2529 = vunpack.c.l.bf16 %v2525
    %v2530 = vunpack.c.l.bf16 %v2526
    %v2531 = vunpack.c.l.bf16 %v2527
    %v2532 = vunpack.c.l.bf16 %v2528
    %v2533 = vunpack.c.h.bf16 %v2525
    %v2534 = vunpack.c.h.bf16 %v2526
    %v2535 = vunpack.c.h.bf16 %v2527
    %v2536 = vunpack.c.h.bf16 %v2528
    %v2537 = vadd.f32 %v2453, %v2529
    %v2538 = vadd.f32 %v2455, %v2530
    %v2539 = vadd.f32 %v2496, %v2531
    %v2540 = vadd.f32 %v2498, %v2532
    %v2541 = vadd.f32 %v2457, %v2533
    %v2542 = vadd.f32 %v2459, %v2534
    %v2543 = vadd.f32 %v2500, %v2535
    %v2544 = vadd.f32 %v2502, %v2536
    %v2545 = vxor.u32 %v2517, 2147483648
    %v2546 = vxor.u32 %v2521, 2147483648
    %v2547 = vmul.f32 %v2545, 1.442695
    %v2548 = vpow.pop %v2547
    %v2549 = vmul.f32 %v2546, 1.442695
    %v2550 = vpow.pop %v2549
    %v2551 = vadd.f32 %v2548, 1.0
    %v2552 = vadd.f32 %v2550, 1.0
    %v2553 = vrcp.pop %v2551
    %v2554 = vmul.f32 1.0, %v2553
    %v2555 = vrcp.pop %v2552
    %v2556 = vmul.f32 1.0, %v2555
    %v2557 = vxor.u32 %v2518, 2147483648
    %v2558 = vxor.u32 %v2522, 2147483648
    %v2559 = vmul.f32 %v2557, 1.442695
    %v2560 = vpow.pop %v2559
    %v2561 = vmul.f32 %v2558, 1.442695
    %v2562 = vpow.pop %v2561
    %v2563 = vadd.f32 %v2560, 1.0
    %v2564 = vadd.f32 %v2562, 1.0
    %v2565 = vrcp.pop %v2563
    %v2566 = vmul.f32 1.0, %v2565
    %v2567 = vrcp.pop %v2564
    %v2568 = vmul.f32 1.0, %v2567
    %v2569 = vtanh.pop %v2519
    %v2570 = vtanh.pop %v2523
    %v2571 = vxor.u32 %v2520, 2147483648
    %v2572 = vxor.u32 %v2524, 2147483648
    %v2573 = vmul.f32 %v2571, 1.442695
    %v2574 = vpow.pop %v2573
    %v2575 = vmul.f32 %v2572, 1.442695
    %v2576 = vpow.pop %v2575
    %v2577 = vadd.f32 %v2574, 1.0
    %v2578 = vadd.f32 %v2576, 1.0
    %v2579 = vrcp.pop %v2577
    %v2580 = vmul.f32 1.0, %v2579
    %v2581 = vrcp.pop %v2578
    %v2582 = vmul.f32 1.0, %v2581
    %v2583 = vmul.f32 %v2566, %v2252
    %v2584 = vmul.f32 %v2568, %v2253
    %v2585 = vmul.f32 %v2554, %v2569
    %v2586 = vmul.f32 %v2556, %v2570
    %v2587 = vadd.f32 %v2583, %v2585
    %v2588 = vadd.f32 %v2584, %v2586
    %v2589 = vtanh.pop %v2587
    %v2590 = vtanh.pop %v2588
    %v2591 = vmul.f32 %v2580, %v2589
    %v2592 = vmul.f32 %v2582, %v2590
    %v2593 = vsel %vm2328, %v2587, %v2252
    %v2594 = vsel %vm2329, %v2588, %v2253
    %v2595 = vsel %vm2328, %v2591, %v2254
    %v2596 = vsel %vm2329, %v2592, %v2255
    %v2597 = vsel %vm2328, %v2591, 0.0
    %v2598 = vsel %vm2329, %v2592, 0.0
    %v2599 = vxor.u32 %v2537, 2147483648
    %v2600 = vxor.u32 %v2541, 2147483648
    %v2601 = vmul.f32 %v2599, 1.442695
    %v2602 = vpow.pop %v2601
    %v2603 = vmul.f32 %v2600, 1.442695
    %v2604 = vpow.pop %v2603
    %v2605 = vadd.f32 %v2602, 1.0
    %v2606 = vadd.f32 %v2604, 1.0
    %v2607 = vrcp.pop %v2605
    %v2608 = vmul.f32 1.0, %v2607
    %v2609 = vrcp.pop %v2606
    %v2610 = vmul.f32 1.0, %v2609
    %v2611 = vxor.u32 %v2538, 2147483648
    %v2612 = vxor.u32 %v2542, 2147483648
    %v2613 = vmul.f32 %v2611, 1.442695
    %v2614 = vpow.pop %v2613
    %v2615 = vmul.f32 %v2612, 1.442695
    %v2616 = vpow.pop %v2615
    %v2617 = vadd.f32 %v2614, 1.0
    %v2618 = vadd.f32 %v2616, 1.0
    %v2619 = vrcp.pop %v2617
    %v2620 = vmul.f32 1.0, %v2619
    %v2621 = vrcp.pop %v2618
    %v2622 = vmul.f32 1.0, %v2621
    %v2623 = vtanh.pop %v2539
    %v2624 = vtanh.pop %v2543
    %v2625 = vxor.u32 %v2540, 2147483648
    %v2626 = vxor.u32 %v2544, 2147483648
    %v2627 = vmul.f32 %v2625, 1.442695
    %v2628 = vpow.pop %v2627
    %v2629 = vmul.f32 %v2626, 1.442695
    %v2630 = vpow.pop %v2629
    %v2631 = vadd.f32 %v2628, 1.0
    %v2632 = vadd.f32 %v2630, 1.0
    %v2633 = vrcp.pop %v2631
    %v2634 = vmul.f32 1.0, %v2633
    %v2635 = vrcp.pop %v2632
    %v2636 = vmul.f32 1.0, %v2635
    %v2637 = vmul.f32 %v2620, %v2306
    %v2638 = vmul.f32 %v2622, %v2307
    %v2639 = vmul.f32 %v2608, %v2623
    %v2640 = vmul.f32 %v2610, %v2624
    %v2641 = vadd.f32 %v2637, %v2639
    %v2642 = vadd.f32 %v2638, %v2640
    %v2643 = vtanh.pop %v2641
    %v2644 = vtanh.pop %v2642
    %v2645 = vmul.f32 %v2634, %v2643
    %v2646 = vmul.f32 %v2636, %v2644
    %v2647 = vsel %vm2328, %v2641, %v2306
    %v2648 = vsel %vm2329, %v2642, %v2307
    %v2649 = vsel %vm2328, %v2645, %v2308
    %v2650 = vsel %vm2329, %v2646, %v2309
    %v2651 = vsel %vm2328, %v2645, 0.0
    %v2652 = vsel %vm2329, %v2646, 0.0
    %v2653 = vpack.c.bf16 %v2598, %v2597
    %s2654 = scalar_lea.vmem [#allocation3], 16
    %2655 = vst [vmem:[%s2654] sm:$0xff] %v2653
    %v2656 = vpack.c.bf16 %v2652, %v2651
    %s2657 = scalar_lea.vmem [#allocation4], 16
    %2658 = vst [vmem:[%s2657] sm:$0xff] %v2656
    %v2659 = vpack.c.bf16 %v2596, %v2595
    %v2660 = vpack.c.bf16 %v2650, %v2649
    %2661 = vmatprep.subr.bf16.mxu0 %v1389
    %2662 = vmatpush1.bf16.msra.mxu0 %v1388
    %2663 = vmatprep.subr.bf16.mxu0 %v1397
    %2664 = vmatpush1.bf16.msra.mxu0 %v1396
    %2665 = vmatprep.subr.bf16.mxu0 %v1405
    %2666 = vmatpush1.bf16.msra.mxu0 %v1404
    %2667 = vmatprep.subr.bf16.mxu0 %v1413
    %2668 = vmatpush1.bf16.msra.mxu0 %v1412
    %2669 = vmatprep.subr.bf16.mxu0 %v1421
    %2670 = vmatpush1.bf16.msra.mxu0 %v1420
    %2671 = vmatprep.subr.bf16.mxu0 %v1429
    %2672 = vmatpush1.bf16.msra.mxu0 %v1428
    %2673 = vmatprep.subr.bf16.mxu0 %v1437
    %2674 = vmatpush1.bf16.msra.mxu0 %v1436
    %2675 = vmatprep.subr.bf16.mxu0 %v1445
    %2676 = vmatpush1.bf16.msra.mxu0 %v1444
    %2677 = vmatprep.subr.bf16.mxu0 %v1453
    %2678 = vmatpush1.bf16.msra.mxu0 %v1452
    %2679 = vmatprep.subr.bf16.mxu0 %v1461
    %2680 = vmatpush1.bf16.msra.mxu0 %v1460
    %2681 = vmatprep.subr.bf16.mxu0 %v1469
    %2682 = vmatpush1.bf16.msra.mxu0 %v1468
    %2683 = vmatprep.subr.bf16.mxu0 %v1477
    %2684 = vmatpush1.bf16.msra.mxu0 %v1476
    %2685 = vmatprep.subr.bf16.mxu0 %v1485
    %2686 = vmatpush1.bf16.msra.mxu0 %v1484
    %2687 = vmatprep.subr.bf16.mxu0 %v1493
    %2688 = vmatpush1.bf16.msra.mxu0 %v1492
    %2689 = vmatprep.subr.bf16.mxu0 %v1501
    %2690 = vmatpush1.bf16.msra.mxu0 %v1500
    %2691 = vmatprep.subr.bf16.mxu0 %v1509
    %2692 = vmatpush1.bf16.msra.mxu0 %v1508
    %2693 = vmatprep.mubr.bf16.mxu0 %v2660
    %2694 = vmatmul.mubr.bf16.gmra.mrb[0].mxu0 %v2659
    %v2695 = vpop.f32.mrb[0].mxu0
    %v2696 = vadd.f32 0.0, %v2695
    %v2697 = vpop.f32.mrb[0].mxu0
    %v2698 = vadd.f32 0.0, %v2697
    %v2699 = vpop.f32.mrb[0].mxu0
    %v2700 = vadd.f32 0.0, %v2699
    %v2701 = vpop.f32.mrb[0].mxu0
    %v2702 = vadd.f32 0.0, %v2701
    %2703 = vdwg.mxu0
    %2704 = vmatprep.subr.bf16.mxu0 %v1391
    %2705 = vmatpush1.bf16.msra.mxu0 %v1390
    %2706 = vmatprep.subr.bf16.mxu0 %v1399
    %2707 = vmatpush1.bf16.msra.mxu0 %v1398
    %2708 = vmatprep.subr.bf16.mxu0 %v1407
    %2709 = vmatpush1.bf16.msra.mxu0 %v1406
    %2710 = vmatprep.subr.bf16.mxu0 %v1415
    %2711 = vmatpush1.bf16.msra.mxu0 %v1414
    %2712 = vmatprep.subr.bf16.mxu0 %v1423
    %2713 = vmatpush1.bf16.msra.mxu0 %v1422
    %2714 = vmatprep.subr.bf16.mxu0 %v1431
    %2715 = vmatpush1.bf16.msra.mxu0 %v1430
    %2716 = vmatprep.subr.bf16.mxu0 %v1439
    %2717 = vmatpush1.bf16.msra.mxu0 %v1438
    %2718 = vmatprep.subr.bf16.mxu0 %v1447
    %2719 = vmatpush1.bf16.msra.mxu0 %v1446
    %2720 = vmatprep.subr.bf16.mxu0 %v1455
    %2721 = vmatpush1.bf16.msra.mxu0 %v1454
    %2722 = vmatprep.subr.bf16.mxu0 %v1463
    %2723 = vmatpush1.bf16.msra.mxu0 %v1462
    %2724 = vmatprep.subr.bf16.mxu0 %v1471
    %2725 = vmatpush1.bf16.msra.mxu0 %v1470
    %2726 = vmatprep.subr.bf16.mxu0 %v1479
    %2727 = vmatpush1.bf16.msra.mxu0 %v1478
    %2728 = vmatprep.subr.bf16.mxu0 %v1487
    %2729 = vmatpush1.bf16.msra.mxu0 %v1486
    %2730 = vmatprep.subr.bf16.mxu0 %v1495
    %2731 = vmatpush1.bf16.msra.mxu0 %v1494
    %2732 = vmatprep.subr.bf16.mxu0 %v1503
    %2733 = vmatpush1.bf16.msra.mxu0 %v1502
    %2734 = vmatprep.subr.bf16.mxu0 %v1511
    %2735 = vmatpush1.bf16.msra.mxu0 %v1510
    %2736 = vmatprep.mubr.bf16.mxu0 %v2660
    %2737 = vmatmul.mubr.bf16.gmra.mrb[0].mxu0 %v2659
    %v2738 = vpop.f32.mrb[0].mxu0
    %v2739 = vadd.f32 0.0, %v2738
    %v2740 = vpop.f32.mrb[0].mxu0
    %v2741 = vadd.f32 0.0, %v2740
    %v2742 = vpop.f32.mrb[0].mxu0
    %v2743 = vadd.f32 0.0, %v2742
    %v2744 = vpop.f32.mrb[0].mxu0
    %v2745 = vadd.f32 0.0, %v2744
    %2746 = vdwg.mxu0
    %2747 = vmatprep.subr.bf16.mxu0 %v1393
    %2748 = vmatpush1.bf16.msra.mxu0 %v1392
    %2749 = vmatprep.subr.bf16.mxu0 %v1401
    %2750 = vmatpush1.bf16.msra.mxu0 %v1400
    %2751 = vmatprep.subr.bf16.mxu0 %v1409
    %2752 = vmatpush1.bf16.msra.mxu0 %v1408
    %2753 = vmatprep.subr.bf16.mxu0 %v1417
    %2754 = vmatpush1.bf16.msra.mxu0 %v1416
    %2755 = vmatprep.subr.bf16.mxu0 %v1425
    %2756 = vmatpush1.bf16.msra.mxu0 %v1424
    %2757 = vmatprep.subr.bf16.mxu0 %v1433
    %2758 = vmatpush1.bf16.msra.mxu0 %v1432
    %2759 = vmatprep.subr.bf16.mxu0 %v1441
    %2760 = vmatpush1.bf16.msra.mxu0 %v1440
    %2761 = vmatprep.subr.bf16.mxu0 %v1449
    %2762 = vmatpush1.bf16.msra.mxu0 %v1448
    %2763 = vmatprep.subr.bf16.mxu0 %v1457
    %2764 = vmatpush1.bf16.msra.mxu0 %v1456
    %2765 = vmatprep.subr.bf16.mxu0 %v1465
    %2766 = vmatpush1.bf16.msra.mxu0 %v1464
    %2767 = vmatprep.subr.bf16.mxu0 %v1473
    %2768 = vmatpush1.bf16.msra.mxu0 %v1472
    %2769 = vmatprep.subr.bf16.mxu0 %v1481
    %2770 = vmatpush1.bf16.msra.mxu0 %v1480
    %2771 = vmatprep.subr.bf16.mxu0 %v1489
    %2772 = vmatpush1.bf16.msra.mxu0 %v1488
    %2773 = vmatprep.subr.bf16.mxu0 %v1497
    %2774 = vmatpush1.bf16.msra.mxu0 %v1496
    %2775 = vmatprep.subr.bf16.mxu0 %v1505
    %2776 = vmatpush1.bf16.msra.mxu0 %v1504
    %2777 = vmatprep.subr.bf16.mxu0 %v1513
    %2778 = vmatpush1.bf16.msra.mxu0 %v1512
    %2779 = vmatprep.mubr.bf16.mxu0 %v2660
    %2780 = vmatmul.mubr.bf16.gmra.mrb[0].mxu0 %v2659
    %v2781 = vpop.f32.mrb[0].mxu0
    %v2782 = vadd.f32 0.0, %v2781
    %v2783 = vpop.f32.mrb[0].mxu0
    %v2784 = vadd.f32 0.0, %v2783
    %v2785 = vpop.f32.mrb[0].mxu0
    %v2786 = vadd.f32 0.0, %v2785
    %v2787 = vpop.f32.mrb[0].mxu0
    %v2788 = vadd.f32 0.0, %v2787
    %2789 = vdwg.mxu0
    %2790 = vmatprep.subr.bf16.mxu0 %v1395
    %2791 = vmatpush1.bf16.msra.mxu0 %v1394
    %2792 = vmatprep.subr.bf16.mxu0 %v1403
    %2793 = vmatpush1.bf16.msra.mxu0 %v1402
    %2794 = vmatprep.subr.bf16.mxu0 %v1411
    %2795 = vmatpush1.bf16.msra.mxu0 %v1410
    %2796 = vmatprep.subr.bf16.mxu0 %v1419
    %2797 = vmatpush1.bf16.msra.mxu0 %v1418
    %2798 = vmatprep.subr.bf16.mxu0 %v1427
    %2799 = vmatpush1.bf16.msra.mxu0 %v1426
    %2800 = vmatprep.subr.bf16.mxu0 %v1435
    %2801 = vmatpush1.bf16.msra.mxu0 %v1434
    %2802 = vmatprep.subr.bf16.mxu0 %v1443
    %2803 = vmatpush1.bf16.msra.mxu0 %v1442
    %2804 = vmatprep.subr.bf16.mxu0 %v1451
    %2805 = vmatpush1.bf16.msra.mxu0 %v1450
    %2806 = vmatprep.subr.bf16.mxu0 %v1459
    %2807 = vmatpush1.bf16.msra.mxu0 %v1458
    %2808 = vmatprep.subr.bf16.mxu0 %v1467
    %2809 = vmatpush1.bf16.msra.mxu0 %v1466
    %2810 = vmatprep.subr.bf16.mxu0 %v1475
    %2811 = vmatpush1.bf16.msra.mxu0 %v1474
    %2812 = vmatprep.subr.bf16.mxu0 %v1483
    %2813 = vmatpush1.bf16.msra.mxu0 %v1482
    %2814 = vmatprep.subr.bf16.mxu0 %v1491
    %2815 = vmatpush1.bf16.msra.mxu0 %v1490
    %2816 = vmatprep.subr.bf16.mxu0 %v1499
    %2817 = vmatpush1.bf16.msra.mxu0 %v1498
    %2818 = vmatprep.subr.bf16.mxu0 %v1507
    %2819 = vmatpush1.bf16.msra.mxu0 %v1506
    %2820 = vmatprep.subr.bf16.mxu0 %v1515
    %2821 = vmatpush1.bf16.msra.mxu0 %v1514
    %2822 = vmatprep.mubr.bf16.mxu0 %v2660
    %2823 = vmatmul.mubr.bf16.gmra.mrb[0].mxu0 %v2659
    %v2824 = vpop.f32.mrb[0].mxu0
    %v2825 = vadd.f32 0.0, %v2824
    %v2826 = vpop.f32.mrb[0].mxu0
    %v2827 = vadd.f32 0.0, %v2826
    %v2828 = vpop.f32.mrb[0].mxu0
    %v2829 = vadd.f32 0.0, %v2828
    %v2830 = vpop.f32.mrb[0].mxu0
    %v2831 = vadd.f32 0.0, %v2830
    %2832 = vdwg.mxu0
    %v2833 = vld [vmem:[%s2183] sm:$0xff]
    %v2834 = vld [vmem:[%s2183 + $0x8] sm:$0xff]
    %v2835 = vld [vmem:[%s2183 + $0x10] sm:$0xff]
    %v2836 = vld [vmem:[%s2183 + $0x18] sm:$0xff]
    %v2837 = vunpack.c.l.bf16 %v2833
    %v2838 = vunpack.c.l.bf16 %v2834
    %v2839 = vunpack.c.l.bf16 %v2835
    %v2840 = vunpack.c.l.bf16 %v2836
    %v2841 = vunpack.c.h.bf16 %v2833
    %v2842 = vunpack.c.h.bf16 %v2834
    %v2843 = vunpack.c.h.bf16 %v2835
    %v2844 = vunpack.c.h.bf16 %v2836
    %v2845 = vadd.f32 %v2696, %v2837
    %v2846 = vadd.f32 %v2698, %v2838
    %v2847 = vadd.f32 %v2739, %v2839
    %v2848 = vadd.f32 %v2741, %v2840
    %v2849 = vadd.f32 %v2700, %v2841
    %v2850 = vadd.f32 %v2702, %v2842
    %v2851 = vadd.f32 %v2743, %v2843
    %v2852 = vadd.f32 %v2745, %v2844
    %v2853 = vld [vmem:[%s2162 + $0x20] sm:$0xff]
    %v2854 = vld [vmem:[%s2162 + $0x28] sm:$0xff]
    %v2855 = vld [vmem:[%s2162 + $0x30] sm:$0xff]
    %v2856 = vld [vmem:[%s2162 + $0x38] sm:$0xff]
    %v2857 = vunpack.c.l.bf16 %v2853
    %v2858 = vunpack.c.l.bf16 %v2854
    %v2859 = vunpack.c.l.bf16 %v2855
    %v2860 = vunpack.c.l.bf16 %v2856
    %v2861 = vunpack.c.h.bf16 %v2853
    %v2862 = vunpack.c.h.bf16 %v2854
    %v2863 = vunpack.c.h.bf16 %v2855
    %v2864 = vunpack.c.h.bf16 %v2856
    %v2865 = vadd.f32 %v2782, %v2857
    %v2866 = vadd.f32 %v2784, %v2858
    %v2867 = vadd.f32 %v2825, %v2859
    %v2868 = vadd.f32 %v2827, %v2860
    %v2869 = vadd.f32 %v2786, %v2861
    %v2870 = vadd.f32 %v2788, %v2862
    %v2871 = vadd.f32 %v2829, %v2863
    %v2872 = vadd.f32 %v2831, %v2864
    %v2873 = vxor.u32 %v2845, 2147483648
    %v2874 = vxor.u32 %v2849, 2147483648
    %v2875 = vmul.f32 %v2873, 1.442695
    %v2876 = vpow.pop %v2875
    %v2877 = vmul.f32 %v2874, 1.442695
    %v2878 = vpow.pop %v2877
    %v2879 = vadd.f32 %v2876, 1.0
    %v2880 = vadd.f32 %v2878, 1.0
    %v2881 = vrcp.pop %v2879
    %v2882 = vmul.f32 1.0, %v2881
    %v2883 = vrcp.pop %v2880
    %v2884 = vmul.f32 1.0, %v2883
    %v2885 = vxor.u32 %v2846, 2147483648
    %v2886 = vxor.u32 %v2850, 2147483648
    %v2887 = vmul.f32 %v2885, 1.442695
    %v2888 = vpow.pop %v2887
    %v2889 = vmul.f32 %v2886, 1.442695
    %v2890 = vpow.pop %v2889
    %v2891 = vadd.f32 %v2888, 1.0
    %v2892 = vadd.f32 %v2890, 1.0
    %v2893 = vrcp.pop %v2891
    %v2894 = vmul.f32 1.0, %v2893
    %v2895 = vrcp.pop %v2892
    %v2896 = vmul.f32 1.0, %v2895
    %v2897 = vtanh.pop %v2847
    %v2898 = vtanh.pop %v2851
    %v2899 = vxor.u32 %v2848, 2147483648
    %v2900 = vxor.u32 %v2852, 2147483648
    %v2901 = vmul.f32 %v2899, 1.442695
    %v2902 = vpow.pop %v2901
    %v2903 = vmul.f32 %v2900, 1.442695
    %v2904 = vpow.pop %v2903
    %v2905 = vadd.f32 %v2902, 1.0
    %v2906 = vadd.f32 %v2904, 1.0
    %v2907 = vrcp.pop %v2905
    %v2908 = vmul.f32 1.0, %v2907
    %v2909 = vrcp.pop %v2906
    %v2910 = vmul.f32 1.0, %v2909
    %v2911 = vmul.f32 %v2894, %v2593
    %v2912 = vmul.f32 %v2896, %v2594
    %v2913 = vmul.f32 %v2882, %v2897
    %v2914 = vmul.f32 %v2884, %v2898
    %v2915 = vadd.f32 %v2911, %v2913
    %v2916 = vadd.f32 %v2912, %v2914
    %v2917 = vtanh.pop %v2915
    %v2918 = vtanh.pop %v2916
    %v2919 = vmul.f32 %v2908, %v2917
    %v2920 = vmul.f32 %v2910, %v2918
    %v2921 = vsel %vm1988, %v2915, %v2593
    %v2922 = vsel %vm1989, %v2916, %v2594
    %v2923 = vsel %vm1988, %v2919, %v2595
    %v2924 = vsel %vm1989, %v2920, %v2596
    %v2925 = vsel %vm1988, %v2919, 0.0
    %v2926 = vsel %vm1989, %v2920, 0.0
    %v2927 = vxor.u32 %v2865, 2147483648
    %v2928 = vxor.u32 %v2869, 2147483648
    %v2929 = vmul.f32 %v2927, 1.442695
    %v2930 = vpow.pop %v2929
    %v2931 = vmul.f32 %v2928, 1.442695
    %v2932 = vpow.pop %v2931
    %v2933 = vadd.f32 %v2930, 1.0
    %v2934 = vadd.f32 %v2932, 1.0
    %v2935 = vrcp.pop %v2933
    %v2936 = vmul.f32 1.0, %v2935
    %v2937 = vrcp.pop %v2934
    %v2938 = vmul.f32 1.0, %v2937
    %v2939 = vxor.u32 %v2866, 2147483648
    %v2940 = vxor.u32 %v2870, 2147483648
    %v2941 = vmul.f32 %v2939, 1.442695
    %v2942 = vpow.pop %v2941
    %v2943 = vmul.f32 %v2940, 1.442695
    %v2944 = vpow.pop %v2943
    %v2945 = vadd.f32 %v2942, 1.0
    %v2946 = vadd.f32 %v2944, 1.0
    %v2947 = vrcp.pop %v2945
    %v2948 = vmul.f32 1.0, %v2947
    %v2949 = vrcp.pop %v2946
    %v2950 = vmul.f32 1.0, %v2949
    %v2951 = vtanh.pop %v2867
    %v2952 = vtanh.pop %v2871
    %v2953 = vxor.u32 %v2868, 2147483648
    %v2954 = vxor.u32 %v2872, 2147483648
    %v2955 = vmul.f32 %v2953, 1.442695
    %v2956 = vpow.pop %v2955
    %v2957 = vmul.f32 %v2954, 1.442695
    %v2958 = vpow.pop %v2957
    %v2959 = vadd.f32 %v2956, 1.0
    %v2960 = vadd.f32 %v2958, 1.0
    %v2961 = vrcp.pop %v2959
    %v2962 = vmul.f32 1.0, %v2961
    %v2963 = vrcp.pop %v2960
    %v2964 = vmul.f32 1.0, %v2963
    %v2965 = vmul.f32 %v2948, %v2647
    %v2966 = vmul.f32 %v2950, %v2648
    %v2967 = vmul.f32 %v2936, %v2951
    %v2968 = vmul.f32 %v2938, %v2952
    %v2969 = vadd.f32 %v2965, %v2967
    %v2970 = vadd.f32 %v2966, %v2968
    %v2971 = vtanh.pop %v2969
    %v2972 = vtanh.pop %v2970
    %v2973 = vmul.f32 %v2962, %v2971
    %v2974 = vmul.f32 %v2964, %v2972
    %v2975 = vsel %vm1976, %v2969, %v2647
    %v2976 = vsel %vm1977, %v2970, %v2648
    %v2977 = vsel %vm1976, %v2973, %v2649
    %v2978 = vsel %vm1977, %v2974, %v2650
    %v2979 = vsel %vm1976, %v2973, 0.0
    %v2980 = vsel %vm1977, %v2974, 0.0
    %v2981 = vpack.c.bf16 %v2926, %v2925
    %s2982 = scalar_lea.vmem [#allocation3], 24
    %2983 = vst [vmem:[%s2982] sm:$0xff] %v2981
    %v2984 = vpack.c.bf16 %v2980, %v2979
    %s2985 = scalar_lea.vmem [#allocation4], 8
    %2986 = vst [vmem:[%s2985] sm:$0xff] %v2984
    %v2987 = vpack.c.bf16 %v2924, %v2923
    %v2988 = vpack.c.bf16 %v2978, %v2977
    %2989 = vmatprep.subr.bf16.mxu0 %v1389
    %2990 = vmatpush1.bf16.msra.mxu0 %v1388
    %2991 = vmatprep.subr.bf16.mxu0 %v1397
    %2992 = vmatpush1.bf16.msra.mxu0 %v1396
    %2993 = vmatprep.subr.bf16.mxu0 %v1405
    %2994 = vmatpush1.bf16.msra.mxu0 %v1404
    %2995 = vmatprep.subr.bf16.mxu0 %v1413
    %2996 = vmatpush1.bf16.msra.mxu0 %v1412
    %2997 = vmatprep.subr.bf16.mxu0 %v1421
    %2998 = vmatpush1.bf16.msra.mxu0 %v1420
    %2999 = vmatprep.subr.bf16.mxu0 %v1429
    %3000 = vmatpush1.bf16.msra.mxu0 %v1428
    %3001 = vmatprep.subr.bf16.mxu0 %v1437
    %3002 = vmatpush1.bf16.msra.mxu0 %v1436
    %3003 = vmatprep.subr.bf16.mxu0 %v1445
    %3004 = vmatpush1.bf16.msra.mxu0 %v1444
    %3005 = vmatprep.subr.bf16.mxu0 %v1453
    %3006 = vmatpush1.bf16.msra.mxu0 %v1452
    %3007 = vmatprep.subr.bf16.mxu0 %v1461
    %3008 = vmatpush1.bf16.msra.mxu0 %v1460
    %3009 = vmatprep.subr.bf16.mxu0 %v1469
    %3010 = vmatpush1.bf16.msra.mxu0 %v1468
    %3011 = vmatprep.subr.bf16.mxu0 %v1477
    %3012 = vmatpush1.bf16.msra.mxu0 %v1476
    %3013 = vmatprep.subr.bf16.mxu0 %v1485
    %3014 = vmatpush1.bf16.msra.mxu0 %v1484
    %3015 = vmatprep.subr.bf16.mxu0 %v1493
    %3016 = vmatpush1.bf16.msra.mxu0 %v1492
    %3017 = vmatprep.subr.bf16.mxu0 %v1501
    %3018 = vmatpush1.bf16.msra.mxu0 %v1500
    %3019 = vmatprep.subr.bf16.mxu0 %v1509
    %3020 = vmatpush1.bf16.msra.mxu0 %v1508
    %3021 = vmatprep.mubr.bf16.mxu0 %v2988
    %3022 = vmatmul.mubr.bf16.gmra.mrb[0].mxu0 %v2987
    %v3023 = vpop.f32.mrb[0].mxu0
    %v3024 = vadd.f32 0.0, %v3023
    %v3025 = vpop.f32.mrb[0].mxu0
    %v3026 = vadd.f32 0.0, %v3025
    %v3027 = vpop.f32.mrb[0].mxu0
    %v3028 = vadd.f32 0.0, %v3027
    %v3029 = vpop.f32.mrb[0].mxu0
    %v3030 = vadd.f32 0.0, %v3029
    %3031 = vdwg.mxu0
    %3032 = vmatprep.subr.bf16.mxu0 %v1391
    %3033 = vmatpush1.bf16.msra.mxu0 %v1390
    %3034 = vmatprep.subr.bf16.mxu0 %v1399
    %3035 = vmatpush1.bf16.msra.mxu0 %v1398
    %3036 = vmatprep.subr.bf16.mxu0 %v1407
    %3037 = vmatpush1.bf16.msra.mxu0 %v1406
    %3038 = vmatprep.subr.bf16.mxu0 %v1415
    %3039 = vmatpush1.bf16.msra.mxu0 %v1414
    %3040 = vmatprep.subr.bf16.mxu0 %v1423
    %3041 = vmatpush1.bf16.msra.mxu0 %v1422
    %3042 = vmatprep.subr.bf16.mxu0 %v1431
    %3043 = vmatpush1.bf16.msra.mxu0 %v1430
    %3044 = vmatprep.subr.bf16.mxu0 %v1439
    %3045 = vmatpush1.bf16.msra.mxu0 %v1438
    %3046 = vmatprep.subr.bf16.mxu0 %v1447
    %3047 = vmatpush1.bf16.msra.mxu0 %v1446
    %3048 = vmatprep.subr.bf16.mxu0 %v1455
    %3049 = vmatpush1.bf16.msra.mxu0 %v1454
    %3050 = vmatprep.subr.bf16.mxu0 %v1463
    %3051 = vmatpush1.bf16.msra.mxu0 %v1462
    %3052 = vmatprep.subr.bf16.mxu0 %v1471
    %3053 = vmatpush1.bf16.msra.mxu0 %v1470
    %3054 = vmatprep.subr.bf16.mxu0 %v1479
    %3055 = vmatpush1.bf16.msra.mxu0 %v1478
    %3056 = vmatprep.subr.bf16.mxu0 %v1487
    %3057 = vmatpush1.bf16.msra.mxu0 %v1486
    %3058 = vmatprep.subr.bf16.mxu0 %v1495
    %3059 = vmatpush1.bf16.msra.mxu0 %v1494
    %3060 = vmatprep.subr.bf16.mxu0 %v1503
    %3061 = vmatpush1.bf16.msra.mxu0 %v1502
    %3062 = vmatprep.subr.bf16.mxu0 %v1511
    %3063 = vmatpush1.bf16.msra.mxu0 %v1510
    %3064 = vmatprep.mubr.bf16.mxu0 %v2988
    %3065 = vmatmul.mubr.bf16.gmra.mrb[0].mxu0 %v2987
    %v3066 = vpop.f32.mrb[0].mxu0
    %v3067 = vadd.f32 0.0, %v3066
    %v3068 = vpop.f32.mrb[0].mxu0
    %v3069 = vadd.f32 0.0, %v3068
    %v3070 = vpop.f32.mrb[0].mxu0
    %v3071 = vadd.f32 0.0, %v3070
    %v3072 = vpop.f32.mrb[0].mxu0
    %v3073 = vadd.f32 0.0, %v3072
    %3074 = vdwg.mxu0
    %3075 = vmatprep.subr.bf16.mxu0 %v1393
    %3076 = vmatpush1.bf16.msra.mxu0 %v1392
    %3077 = vmatprep.subr.bf16.mxu0 %v1401
    %3078 = vmatpush1.bf16.msra.mxu0 %v1400
    %3079 = vmatprep.subr.bf16.mxu0 %v1409
    %3080 = vmatpush1.bf16.msra.mxu0 %v1408
    %3081 = vmatprep.subr.bf16.mxu0 %v1417
    %3082 = vmatpush1.bf16.msra.mxu0 %v1416
    %3083 = vmatprep.subr.bf16.mxu0 %v1425
    %3084 = vmatpush1.bf16.msra.mxu0 %v1424
    %3085 = vmatprep.subr.bf16.mxu0 %v1433
    %3086 = vmatpush1.bf16.msra.mxu0 %v1432
    %3087 = vmatprep.subr.bf16.mxu0 %v1441
    %3088 = vmatpush1.bf16.msra.mxu0 %v1440
    %3089 = vmatprep.subr.bf16.mxu0 %v1449
    %3090 = vmatpush1.bf16.msra.mxu0 %v1448
    %3091 = vmatprep.subr.bf16.mxu0 %v1457
    %3092 = vmatpush1.bf16.msra.mxu0 %v1456
    %3093 = vmatprep.subr.bf16.mxu0 %v1465
    %3094 = vmatpush1.bf16.msra.mxu0 %v1464
    %3095 = vmatprep.subr.bf16.mxu0 %v1473
    %3096 = vmatpush1.bf16.msra.mxu0 %v1472
    %3097 = vmatprep.subr.bf16.mxu0 %v1481
    %3098 = vmatpush1.bf16.msra.mxu0 %v1480
    %3099 = vmatprep.subr.bf16.mxu0 %v1489
    %3100 = vmatpush1.bf16.msra.mxu0 %v1488
    %3101 = vmatprep.subr.bf16.mxu0 %v1497
    %3102 = vmatpush1.bf16.msra.mxu0 %v1496
    %3103 = vmatprep.subr.bf16.mxu0 %v1505
    %3104 = vmatpush1.bf16.msra.mxu0 %v1504
    %3105 = vmatprep.subr.bf16.mxu0 %v1513
    %3106 = vmatpush1.bf16.msra.mxu0 %v1512
    %3107 = vmatprep.mubr.bf16.mxu0 %v2988
    %3108 = vmatmul.mubr.bf16.gmra.mrb[0].mxu0 %v2987
    %v3109 = vpop.f32.mrb[0].mxu0
    %v3110 = vadd.f32 0.0, %v3109
    %v3111 = vpop.f32.mrb[0].mxu0
    %v3112 = vadd.f32 0.0, %v3111
    %v3113 = vpop.f32.mrb[0].mxu0
    %v3114 = vadd.f32 0.0, %v3113
    %v3115 = vpop.f32.mrb[0].mxu0
    %v3116 = vadd.f32 0.0, %v3115
    %3117 = vdwg.mxu0
    %3118 = vmatprep.subr.bf16.mxu0 %v1395
    %3119 = vmatpush1.bf16.msra.mxu0 %v1394
    %3120 = vmatprep.subr.bf16.mxu0 %v1403
    %3121 = vmatpush1.bf16.msra.mxu0 %v1402
    %3122 = vmatprep.subr.bf16.mxu0 %v1411
    %3123 = vmatpush1.bf16.msra.mxu0 %v1410
    %3124 = vmatprep.subr.bf16.mxu0 %v1419
    %3125 = vmatpush1.bf16.msra.mxu0 %v1418
    %3126 = vmatprep.subr.bf16.mxu0 %v1427
    %3127 = vmatpush1.bf16.msra.mxu0 %v1426
    %3128 = vmatprep.subr.bf16.mxu0 %v1435
    %3129 = vmatpush1.bf16.msra.mxu0 %v1434
    %3130 = vmatprep.subr.bf16.mxu0 %v1443
    %3131 = vmatpush1.bf16.msra.mxu0 %v1442
    %3132 = vmatprep.subr.bf16.mxu0 %v1451
    %3133 = vmatpush1.bf16.msra.mxu0 %v1450
    %3134 = vmatprep.subr.bf16.mxu0 %v1459
    %3135 = vmatpush1.bf16.msra.mxu0 %v1458
    %3136 = vmatprep.subr.bf16.mxu0 %v1467
    %3137 = vmatpush1.bf16.msra.mxu0 %v1466
    %3138 = vmatprep.subr.bf16.mxu0 %v1475
    %3139 = vmatpush1.bf16.msra.mxu0 %v1474
    %3140 = vmatprep.subr.bf16.mxu0 %v1483
    %3141 = vmatpush1.bf16.msra.mxu0 %v1482
    %3142 = vmatprep.subr.bf16.mxu0 %v1491
    %3143 = vmatpush1.bf16.msra.mxu0 %v1490
    %3144 = vmatprep.subr.bf16.mxu0 %v1499
    %3145 = vmatpush1.bf16.msra.mxu0 %v1498
    %3146 = vmatprep.subr.bf16.mxu0 %v1507
    %3147 = vmatpush1.bf16.msra.mxu0 %v1506
    %3148 = vmatprep.subr.bf16.mxu0 %v1515
    %3149 = vmatpush1.bf16.msra.mxu0 %v1514
    %3150 = vmatprep.mubr.bf16.mxu0 %v2988
    %3151 = vmatmul.mubr.bf16.gmra.mrb[0].mxu0 %v2987
    %v3152 = vpop.f32.mrb[0].mxu0
    %v3153 = vadd.f32 0.0, %v3152
    %v3154 = vpop.f32.mrb[0].mxu0
    %v3155 = vadd.f32 0.0, %v3154
    %v3156 = vpop.f32.mrb[0].mxu0
    %v3157 = vadd.f32 0.0, %v3156
    %v3158 = vpop.f32.mrb[0].mxu0
    %v3159 = vadd.f32 0.0, %v3158
    %3160 = vdwg.mxu0
    %v3161 = vld [vmem:[%s1836] sm:$0xff]
    %v3162 = vld [vmem:[%s1836 + $0x8] sm:$0xff]
    %v3163 = vld [vmem:[%s1836 + $0x10] sm:$0xff]
    %v3164 = vld [vmem:[%s1836 + $0x18] sm:$0xff]
    %v3165 = vunpack.c.l.bf16 %v3161
    %v3166 = vunpack.c.l.bf16 %v3162
    %v3167 = vunpack.c.l.bf16 %v3163
    %v3168 = vunpack.c.l.bf16 %v3164
    %v3169 = vunpack.c.h.bf16 %v3161
    %v3170 = vunpack.c.h.bf16 %v3162
    %v3171 = vunpack.c.h.bf16 %v3163
    %v3172 = vunpack.c.h.bf16 %v3164
    %v3173 = vadd.f32 %v3024, %v3165
    %v3174 = vadd.f32 %v3026, %v3166
    %v3175 = vadd.f32 %v3067, %v3167
    %v3176 = vadd.f32 %v3069, %v3168
    %v3177 = vadd.f32 %v3028, %v3169
    %v3178 = vadd.f32 %v3030, %v3170
    %v3179 = vadd.f32 %v3071, %v3171
    %v3180 = vadd.f32 %v3073, %v3172
    %v3181 = vld [vmem:[#allocation2 + $0x20] sm:$0xff]
    %v3182 = vld [vmem:[#allocation2 + $0x28] sm:$0xff]
    %v3183 = vld [vmem:[#allocation2 + $0x30] sm:$0xff]
    %v3184 = vld [vmem:[#allocation2 + $0x38] sm:$0xff]
    %v3185 = vunpack.c.l.bf16 %v3181
    %v3186 = vunpack.c.l.bf16 %v3182
    %v3187 = vunpack.c.l.bf16 %v3183
    %v3188 = vunpack.c.l.bf16 %v3184
    %v3189 = vunpack.c.h.bf16 %v3181
    %v3190 = vunpack.c.h.bf16 %v3182
    %v3191 = vunpack.c.h.bf16 %v3183
    %v3192 = vunpack.c.h.bf16 %v3184
    %v3193 = vadd.f32 %v3110, %v3185
    %v3194 = vadd.f32 %v3112, %v3186
    %v3195 = vadd.f32 %v3153, %v3187
    %v3196 = vadd.f32 %v3155, %v3188
    %v3197 = vadd.f32 %v3114, %v3189
    %v3198 = vadd.f32 %v3116, %v3190
    %v3199 = vadd.f32 %v3157, %v3191
    %v3200 = vadd.f32 %v3159, %v3192
    %v3201 = vxor.u32 %v3173, 2147483648
    %v3202 = vxor.u32 %v3177, 2147483648
    %v3203 = vmul.f32 %v3201, 1.442695
    %v3204 = vpow.pop %v3203
    %v3205 = vmul.f32 %v3202, 1.442695
    %v3206 = vpow.pop %v3205
    %v3207 = vadd.f32 %v3204, 1.0
    %v3208 = vadd.f32 %v3206, 1.0
    %v3209 = vrcp.pop %v3207
    %v3210 = vmul.f32 1.0, %v3209
    %v3211 = vrcp.pop %v3208
    %v3212 = vmul.f32 1.0, %v3211
    %v3213 = vxor.u32 %v3174, 2147483648
    %v3214 = vxor.u32 %v3178, 2147483648
    %v3215 = vmul.f32 %v3213, 1.442695
    %v3216 = vpow.pop %v3215
    %v3217 = vmul.f32 %v3214, 1.442695
    %v3218 = vpow.pop %v3217
    %v3219 = vadd.f32 %v3216, 1.0
    %v3220 = vadd.f32 %v3218, 1.0
    %v3221 = vrcp.pop %v3219
    %v3222 = vmul.f32 1.0, %v3221
    %v3223 = vrcp.pop %v3220
    %v3224 = vmul.f32 1.0, %v3223
    %v3225 = vtanh.pop %v3175
    %v3226 = vtanh.pop %v3179
    %v3227 = vxor.u32 %v3176, 2147483648
    %v3228 = vxor.u32 %v3180, 2147483648
    %v3229 = vmul.f32 %v3227, 1.442695
    %v3230 = vpow.pop %v3229
    %v3231 = vmul.f32 %v3228, 1.442695
    %v3232 = vpow.pop %v3231
    %v3233 = vadd.f32 %v3230, 1.0
    %v3234 = vadd.f32 %v3232, 1.0
    %v3235 = vrcp.pop %v3233
    %v3236 = vmul.f32 1.0, %v3235
    %v3237 = vrcp.pop %v3234
    %v3238 = vmul.f32 1.0, %v3237
    %v3239 = vmul.f32 %v3222, %v2921
    %v3240 = vmul.f32 %v3224, %v2922
    %v3241 = vmul.f32 %v3210, %v3225
    %v3242 = vmul.f32 %v3212, %v3226
    %v3243 = vadd.f32 %v3239, %v3241
    %v3244 = vadd.f32 %v3240, %v3242
    %v3245 = vtanh.pop %v3243
    %v3246 = vtanh.pop %v3244
    %v3247 = vmul.f32 %v3236, %v3245
    %v3248 = vmul.f32 %v3238, %v3246
    %v3249 = vsel %vm1001, %v3247, 0.0
    %v3250 = vsel %vm1002, %v3248, 0.0
    %v3251 = vxor.u32 %v3193, 2147483648
    %v3252 = vxor.u32 %v3197, 2147483648
    %v3253 = vmul.f32 %v3251, 1.442695
    %v3254 = vpow.pop %v3253
    %v3255 = vmul.f32 %v3252, 1.442695
    %v3256 = vpow.pop %v3255
    %v3257 = vadd.f32 %v3254, 1.0
    %v3258 = vadd.f32 %v3256, 1.0
    %v3259 = vrcp.pop %v3257
    %v3260 = vmul.f32 1.0, %v3259
    %v3261 = vrcp.pop %v3258
    %v3262 = vmul.f32 1.0, %v3261
    %v3263 = vxor.u32 %v3194, 2147483648
    %v3264 = vxor.u32 %v3198, 2147483648
    %v3265 = vmul.f32 %v3263, 1.442695
    %v3266 = vpow.pop %v3265
    %v3267 = vmul.f32 %v3264, 1.442695
    %v3268 = vpow.pop %v3267
    %v3269 = vadd.f32 %v3266, 1.0
    %v3270 = vadd.f32 %v3268, 1.0
    %v3271 = vrcp.pop %v3269
    %v3272 = vmul.f32 1.0, %v3271
    %v3273 = vrcp.pop %v3270
    %v3274 = vmul.f32 1.0, %v3273
    %v3275 = vtanh.pop %v3195
    %v3276 = vtanh.pop %v3199
    %v3277 = vxor.u32 %v3196, 2147483648
    %v3278 = vxor.u32 %v3200, 2147483648
    %v3279 = vmul.f32 %v3277, 1.442695
    %v3280 = vpow.pop %v3279
    %v3281 = vmul.f32 %v3278, 1.442695
    %v3282 = vpow.pop %v3281
    %v3283 = vadd.f32 %v3280, 1.0
    %v3284 = vadd.f32 %v3282, 1.0
    %v3285 = vrcp.pop %v3283
    %v3286 = vmul.f32 1.0, %v3285
    %v3287 = vrcp.pop %v3284
    %v3288 = vmul.f32 1.0, %v3287
    %v3289 = vmul.f32 %v3272, %v2975
    %v3290 = vmul.f32 %v3274, %v2976
    %v3291 = vmul.f32 %v3260, %v3275
    %v3292 = vmul.f32 %v3262, %v3276
    %v3293 = vadd.f32 %v3289, %v3291
    %v3294 = vadd.f32 %v3290, %v3292
    %v3295 = vtanh.pop %v3293
    %v3296 = vtanh.pop %v3294
    %v3297 = vmul.f32 %v3286, %v3295
    %v3298 = vmul.f32 %v3288, %v3296
    %v3299 = vsel %vm989, %v3297, 0.0
    %v3300 = vsel %vm990, %v3298, 0.0
    %v3301 = vpack.c.bf16 %v3250, %v3249
    %s3302 = scalar_lea.vmem [#allocation3], 32
    %3303 = vst [vmem:[%s3302] sm:$0xff] %v3301
    %v3304 = vpack.c.bf16 %v3300, %v3299
    %3305 = vst [vmem:[#allocation4] sm:$0xff] %v3304
    %v3306 = vld [vmem:[#allocation3] sm:$0xff]
    %v3307 = vld [vmem:[#allocation3 + $0x8] sm:$0xff]
    %v3308 = vld [vmem:[#allocation3 + $0x10] sm:$0xff]
    %v3309 = vld [vmem:[#allocation3 + $0x18] sm:$0xff]
    %v3310 = vld [vmem:[#allocation3 + $0x20] sm:$0xff]
    %v3311 = vld [vmem:[#allocation4] sm:$0xff]
    %v3312 = vld [vmem:[#allocation4 + $0x8] sm:$0xff]
    %v3313 = vld [vmem:[#allocation4 + $0x10] sm:$0xff]
    %v3314 = vld [vmem:[#allocation4 + $0x18] sm:$0xff]
    %v3315 = vld [vmem:[#allocation4 + $0x20] sm:$0xff]
    %v3316 = vld [vmem:[#allocation13] sm:$0xff]
    %v3317 = vld [vmem:[#allocation13 + $0x8] sm:$0xff]
    %v3318 = vld [vmem:[#allocation13 + $0x10] sm:$0xff]
    %v3319 = vld [vmem:[#allocation13 + $0x18] sm:$0xff]
    %v3320 = vld [vmem:[#allocation13 + $0x20] sm:$0xff]
    %v3321 = vld [vmem:[#allocation13 + $0x28] sm:$0xff]
    %v3322 = vld [vmem:[#allocation13 + $0x30] sm:$0xff]
    %v3323 = vld [vmem:[#allocation13 + $0x38] sm:$0xff]
    %v3324 = vld [vmem:[#allocation13 + $0x40] sm:$0xff]
    %v3325 = vld [vmem:[#allocation13 + $0x48] sm:$0xff]
    %v3326 = vld [vmem:[#allocation13 + $0x50] sm:$0xff]
    %v3327 = vld [vmem:[#allocation13 + $0x58] sm:$0xff]
    %v3328 = vld [vmem:[#allocation13 + $0x60] sm:$0xff]
    %v3329 = vld [vmem:[#allocation13 + $0x68] sm:$0xff]
    %v3330 = vld [vmem:[#allocation13 + $0x70] sm:$0xff]
    %v3331 = vld [vmem:[#allocation13 + $0x78] sm:$0xff]
    %v3332 = vld [vmem:[#allocation13 + $0x80] sm:$0xff]
    %v3333 = vld [vmem:[#allocation13 + $0x88] sm:$0xff]
    %v3334 = vld [vmem:[#allocation13 + $0x90] sm:$0xff]
    %v3335 = vld [vmem:[#allocation13 + $0x98] sm:$0xff]
    %v3336 = vld [vmem:[#allocation13 + $0xa0] sm:$0xff]
    %v3337 = vld [vmem:[#allocation13 + $0xa8] sm:$0xff]
    %v3338 = vld [vmem:[#allocation13 + $0xb0] sm:$0xff]
    %v3339 = vld [vmem:[#allocation13 + $0xb8] sm:$0xff]
    %v3340 = vld [vmem:[#allocation13 + $0xc0] sm:$0xff]
    %v3341 = vld [vmem:[#allocation13 + $0xc8] sm:$0xff]
    %v3342 = vld [vmem:[#allocation13 + $0xd0] sm:$0xff]
    %v3343 = vld [vmem:[#allocation13 + $0xd8] sm:$0xff]
    %v3344 = vld [vmem:[#allocation13 + $0xe0] sm:$0xff]
    %v3345 = vld [vmem:[#allocation13 + $0xe8] sm:$0xff]
    %v3346 = vld [vmem:[#allocation13 + $0xf0] sm:$0xff]
    %v3347 = vld [vmem:[#allocation13 + $0xf8] sm:$0xff]
    %v3348 = vld [vmem:[#allocation13 + $0x100] sm:$0xff]
    %v3349 = vld [vmem:[#allocation13 + $0x108] sm:$0xff]
    %v3350 = vld [vmem:[#allocation13 + $0x110] sm:$0xff]
    %v3351 = vld [vmem:[#allocation13 + $0x118] sm:$0xff]
    %v3352 = vld [vmem:[#allocation13 + $0x120] sm:$0xff]
    %v3353 = vld [vmem:[#allocation13 + $0x128] sm:$0xff]
    %v3354 = vld [vmem:[#allocation13 + $0x130] sm:$0xff]
    %v3355 = vld [vmem:[#allocation13 + $0x138] sm:$0xff]
    %v3356 = vld [vmem:[#allocation13 + $0x140] sm:$0xff]
    %v3357 = vld [vmem:[#allocation13 + $0x148] sm:$0xff]
    %v3358 = vld [vmem:[#allocation13 + $0x150] sm:$0xff]
    %v3359 = vld [vmem:[#allocation13 + $0x158] sm:$0xff]
    %v3360 = vld [vmem:[#allocation13 + $0x160] sm:$0xff]
    %v3361 = vld [vmem:[#allocation13 + $0x168] sm:$0xff]
    %v3362 = vld [vmem:[#allocation13 + $0x170] sm:$0xff]
    %v3363 = vld [vmem:[#allocation13 + $0x178] sm:$0xff]
    %v3364 = vld [vmem:[#allocation13 + $0x180] sm:$0xff]
    %v3365 = vld [vmem:[#allocation13 + $0x188] sm:$0xff]
    %v3366 = vld [vmem:[#allocation13 + $0x190] sm:$0xff]
    %v3367 = vld [vmem:[#allocation13 + $0x198] sm:$0xff]
    %v3368 = vld [vmem:[#allocation13 + $0x1a0] sm:$0xff]
    %v3369 = vld [vmem:[#allocation13 + $0x1a8] sm:$0xff]
    %v3370 = vld [vmem:[#allocation13 + $0x1b0] sm:$0xff]
    %v3371 = vld [vmem:[#allocation13 + $0x1b8] sm:$0xff]
    %v3372 = vld [vmem:[#allocation13 + $0x1c0] sm:$0xff]
    %v3373 = vld [vmem:[#allocation13 + $0x1c8] sm:$0xff]
    %v3374 = vld [vmem:[#allocation13 + $0x1d0] sm:$0xff]
    %v3375 = vld [vmem:[#allocation13 + $0x1d8] sm:$0xff]
    %v3376 = vld [vmem:[#allocation13 + $0x1e0] sm:$0xff]
    %v3377 = vld [vmem:[#allocation13 + $0x1e8] sm:$0xff]
    %v3378 = vld [vmem:[#allocation13 + $0x1f0] sm:$0xff]
    %v3379 = vld [vmem:[#allocation13 + $0x1f8] sm:$0xff]
    %v3380 = vld [vmem:[#allocation15] sm:$0xff]
    %v3381 = vld [vmem:[#allocation15 + $0x8] sm:$0xff]
    %v3382 = vld [vmem:[#allocation15 + $0x10] sm:$0xff]
    %v3383 = vld [vmem:[#allocation15 + $0x18] sm:$0xff]
    %v3384 = vld [vmem:[#allocation15 + $0x20] sm:$0xff]
    %v3385 = vld [vmem:[#allocation15 + $0x28] sm:$0xff]
    %v3386 = vld [vmem:[#allocation15 + $0x30] sm:$0xff]
    %v3387 = vld [vmem:[#allocation15 + $0x38] sm:$0xff]
    %v3388 = vld [vmem:[#allocation15 + $0x40] sm:$0xff]
    %v3389 = vld [vmem:[#allocation15 + $0x48] sm:$0xff]
    %v3390 = vld [vmem:[#allocation15 + $0x50] sm:$0xff]
    %v3391 = vld [vmem:[#allocation15 + $0x58] sm:$0xff]
    %v3392 = vld [vmem:[#allocation15 + $0x60] sm:$0xff]
    %v3393 = vld [vmem:[#allocation15 + $0x68] sm:$0xff]
    %v3394 = vld [vmem:[#allocation15 + $0x70] sm:$0xff]
    %v3395 = vld [vmem:[#allocation15 + $0x78] sm:$0xff]
    %v3396 = vld [vmem:[#allocation15 + $0x80] sm:$0xff]
    %v3397 = vld [vmem:[#allocation15 + $0x88] sm:$0xff]
    %v3398 = vld [vmem:[#allocation15 + $0x90] sm:$0xff]
    %v3399 = vld [vmem:[#allocation15 + $0x98] sm:$0xff]
    %v3400 = vld [vmem:[#allocation15 + $0xa0] sm:$0xff]
    %v3401 = vld [vmem:[#allocation15 + $0xa8] sm:$0xff]
    %v3402 = vld [vmem:[#allocation15 + $0xb0] sm:$0xff]
    %v3403 = vld [vmem:[#allocation15 + $0xb8] sm:$0xff]
    %v3404 = vld [vmem:[#allocation15 + $0xc0] sm:$0xff]
    %v3405 = vld [vmem:[#allocation15 + $0xc8] sm:$0xff]
    %v3406 = vld [vmem:[#allocation15 + $0xd0] sm:$0xff]
    %v3407 = vld [vmem:[#allocation15 + $0xd8] sm:$0xff]
    %v3408 = vld [vmem:[#allocation15 + $0xe0] sm:$0xff]
    %v3409 = vld [vmem:[#allocation15 + $0xe8] sm:$0xff]
    %v3410 = vld [vmem:[#allocation15 + $0xf0] sm:$0xff]
    %v3411 = vld [vmem:[#allocation15 + $0xf8] sm:$0xff]
    %v3412 = vld [vmem:[#allocation15 + $0x100] sm:$0xff]
    %v3413 = vld [vmem:[#allocation15 + $0x108] sm:$0xff]
    %v3414 = vld [vmem:[#allocation15 + $0x110] sm:$0xff]
    %v3415 = vld [vmem:[#allocation15 + $0x118] sm:$0xff]
    %v3416 = vld [vmem:[#allocation15 + $0x120] sm:$0xff]
    %v3417 = vld [vmem:[#allocation15 + $0x128] sm:$0xff]
    %v3418 = vld [vmem:[#allocation15 + $0x130] sm:$0xff]
    %v3419 = vld [vmem:[#allocation15 + $0x138] sm:$0xff]
    %v3420 = vld [vmem:[#allocation15 + $0x140] sm:$0xff]
    %v3421 = vld [vmem:[#allocation15 + $0x148] sm:$0xff]
    %v3422 = vld [vmem:[#allocation15 + $0x150] sm:$0xff]
    %v3423 = vld [vmem:[#allocation15 + $0x158] sm:$0xff]
    %v3424 = vld [vmem:[#allocation15 + $0x160] sm:$0xff]
    %v3425 = vld [vmem:[#allocation15 + $0x168] sm:$0xff]
    %v3426 = vld [vmem:[#allocation15 + $0x170] sm:$0xff]
    %v3427 = vld [vmem:[#allocation15 + $0x178] sm:$0xff]
    %v3428 = vld [vmem:[#allocation15 + $0x180] sm:$0xff]
    %v3429 = vld [vmem:[#allocation15 + $0x188] sm:$0xff]
    %v3430 = vld [vmem:[#allocation15 + $0x190] sm:$0xff]
    %v3431 = vld [vmem:[#allocation15 + $0x198] sm:$0xff]
    %v3432 = vld [vmem:[#allocation15 + $0x1a0] sm:$0xff]
    %v3433 = vld [vmem:[#allocation15 + $0x1a8] sm:$0xff]
    %v3434 = vld [vmem:[#allocation15 + $0x1b0] sm:$0xff]
    %v3435 = vld [vmem:[#allocation15 + $0x1b8] sm:$0xff]
    %v3436 = vld [vmem:[#allocation15 + $0x1c0] sm:$0xff]
    %v3437 = vld [vmem:[#allocation15 + $0x1c8] sm:$0xff]
    %v3438 = vld [vmem:[#allocation15 + $0x1d0] sm:$0xff]
    %v3439 = vld [vmem:[#allocation15 + $0x1d8] sm:$0xff]
    %v3440 = vld [vmem:[#allocation15 + $0x1e0] sm:$0xff]
    %v3441 = vld [vmem:[#allocation15 + $0x1e8] sm:$0xff]
    %v3442 = vld [vmem:[#allocation15 + $0x1f0] sm:$0xff]
    %v3443 = vld [vmem:[#allocation15 + $0x1f8] sm:$0xff]
    %v3508 = vunpack.c.l.b16 %v3380
    %v3509 = vunpack.c.h.b16 %v3380
    %v3510 = vunpack.c.l.b16 %v3381
    %v3511 = vunpack.c.h.b16 %v3381
    %v3512 = vunpack.c.l.b16 %v3382
    %v3513 = vunpack.c.h.b16 %v3382
    %v3514 = vunpack.c.l.b16 %v3383
    %v3515 = vunpack.c.h.b16 %v3383
    %v3516 = vunpack.c.l.b16 %v3384
    %v3517 = vunpack.c.h.b16 %v3384
    %v3518 = vunpack.c.l.b16 %v3385
    %v3519 = vunpack.c.h.b16 %v3385
    %v3520 = vunpack.c.l.b16 %v3386
    %v3521 = vunpack.c.h.b16 %v3386
    %v3522 = vunpack.c.l.b16 %v3387
    %v3523 = vunpack.c.h.b16 %v3387
    %v3524 = vunpack.c.l.b16 %v3388
    %v3525 = vunpack.c.h.b16 %v3388
    %v3526 = vunpack.c.l.b16 %v3389
    %v3527 = vunpack.c.h.b16 %v3389
    %v3528 = vunpack.c.l.b16 %v3390
    %v3529 = vunpack.c.h.b16 %v3390
    %v3530 = vunpack.c.l.b16 %v3391
    %v3531 = vunpack.c.h.b16 %v3391
    %v3532 = vunpack.c.l.b16 %v3392
    %v3533 = vunpack.c.h.b16 %v3392
    %v3534 = vunpack.c.l.b16 %v3393
    %v3535 = vunpack.c.h.b16 %v3393
    %v3536 = vunpack.c.l.b16 %v3394
    %v3537 = vunpack.c.h.b16 %v3394
    %v3538 = vunpack.c.l.b16 %v3395
    %v3539 = vunpack.c.h.b16 %v3395
    %v3540 = vunpack.c.l.b16 %v3396
    %v3541 = vunpack.c.h.b16 %v3396
    %v3542 = vunpack.c.l.b16 %v3397
    %v3543 = vunpack.c.h.b16 %v3397
    %v3544 = vunpack.c.l.b16 %v3398
    %v3545 = vunpack.c.h.b16 %v3398
    %v3546 = vunpack.c.l.b16 %v3399
    %v3547 = vunpack.c.h.b16 %v3399
    %v3548 = vunpack.c.l.b16 %v3400
    %v3549 = vunpack.c.h.b16 %v3400
    %v3550 = vunpack.c.l.b16 %v3401
    %v3551 = vunpack.c.h.b16 %v3401
    %v3552 = vunpack.c.l.b16 %v3402
    %v3553 = vunpack.c.h.b16 %v3402
    %v3554 = vunpack.c.l.b16 %v3403
    %v3555 = vunpack.c.h.b16 %v3403
    %v3556 = vunpack.c.l.b16 %v3404
    %v3557 = vunpack.c.h.b16 %v3404
    %v3558 = vunpack.c.l.b16 %v3405
    %v3559 = vunpack.c.h.b16 %v3405
    %v3560 = vunpack.c.l.b16 %v3406
    %v3561 = vunpack.c.h.b16 %v3406
    %v3562 = vunpack.c.l.b16 %v3407
    %v3563 = vunpack.c.h.b16 %v3407
    %v3564 = vunpack.c.l.b16 %v3408
    %v3565 = vunpack.c.h.b16 %v3408
    %v3566 = vunpack.c.l.b16 %v3409
    %v3567 = vunpack.c.h.b16 %v3409
    %v3568 = vunpack.c.l.b16 %v3410
    %v3569 = vunpack.c.h.b16 %v3410
    %v3570 = vunpack.c.l.b16 %v3411
    %v3571 = vunpack.c.h.b16 %v3411
    %v3572 = vunpack.c.l.b16 %v3412
    %v3573 = vunpack.c.h.b16 %v3412
    %v3574 = vunpack.c.l.b16 %v3413
    %v3575 = vunpack.c.h.b16 %v3413
    %v3576 = vunpack.c.l.b16 %v3414
    %v3577 = vunpack.c.h.b16 %v3414
    %v3578 = vunpack.c.l.b16 %v3415
    %v3579 = vunpack.c.h.b16 %v3415
    %v3580 = vunpack.c.l.b16 %v3416
    %v3581 = vunpack.c.h.b16 %v3416
    %v3582 = vunpack.c.l.b16 %v3417
    %v3583 = vunpack.c.h.b16 %v3417
    %v3584 = vunpack.c.l.b16 %v3418
    %v3585 = vunpack.c.h.b16 %v3418
    %v3586 = vunpack.c.l.b16 %v3419
    %v3587 = vunpack.c.h.b16 %v3419
    %v3588 = vunpack.c.l.b16 %v3420
    %v3589 = vunpack.c.h.b16 %v3420
    %v3590 = vunpack.c.l.b16 %v3421
    %v3591 = vunpack.c.h.b16 %v3421
    %v3592 = vunpack.c.l.b16 %v3422
    %v3593 = vunpack.c.h.b16 %v3422
    %v3594 = vunpack.c.l.b16 %v3423
    %v3595 = vunpack.c.h.b16 %v3423
    %v3596 = vunpack.c.l.b16 %v3424
    %v3597 = vunpack.c.h.b16 %v3424
    %v3598 = vunpack.c.l.b16 %v3425
    %v3599 = vunpack.c.h.b16 %v3425
    %v3600 = vunpack.c.l.b16 %v3426
    %v3601 = vunpack.c.h.b16 %v3426
    %v3602 = vunpack.c.l.b16 %v3427
    %v3603 = vunpack.c.h.b16 %v3427
    %v3604 = vunpack.c.l.b16 %v3428
    %v3605 = vunpack.c.h.b16 %v3428
    %v3606 = vunpack.c.l.b16 %v3429
    %v3607 = vunpack.c.h.b16 %v3429
    %v3608 = vunpack.c.l.b16 %v3430
    %v3609 = vunpack.c.h.b16 %v3430
    %v3610 = vunpack.c.l.b16 %v3431
    %v3611 = vunpack.c.h.b16 %v3431
    %v3612 = vunpack.c.l.b16 %v3432
    %v3613 = vunpack.c.h.b16 %v3432
    %v3614 = vunpack.c.l.b16 %v3433
    %v3615 = vunpack.c.h.b16 %v3433
    %v3616 = vunpack.c.l.b16 %v3434
    %v3617 = vunpack.c.h.b16 %v3434
    %v3618 = vunpack.c.l.b16 %v3435
    %v3619 = vunpack.c.h.b16 %v3435
    %v3620 = vunpack.c.l.b16 %v3436
    %v3621 = vunpack.c.h.b16 %v3436
    %v3622 = vunpack.c.l.b16 %v3437
    %v3623 = vunpack.c.h.b16 %v3437
    %v3624 = vunpack.c.l.b16 %v3438
    %v3625 = vunpack.c.h.b16 %v3438
    %v3626 = vunpack.c.l.b16 %v3439
    %v3627 = vunpack.c.h.b16 %v3439
    %v3628 = vunpack.c.l.b16 %v3440
    %v3629 = vunpack.c.h.b16 %v3440
    %v3630 = vunpack.c.l.b16 %v3441
    %v3631 = vunpack.c.h.b16 %v3441
    %v3632 = vunpack.c.l.b16 %v3442
    %v3633 = vunpack.c.h.b16 %v3442
    %v3634 = vunpack.c.l.b16 %v3443
    %v3635 = vunpack.c.h.b16 %v3443
    %v3636 = vpack.c.b16 %v3516, %v3508
    %v3637 = vpack.c.b16 %v3517, %v3509
    %v3638 = vpack.c.b16 %v3518, %v3510
    %v3639 = vpack.c.b16 %v3519, %v3511
    %v3640 = vpack.c.b16 %v3520, %v3512
    %v3641 = vpack.c.b16 %v3521, %v3513
    %v3642 = vpack.c.b16 %v3522, %v3514
    %v3643 = vpack.c.b16 %v3523, %v3515
    %v3644 = vpack.c.b16 %v3532, %v3524
    %v3645 = vpack.c.b16 %v3533, %v3525
    %v3646 = vpack.c.b16 %v3534, %v3526
    %v3647 = vpack.c.b16 %v3535, %v3527
    %v3648 = vpack.c.b16 %v3536, %v3528
    %v3649 = vpack.c.b16 %v3537, %v3529
    %v3650 = vpack.c.b16 %v3538, %v3530
    %v3651 = vpack.c.b16 %v3539, %v3531
    %v3652 = vpack.c.b16 %v3548, %v3540
    %v3653 = vpack.c.b16 %v3549, %v3541
    %v3654 = vpack.c.b16 %v3550, %v3542
    %v3655 = vpack.c.b16 %v3551, %v3543
    %v3656 = vpack.c.b16 %v3552, %v3544
    %v3657 = vpack.c.b16 %v3553, %v3545
    %v3658 = vpack.c.b16 %v3554, %v3546
    %v3659 = vpack.c.b16 %v3555, %v3547
    %v3660 = vpack.c.b16 %v3564, %v3556
    %v3661 = vpack.c.b16 %v3565, %v3557
    %v3662 = vpack.c.b16 %v3566, %v3558
    %v3663 = vpack.c.b16 %v3567, %v3559
    %v3664 = vpack.c.b16 %v3568, %v3560
    %v3665 = vpack.c.b16 %v3569, %v3561
    %v3666 = vpack.c.b16 %v3570, %v3562
    %v3667 = vpack.c.b16 %v3571, %v3563
    %v3668 = vpack.c.b16 %v3580, %v3572
    %v3669 = vpack.c.b16 %v3581, %v3573
    %v3670 = vpack.c.b16 %v3582, %v3574
    %v3671 = vpack.c.b16 %v3583, %v3575
    %v3672 = vpack.c.b16 %v3584, %v3576
    %v3673 = vpack.c.b16 %v3585, %v3577
    %v3674 = vpack.c.b16 %v3586, %v3578
    %v3675 = vpack.c.b16 %v3587, %v3579
    %v3676 = vpack.c.b16 %v3596, %v3588
    %v3677 = vpack.c.b16 %v3597, %v3589
    %v3678 = vpack.c.b16 %v3598, %v3590
    %v3679 = vpack.c.b16 %v3599, %v3591
    %v3680 = vpack.c.b16 %v3600, %v3592
    %v3681 = vpack.c.b16 %v3601, %v3593
    %v3682 = vpack.c.b16 %v3602, %v3594
    %v3683 = vpack.c.b16 %v3603, %v3595
    %v3684 = vpack.c.b16 %v3612, %v3604
    %v3685 = vpack.c.b16 %v3613, %v3605
    %v3686 = vpack.c.b16 %v3614, %v3606
    %v3687 = vpack.c.b16 %v3615, %v3607
    %v3688 = vpack.c.b16 %v3616, %v3608
    %v3689 = vpack.c.b16 %v3617, %v3609
    %v3690 = vpack.c.b16 %v3618, %v3610
    %v3691 = vpack.c.b16 %v3619, %v3611
    %v3692 = vpack.c.b16 %v3628, %v3620
    %v3693 = vpack.c.b16 %v3629, %v3621
    %v3694 = vpack.c.b16 %v3630, %v3622
    %v3695 = vpack.c.b16 %v3631, %v3623
    %v3696 = vpack.c.b16 %v3632, %v3624
    %v3697 = vpack.c.b16 %v3633, %v3625
    %v3698 = vpack.c.b16 %v3634, %v3626
    %v3699 = vpack.c.b16 %v3635, %v3627
    %3764 = vmatprep.subr.bf16.mxu0 %v3637
    %3765 = vmatpush1.bf16.msra.mxu0 %v3636
    %3766 = vmatprep.subr.bf16.mxu0 %v3645
    %3767 = vmatpush1.bf16.msra.mxu0 %v3644
    %3768 = vmatprep.subr.bf16.mxu0 %v3653
    %3769 = vmatpush1.bf16.msra.mxu0 %v3652
    %3770 = vmatprep.subr.bf16.mxu0 %v3661
    %3771 = vmatpush1.bf16.msra.mxu0 %v3660
    %3772 = vmatprep.subr.bf16.mxu0 %v3669
    %3773 = vmatpush1.bf16.msra.mxu0 %v3668
    %3774 = vmatprep.subr.bf16.mxu0 %v3677
    %3775 = vmatpush1.bf16.msra.mxu0 %v3676
    %3776 = vmatprep.subr.bf16.mxu0 %v3685
    %3777 = vmatpush1.bf16.msra.mxu0 %v3684
    %3778 = vmatprep.subr.bf16.mxu0 %v3693
    %3779 = vmatpush1.bf16.msra.mxu0 %v3692
    %3780 = vmatprep.subr.bf16.mxu0 0
    %3781 = vmatpush1.bf16.msra.mxu0 0
    %3782 = vmatprep.subr.bf16.mxu0 0
    %3783 = vmatpush1.bf16.msra.mxu0 0
    %3784 = vmatprep.subr.bf16.mxu0 0
    %3785 = vmatpush1.bf16.msra.mxu0 0
    %3786 = vmatprep.subr.bf16.mxu0 0
    %3787 = vmatpush1.bf16.msra.mxu0 0
    %3788 = vmatprep.subr.bf16.mxu0 0
    %3789 = vmatpush1.bf16.msra.mxu0 0
    %3790 = vmatprep.subr.bf16.mxu0 0
    %3791 = vmatpush1.bf16.msra.mxu0 0
    %3792 = vmatprep.subr.bf16.mxu0 0
    %3793 = vmatpush1.bf16.msra.mxu0 0
    %3794 = vmatprep.subr.bf16.mxu0 0
    %3795 = vmatpush1.bf16.msra.mxu0 0
    %3796 = vmatprep.mubr.bf16.mxu0 0
    %3797 = vmatmul.mubr.bf16.gmra.mrb[0].mxu0 %v3311
    %v3798 = vpop.f32.mrb[0].mxu0
    %v3799 = vadd.f32 0.0, %v3798
    %v3800 = vpop.f32.mrb[0].mxu0
    %v3801 = vadd.f32 0.0, %v3800
    %v3802 = vpop.f32.mrb[0].mxu0
    %v3803 = vadd.f32 0.0, %v3802
    %v3804 = vpop.f32.mrb[0].mxu0
    %v3805 = vadd.f32 0.0, %v3804
    %3806 = vmatprep.mubr.bf16.mxu0 0
    %3807 = vmatmul.mubr.bf16.gmra.mrb[0].mxu0 %v3312
    %v3808 = vpop.f32.mrb[0].mxu0
    %v3809 = vadd.f32 0.0, %v3808
    %v3810 = vpop.f32.mrb[0].mxu0
    %v3811 = vadd.f32 0.0, %v3810
    %v3812 = vpop.f32.mrb[0].mxu0
    %v3813 = vadd.f32 0.0, %v3812
    %v3814 = vpop.f32.mrb[0].mxu0
    %v3815 = vadd.f32 0.0, %v3814
    %3816 = vmatprep.mubr.bf16.mxu0 0
    %3817 = vmatmul.mubr.bf16.gmra.mrb[0].mxu0 %v3313
    %v3818 = vpop.f32.mrb[0].mxu0
    %v3819 = vadd.f32 0.0, %v3818
    %v3820 = vpop.f32.mrb[0].mxu0
    %v3821 = vadd.f32 0.0, %v3820
    %v3822 = vpop.f32.mrb[0].mxu0
    %v3823 = vadd.f32 0.0, %v3822
    %v3824 = vpop.f32.mrb[0].mxu0
    %v3825 = vadd.f32 0.0, %v3824
    %3826 = vmatprep.mubr.bf16.mxu0 0
    %3827 = vmatmul.mubr.bf16.gmra.mrb[0].mxu0 %v3314
    %v3828 = vpop.f32.mrb[0].mxu0
    %v3829 = vadd.f32 0.0, %v3828
    %v3830 = vpop.f32.mrb[0].mxu0
    %v3831 = vadd.f32 0.0, %v3830
    %v3832 = vpop.f32.mrb[0].mxu0
    %v3833 = vadd.f32 0.0, %v3832
    %v3834 = vpop.f32.mrb[0].mxu0
    %v3835 = vadd.f32 0.0, %v3834
    %3836 = vmatprep.mubr.bf16.mxu0 0
    %3837 = vmatmul.mubr.bf16.gmra.mrb[0].mxu0 %v3315
    %v3838 = vpop.f32.mrb[0].mxu0
    %v3839 = vadd.f32 0.0, %v3838
    %v3840 = vpop.f32.mrb[0].mxu0
    %v3841 = vadd.f32 0.0, %v3840
    %v3842 = vpop.f32.mrb[0].mxu0
    %v3843 = vadd.f32 0.0, %v3842
    %v3844 = vpop.f32.mrb[0].mxu0
    %v3845 = vadd.f32 0.0, %v3844
    %3846 = vdwg.mxu0
    %3847 = vmatprep.subr.bf16.mxu0 %v3639
    %3848 = vmatpush1.bf16.msra.mxu0 %v3638
    %3849 = vmatprep.subr.bf16.mxu0 %v3647
    %3850 = vmatpush1.bf16.msra.mxu0 %v3646
    %3851 = vmatprep.subr.bf16.mxu0 %v3655
    %3852 = vmatpush1.bf16.msra.mxu0 %v3654
    %3853 = vmatprep.subr.bf16.mxu0 %v3663
    %3854 = vmatpush1.bf16.msra.mxu0 %v3662
    %3855 = vmatprep.subr.bf16.mxu0 %v3671
    %3856 = vmatpush1.bf16.msra.mxu0 %v3670
    %3857 = vmatprep.subr.bf16.mxu0 %v3679
    %3858 = vmatpush1.bf16.msra.mxu0 %v3678
    %3859 = vmatprep.subr.bf16.mxu0 %v3687
    %3860 = vmatpush1.bf16.msra.mxu0 %v3686
    %3861 = vmatprep.subr.bf16.mxu0 %v3695
    %3862 = vmatpush1.bf16.msra.mxu0 %v3694
    %3863 = vmatprep.subr.bf16.mxu0 0
    %3864 = vmatpush1.bf16.msra.mxu0 0
    %3865 = vmatprep.subr.bf16.mxu0 0
    %3866 = vmatpush1.bf16.msra.mxu0 0
    %3867 = vmatprep.subr.bf16.mxu0 0
    %3868 = vmatpush1.bf16.msra.mxu0 0
    %3869 = vmatprep.subr.bf16.mxu0 0
    %3870 = vmatpush1.bf16.msra.mxu0 0
    %3871 = vmatprep.subr.bf16.mxu0 0
    %3872 = vmatpush1.bf16.msra.mxu0 0
    %3873 = vmatprep.subr.bf16.mxu0 0
    %3874 = vmatpush1.bf16.msra.mxu0 0
    %3875 = vmatprep.subr.bf16.mxu0 0
    %3876 = vmatpush1.bf16.msra.mxu0 0
    %3877 = vmatprep.subr.bf16.mxu0 0
    %3878 = vmatpush1.bf16.msra.mxu0 0
    %3879 = vmatprep.mubr.bf16.mxu0 0
    %3880 = vmatmul.mubr.bf16.gmra.mrb[0].mxu0 %v3311
    %v3881 = vpop.f32.mrb[0].mxu0
    %v3882 = vadd.f32 0.0, %v3881
    %v3883 = vpop.f32.mrb[0].mxu0
    %v3884 = vadd.f32 0.0, %v3883
    %v3885 = vpop.f32.mrb[0].mxu0
    %v3886 = vadd.f32 0.0, %v3885
    %v3887 = vpop.f32.mrb[0].mxu0
    %v3888 = vadd.f32 0.0, %v3887
    %3889 = vmatprep.mubr.bf16.mxu0 0
    %3890 = vmatmul.mubr.bf16.gmra.mrb[0].mxu0 %v3312
    %v3891 = vpop.f32.mrb[0].mxu0
    %v3892 = vadd.f32 0.0, %v3891
    %v3893 = vpop.f32.mrb[0].mxu0
    %v3894 = vadd.f32 0.0, %v3893
    %v3895 = vpop.f32.mrb[0].mxu0
    %v3896 = vadd.f32 0.0, %v3895
    %v3897 = vpop.f32.mrb[0].mxu0
    %v3898 = vadd.f32 0.0, %v3897
    %3899 = vmatprep.mubr.bf16.mxu0 0
    %3900 = vmatmul.mubr.bf16.gmra.mrb[0].mxu0 %v3313
    %v3901 = vpop.f32.mrb[0].mxu0
    %v3902 = vadd.f32 0.0, %v3901
    %v3903 = vpop.f32.mrb[0].mxu0
    %v3904 = vadd.f32 0.0, %v3903
    %v3905 = vpop.f32.mrb[0].mxu0
    %v3906 = vadd.f32 0.0, %v3905
    %v3907 = vpop.f32.mrb[0].mxu0
    %v3908 = vadd.f32 0.0, %v3907
    %3909 = vmatprep.mubr.bf16.mxu0 0
    %3910 = vmatmul.mubr.bf16.gmra.mrb[0].mxu0 %v3314
    %v3911 = vpop.f32.mrb[0].mxu0
    %v3912 = vadd.f32 0.0, %v3911
    %v3913 = vpop.f32.mrb[0].mxu0
    %v3914 = vadd.f32 0.0, %v3913
    %v3915 = vpop.f32.mrb[0].mxu0
    %v3916 = vadd.f32 0.0, %v3915
    %v3917 = vpop.f32.mrb[0].mxu0
    %v3918 = vadd.f32 0.0, %v3917
    %3919 = vmatprep.mubr.bf16.mxu0 0
    %3920 = vmatmul.mubr.bf16.gmra.mrb[0].mxu0 %v3315
    %v3921 = vpop.f32.mrb[0].mxu0
    %v3922 = vadd.f32 0.0, %v3921
    %v3923 = vpop.f32.mrb[0].mxu0
    %v3924 = vadd.f32 0.0, %v3923
    %v3925 = vpop.f32.mrb[0].mxu0
    %v3926 = vadd.f32 0.0, %v3925
    %v3927 = vpop.f32.mrb[0].mxu0
    %v3928 = vadd.f32 0.0, %v3927
    %3929 = vdwg.mxu0
    %3930 = vmatprep.subr.bf16.mxu0 %v3641
    %3931 = vmatpush1.bf16.msra.mxu0 %v3640
    %3932 = vmatprep.subr.bf16.mxu0 %v3649
    %3933 = vmatpush1.bf16.msra.mxu0 %v3648
    %3934 = vmatprep.subr.bf16.mxu0 %v3657
    %3935 = vmatpush1.bf16.msra.mxu0 %v3656
    %3936 = vmatprep.subr.bf16.mxu0 %v3665
    %3937 = vmatpush1.bf16.msra.mxu0 %v3664
    %3938 = vmatprep.subr.bf16.mxu0 %v3673
    %3939 = vmatpush1.bf16.msra.mxu0 %v3672
    %3940 = vmatprep.subr.bf16.mxu0 %v3681
    %3941 = vmatpush1.bf16.msra.mxu0 %v3680
    %3942 = vmatprep.subr.bf16.mxu0 %v3689
    %3943 = vmatpush1.bf16.msra.mxu0 %v3688
    %3944 = vmatprep.subr.bf16.mxu0 %v3697
    %3945 = vmatpush1.bf16.msra.mxu0 %v3696
    %3946 = vmatprep.subr.bf16.mxu0 0
    %3947 = vmatpush1.bf16.msra.mxu0 0
    %3948 = vmatprep.subr.bf16.mxu0 0
    %3949 = vmatpush1.bf16.msra.mxu0 0
    %3950 = vmatprep.subr.bf16.mxu0 0
    %3951 = vmatpush1.bf16.msra.mxu0 0
    %3952 = vmatprep.subr.bf16.mxu0 0
    %3953 = vmatpush1.bf16.msra.mxu0 0
    %3954 = vmatprep.subr.bf16.mxu0 0
    %3955 = vmatpush1.bf16.msra.mxu0 0
    %3956 = vmatprep.subr.bf16.mxu0 0
    %3957 = vmatpush1.bf16.msra.mxu0 0
    %3958 = vmatprep.subr.bf16.mxu0 0
    %3959 = vmatpush1.bf16.msra.mxu0 0
    %3960 = vmatprep.subr.bf16.mxu0 0
    %3961 = vmatpush1.bf16.msra.mxu0 0
    %3962 = vmatprep.mubr.bf16.mxu0 0
    %3963 = vmatmul.mubr.bf16.gmra.mrb[0].mxu0 %v3311
    %v3964 = vpop.f32.mrb[0].mxu0
    %v3965 = vadd.f32 0.0, %v3964
    %v3966 = vpop.f32.mrb[0].mxu0
    %v3967 = vadd.f32 0.0, %v3966
    %v3968 = vpop.f32.mrb[0].mxu0
    %v3969 = vadd.f32 0.0, %v3968
    %v3970 = vpop.f32.mrb[0].mxu0
    %v3971 = vadd.f32 0.0, %v3970
    %3972 = vmatprep.mubr.bf16.mxu0 0
    %3973 = vmatmul.mubr.bf16.gmra.mrb[0].mxu0 %v3312
    %v3974 = vpop.f32.mrb[0].mxu0
    %v3975 = vadd.f32 0.0, %v3974
    %v3976 = vpop.f32.mrb[0].mxu0
    %v3977 = vadd.f32 0.0, %v3976
    %v3978 = vpop.f32.mrb[0].mxu0
    %v3979 = vadd.f32 0.0, %v3978
    %v3980 = vpop.f32.mrb[0].mxu0
    %v3981 = vadd.f32 0.0, %v3980
    %3982 = vmatprep.mubr.bf16.mxu0 0
    %3983 = vmatmul.mubr.bf16.gmra.mrb[0].mxu0 %v3313
    %v3984 = vpop.f32.mrb[0].mxu0
    %v3985 = vadd.f32 0.0, %v3984
    %v3986 = vpop.f32.mrb[0].mxu0
    %v3987 = vadd.f32 0.0, %v3986
    %v3988 = vpop.f32.mrb[0].mxu0
    %v3989 = vadd.f32 0.0, %v3988
    %v3990 = vpop.f32.mrb[0].mxu0
    %v3991 = vadd.f32 0.0, %v3990
    %3992 = vmatprep.mubr.bf16.mxu0 0
    %3993 = vmatmul.mubr.bf16.gmra.mrb[0].mxu0 %v3314
    %v3994 = vpop.f32.mrb[0].mxu0
    %v3995 = vadd.f32 0.0, %v3994
    %v3996 = vpop.f32.mrb[0].mxu0
    %v3997 = vadd.f32 0.0, %v3996
    %v3998 = vpop.f32.mrb[0].mxu0
    %v3999 = vadd.f32 0.0, %v3998
    %v4000 = vpop.f32.mrb[0].mxu0
    %v4001 = vadd.f32 0.0, %v4000
    %4002 = vmatprep.mubr.bf16.mxu0 0
    %4003 = vmatmul.mubr.bf16.gmra.mrb[0].mxu0 %v3315
    %v4004 = vpop.f32.mrb[0].mxu0
    %v4005 = vadd.f32 0.0, %v4004
    %v4006 = vpop.f32.mrb[0].mxu0
    %v4007 = vadd.f32 0.0, %v4006
    %v4008 = vpop.f32.mrb[0].mxu0
    %v4009 = vadd.f32 0.0, %v4008
    %v4010 = vpop.f32.mrb[0].mxu0
    %v4011 = vadd.f32 0.0, %v4010
    %4012 = vdwg.mxu0
    %4013 = vmatprep.subr.bf16.mxu0 %v3643
    %4014 = vmatpush1.bf16.msra.mxu0 %v3642
    %4015 = vmatprep.subr.bf16.mxu0 %v3651
    %4016 = vmatpush1.bf16.msra.mxu0 %v3650
    %4017 = vmatprep.subr.bf16.mxu0 %v3659
    %4018 = vmatpush1.bf16.msra.mxu0 %v3658
    %4019 = vmatprep.subr.bf16.mxu0 %v3667
    %4020 = vmatpush1.bf16.msra.mxu0 %v3666
    %4021 = vmatprep.subr.bf16.mxu0 %v3675
    %4022 = vmatpush1.bf16.msra.mxu0 %v3674
    %4023 = vmatprep.subr.bf16.mxu0 %v3683
    %4024 = vmatpush1.bf16.msra.mxu0 %v3682
    %4025 = vmatprep.subr.bf16.mxu0 %v3691
    %4026 = vmatpush1.bf16.msra.mxu0 %v3690
    %4027 = vmatprep.subr.bf16.mxu0 %v3699
    %4028 = vmatpush1.bf16.msra.mxu0 %v3698
    %4029 = vmatprep.subr.bf16.mxu0 0
    %4030 = vmatpush1.bf16.msra.mxu0 0
    %4031 = vmatprep.subr.bf16.mxu0 0
    %4032 = vmatpush1.bf16.msra.mxu0 0
    %4033 = vmatprep.subr.bf16.mxu0 0
    %4034 = vmatpush1.bf16.msra.mxu0 0
    %4035 = vmatprep.subr.bf16.mxu0 0
    %4036 = vmatpush1.bf16.msra.mxu0 0
    %4037 = vmatprep.subr.bf16.mxu0 0
    %4038 = vmatpush1.bf16.msra.mxu0 0
    %4039 = vmatprep.subr.bf16.mxu0 0
    %4040 = vmatpush1.bf16.msra.mxu0 0
    %4041 = vmatprep.subr.bf16.mxu0 0
    %4042 = vmatpush1.bf16.msra.mxu0 0
    %4043 = vmatprep.subr.bf16.mxu0 0
    %4044 = vmatpush1.bf16.msra.mxu0 0
    %4045 = vmatprep.mubr.bf16.mxu0 0
    %4046 = vmatmul.mubr.bf16.gmra.mrb[0].mxu0 %v3311
    %v4047 = vpop.f32.mrb[0].mxu0
    %v4048 = vadd.f32 0.0, %v4047
    %v4049 = vpop.f32.mrb[0].mxu0
    %v4050 = vadd.f32 0.0, %v4049
    %v4051 = vpop.f32.mrb[0].mxu0
    %v4052 = vadd.f32 0.0, %v4051
    %v4053 = vpop.f32.mrb[0].mxu0
    %v4054 = vadd.f32 0.0, %v4053
    %4055 = vmatprep.mubr.bf16.mxu0 0
    %4056 = vmatmul.mubr.bf16.gmra.mrb[0].mxu0 %v3312
    %v4057 = vpop.f32.mrb[0].mxu0
    %v4058 = vadd.f32 0.0, %v4057
    %v4059 = vpop.f32.mrb[0].mxu0
    %v4060 = vadd.f32 0.0, %v4059
    %v4061 = vpop.f32.mrb[0].mxu0
    %v4062 = vadd.f32 0.0, %v4061
    %v4063 = vpop.f32.mrb[0].mxu0
    %v4064 = vadd.f32 0.0, %v4063
    %4065 = vmatprep.mubr.bf16.mxu0 0
    %4066 = vmatmul.mubr.bf16.gmra.mrb[0].mxu0 %v3313
    %v4067 = vpop.f32.mrb[0].mxu0
    %v4068 = vadd.f32 0.0, %v4067
    %v4069 = vpop.f32.mrb[0].mxu0
    %v4070 = vadd.f32 0.0, %v4069
    %v4071 = vpop.f32.mrb[0].mxu0
    %v4072 = vadd.f32 0.0, %v4071
    %v4073 = vpop.f32.mrb[0].mxu0
    %v4074 = vadd.f32 0.0, %v4073
    %4075 = vmatprep.mubr.bf16.mxu0 0
    %4076 = vmatmul.mubr.bf16.gmra.mrb[0].mxu0 %v3314
    %v4077 = vpop.f32.mrb[0].mxu0
    %v4078 = vadd.f32 0.0, %v4077
    %v4079 = vpop.f32.mrb[0].mxu0
    %v4080 = vadd.f32 0.0, %v4079
    %v4081 = vpop.f32.mrb[0].mxu0
    %v4082 = vadd.f32 0.0, %v4081
    %v4083 = vpop.f32.mrb[0].mxu0
    %v4084 = vadd.f32 0.0, %v4083
    %4085 = vmatprep.mubr.bf16.mxu0 0
    %4086 = vmatmul.mubr.bf16.gmra.mrb[0].mxu0 %v3315
    %v4087 = vpop.f32.mrb[0].mxu0
    %v4088 = vadd.f32 0.0, %v4087
    %v4089 = vpop.f32.mrb[0].mxu0
    %v4090 = vadd.f32 0.0, %v4089
    %v4091 = vpop.f32.mrb[0].mxu0
    %v4092 = vadd.f32 0.0, %v4091
    %v4093 = vpop.f32.mrb[0].mxu0
    %v4094 = vadd.f32 0.0, %v4093
    %4095 = vdwg.mxu0
    %v4160 = vunpack.c.l.b16 %v3316
    %v4161 = vunpack.c.h.b16 %v3316
    %v4162 = vunpack.c.l.b16 %v3317
    %v4163 = vunpack.c.h.b16 %v3317
    %v4164 = vunpack.c.l.b16 %v3318
    %v4165 = vunpack.c.h.b16 %v3318
    %v4166 = vunpack.c.l.b16 %v3319
    %v4167 = vunpack.c.h.b16 %v3319
    %v4168 = vunpack.c.l.b16 %v3320
    %v4169 = vunpack.c.h.b16 %v3320
    %v4170 = vunpack.c.l.b16 %v3321
    %v4171 = vunpack.c.h.b16 %v3321
    %v4172 = vunpack.c.l.b16 %v3322
    %v4173 = vunpack.c.h.b16 %v3322
    %v4174 = vunpack.c.l.b16 %v3323
    %v4175 = vunpack.c.h.b16 %v3323
    %v4176 = vunpack.c.l.b16 %v3324
    %v4177 = vunpack.c.h.b16 %v3324
    %v4178 = vunpack.c.l.b16 %v3325
    %v4179 = vunpack.c.h.b16 %v3325
    %v4180 = vunpack.c.l.b16 %v3326
    %v4181 = vunpack.c.h.b16 %v3326
    %v4182 = vunpack.c.l.b16 %v3327
    %v4183 = vunpack.c.h.b16 %v3327
    %v4184 = vunpack.c.l.b16 %v3328
    %v4185 = vunpack.c.h.b16 %v3328
    %v4186 = vunpack.c.l.b16 %v3329
    %v4187 = vunpack.c.h.b16 %v3329
    %v4188 = vunpack.c.l.b16 %v3330
    %v4189 = vunpack.c.h.b16 %v3330
    %v4190 = vunpack.c.l.b16 %v3331
    %v4191 = vunpack.c.h.b16 %v3331
    %v4192 = vunpack.c.l.b16 %v3332
    %v4193 = vunpack.c.h.b16 %v3332
    %v4194 = vunpack.c.l.b16 %v3333
    %v4195 = vunpack.c.h.b16 %v3333
    %v4196 = vunpack.c.l.b16 %v3334
    %v4197 = vunpack.c.h.b16 %v3334
    %v4198 = vunpack.c.l.b16 %v3335
    %v4199 = vunpack.c.h.b16 %v3335
    %v4200 = vunpack.c.l.b16 %v3336
    %v4201 = vunpack.c.h.b16 %v3336
    %v4202 = vunpack.c.l.b16 %v3337
    %v4203 = vunpack.c.h.b16 %v3337
    %v4204 = vunpack.c.l.b16 %v3338
    %v4205 = vunpack.c.h.b16 %v3338
    %v4206 = vunpack.c.l.b16 %v3339
    %v4207 = vunpack.c.h.b16 %v3339
    %v4208 = vunpack.c.l.b16 %v3340
    %v4209 = vunpack.c.h.b16 %v3340
    %v4210 = vunpack.c.l.b16 %v3341
    %v4211 = vunpack.c.h.b16 %v3341
    %v4212 = vunpack.c.l.b16 %v3342
    %v4213 = vunpack.c.h.b16 %v3342
    %v4214 = vunpack.c.l.b16 %v3343
    %v4215 = vunpack.c.h.b16 %v3343
    %v4216 = vunpack.c.l.b16 %v3344
    %v4217 = vunpack.c.h.b16 %v3344
    %v4218 = vunpack.c.l.b16 %v3345
    %v4219 = vunpack.c.h.b16 %v3345
    %v4220 = vunpack.c.l.b16 %v3346
    %v4221 = vunpack.c.h.b16 %v3346
    %v4222 = vunpack.c.l.b16 %v3347
    %v4223 = vunpack.c.h.b16 %v3347
    %v4224 = vunpack.c.l.b16 %v3348
    %v4225 = vunpack.c.h.b16 %v3348
    %v4226 = vunpack.c.l.b16 %v3349
    %v4227 = vunpack.c.h.b16 %v3349
    %v4228 = vunpack.c.l.b16 %v3350
    %v4229 = vunpack.c.h.b16 %v3350
    %v4230 = vunpack.c.l.b16 %v3351
    %v4231 = vunpack.c.h.b16 %v3351
    %v4232 = vunpack.c.l.b16 %v3352
    %v4233 = vunpack.c.h.b16 %v3352
    %v4234 = vunpack.c.l.b16 %v3353
    %v4235 = vunpack.c.h.b16 %v3353
    %v4236 = vunpack.c.l.b16 %v3354
    %v4237 = vunpack.c.h.b16 %v3354
    %v4238 = vunpack.c.l.b16 %v3355
    %v4239 = vunpack.c.h.b16 %v3355
    %v4240 = vunpack.c.l.b16 %v3356
    %v4241 = vunpack.c.h.b16 %v3356
    %v4242 = vunpack.c.l.b16 %v3357
    %v4243 = vunpack.c.h.b16 %v3357
    %v4244 = vunpack.c.l.b16 %v3358
    %v4245 = vunpack.c.h.b16 %v3358
    %v4246 = vunpack.c.l.b16 %v3359
    %v4247 = vunpack.c.h.b16 %v3359
    %v4248 = vunpack.c.l.b16 %v3360
    %v4249 = vunpack.c.h.b16 %v3360
    %v4250 = vunpack.c.l.b16 %v3361
    %v4251 = vunpack.c.h.b16 %v3361
    %v4252 = vunpack.c.l.b16 %v3362
    %v4253 = vunpack.c.h.b16 %v3362
    %v4254 = vunpack.c.l.b16 %v3363
    %v4255 = vunpack.c.h.b16 %v3363
    %v4256 = vunpack.c.l.b16 %v3364
    %v4257 = vunpack.c.h.b16 %v3364
    %v4258 = vunpack.c.l.b16 %v3365
    %v4259 = vunpack.c.h.b16 %v3365
    %v4260 = vunpack.c.l.b16 %v3366
    %v4261 = vunpack.c.h.b16 %v3366
    %v4262 = vunpack.c.l.b16 %v3367
    %v4263 = vunpack.c.h.b16 %v3367
    %v4264 = vunpack.c.l.b16 %v3368
    %v4265 = vunpack.c.h.b16 %v3368
    %v4266 = vunpack.c.l.b16 %v3369
    %v4267 = vunpack.c.h.b16 %v3369
    %v4268 = vunpack.c.l.b16 %v3370
    %v4269 = vunpack.c.h.b16 %v3370
    %v4270 = vunpack.c.l.b16 %v3371
    %v4271 = vunpack.c.h.b16 %v3371
    %v4272 = vunpack.c.l.b16 %v3372
    %v4273 = vunpack.c.h.b16 %v3372
    %v4274 = vunpack.c.l.b16 %v3373
    %v4275 = vunpack.c.h.b16 %v3373
    %v4276 = vunpack.c.l.b16 %v3374
    %v4277 = vunpack.c.h.b16 %v3374
    %v4278 = vunpack.c.l.b16 %v3375
    %v4279 = vunpack.c.h.b16 %v3375
    %v4280 = vunpack.c.l.b16 %v3376
    %v4281 = vunpack.c.h.b16 %v3376
    %v4282 = vunpack.c.l.b16 %v3377
    %v4283 = vunpack.c.h.b16 %v3377
    %v4284 = vunpack.c.l.b16 %v3378
    %v4285 = vunpack.c.h.b16 %v3378
    %v4286 = vunpack.c.l.b16 %v3379
    %v4287 = vunpack.c.h.b16 %v3379
    %v4288 = vpack.c.b16 %v4168, %v4160
    %v4289 = vpack.c.b16 %v4169, %v4161
    %v4290 = vpack.c.b16 %v4170, %v4162
    %v4291 = vpack.c.b16 %v4171, %v4163
    %v4292 = vpack.c.b16 %v4172, %v4164
    %v4293 = vpack.c.b16 %v4173, %v4165
    %v4294 = vpack.c.b16 %v4174, %v4166
    %v4295 = vpack.c.b16 %v4175, %v4167
    %v4296 = vpack.c.b16 %v4184, %v4176
    %v4297 = vpack.c.b16 %v4185, %v4177
    %v4298 = vpack.c.b16 %v4186, %v4178
    %v4299 = vpack.c.b16 %v4187, %v4179
    %v4300 = vpack.c.b16 %v4188, %v4180
    %v4301 = vpack.c.b16 %v4189, %v4181
    %v4302 = vpack.c.b16 %v4190, %v4182
    %v4303 = vpack.c.b16 %v4191, %v4183
    %v4304 = vpack.c.b16 %v4200, %v4192
    %v4305 = vpack.c.b16 %v4201, %v4193
    %v4306 = vpack.c.b16 %v4202, %v4194
    %v4307 = vpack.c.b16 %v4203, %v4195
    %v4308 = vpack.c.b16 %v4204, %v4196
    %v4309 = vpack.c.b16 %v4205, %v4197
    %v4310 = vpack.c.b16 %v4206, %v4198
    %v4311 = vpack.c.b16 %v4207, %v4199
    %v4312 = vpack.c.b16 %v4216, %v4208
    %v4313 = vpack.c.b16 %v4217, %v4209
    %v4314 = vpack.c.b16 %v4218, %v4210
    %v4315 = vpack.c.b16 %v4219, %v4211
    %v4316 = vpack.c.b16 %v4220, %v4212
    %v4317 = vpack.c.b16 %v4221, %v4213
    %v4318 = vpack.c.b16 %v4222, %v4214
    %v4319 = vpack.c.b16 %v4223, %v4215
    %v4320 = vpack.c.b16 %v4232, %v4224
    %v4321 = vpack.c.b16 %v4233, %v4225
    %v4322 = vpack.c.b16 %v4234, %v4226
    %v4323 = vpack.c.b16 %v4235, %v4227
    %v4324 = vpack.c.b16 %v4236, %v4228
    %v4325 = vpack.c.b16 %v4237, %v4229
    %v4326 = vpack.c.b16 %v4238, %v4230
    %v4327 = vpack.c.b16 %v4239, %v4231
    %v4328 = vpack.c.b16 %v4248, %v4240
    %v4329 = vpack.c.b16 %v4249, %v4241
    %v4330 = vpack.c.b16 %v4250, %v4242
    %v4331 = vpack.c.b16 %v4251, %v4243
    %v4332 = vpack.c.b16 %v4252, %v4244
    %v4333 = vpack.c.b16 %v4253, %v4245
    %v4334 = vpack.c.b16 %v4254, %v4246
    %v4335 = vpack.c.b16 %v4255, %v4247
    %v4336 = vpack.c.b16 %v4264, %v4256
    %v4337 = vpack.c.b16 %v4265, %v4257
    %v4338 = vpack.c.b16 %v4266, %v4258
    %v4339 = vpack.c.b16 %v4267, %v4259
    %v4340 = vpack.c.b16 %v4268, %v4260
    %v4341 = vpack.c.b16 %v4269, %v4261
    %v4342 = vpack.c.b16 %v4270, %v4262
    %v4343 = vpack.c.b16 %v4271, %v4263
    %v4344 = vpack.c.b16 %v4280, %v4272
    %v4345 = vpack.c.b16 %v4281, %v4273
    %v4346 = vpack.c.b16 %v4282, %v4274
    %v4347 = vpack.c.b16 %v4283, %v4275
    %v4348 = vpack.c.b16 %v4284, %v4276
    %v4349 = vpack.c.b16 %v4285, %v4277
    %v4350 = vpack.c.b16 %v4286, %v4278
    %v4351 = vpack.c.b16 %v4287, %v4279
    %4416 = vmatprep.subr.bf16.mxu0 %v4289
    %4417 = vmatpush1.bf16.msra.mxu0 %v4288
    %4418 = vmatprep.subr.bf16.mxu0 %v4297
    %4419 = vmatpush1.bf16.msra.mxu0 %v4296
    %4420 = vmatprep.subr.bf16.mxu0 %v4305
    %4421 = vmatpush1.bf16.msra.mxu0 %v4304
    %4422 = vmatprep.subr.bf16.mxu0 %v4313
    %4423 = vmatpush1.bf16.msra.mxu0 %v4312
    %4424 = vmatprep.subr.bf16.mxu0 %v4321
    %4425 = vmatpush1.bf16.msra.mxu0 %v4320
    %4426 = vmatprep.subr.bf16.mxu0 %v4329
    %4427 = vmatpush1.bf16.msra.mxu0 %v4328
    %4428 = vmatprep.subr.bf16.mxu0 %v4337
    %4429 = vmatpush1.bf16.msra.mxu0 %v4336
    %4430 = vmatprep.subr.bf16.mxu0 %v4345
    %4431 = vmatpush1.bf16.msra.mxu0 %v4344
    %4432 = vmatprep.subr.bf16.mxu0 0
    %4433 = vmatpush1.bf16.msra.mxu0 0
    %4434 = vmatprep.subr.bf16.mxu0 0
    %4435 = vmatpush1.bf16.msra.mxu0 0
    %4436 = vmatprep.subr.bf16.mxu0 0
    %4437 = vmatpush1.bf16.msra.mxu0 0
    %4438 = vmatprep.subr.bf16.mxu0 0
    %4439 = vmatpush1.bf16.msra.mxu0 0
    %4440 = vmatprep.subr.bf16.mxu0 0
    %4441 = vmatpush1.bf16.msra.mxu0 0
    %4442 = vmatprep.subr.bf16.mxu0 0
    %4443 = vmatpush1.bf16.msra.mxu0 0
    %4444 = vmatprep.subr.bf16.mxu0 0
    %4445 = vmatpush1.bf16.msra.mxu0 0
    %4446 = vmatprep.subr.bf16.mxu0 0
    %4447 = vmatpush1.bf16.msra.mxu0 0
    %4448 = vmatprep.mubr.bf16.mxu0 0
    %4449 = vmatmul.mubr.bf16.gmra.mrb[0].mxu0 %v3306
    %v4450 = vpop.f32.mrb[0].mxu0
    %v4451 = vadd.f32 %v3799, %v4450
    %v4452 = vpop.f32.mrb[0].mxu0
    %v4453 = vadd.f32 %v3801, %v4452
    %v4454 = vpop.f32.mrb[0].mxu0
    %v4455 = vadd.f32 %v3803, %v4454
    %v4456 = vpop.f32.mrb[0].mxu0
    %v4457 = vadd.f32 %v3805, %v4456
    %4458 = vmatprep.mubr.bf16.mxu0 0
    %4459 = vmatmul.mubr.bf16.gmra.mrb[0].mxu0 %v3307
    %v4460 = vpop.f32.mrb[0].mxu0
    %v4461 = vadd.f32 %v3809, %v4460
    %v4462 = vpop.f32.mrb[0].mxu0
    %v4463 = vadd.f32 %v3811, %v4462
    %v4464 = vpop.f32.mrb[0].mxu0
    %v4465 = vadd.f32 %v3813, %v4464
    %v4466 = vpop.f32.mrb[0].mxu0
    %v4467 = vadd.f32 %v3815, %v4466
    %4468 = vmatprep.mubr.bf16.mxu0 0
    %4469 = vmatmul.mubr.bf16.gmra.mrb[0].mxu0 %v3308
    %v4470 = vpop.f32.mrb[0].mxu0
    %v4471 = vadd.f32 %v3819, %v4470
    %v4472 = vpop.f32.mrb[0].mxu0
    %v4473 = vadd.f32 %v3821, %v4472
    %v4474 = vpop.f32.mrb[0].mxu0
    %v4475 = vadd.f32 %v3823, %v4474
    %v4476 = vpop.f32.mrb[0].mxu0
    %v4477 = vadd.f32 %v3825, %v4476
    %4478 = vmatprep.mubr.bf16.mxu0 0
    %4479 = vmatmul.mubr.bf16.gmra.mrb[0].mxu0 %v3309
    %v4480 = vpop.f32.mrb[0].mxu0
    %v4481 = vadd.f32 %v3829, %v4480
    %v4482 = vpop.f32.mrb[0].mxu0
    %v4483 = vadd.f32 %v3831, %v4482
    %v4484 = vpop.f32.mrb[0].mxu0
    %v4485 = vadd.f32 %v3833, %v4484
    %v4486 = vpop.f32.mrb[0].mxu0
    %v4487 = vadd.f32 %v3835, %v4486
    %4488 = vmatprep.mubr.bf16.mxu0 0
    %4489 = vmatmul.mubr.bf16.gmra.mrb[0].mxu0 %v3310
    %v4490 = vpop.f32.mrb[0].mxu0
    %v4491 = vadd.f32 %v3839, %v4490
    %v4492 = vpop.f32.mrb[0].mxu0
    %v4493 = vadd.f32 %v3841, %v4492
    %v4494 = vpop.f32.mrb[0].mxu0
    %v4495 = vadd.f32 %v3843, %v4494
    %v4496 = vpop.f32.mrb[0].mxu0
    %v4497 = vadd.f32 %v3845, %v4496
    %4498 = vdwg.mxu0
    %4499 = vmatprep.subr.bf16.mxu0 %v4291
    %4500 = vmatpush1.bf16.msra.mxu0 %v4290
    %4501 = vmatprep.subr.bf16.mxu0 %v4299
    %4502 = vmatpush1.bf16.msra.mxu0 %v4298
    %4503 = vmatprep.subr.bf16.mxu0 %v4307
    %4504 = vmatpush1.bf16.msra.mxu0 %v4306
    %4505 = vmatprep.subr.bf16.mxu0 %v4315
    %4506 = vmatpush1.bf16.msra.mxu0 %v4314
    %4507 = vmatprep.subr.bf16.mxu0 %v4323
    %4508 = vmatpush1.bf16.msra.mxu0 %v4322
    %4509 = vmatprep.subr.bf16.mxu0 %v4331
    %4510 = vmatpush1.bf16.msra.mxu0 %v4330
    %4511 = vmatprep.subr.bf16.mxu0 %v4339
    %4512 = vmatpush1.bf16.msra.mxu0 %v4338
    %4513 = vmatprep.subr.bf16.mxu0 %v4347
    %4514 = vmatpush1.bf16.msra.mxu0 %v4346
    %4515 = vmatprep.subr.bf16.mxu0 0
    %4516 = vmatpush1.bf16.msra.mxu0 0
    %4517 = vmatprep.subr.bf16.mxu0 0
    %4518 = vmatpush1.bf16.msra.mxu0 0
    %4519 = vmatprep.subr.bf16.mxu0 0
    %4520 = vmatpush1.bf16.msra.mxu0 0
    %4521 = vmatprep.subr.bf16.mxu0 0
    %4522 = vmatpush1.bf16.msra.mxu0 0
    %4523 = vmatprep.subr.bf16.mxu0 0
    %4524 = vmatpush1.bf16.msra.mxu0 0
    %4525 = vmatprep.subr.bf16.mxu0 0
    %4526 = vmatpush1.bf16.msra.mxu0 0
    %4527 = vmatprep.subr.bf16.mxu0 0
    %4528 = vmatpush1.bf16.msra.mxu0 0
    %4529 = vmatprep.subr.bf16.mxu0 0
    %4530 = vmatpush1.bf16.msra.mxu0 0
    %4531 = vmatprep.mubr.bf16.mxu0 0
    %4532 = vmatmul.mubr.bf16.gmra.mrb[0].mxu0 %v3306
    %v4533 = vpop.f32.mrb[0].mxu0
    %v4534 = vadd.f32 %v3882, %v4533
    %v4535 = vpop.f32.mrb[0].mxu0
    %v4536 = vadd.f32 %v3884, %v4535
    %v4537 = vpop.f32.mrb[0].mxu0
    %v4538 = vadd.f32 %v3886, %v4537
    %v4539 = vpop.f32.mrb[0].mxu0
    %v4540 = vadd.f32 %v3888, %v4539
    %4541 = vmatprep.mubr.bf16.mxu0 0
    %4542 = vmatmul.mubr.bf16.gmra.mrb[0].mxu0 %v3307
    %v4543 = vpop.f32.mrb[0].mxu0
    %v4544 = vadd.f32 %v3892, %v4543
    %v4545 = vpop.f32.mrb[0].mxu0
    %v4546 = vadd.f32 %v3894, %v4545
    %v4547 = vpop.f32.mrb[0].mxu0
    %v4548 = vadd.f32 %v3896, %v4547
    %v4549 = vpop.f32.mrb[0].mxu0
    %v4550 = vadd.f32 %v3898, %v4549
    %4551 = vmatprep.mubr.bf16.mxu0 0
    %4552 = vmatmul.mubr.bf16.gmra.mrb[0].mxu0 %v3308
    %v4553 = vpop.f32.mrb[0].mxu0
    %v4554 = vadd.f32 %v3902, %v4553
    %v4555 = vpop.f32.mrb[0].mxu0
    %v4556 = vadd.f32 %v3904, %v4555
    %v4557 = vpop.f32.mrb[0].mxu0
    %v4558 = vadd.f32 %v3906, %v4557
    %v4559 = vpop.f32.mrb[0].mxu0
    %v4560 = vadd.f32 %v3908, %v4559
    %4561 = vmatprep.mubr.bf16.mxu0 0
    %4562 = vmatmul.mubr.bf16.gmra.mrb[0].mxu0 %v3309
    %v4563 = vpop.f32.mrb[0].mxu0
    %v4564 = vadd.f32 %v3912, %v4563
    %v4565 = vpop.f32.mrb[0].mxu0
    %v4566 = vadd.f32 %v3914, %v4565
    %v4567 = vpop.f32.mrb[0].mxu0
    %v4568 = vadd.f32 %v3916, %v4567
    %v4569 = vpop.f32.mrb[0].mxu0
    %v4570 = vadd.f32 %v3918, %v4569
    %4571 = vmatprep.mubr.bf16.mxu0 0
    %4572 = vmatmul.mubr.bf16.gmra.mrb[0].mxu0 %v3310
    %v4573 = vpop.f32.mrb[0].mxu0
    %v4574 = vadd.f32 %v3922, %v4573
    %v4575 = vpop.f32.mrb[0].mxu0
    %v4576 = vadd.f32 %v3924, %v4575
    %v4577 = vpop.f32.mrb[0].mxu0
    %v4578 = vadd.f32 %v3926, %v4577
    %v4579 = vpop.f32.mrb[0].mxu0
    %v4580 = vadd.f32 %v3928, %v4579
    %4581 = vdwg.mxu0
    %4582 = vmatprep.subr.bf16.mxu0 %v4293
    %4583 = vmatpush1.bf16.msra.mxu0 %v4292
    %4584 = vmatprep.subr.bf16.mxu0 %v4301
    %4585 = vmatpush1.bf16.msra.mxu0 %v4300
    %4586 = vmatprep.subr.bf16.mxu0 %v4309
    %4587 = vmatpush1.bf16.msra.mxu0 %v4308
    %4588 = vmatprep.subr.bf16.mxu0 %v4317
    %4589 = vmatpush1.bf16.msra.mxu0 %v4316
    %4590 = vmatprep.subr.bf16.mxu0 %v4325
    %4591 = vmatpush1.bf16.msra.mxu0 %v4324
    %4592 = vmatprep.subr.bf16.mxu0 %v4333
    %4593 = vmatpush1.bf16.msra.mxu0 %v4332
    %4594 = vmatprep.subr.bf16.mxu0 %v4341
    %4595 = vmatpush1.bf16.msra.mxu0 %v4340
    %4596 = vmatprep.subr.bf16.mxu0 %v4349
    %4597 = vmatpush1.bf16.msra.mxu0 %v4348
    %4598 = vmatprep.subr.bf16.mxu0 0
    %4599 = vmatpush1.bf16.msra.mxu0 0
    %4600 = vmatprep.subr.bf16.mxu0 0
    %4601 = vmatpush1.bf16.msra.mxu0 0
    %4602 = vmatprep.subr.bf16.mxu0 0
    %4603 = vmatpush1.bf16.msra.mxu0 0
    %4604 = vmatprep.subr.bf16.mxu0 0
    %4605 = vmatpush1.bf16.msra.mxu0 0
    %4606 = vmatprep.subr.bf16.mxu0 0
    %4607 = vmatpush1.bf16.msra.mxu0 0
    %4608 = vmatprep.subr.bf16.mxu0 0
    %4609 = vmatpush1.bf16.msra.mxu0 0
    %4610 = vmatprep.subr.bf16.mxu0 0
    %4611 = vmatpush1.bf16.msra.mxu0 0
    %4612 = vmatprep.subr.bf16.mxu0 0
    %4613 = vmatpush1.bf16.msra.mxu0 0
    %4614 = vmatprep.mubr.bf16.mxu0 0
    %4615 = vmatmul.mubr.bf16.gmra.mrb[0].mxu0 %v3306
    %v4616 = vpop.f32.mrb[0].mxu0
    %v4617 = vadd.f32 %v3965, %v4616
    %v4618 = vpop.f32.mrb[0].mxu0
    %v4619 = vadd.f32 %v3967, %v4618
    %v4620 = vpop.f32.mrb[0].mxu0
    %v4621 = vadd.f32 %v3969, %v4620
    %v4622 = vpop.f32.mrb[0].mxu0
    %v4623 = vadd.f32 %v3971, %v4622
    %4624 = vmatprep.mubr.bf16.mxu0 0
    %4625 = vmatmul.mubr.bf16.gmra.mrb[0].mxu0 %v3307
    %v4626 = vpop.f32.mrb[0].mxu0
    %v4627 = vadd.f32 %v3975, %v4626
    %v4628 = vpop.f32.mrb[0].mxu0
    %v4629 = vadd.f32 %v3977, %v4628
    %v4630 = vpop.f32.mrb[0].mxu0
    %v4631 = vadd.f32 %v3979, %v4630
    %v4632 = vpop.f32.mrb[0].mxu0
    %v4633 = vadd.f32 %v3981, %v4632
    %4634 = vmatprep.mubr.bf16.mxu0 0
    %4635 = vmatmul.mubr.bf16.gmra.mrb[0].mxu0 %v3308
    %v4636 = vpop.f32.mrb[0].mxu0
    %v4637 = vadd.f32 %v3985, %v4636
    %v4638 = vpop.f32.mrb[0].mxu0
    %v4639 = vadd.f32 %v3987, %v4638
    %v4640 = vpop.f32.mrb[0].mxu0
    %v4641 = vadd.f32 %v3989, %v4640
    %v4642 = vpop.f32.mrb[0].mxu0
    %v4643 = vadd.f32 %v3991, %v4642
    %4644 = vmatprep.mubr.bf16.mxu0 0
    %4645 = vmatmul.mubr.bf16.gmra.mrb[0].mxu0 %v3309
    %v4646 = vpop.f32.mrb[0].mxu0
    %v4647 = vadd.f32 %v3995, %v4646
    %v4648 = vpop.f32.mrb[0].mxu0
    %v4649 = vadd.f32 %v3997, %v4648
    %v4650 = vpop.f32.mrb[0].mxu0
    %v4651 = vadd.f32 %v3999, %v4650
    %v4652 = vpop.f32.mrb[0].mxu0
    %v4653 = vadd.f32 %v4001, %v4652
    %4654 = vmatprep.mubr.bf16.mxu0 0
    %4655 = vmatmul.mubr.bf16.gmra.mrb[0].mxu0 %v3310
    %v4656 = vpop.f32.mrb[0].mxu0
    %v4657 = vadd.f32 %v4005, %v4656
    %v4658 = vpop.f32.mrb[0].mxu0
    %v4659 = vadd.f32 %v4007, %v4658
    %v4660 = vpop.f32.mrb[0].mxu0
    %v4661 = vadd.f32 %v4009, %v4660
    %v4662 = vpop.f32.mrb[0].mxu0
    %v4663 = vadd.f32 %v4011, %v4662
    %4664 = vdwg.mxu0
    %4665 = vmatprep.subr.bf16.mxu0 %v4295
    %4666 = vmatpush1.bf16.msra.mxu0 %v4294
    %4667 = vmatprep.subr.bf16.mxu0 %v4303
    %4668 = vmatpush1.bf16.msra.mxu0 %v4302
    %4669 = vmatprep.subr.bf16.mxu0 %v4311
    %4670 = vmatpush1.bf16.msra.mxu0 %v4310
    %4671 = vmatprep.subr.bf16.mxu0 %v4319
    %4672 = vmatpush1.bf16.msra.mxu0 %v4318
    %4673 = vmatprep.subr.bf16.mxu0 %v4327
    %4674 = vmatpush1.bf16.msra.mxu0 %v4326
    %4675 = vmatprep.subr.bf16.mxu0 %v4335
    %4676 = vmatpush1.bf16.msra.mxu0 %v4334
    %4677 = vmatprep.subr.bf16.mxu0 %v4343
    %4678 = vmatpush1.bf16.msra.mxu0 %v4342
    %4679 = vmatprep.subr.bf16.mxu0 %v4351
    %4680 = vmatpush1.bf16.msra.mxu0 %v4350
    %4681 = vmatprep.subr.bf16.mxu0 0
    %4682 = vmatpush1.bf16.msra.mxu0 0
    %4683 = vmatprep.subr.bf16.mxu0 0
    %4684 = vmatpush1.bf16.msra.mxu0 0
    %4685 = vmatprep.subr.bf16.mxu0 0
    %4686 = vmatpush1.bf16.msra.mxu0 0
    %4687 = vmatprep.subr.bf16.mxu0 0
    %4688 = vmatpush1.bf16.msra.mxu0 0
    %4689 = vmatprep.subr.bf16.mxu0 0
    %4690 = vmatpush1.bf16.msra.mxu0 0
    %4691 = vmatprep.subr.bf16.mxu0 0
    %4692 = vmatpush1.bf16.msra.mxu0 0
    %4693 = vmatprep.subr.bf16.mxu0 0
    %4694 = vmatpush1.bf16.msra.mxu0 0
    %4695 = vmatprep.subr.bf16.mxu0 0
    %4696 = vmatpush1.bf16.msra.mxu0 0
    %4697 = vmatprep.mubr.bf16.mxu0 0
    %4698 = vmatmul.mubr.bf16.gmra.mrb[0].mxu0 %v3306
    %v4699 = vpop.f32.mrb[0].mxu0
    %v4700 = vadd.f32 %v4048, %v4699
    %v4701 = vpop.f32.mrb[0].mxu0
    %v4702 = vadd.f32 %v4050, %v4701
    %v4703 = vpop.f32.mrb[0].mxu0
    %v4704 = vadd.f32 %v4052, %v4703
    %v4705 = vpop.f32.mrb[0].mxu0
    %v4706 = vadd.f32 %v4054, %v4705
    %4707 = vmatprep.mubr.bf16.mxu0 0
    %4708 = vmatmul.mubr.bf16.gmra.mrb[0].mxu0 %v3307
    %v4709 = vpop.f32.mrb[0].mxu0
    %v4710 = vadd.f32 %v4058, %v4709
    %v4711 = vpop.f32.mrb[0].mxu0
    %v4712 = vadd.f32 %v4060, %v4711
    %v4713 = vpop.f32.mrb[0].mxu0
    %v4714 = vadd.f32 %v4062, %v4713
    %v4715 = vpop.f32.mrb[0].mxu0
    %v4716 = vadd.f32 %v4064, %v4715
    %4717 = vmatprep.mubr.bf16.mxu0 0
    %4718 = vmatmul.mubr.bf16.gmra.mrb[0].mxu0 %v3308
    %v4719 = vpop.f32.mrb[0].mxu0
    %v4720 = vadd.f32 %v4068, %v4719
    %v4721 = vpop.f32.mrb[0].mxu0
    %v4722 = vadd.f32 %v4070, %v4721
    %v4723 = vpop.f32.mrb[0].mxu0
    %v4724 = vadd.f32 %v4072, %v4723
    %v4725 = vpop.f32.mrb[0].mxu0
    %v4726 = vadd.f32 %v4074, %v4725
    %4727 = vmatprep.mubr.bf16.mxu0 0
    %4728 = vmatmul.mubr.bf16.gmra.mrb[0].mxu0 %v3309
    %v4729 = vpop.f32.mrb[0].mxu0
    %v4730 = vadd.f32 %v4078, %v4729
    %v4731 = vpop.f32.mrb[0].mxu0
    %v4732 = vadd.f32 %v4080, %v4731
    %v4733 = vpop.f32.mrb[0].mxu0
    %v4734 = vadd.f32 %v4082, %v4733
    %v4735 = vpop.f32.mrb[0].mxu0
    %v4736 = vadd.f32 %v4084, %v4735
    %4737 = vmatprep.mubr.bf16.mxu0 0
    %4738 = vmatmul.mubr.bf16.gmra.mrb[0].mxu0 %v3310
    %v4739 = vpop.f32.mrb[0].mxu0
    %v4740 = vadd.f32 %v4088, %v4739
    %v4741 = vpop.f32.mrb[0].mxu0
    %v4742 = vadd.f32 %v4090, %v4741
    %v4743 = vpop.f32.mrb[0].mxu0
    %v4744 = vadd.f32 %v4092, %v4743
    %v4745 = vpop.f32.mrb[0].mxu0
    %v4746 = vadd.f32 %v4094, %v4745
    %4747 = vdwg.mxu0
    %v4748 = vld [vmem:[%s7] sm:$0xff]
    %v4750 = vlaneseq
    %v4751 = vshrl.u32 %v4750, 7
    %v4752 = vsub.s32 0, %v4751
    %v4753 = vrot.slane %v4748, %v4752
    %v4754 = vlaneseq
    %v4755 = vshrl.u32 %v4754, 7
    %v4756 = vsub.s32 1, %v4755
    %v4757 = vrot.slane %v4748, %v4756
    %v4758 = vlaneseq
    %v4759 = vshrl.u32 %v4758, 7
    %v4760 = vsub.s32 2, %v4759
    %v4761 = vrot.slane %v4748, %v4760
    %v4762 = vlaneseq
    %v4763 = vshrl.u32 %v4762, 7
    %v4764 = vsub.s32 3, %v4763
    %v4765 = vrot.slane %v4748, %v4764
    %v4766 = vlaneseq
    %v4767 = vshrl.u32 %v4766, 7
    %v4768 = vsub.s32 4, %v4767
    %v4769 = vrot.slane %v4748, %v4768
    %v4770 = vlaneseq
    %v4771 = vshrl.u32 %v4770, 7
    %v4772 = vsub.s32 5, %v4771
    %v4773 = vrot.slane %v4748, %v4772
    %v4774 = vlaneseq
    %v4775 = vshrl.u32 %v4774, 7
    %v4776 = vsub.s32 6, %v4775
    %v4777 = vrot.slane %v4748, %v4776
    %v4778 = vlaneseq
    %v4779 = vshrl.u32 %v4778, 7
    %v4780 = vsub.s32 7, %v4779
    %v4781 = vrot.slane %v4748, %v4780
    %v4790 = vadd.f32 %v4451, %v4753
    %v4791 = vadd.f32 %v4453, %v4757
    %v4792 = vadd.f32 %v4534, %v4761
    %v4793 = vadd.f32 %v4536, %v4765
    %v4794 = vadd.f32 %v4617, %v4769
    %v4795 = vadd.f32 %v4619, %v4773
    %v4796 = vadd.f32 %v4700, %v4777
    %v4797 = vadd.f32 %v4702, %v4781
    %v4798 = vadd.f32 %v4455, %v4753
    %v4799 = vadd.f32 %v4457, %v4757
    %v4800 = vadd.f32 %v4538, %v4761
    %v4801 = vadd.f32 %v4540, %v4765
    %v4802 = vadd.f32 %v4621, %v4769
    %v4803 = vadd.f32 %v4623, %v4773
    %v4804 = vadd.f32 %v4704, %v4777
    %v4805 = vadd.f32 %v4706, %v4781
    %v4806 = vadd.f32 %v4461, %v4753
    %v4807 = vadd.f32 %v4463, %v4757
    %v4808 = vadd.f32 %v4544, %v4761
    %v4809 = vadd.f32 %v4546, %v4765
    %v4810 = vadd.f32 %v4627, %v4769
    %v4811 = vadd.f32 %v4629, %v4773
    %v4812 = vadd.f32 %v4710, %v4777
    %v4813 = vadd.f32 %v4712, %v4781
    %v4814 = vadd.f32 %v4465, %v4753
    %v4815 = vadd.f32 %v4467, %v4757
    %v4816 = vadd.f32 %v4548, %v4761
    %v4817 = vadd.f32 %v4550, %v4765
    %v4818 = vadd.f32 %v4631, %v4769
    %v4819 = vadd.f32 %v4633, %v4773
    %v4820 = vadd.f32 %v4714, %v4777
    %v4821 = vadd.f32 %v4716, %v4781
    %v4822 = vadd.f32 %v4471, %v4753
    %v4823 = vadd.f32 %v4473, %v4757
    %v4824 = vadd.f32 %v4554, %v4761
    %v4825 = vadd.f32 %v4556, %v4765
    %v4826 = vadd.f32 %v4637, %v4769
    %v4827 = vadd.f32 %v4639, %v4773
    %v4828 = vadd.f32 %v4720, %v4777
    %v4829 = vadd.f32 %v4722, %v4781
    %v4830 = vadd.f32 %v4475, %v4753
    %v4831 = vadd.f32 %v4477, %v4757
    %v4832 = vadd.f32 %v4558, %v4761
    %v4833 = vadd.f32 %v4560, %v4765
    %v4834 = vadd.f32 %v4641, %v4769
    %v4835 = vadd.f32 %v4643, %v4773
    %v4836 = vadd.f32 %v4724, %v4777
    %v4837 = vadd.f32 %v4726, %v4781
    %v4838 = vadd.f32 %v4481, %v4753
    %v4839 = vadd.f32 %v4483, %v4757
    %v4840 = vadd.f32 %v4564, %v4761
    %v4841 = vadd.f32 %v4566, %v4765
    %v4842 = vadd.f32 %v4647, %v4769
    %v4843 = vadd.f32 %v4649, %v4773
    %v4844 = vadd.f32 %v4730, %v4777
    %v4845 = vadd.f32 %v4732, %v4781
    %v4846 = vadd.f32 %v4485, %v4753
    %v4847 = vadd.f32 %v4487, %v4757
    %v4848 = vadd.f32 %v4568, %v4761
    %v4849 = vadd.f32 %v4570, %v4765
    %v4850 = vadd.f32 %v4651, %v4769
    %v4851 = vadd.f32 %v4653, %v4773
    %v4852 = vadd.f32 %v4734, %v4777
    %v4853 = vadd.f32 %v4736, %v4781
    %v4854 = vadd.f32 %v4491, %v4753
    %v4855 = vadd.f32 %v4493, %v4757
    %v4856 = vadd.f32 %v4574, %v4761
    %v4857 = vadd.f32 %v4576, %v4765
    %v4858 = vadd.f32 %v4657, %v4769
    %v4859 = vadd.f32 %v4659, %v4773
    %v4860 = vadd.f32 %v4740, %v4777
    %v4861 = vadd.f32 %v4742, %v4781
    %v4862 = vadd.f32 %v4495, %v4753
    %v4863 = vadd.f32 %v4497, %v4757
    %v4864 = vadd.f32 %v4578, %v4761
    %v4865 = vadd.f32 %v4580, %v4765
    %v4866 = vadd.f32 %v4661, %v4769
    %v4867 = vadd.f32 %v4663, %v4773
    %v4868 = vadd.f32 %v4744, %v4777
    %v4869 = vadd.f32 %v4746, %v4781
    %v4870 = vpack.c.bf16 %v4798, %v4790
    %v4871 = vpack.c.bf16 %v4799, %v4791
    %v4872 = vpack.c.bf16 %v4800, %v4792
    %v4873 = vpack.c.bf16 %v4801, %v4793
    %v4874 = vpack.c.bf16 %v4802, %v4794
    %v4875 = vpack.c.bf16 %v4803, %v4795
    %v4876 = vpack.c.bf16 %v4804, %v4796
    %v4877 = vpack.c.bf16 %v4805, %v4797
    %v4878 = vpack.c.bf16 %v4814, %v4806
    %v4879 = vpack.c.bf16 %v4815, %v4807
    %v4880 = vpack.c.bf16 %v4816, %v4808
    %v4881 = vpack.c.bf16 %v4817, %v4809
    %v4882 = vpack.c.bf16 %v4818, %v4810
    %v4883 = vpack.c.bf16 %v4819, %v4811
    %v4884 = vpack.c.bf16 %v4820, %v4812
    %v4885 = vpack.c.bf16 %v4821, %v4813
    %v4886 = vpack.c.bf16 %v4830, %v4822
    %v4887 = vpack.c.bf16 %v4831, %v4823
    %v4888 = vpack.c.bf16 %v4832, %v4824
    %v4889 = vpack.c.bf16 %v4833, %v4825
    %v4890 = vpack.c.bf16 %v4834, %v4826
    %v4891 = vpack.c.bf16 %v4835, %v4827
    %v4892 = vpack.c.bf16 %v4836, %v4828
    %v4893 = vpack.c.bf16 %v4837, %v4829
    %v4894 = vpack.c.bf16 %v4846, %v4838
    %v4895 = vpack.c.bf16 %v4847, %v4839
    %v4896 = vpack.c.bf16 %v4848, %v4840
    %v4897 = vpack.c.bf16 %v4849, %v4841
    %v4898 = vpack.c.bf16 %v4850, %v4842
    %v4899 = vpack.c.bf16 %v4851, %v4843
    %v4900 = vpack.c.bf16 %v4852, %v4844
    %v4901 = vpack.c.bf16 %v4853, %v4845
    %v4902 = vpack.c.bf16 %v4862, %v4854
    %v4903 = vpack.c.bf16 %v4863, %v4855
    %v4904 = vpack.c.bf16 %v4864, %v4856
    %v4905 = vpack.c.bf16 %v4865, %v4857
    %v4906 = vpack.c.bf16 %v4866, %v4858
    %v4907 = vpack.c.bf16 %v4867, %v4859
    %v4908 = vpack.c.bf16 %v4868, %v4860
    %v4909 = vpack.c.bf16 %v4869, %v4861
    %4910 = vst [vmem:[#allocation2] sm:$0xff] %v4870
    %4911 = vst [vmem:[#allocation2 + $0x8] sm:$0xff] %v4871
    %4912 = vst [vmem:[#allocation2 + $0x10] sm:$0xff] %v4872
    %4913 = vst [vmem:[#allocation2 + $0x18] sm:$0xff] %v4873
    %4914 = vst [vmem:[#allocation2 + $0x20] sm:$0xff] %v4874
    %4915 = vst [vmem:[#allocation2 + $0x28] sm:$0xff] %v4875
    %4916 = vst [vmem:[#allocation2 + $0x30] sm:$0xff] %v4876
    %4917 = vst [vmem:[#allocation2 + $0x38] sm:$0xff] %v4877
    %4918 = vst [vmem:[#allocation2 + $0x40] sm:$0xff] %v4878
    %4919 = vst [vmem:[#allocation2 + $0x48] sm:$0xff] %v4879
    %4920 = vst [vmem:[#allocation2 + $0x50] sm:$0xff] %v4880
    %4921 = vst [vmem:[#allocation2 + $0x58] sm:$0xff] %v4881
    %4922 = vst [vmem:[#allocation2 + $0x60] sm:$0xff] %v4882
    %4923 = vst [vmem:[#allocation2 + $0x68] sm:$0xff] %v4883
    %4924 = vst [vmem:[#allocation2 + $0x70] sm:$0xff] %v4884
    %4925 = vst [vmem:[#allocation2 + $0x78] sm:$0xff] %v4885
    %4926 = vst [vmem:[#allocation2 + $0x80] sm:$0xff] %v4886
    %4927 = vst [vmem:[#allocation2 + $0x88] sm:$0xff] %v4887
    %4928 = vst [vmem:[#allocation2 + $0x90] sm:$0xff] %v4888
    %4929 = vst [vmem:[#allocation2 + $0x98] sm:$0xff] %v4889
    %4930 = vst [vmem:[#allocation2 + $0xa0] sm:$0xff] %v4890
    %4931 = vst [vmem:[#allocation2 + $0xa8] sm:$0xff] %v4891
    %4932 = vst [vmem:[#allocation2 + $0xb0] sm:$0xff] %v4892
    %4933 = vst [vmem:[#allocation2 + $0xb8] sm:$0xff] %v4893
    %4934 = vst [vmem:[#allocation2 + $0xc0] sm:$0xff] %v4894
    %4935 = vst [vmem:[#allocation2 + $0xc8] sm:$0xff] %v4895
    %4936 = vst [vmem:[#allocation2 + $0xd0] sm:$0xff] %v4896
    %4937 = vst [vmem:[#allocation2 + $0xd8] sm:$0xff] %v4897
    %4938 = vst [vmem:[#allocation2 + $0xe0] sm:$0xff] %v4898
    %4939 = vst [vmem:[#allocation2 + $0xe8] sm:$0xff] %v4899
    %4940 = vst [vmem:[#allocation2 + $0xf0] sm:$0xff] %v4900
    %4941 = vst [vmem:[#allocation2 + $0xf8] sm:$0xff] %v4901
    %4942 = vst [vmem:[#allocation2 + $0x100] sm:$0xff] %v4902
    %4943 = vst [vmem:[#allocation2 + $0x108] sm:$0xff] %v4903
    %4944 = vst [vmem:[#allocation2 + $0x110] sm:$0xff] %v4904
    %4945 = vst [vmem:[#allocation2 + $0x118] sm:$0xff] %v4905
    %4946 = vst [vmem:[#allocation2 + $0x120] sm:$0xff] %v4906
    %4947 = vst [vmem:[#allocation2 + $0x128] sm:$0xff] %v4907
    %4948 = vst [vmem:[#allocation2 + $0x130] sm:$0xff] %v4908
    %4949 = vst [vmem:[#allocation2 + $0x138] sm:$0xff] %v4909
    %v4950 = vld [vmem:[#allocation16] sm:$0xff]
    %v4951 = vld [vmem:[#allocation16 + $0x8] sm:$0xff]
    %v4952 = vld [vmem:[#allocation16 + $0x10] sm:$0xff]
    %v4953 = vld [vmem:[#allocation16 + $0x18] sm:$0xff]
    %v4954 = vld [vmem:[#allocation16 + $0x20] sm:$0xff]
    %v4955 = vld [vmem:[#allocation16 + $0x28] sm:$0xff]
    %v4956 = vld [vmem:[#allocation16 + $0x30] sm:$0xff]
    %v4957 = vld [vmem:[#allocation16 + $0x38] sm:$0xff]
    %v4958 = vld [vmem:[#allocation16 + $0x40] sm:$0xff]
    %v4959 = vld [vmem:[#allocation16 + $0x48] sm:$0xff]
    %v4960 = vld [vmem:[#allocation16 + $0x50] sm:$0xff]
    %v4961 = vld [vmem:[#allocation16 + $0x58] sm:$0xff]
    %v4962 = vld [vmem:[#allocation16 + $0x60] sm:$0xff]
    %v4963 = vld [vmem:[#allocation16 + $0x68] sm:$0xff]
    %v4964 = vld [vmem:[#allocation16 + $0x70] sm:$0xff]
    %v4965 = vld [vmem:[#allocation16 + $0x78] sm:$0xff]
    %v4966 = vld [vmem:[#allocation16 + $0x80] sm:$0xff]
    %v4967 = vld [vmem:[#allocation16 + $0x88] sm:$0xff]
    %v4968 = vld [vmem:[#allocation16 + $0x90] sm:$0xff]
    %v4969 = vld [vmem:[#allocation16 + $0x98] sm:$0xff]
    %v4970 = vld [vmem:[#allocation16 + $0xa0] sm:$0xff]
    %v4971 = vld [vmem:[#allocation16 + $0xa8] sm:$0xff]
    %v4972 = vld [vmem:[#allocation16 + $0xb0] sm:$0xff]
    %v4973 = vld [vmem:[#allocation16 + $0xb8] sm:$0xff]
    %v4974 = vld [vmem:[#allocation16 + $0xc0] sm:$0xff]
    %v4975 = vld [vmem:[#allocation16 + $0xc8] sm:$0xff]
    %v4976 = vld [vmem:[#allocation16 + $0xd0] sm:$0xff]
    %v4977 = vld [vmem:[#allocation16 + $0xd8] sm:$0xff]
    %v4978 = vld [vmem:[#allocation16 + $0xe0] sm:$0xff]
    %v4979 = vld [vmem:[#allocation16 + $0xe8] sm:$0xff]
    %v4980 = vld [vmem:[#allocation16 + $0xf0] sm:$0xff]
    %v4981 = vld [vmem:[#allocation16 + $0xf8] sm:$0xff]
    %v4982 = vld [vmem:[#allocation16 + $0x100] sm:$0xff]
    %v4983 = vld [vmem:[#allocation16 + $0x108] sm:$0xff]
    %v4984 = vld [vmem:[#allocation16 + $0x110] sm:$0xff]
    %v4985 = vld [vmem:[#allocation16 + $0x118] sm:$0xff]
    %v4986 = vld [vmem:[#allocation16 + $0x120] sm:$0xff]
    %v4987 = vld [vmem:[#allocation16 + $0x128] sm:$0xff]
    %v4988 = vld [vmem:[#allocation16 + $0x130] sm:$0xff]
    %v4989 = vld [vmem:[#allocation16 + $0x138] sm:$0xff]
    %v4990 = vld [vmem:[#allocation16 + $0x140] sm:$0xff]
    %v4991 = vld [vmem:[#allocation16 + $0x148] sm:$0xff]
    %v4992 = vld [vmem:[#allocation16 + $0x150] sm:$0xff]
    %v4993 = vld [vmem:[#allocation16 + $0x158] sm:$0xff]
    %v4994 = vld [vmem:[#allocation16 + $0x160] sm:$0xff]
    %v4995 = vld [vmem:[#allocation16 + $0x168] sm:$0xff]
    %v4996 = vld [vmem:[#allocation16 + $0x170] sm:$0xff]
    %v4997 = vld [vmem:[#allocation16 + $0x178] sm:$0xff]
    %v4998 = vld [vmem:[#allocation16 + $0x180] sm:$0xff]
    %v4999 = vld [vmem:[#allocation16 + $0x188] sm:$0xff]
    %v5000 = vld [vmem:[#allocation16 + $0x190] sm:$0xff]
    %v5001 = vld [vmem:[#allocation16 + $0x198] sm:$0xff]
    %v5002 = vld [vmem:[#allocation16 + $0x1a0] sm:$0xff]
    %v5003 = vld [vmem:[#allocation16 + $0x1a8] sm:$0xff]
    %v5004 = vld [vmem:[#allocation16 + $0x1b0] sm:$0xff]
    %v5005 = vld [vmem:[#allocation16 + $0x1b8] sm:$0xff]
    %v5006 = vld [vmem:[#allocation16 + $0x1c0] sm:$0xff]
    %v5007 = vld [vmem:[#allocation16 + $0x1c8] sm:$0xff]
    %v5008 = vld [vmem:[#allocation16 + $0x1d0] sm:$0xff]
    %v5009 = vld [vmem:[#allocation16 + $0x1d8] sm:$0xff]
    %v5010 = vld [vmem:[#allocation16 + $0x1e0] sm:$0xff]
    %v5011 = vld [vmem:[#allocation16 + $0x1e8] sm:$0xff]
    %v5012 = vld [vmem:[#allocation16 + $0x1f0] sm:$0xff]
    %v5013 = vld [vmem:[#allocation16 + $0x1f8] sm:$0xff]
    %v5014 = vld [vmem:[#allocation16 + $0x200] sm:$0xff]
    %v5015 = vld [vmem:[#allocation16 + $0x208] sm:$0xff]
    %v5016 = vld [vmem:[#allocation16 + $0x210] sm:$0xff]
    %v5017 = vld [vmem:[#allocation16 + $0x218] sm:$0xff]
    %v5018 = vld [vmem:[#allocation16 + $0x220] sm:$0xff]
    %v5019 = vld [vmem:[#allocation16 + $0x228] sm:$0xff]
    %v5020 = vld [vmem:[#allocation16 + $0x230] sm:$0xff]
    %v5021 = vld [vmem:[#allocation16 + $0x238] sm:$0xff]
    %v5022 = vld [vmem:[#allocation16 + $0x240] sm:$0xff]
    %v5023 = vld [vmem:[#allocation16 + $0x248] sm:$0xff]
    %v5024 = vld [vmem:[#allocation16 + $0x250] sm:$0xff]
    %v5025 = vld [vmem:[#allocation16 + $0x258] sm:$0xff]
    %v5026 = vld [vmem:[#allocation16 + $0x260] sm:$0xff]
    %v5027 = vld [vmem:[#allocation16 + $0x268] sm:$0xff]
    %v5028 = vld [vmem:[#allocation16 + $0x270] sm:$0xff]
    %v5029 = vld [vmem:[#allocation16 + $0x278] sm:$0xff]
    %v5030 = vld [vmem:[#allocation16 + $0x280] sm:$0xff]
    %v5031 = vld [vmem:[#allocation16 + $0x288] sm:$0xff]
    %v5032 = vld [vmem:[#allocation16 + $0x290] sm:$0xff]
    %v5033 = vld [vmem:[#allocation16 + $0x298] sm:$0xff]
    %v5034 = vld [vmem:[#allocation16 + $0x2a0] sm:$0xff]
    %v5035 = vld [vmem:[#allocation16 + $0x2a8] sm:$0xff]
    %v5036 = vld [vmem:[#allocation16 + $0x2b0] sm:$0xff]
    %v5037 = vld [vmem:[#allocation16 + $0x2b8] sm:$0xff]
    %v5038 = vld [vmem:[#allocation16 + $0x2c0] sm:$0xff]
    %v5039 = vld [vmem:[#allocation16 + $0x2c8] sm:$0xff]
    %v5040 = vld [vmem:[#allocation16 + $0x2d0] sm:$0xff]
    %v5041 = vld [vmem:[#allocation16 + $0x2d8] sm:$0xff]
    %v5042 = vld [vmem:[#allocation16 + $0x2e0] sm:$0xff]
    %v5043 = vld [vmem:[#allocation16 + $0x2e8] sm:$0xff]
    %v5044 = vld [vmem:[#allocation16 + $0x2f0] sm:$0xff]
    %v5045 = vld [vmem:[#allocation16 + $0x2f8] sm:$0xff]
    %v5046 = vld [vmem:[#allocation16 + $0x300] sm:$0xff]
    %v5047 = vld [vmem:[#allocation16 + $0x308] sm:$0xff]
    %v5048 = vld [vmem:[#allocation16 + $0x310] sm:$0xff]
    %v5049 = vld [vmem:[#allocation16 + $0x318] sm:$0xff]
    %v5050 = vld [vmem:[#allocation16 + $0x320] sm:$0xff]
    %v5051 = vld [vmem:[#allocation16 + $0x328] sm:$0xff]
    %v5052 = vld [vmem:[#allocation16 + $0x330] sm:$0xff]
    %v5053 = vld [vmem:[#allocation16 + $0x338] sm:$0xff]
    %v5054 = vld [vmem:[#allocation16 + $0x340] sm:$0xff]
    %v5055 = vld [vmem:[#allocation16 + $0x348] sm:$0xff]
    %v5056 = vld [vmem:[#allocation16 + $0x350] sm:$0xff]
    %v5057 = vld [vmem:[#allocation16 + $0x358] sm:$0xff]
    %v5058 = vld [vmem:[#allocation16 + $0x360] sm:$0xff]
    %v5059 = vld [vmem:[#allocation16 + $0x368] sm:$0xff]
    %v5060 = vld [vmem:[#allocation16 + $0x370] sm:$0xff]
    %v5061 = vld [vmem:[#allocation16 + $0x378] sm:$0xff]
    %v5062 = vld [vmem:[#allocation16 + $0x380] sm:$0xff]
    %v5063 = vld [vmem:[#allocation16 + $0x388] sm:$0xff]
    %v5064 = vld [vmem:[#allocation16 + $0x390] sm:$0xff]
    %v5065 = vld [vmem:[#allocation16 + $0x398] sm:$0xff]
    %v5066 = vld [vmem:[#allocation16 + $0x3a0] sm:$0xff]
    %v5067 = vld [vmem:[#allocation16 + $0x3a8] sm:$0xff]
    %v5068 = vld [vmem:[#allocation16 + $0x3b0] sm:$0xff]
    %v5069 = vld [vmem:[#allocation16 + $0x3b8] sm:$0xff]
    %v5070 = vld [vmem:[#allocation16 + $0x3c0] sm:$0xff]
    %v5071 = vld [vmem:[#allocation16 + $0x3c8] sm:$0xff]
    %v5072 = vld [vmem:[#allocation16 + $0x3d0] sm:$0xff]
    %v5073 = vld [vmem:[#allocation16 + $0x3d8] sm:$0xff]
    %v5074 = vld [vmem:[#allocation16 + $0x3e0] sm:$0xff]
    %v5075 = vld [vmem:[#allocation16 + $0x3e8] sm:$0xff]
    %v5076 = vld [vmem:[#allocation16 + $0x3f0] sm:$0xff]
    %v5077 = vld [vmem:[#allocation16 + $0x3f8] sm:$0xff]
    %v5206 = vunpack.c.l.b16 %v4950
    %v5207 = vunpack.c.h.b16 %v4950
    %v5208 = vunpack.c.l.b16 %v4951
    %v5209 = vunpack.c.h.b16 %v4951
    %v5210 = vunpack.c.l.b16 %v4952
    %v5211 = vunpack.c.h.b16 %v4952
    %v5212 = vunpack.c.l.b16 %v4953
    %v5213 = vunpack.c.h.b16 %v4953
    %v5214 = vunpack.c.l.b16 %v4954
    %v5215 = vunpack.c.h.b16 %v4954
    %v5216 = vunpack.c.l.b16 %v4955
    %v5217 = vunpack.c.h.b16 %v4955
    %v5218 = vunpack.c.l.b16 %v4956
    %v5219 = vunpack.c.h.b16 %v4956
    %v5220 = vunpack.c.l.b16 %v4957
    %v5221 = vunpack.c.h.b16 %v4957
    %v5222 = vunpack.c.l.b16 %v4958
    %v5223 = vunpack.c.h.b16 %v4958
    %v5224 = vunpack.c.l.b16 %v4959
    %v5225 = vunpack.c.h.b16 %v4959
    %v5226 = vunpack.c.l.b16 %v4960
    %v5227 = vunpack.c.h.b16 %v4960
    %v5228 = vunpack.c.l.b16 %v4961
    %v5229 = vunpack.c.h.b16 %v4961
    %v5230 = vunpack.c.l.b16 %v4962
    %v5231 = vunpack.c.h.b16 %v4962
    %v5232 = vunpack.c.l.b16 %v4963
    %v5233 = vunpack.c.h.b16 %v4963
    %v5234 = vunpack.c.l.b16 %v4964
    %v5235 = vunpack.c.h.b16 %v4964
    %v5236 = vunpack.c.l.b16 %v4965
    %v5237 = vunpack.c.h.b16 %v4965
    %v5238 = vunpack.c.l.b16 %v4966
    %v5239 = vunpack.c.h.b16 %v4966
    %v5240 = vunpack.c.l.b16 %v4967
    %v5241 = vunpack.c.h.b16 %v4967
    %v5242 = vunpack.c.l.b16 %v4968
    %v5243 = vunpack.c.h.b16 %v4968
    %v5244 = vunpack.c.l.b16 %v4969
    %v5245 = vunpack.c.h.b16 %v4969
    %v5246 = vunpack.c.l.b16 %v4970
    %v5247 = vunpack.c.h.b16 %v4970
    %v5248 = vunpack.c.l.b16 %v4971
    %v5249 = vunpack.c.h.b16 %v4971
    %v5250 = vunpack.c.l.b16 %v4972
    %v5251 = vunpack.c.h.b16 %v4972
    %v5252 = vunpack.c.l.b16 %v4973
    %v5253 = vunpack.c.h.b16 %v4973
    %v5254 = vunpack.c.l.b16 %v4974
    %v5255 = vunpack.c.h.b16 %v4974
    %v5256 = vunpack.c.l.b16 %v4975
    %v5257 = vunpack.c.h.b16 %v4975
    %v5258 = vunpack.c.l.b16 %v4976
    %v5259 = vunpack.c.h.b16 %v4976
    %v5260 = vunpack.c.l.b16 %v4977
    %v5261 = vunpack.c.h.b16 %v4977
    %v5262 = vunpack.c.l.b16 %v4978
    %v5263 = vunpack.c.h.b16 %v4978
    %v5264 = vunpack.c.l.b16 %v4979
    %v5265 = vunpack.c.h.b16 %v4979
    %v5266 = vunpack.c.l.b16 %v4980
    %v5267 = vunpack.c.h.b16 %v4980
    %v5268 = vunpack.c.l.b16 %v4981
    %v5269 = vunpack.c.h.b16 %v4981
    %v5270 = vunpack.c.l.b16 %v4982
    %v5271 = vunpack.c.h.b16 %v4982
    %v5272 = vunpack.c.l.b16 %v4983
    %v5273 = vunpack.c.h.b16 %v4983
    %v5274 = vunpack.c.l.b16 %v4984
    %v5275 = vunpack.c.h.b16 %v4984
    %v5276 = vunpack.c.l.b16 %v4985
    %v5277 = vunpack.c.h.b16 %v4985
    %v5278 = vunpack.c.l.b16 %v4986
    %v5279 = vunpack.c.h.b16 %v4986
    %v5280 = vunpack.c.l.b16 %v4987
    %v5281 = vunpack.c.h.b16 %v4987
    %v5282 = vunpack.c.l.b16 %v4988
    %v5283 = vunpack.c.h.b16 %v4988
    %v5284 = vunpack.c.l.b16 %v4989
    %v5285 = vunpack.c.h.b16 %v4989
    %v5286 = vunpack.c.l.b16 %v4990
    %v5287 = vunpack.c.h.b16 %v4990
    %v5288 = vunpack.c.l.b16 %v4991
    %v5289 = vunpack.c.h.b16 %v4991
    %v5290 = vunpack.c.l.b16 %v4992
    %v5291 = vunpack.c.h.b16 %v4992
    %v5292 = vunpack.c.l.b16 %v4993
    %v5293 = vunpack.c.h.b16 %v4993
    %v5294 = vunpack.c.l.b16 %v4994
    %v5295 = vunpack.c.h.b16 %v4994
    %v5296 = vunpack.c.l.b16 %v4995
    %v5297 = vunpack.c.h.b16 %v4995
    %v5298 = vunpack.c.l.b16 %v4996
    %v5299 = vunpack.c.h.b16 %v4996
    %v5300 = vunpack.c.l.b16 %v4997
    %v5301 = vunpack.c.h.b16 %v4997
    %v5302 = vunpack.c.l.b16 %v4998
    %v5303 = vunpack.c.h.b16 %v4998
    %v5304 = vunpack.c.l.b16 %v4999
    %v5305 = vunpack.c.h.b16 %v4999
    %v5306 = vunpack.c.l.b16 %v5000
    %v5307 = vunpack.c.h.b16 %v5000
    %v5308 = vunpack.c.l.b16 %v5001
    %v5309 = vunpack.c.h.b16 %v5001
    %v5310 = vunpack.c.l.b16 %v5002
    %v5311 = vunpack.c.h.b16 %v5002
    %v5312 = vunpack.c.l.b16 %v5003
    %v5313 = vunpack.c.h.b16 %v5003
    %v5314 = vunpack.c.l.b16 %v5004
    %v5315 = vunpack.c.h.b16 %v5004
    %v5316 = vunpack.c.l.b16 %v5005
    %v5317 = vunpack.c.h.b16 %v5005
    %v5318 = vunpack.c.l.b16 %v5006
    %v5319 = vunpack.c.h.b16 %v5006
    %v5320 = vunpack.c.l.b16 %v5007
    %v5321 = vunpack.c.h.b16 %v5007
    %v5322 = vunpack.c.l.b16 %v5008
    %v5323 = vunpack.c.h.b16 %v5008
    %v5324 = vunpack.c.l.b16 %v5009
    %v5325 = vunpack.c.h.b16 %v5009
    %v5326 = vunpack.c.l.b16 %v5010
    %v5327 = vunpack.c.h.b16 %v5010
    %v5328 = vunpack.c.l.b16 %v5011
    %v5329 = vunpack.c.h.b16 %v5011
    %v5330 = vunpack.c.l.b16 %v5012
    %v5331 = vunpack.c.h.b16 %v5012
    %v5332 = vunpack.c.l.b16 %v5013
    %v5333 = vunpack.c.h.b16 %v5013
    %v5334 = vunpack.c.l.b16 %v5014
    %v5335 = vunpack.c.h.b16 %v5014
    %v5336 = vunpack.c.l.b16 %v5015
    %v5337 = vunpack.c.h.b16 %v5015
    %v5338 = vunpack.c.l.b16 %v5016
    %v5339 = vunpack.c.h.b16 %v5016
    %v5340 = vunpack.c.l.b16 %v5017
    %v5341 = vunpack.c.h.b16 %v5017
    %v5342 = vunpack.c.l.b16 %v5018
    %v5343 = vunpack.c.h.b16 %v5018
    %v5344 = vunpack.c.l.b16 %v5019
    %v5345 = vunpack.c.h.b16 %v5019
    %v5346 = vunpack.c.l.b16 %v5020
    %v5347 = vunpack.c.h.b16 %v5020
    %v5348 = vunpack.c.l.b16 %v5021
    %v5349 = vunpack.c.h.b16 %v5021
    %v5350 = vunpack.c.l.b16 %v5022
    %v5351 = vunpack.c.h.b16 %v5022
    %v5352 = vunpack.c.l.b16 %v5023
    %v5353 = vunpack.c.h.b16 %v5023
    %v5354 = vunpack.c.l.b16 %v5024
    %v5355 = vunpack.c.h.b16 %v5024
    %v5356 = vunpack.c.l.b16 %v5025
    %v5357 = vunpack.c.h.b16 %v5025
    %v5358 = vunpack.c.l.b16 %v5026
    %v5359 = vunpack.c.h.b16 %v5026
    %v5360 = vunpack.c.l.b16 %v5027
    %v5361 = vunpack.c.h.b16 %v5027
    %v5362 = vunpack.c.l.b16 %v5028
    %v5363 = vunpack.c.h.b16 %v5028
    %v5364 = vunpack.c.l.b16 %v5029
    %v5365 = vunpack.c.h.b16 %v5029
    %v5366 = vunpack.c.l.b16 %v5030
    %v5367 = vunpack.c.h.b16 %v5030
    %v5368 = vunpack.c.l.b16 %v5031
    %v5369 = vunpack.c.h.b16 %v5031
    %v5370 = vunpack.c.l.b16 %v5032
    %v5371 = vunpack.c.h.b16 %v5032
    %v5372 = vunpack.c.l.b16 %v5033
    %v5373 = vunpack.c.h.b16 %v5033
    %v5374 = vunpack.c.l.b16 %v5034
    %v5375 = vunpack.c.h.b16 %v5034
    %v5376 = vunpack.c.l.b16 %v5035
    %v5377 = vunpack.c.h.b16 %v5035
    %v5378 = vunpack.c.l.b16 %v5036
    %v5379 = vunpack.c.h.b16 %v5036
    %v5380 = vunpack.c.l.b16 %v5037
    %v5381 = vunpack.c.h.b16 %v5037
    %v5382 = vunpack.c.l.b16 %v5038
    %v5383 = vunpack.c.h.b16 %v5038
    %v5384 = vunpack.c.l.b16 %v5039
    %v5385 = vunpack.c.h.b16 %v5039
    %v5386 = vunpack.c.l.b16 %v5040
    %v5387 = vunpack.c.h.b16 %v5040
    %v5388 = vunpack.c.l.b16 %v5041
    %v5389 = vunpack.c.h.b16 %v5041
    %v5390 = vunpack.c.l.b16 %v5042
    %v5391 = vunpack.c.h.b16 %v5042
    %v5392 = vunpack.c.l.b16 %v5043
    %v5393 = vunpack.c.h.b16 %v5043
    %v5394 = vunpack.c.l.b16 %v5044
    %v5395 = vunpack.c.h.b16 %v5044
    %v5396 = vunpack.c.l.b16 %v5045
    %v5397 = vunpack.c.h.b16 %v5045
    %v5398 = vunpack.c.l.b16 %v5046
    %v5399 = vunpack.c.h.b16 %v5046
    %v5400 = vunpack.c.l.b16 %v5047
    %v5401 = vunpack.c.h.b16 %v5047
    %v5402 = vunpack.c.l.b16 %v5048
    %v5403 = vunpack.c.h.b16 %v5048
    %v5404 = vunpack.c.l.b16 %v5049
    %v5405 = vunpack.c.h.b16 %v5049
    %v5406 = vunpack.c.l.b16 %v5050
    %v5407 = vunpack.c.h.b16 %v5050
    %v5408 = vunpack.c.l.b16 %v5051
    %v5409 = vunpack.c.h.b16 %v5051
    %v5410 = vunpack.c.l.b16 %v5052
    %v5411 = vunpack.c.h.b16 %v5052
    %v5412 = vunpack.c.l.b16 %v5053
    %v5413 = vunpack.c.h.b16 %v5053
    %v5414 = vunpack.c.l.b16 %v5054
    %v5415 = vunpack.c.h.b16 %v5054
    %v5416 = vunpack.c.l.b16 %v5055
    %v5417 = vunpack.c.h.b16 %v5055
    %v5418 = vunpack.c.l.b16 %v5056
    %v5419 = vunpack.c.h.b16 %v5056
    %v5420 = vunpack.c.l.b16 %v5057
    %v5421 = vunpack.c.h.b16 %v5057
    %v5422 = vunpack.c.l.b16 %v5058
    %v5423 = vunpack.c.h.b16 %v5058
    %v5424 = vunpack.c.l.b16 %v5059
    %v5425 = vunpack.c.h.b16 %v5059
    %v5426 = vunpack.c.l.b16 %v5060
    %v5427 = vunpack.c.h.b16 %v5060
    %v5428 = vunpack.c.l.b16 %v5061
    %v5429 = vunpack.c.h.b16 %v5061
    %v5430 = vunpack.c.l.b16 %v5062
    %v5431 = vunpack.c.h.b16 %v5062
    %v5432 = vunpack.c.l.b16 %v5063
    %v5433 = vunpack.c.h.b16 %v5063
    %v5434 = vunpack.c.l.b16 %v5064
    %v5435 = vunpack.c.h.b16 %v5064
    %v5436 = vunpack.c.l.b16 %v5065
    %v5437 = vunpack.c.h.b16 %v5065
    %v5438 = vunpack.c.l.b16 %v5066
    %v5439 = vunpack.c.h.b16 %v5066
    %v5440 = vunpack.c.l.b16 %v5067
    %v5441 = vunpack.c.h.b16 %v5067
    %v5442 = vunpack.c.l.b16 %v5068
    %v5443 = vunpack.c.h.b16 %v5068
    %v5444 = vunpack.c.l.b16 %v5069
    %v5445 = vunpack.c.h.b16 %v5069
    %v5446 = vunpack.c.l.b16 %v5070
    %v5447 = vunpack.c.h.b16 %v5070
    %v5448 = vunpack.c.l.b16 %v5071
    %v5449 = vunpack.c.h.b16 %v5071
    %v5450 = vunpack.c.l.b16 %v5072
    %v5451 = vunpack.c.h.b16 %v5072
    %v5452 = vunpack.c.l.b16 %v5073
    %v5453 = vunpack.c.h.b16 %v5073
    %v5454 = vunpack.c.l.b16 %v5074
    %v5455 = vunpack.c.h.b16 %v5074
    %v5456 = vunpack.c.l.b16 %v5075
    %v5457 = vunpack.c.h.b16 %v5075
    %v5458 = vunpack.c.l.b16 %v5076
    %v5459 = vunpack.c.h.b16 %v5076
    %v5460 = vunpack.c.l.b16 %v5077
    %v5461 = vunpack.c.h.b16 %v5077
    %v5462 = vpack.c.b16 %v5214, %v5206
    %v5463 = vpack.c.b16 %v5215, %v5207
    %v5464 = vpack.c.b16 %v5216, %v5208
    %v5465 = vpack.c.b16 %v5217, %v5209
    %v5466 = vpack.c.b16 %v5218, %v5210
    %v5467 = vpack.c.b16 %v5219, %v5211
    %v5468 = vpack.c.b16 %v5220, %v5212
    %v5469 = vpack.c.b16 %v5221, %v5213
    %v5470 = vpack.c.b16 %v5230, %v5222
    %v5471 = vpack.c.b16 %v5231, %v5223
    %v5472 = vpack.c.b16 %v5232, %v5224
    %v5473 = vpack.c.b16 %v5233, %v5225
    %v5474 = vpack.c.b16 %v5234, %v5226
    %v5475 = vpack.c.b16 %v5235, %v5227
    %v5476 = vpack.c.b16 %v5236, %v5228
    %v5477 = vpack.c.b16 %v5237, %v5229
    %v5478 = vpack.c.b16 %v5246, %v5238
    %v5479 = vpack.c.b16 %v5247, %v5239
    %v5480 = vpack.c.b16 %v5248, %v5240
    %v5481 = vpack.c.b16 %v5249, %v5241
    %v5482 = vpack.c.b16 %v5250, %v5242
    %v5483 = vpack.c.b16 %v5251, %v5243
    %v5484 = vpack.c.b16 %v5252, %v5244
    %v5485 = vpack.c.b16 %v5253, %v5245
    %v5486 = vpack.c.b16 %v5262, %v5254
    %v5487 = vpack.c.b16 %v5263, %v5255
    %v5488 = vpack.c.b16 %v5264, %v5256
    %v5489 = vpack.c.b16 %v5265, %v5257
    %v5490 = vpack.c.b16 %v5266, %v5258
    %v5491 = vpack.c.b16 %v5267, %v5259
    %v5492 = vpack.c.b16 %v5268, %v5260
    %v5493 = vpack.c.b16 %v5269, %v5261
    %v5494 = vpack.c.b16 %v5278, %v5270
    %v5495 = vpack.c.b16 %v5279, %v5271
    %v5496 = vpack.c.b16 %v5280, %v5272
    %v5497 = vpack.c.b16 %v5281, %v5273
    %v5498 = vpack.c.b16 %v5282, %v5274
    %v5499 = vpack.c.b16 %v5283, %v5275
    %v5500 = vpack.c.b16 %v5284, %v5276
    %v5501 = vpack.c.b16 %v5285, %v5277
    %v5502 = vpack.c.b16 %v5294, %v5286
    %v5503 = vpack.c.b16 %v5295, %v5287
    %v5504 = vpack.c.b16 %v5296, %v5288
    %v5505 = vpack.c.b16 %v5297, %v5289
    %v5506 = vpack.c.b16 %v5298, %v5290
    %v5507 = vpack.c.b16 %v5299, %v5291
    %v5508 = vpack.c.b16 %v5300, %v5292
    %v5509 = vpack.c.b16 %v5301, %v5293
    %v5510 = vpack.c.b16 %v5310, %v5302
    %v5511 = vpack.c.b16 %v5311, %v5303
    %v5512 = vpack.c.b16 %v5312, %v5304
    %v5513 = vpack.c.b16 %v5313, %v5305
    %v5514 = vpack.c.b16 %v5314, %v5306
    %v5515 = vpack.c.b16 %v5315, %v5307
    %v5516 = vpack.c.b16 %v5316, %v5308
    %v5517 = vpack.c.b16 %v5317, %v5309
    %v5518 = vpack.c.b16 %v5326, %v5318
    %v5519 = vpack.c.b16 %v5327, %v5319
    %v5520 = vpack.c.b16 %v5328, %v5320
    %v5521 = vpack.c.b16 %v5329, %v5321
    %v5522 = vpack.c.b16 %v5330, %v5322
    %v5523 = vpack.c.b16 %v5331, %v5323
    %v5524 = vpack.c.b16 %v5332, %v5324
    %v5525 = vpack.c.b16 %v5333, %v5325
    %v5526 = vpack.c.b16 %v5342, %v5334
    %v5527 = vpack.c.b16 %v5343, %v5335
    %v5528 = vpack.c.b16 %v5344, %v5336
    %v5529 = vpack.c.b16 %v5345, %v5337
    %v5530 = vpack.c.b16 %v5346, %v5338
    %v5531 = vpack.c.b16 %v5347, %v5339
    %v5532 = vpack.c.b16 %v5348, %v5340
    %v5533 = vpack.c.b16 %v5349, %v5341
    %v5534 = vpack.c.b16 %v5358, %v5350
    %v5535 = vpack.c.b16 %v5359, %v5351
    %v5536 = vpack.c.b16 %v5360, %v5352
    %v5537 = vpack.c.b16 %v5361, %v5353
    %v5538 = vpack.c.b16 %v5362, %v5354
    %v5539 = vpack.c.b16 %v5363, %v5355
    %v5540 = vpack.c.b16 %v5364, %v5356
    %v5541 = vpack.c.b16 %v5365, %v5357
    %v5542 = vpack.c.b16 %v5374, %v5366
    %v5543 = vpack.c.b16 %v5375, %v5367
    %v5544 = vpack.c.b16 %v5376, %v5368
    %v5545 = vpack.c.b16 %v5377, %v5369
    %v5546 = vpack.c.b16 %v5378, %v5370
    %v5547 = vpack.c.b16 %v5379, %v5371
    %v5548 = vpack.c.b16 %v5380, %v5372
    %v5549 = vpack.c.b16 %v5381, %v5373
    %v5550 = vpack.c.b16 %v5390, %v5382
    %v5551 = vpack.c.b16 %v5391, %v5383
    %v5552 = vpack.c.b16 %v5392, %v5384
    %v5553 = vpack.c.b16 %v5393, %v5385
    %v5554 = vpack.c.b16 %v5394, %v5386
    %v5555 = vpack.c.b16 %v5395, %v5387
    %v5556 = vpack.c.b16 %v5396, %v5388
    %v5557 = vpack.c.b16 %v5397, %v5389
    %v5558 = vpack.c.b16 %v5406, %v5398
    %v5559 = vpack.c.b16 %v5407, %v5399
    %v5560 = vpack.c.b16 %v5408, %v5400
    %v5561 = vpack.c.b16 %v5409, %v5401
    %v5562 = vpack.c.b16 %v5410, %v5402
    %v5563 = vpack.c.b16 %v5411, %v5403
    %v5564 = vpack.c.b16 %v5412, %v5404
    %v5565 = vpack.c.b16 %v5413, %v5405
    %v5566 = vpack.c.b16 %v5422, %v5414
    %v5567 = vpack.c.b16 %v5423, %v5415
    %v5568 = vpack.c.b16 %v5424, %v5416
    %v5569 = vpack.c.b16 %v5425, %v5417
    %v5570 = vpack.c.b16 %v5426, %v5418
    %v5571 = vpack.c.b16 %v5427, %v5419
    %v5572 = vpack.c.b16 %v5428, %v5420
    %v5573 = vpack.c.b16 %v5429, %v5421
    %v5574 = vpack.c.b16 %v5438, %v5430
    %v5575 = vpack.c.b16 %v5439, %v5431
    %v5576 = vpack.c.b16 %v5440, %v5432
    %v5577 = vpack.c.b16 %v5441, %v5433
    %v5578 = vpack.c.b16 %v5442, %v5434
    %v5579 = vpack.c.b16 %v5443, %v5435
    %v5580 = vpack.c.b16 %v5444, %v5436
    %v5581 = vpack.c.b16 %v5445, %v5437
    %v5582 = vpack.c.b16 %v5454, %v5446
    %v5583 = vpack.c.b16 %v5455, %v5447
    %v5584 = vpack.c.b16 %v5456, %v5448
    %v5585 = vpack.c.b16 %v5457, %v5449
    %v5586 = vpack.c.b16 %v5458, %v5450
    %v5587 = vpack.c.b16 %v5459, %v5451
    %v5588 = vpack.c.b16 %v5460, %v5452
    %v5589 = vpack.c.b16 %v5461, %v5453
    %5718 = vmatprep.subr.bf16.mxu0 %v5463
    %5719 = vmatpush1.bf16.msra.mxu0 %v5462
    %5720 = vmatprep.subr.bf16.mxu0 %v5471
    %5721 = vmatpush1.bf16.msra.mxu0 %v5470
    %5722 = vmatprep.subr.bf16.mxu0 %v5479
    %5723 = vmatpush1.bf16.msra.mxu0 %v5478
    %5724 = vmatprep.subr.bf16.mxu0 %v5487
    %5725 = vmatpush1.bf16.msra.mxu0 %v5486
    %5726 = vmatprep.subr.bf16.mxu0 %v5495
    %5727 = vmatpush1.bf16.msra.mxu0 %v5494
    %5728 = vmatprep.subr.bf16.mxu0 %v5503
    %5729 = vmatpush1.bf16.msra.mxu0 %v5502
    %5730 = vmatprep.subr.bf16.mxu0 %v5511
    %5731 = vmatpush1.bf16.msra.mxu0 %v5510
    %5732 = vmatprep.subr.bf16.mxu0 %v5519
    %5733 = vmatpush1.bf16.msra.mxu0 %v5518
    %5734 = vmatprep.subr.bf16.mxu0 %v5527
    %5735 = vmatpush1.bf16.msra.mxu0 %v5526
    %5736 = vmatprep.subr.bf16.mxu0 %v5535
    %5737 = vmatpush1.bf16.msra.mxu0 %v5534
    %5738 = vmatprep.subr.bf16.mxu0 %v5543
    %5739 = vmatpush1.bf16.msra.mxu0 %v5542
    %5740 = vmatprep.subr.bf16.mxu0 %v5551
    %5741 = vmatpush1.bf16.msra.mxu0 %v5550
    %5742 = vmatprep.subr.bf16.mxu0 %v5559
    %5743 = vmatpush1.bf16.msra.mxu0 %v5558
    %5744 = vmatprep.subr.bf16.mxu0 %v5567
    %5745 = vmatpush1.bf16.msra.mxu0 %v5566
    %5746 = vmatprep.subr.bf16.mxu0 %v5575
    %5747 = vmatpush1.bf16.msra.mxu0 %v5574
    %5748 = vmatprep.subr.bf16.mxu0 %v5583
    %5749 = vmatpush1.bf16.msra.mxu0 %v5582
    %5750 = vmatprep.mubr.bf16.mxu0 %v1003
    %5751 = vmatmul.mubr.bf16.gmra.mrb[0].mxu0 %v1003
    %v5752 = vpop.f32.mrb[0].mxu0
    %v5753 = vadd.f32 0.0, %v5752
    %v5754 = vpop.f32.mrb[0].mxu0
    %v5755 = vadd.f32 0.0, %v5754
    %v5756 = vpop.f32.mrb[0].mxu0
    %v5757 = vadd.f32 0.0, %v5756
    %v5758 = vpop.f32.mrb[0].mxu0
    %v5759 = vadd.f32 0.0, %v5758
    %5760 = vdwg.mxu0
    %5761 = vmatprep.subr.bf16.mxu0 %v5465
    %5762 = vmatpush1.bf16.msra.mxu0 %v5464
    %5763 = vmatprep.subr.bf16.mxu0 %v5473
    %5764 = vmatpush1.bf16.msra.mxu0 %v5472
    %5765 = vmatprep.subr.bf16.mxu0 %v5481
    %5766 = vmatpush1.bf16.msra.mxu0 %v5480
    %5767 = vmatprep.subr.bf16.mxu0 %v5489
    %5768 = vmatpush1.bf16.msra.mxu0 %v5488
    %5769 = vmatprep.subr.bf16.mxu0 %v5497
    %5770 = vmatpush1.bf16.msra.mxu0 %v5496
    %5771 = vmatprep.subr.bf16.mxu0 %v5505
    %5772 = vmatpush1.bf16.msra.mxu0 %v5504
    %5773 = vmatprep.subr.bf16.mxu0 %v5513
    %5774 = vmatpush1.bf16.msra.mxu0 %v5512
    %5775 = vmatprep.subr.bf16.mxu0 %v5521
    %5776 = vmatpush1.bf16.msra.mxu0 %v5520
    %5777 = vmatprep.subr.bf16.mxu0 %v5529
    %5778 = vmatpush1.bf16.msra.mxu0 %v5528
    %5779 = vmatprep.subr.bf16.mxu0 %v5537
    %5780 = vmatpush1.bf16.msra.mxu0 %v5536
    %5781 = vmatprep.subr.bf16.mxu0 %v5545
    %5782 = vmatpush1.bf16.msra.mxu0 %v5544
    %5783 = vmatprep.subr.bf16.mxu0 %v5553
    %5784 = vmatpush1.bf16.msra.mxu0 %v5552
    %5785 = vmatprep.subr.bf16.mxu0 %v5561
    %5786 = vmatpush1.bf16.msra.mxu0 %v5560
    %5787 = vmatprep.subr.bf16.mxu0 %v5569
    %5788 = vmatpush1.bf16.msra.mxu0 %v5568
    %5789 = vmatprep.subr.bf16.mxu0 %v5577
    %5790 = vmatpush1.bf16.msra.mxu0 %v5576
    %5791 = vmatprep.subr.bf16.mxu0 %v5585
    %5792 = vmatpush1.bf16.msra.mxu0 %v5584
    %5793 = vmatprep.mubr.bf16.mxu0 %v1003
    %5794 = vmatmul.mubr.bf16.gmra.mrb[0].mxu0 %v1003
    %v5795 = vpop.f32.mrb[0].mxu0
    %v5796 = vadd.f32 0.0, %v5795
    %v5797 = vpop.f32.mrb[0].mxu0
    %v5798 = vadd.f32 0.0, %v5797
    %v5799 = vpop.f32.mrb[0].mxu0
    %v5800 = vadd.f32 0.0, %v5799
    %v5801 = vpop.f32.mrb[0].mxu0
    %v5802 = vadd.f32 0.0, %v5801
    %5803 = vdwg.mxu0
    %5804 = vmatprep.subr.bf16.mxu0 %v5467
    %5805 = vmatpush1.bf16.msra.mxu0 %v5466
    %5806 = vmatprep.subr.bf16.mxu0 %v5475
    %5807 = vmatpush1.bf16.msra.mxu0 %v5474
    %5808 = vmatprep.subr.bf16.mxu0 %v5483
    %5809 = vmatpush1.bf16.msra.mxu0 %v5482
    %5810 = vmatprep.subr.bf16.mxu0 %v5491
    %5811 = vmatpush1.bf16.msra.mxu0 %v5490
    %5812 = vmatprep.subr.bf16.mxu0 %v5499
    %5813 = vmatpush1.bf16.msra.mxu0 %v5498
    %5814 = vmatprep.subr.bf16.mxu0 %v5507
    %5815 = vmatpush1.bf16.msra.mxu0 %v5506
    %5816 = vmatprep.subr.bf16.mxu0 %v5515
    %5817 = vmatpush1.bf16.msra.mxu0 %v5514
    %5818 = vmatprep.subr.bf16.mxu0 %v5523
    %5819 = vmatpush1.bf16.msra.mxu0 %v5522
    %5820 = vmatprep.subr.bf16.mxu0 %v5531
    %5821 = vmatpush1.bf16.msra.mxu0 %v5530
    %5822 = vmatprep.subr.bf16.mxu0 %v5539
    %5823 = vmatpush1.bf16.msra.mxu0 %v5538
    %5824 = vmatprep.subr.bf16.mxu0 %v5547
    %5825 = vmatpush1.bf16.msra.mxu0 %v5546
    %5826 = vmatprep.subr.bf16.mxu0 %v5555
    %5827 = vmatpush1.bf16.msra.mxu0 %v5554
    %5828 = vmatprep.subr.bf16.mxu0 %v5563
    %5829 = vmatpush1.bf16.msra.mxu0 %v5562
    %5830 = vmatprep.subr.bf16.mxu0 %v5571
    %5831 = vmatpush1.bf16.msra.mxu0 %v5570
    %5832 = vmatprep.subr.bf16.mxu0 %v5579
    %5833 = vmatpush1.bf16.msra.mxu0 %v5578
    %5834 = vmatprep.subr.bf16.mxu0 %v5587
    %5835 = vmatpush1.bf16.msra.mxu0 %v5586
    %5836 = vmatprep.mubr.bf16.mxu0 %v1003
    %5837 = vmatmul.mubr.bf16.gmra.mrb[0].mxu0 %v1003
    %v5838 = vpop.f32.mrb[0].mxu0
    %v5839 = vadd.f32 0.0, %v5838
    %v5840 = vpop.f32.mrb[0].mxu0
    %v5841 = vadd.f32 0.0, %v5840
    %v5842 = vpop.f32.mrb[0].mxu0
    %v5843 = vadd.f32 0.0, %v5842
    %v5844 = vpop.f32.mrb[0].mxu0
    %v5845 = vadd.f32 0.0, %v5844
    %5846 = vdwg.mxu0
    %5847 = vmatprep.subr.bf16.mxu0 %v5469
    %5848 = vmatpush1.bf16.msra.mxu0 %v5468
    %5849 = vmatprep.subr.bf16.mxu0 %v5477
    %5850 = vmatpush1.bf16.msra.mxu0 %v5476
    %5851 = vmatprep.subr.bf16.mxu0 %v5485
    %5852 = vmatpush1.bf16.msra.mxu0 %v5484
    %5853 = vmatprep.subr.bf16.mxu0 %v5493
    %5854 = vmatpush1.bf16.msra.mxu0 %v5492
    %5855 = vmatprep.subr.bf16.mxu0 %v5501
    %5856 = vmatpush1.bf16.msra.mxu0 %v5500
    %5857 = vmatprep.subr.bf16.mxu0 %v5509
    %5858 = vmatpush1.bf16.msra.mxu0 %v5508
    %5859 = vmatprep.subr.bf16.mxu0 %v5517
    %5860 = vmatpush1.bf16.msra.mxu0 %v5516
    %5861 = vmatprep.subr.bf16.mxu0 %v5525
    %5862 = vmatpush1.bf16.msra.mxu0 %v5524
    %5863 = vmatprep.subr.bf16.mxu0 %v5533
    %5864 = vmatpush1.bf16.msra.mxu0 %v5532
    %5865 = vmatprep.subr.bf16.mxu0 %v5541
    %5866 = vmatpush1.bf16.msra.mxu0 %v5540
    %5867 = vmatprep.subr.bf16.mxu0 %v5549
    %5868 = vmatpush1.bf16.msra.mxu0 %v5548
    %5869 = vmatprep.subr.bf16.mxu0 %v5557
    %5870 = vmatpush1.bf16.msra.mxu0 %v5556
    %5871 = vmatprep.subr.bf16.mxu0 %v5565
    %5872 = vmatpush1.bf16.msra.mxu0 %v5564
    %5873 = vmatprep.subr.bf16.mxu0 %v5573
    %5874 = vmatpush1.bf16.msra.mxu0 %v5572
    %5875 = vmatprep.subr.bf16.mxu0 %v5581
    %5876 = vmatpush1.bf16.msra.mxu0 %v5580
    %5877 = vmatprep.subr.bf16.mxu0 %v5589
    %5878 = vmatpush1.bf16.msra.mxu0 %v5588
    %5879 = vmatprep.mubr.bf16.mxu0 %v1003
    %5880 = vmatmul.mubr.bf16.gmra.mrb[0].mxu0 %v1003
    %v5881 = vpop.f32.mrb[0].mxu0
    %v5882 = vadd.f32 0.0, %v5881
    %v5883 = vpop.f32.mrb[0].mxu0
    %v5884 = vadd.f32 0.0, %v5883
    %v5885 = vpop.f32.mrb[0].mxu0
    %v5886 = vadd.f32 0.0, %v5885
    %v5887 = vpop.f32.mrb[0].mxu0
    %v5888 = vadd.f32 0.0, %v5887
    %5889 = vdwg.mxu0
    %v5890 = vld [vmem:[#allocation2] sm:$0xff]
    %v5891 = vld [vmem:[#allocation2 + $0x8] sm:$0xff]
    %v5892 = vld [vmem:[#allocation2 + $0x10] sm:$0xff]
    %v5893 = vld [vmem:[#allocation2 + $0x18] sm:$0xff]
    %v5894 = vunpack.c.l.bf16 %v5890
    %v5895 = vunpack.c.l.bf16 %v5891
    %v5896 = vunpack.c.l.bf16 %v5892
    %v5897 = vunpack.c.l.bf16 %v5893
    %v5898 = vunpack.c.h.bf16 %v5890
    %v5899 = vunpack.c.h.bf16 %v5891
    %v5900 = vunpack.c.h.bf16 %v5892
    %v5901 = vunpack.c.h.bf16 %v5893
    %v5902 = vadd.f32 %v5753, %v5894
    %v5903 = vadd.f32 %v5755, %v5895
    %v5904 = vadd.f32 %v5796, %v5896
    %v5905 = vadd.f32 %v5798, %v5897
    %v5906 = vadd.f32 %v5757, %v5898
    %v5907 = vadd.f32 %v5759, %v5899
    %v5908 = vadd.f32 %v5800, %v5900
    %v5909 = vadd.f32 %v5802, %v5901
    %v5910 = vld [vmem:[%s1836 + $0x20] sm:$0xff]
    %v5911 = vld [vmem:[%s1836 + $0x28] sm:$0xff]
    %v5912 = vld [vmem:[%s1836 + $0x30] sm:$0xff]
    %v5913 = vld [vmem:[%s1836 + $0x38] sm:$0xff]
    %v5914 = vunpack.c.l.bf16 %v5910
    %v5915 = vunpack.c.l.bf16 %v5911
    %v5916 = vunpack.c.l.bf16 %v5912
    %v5917 = vunpack.c.l.bf16 %v5913
    %v5918 = vunpack.c.h.bf16 %v5910
    %v5919 = vunpack.c.h.bf16 %v5911
    %v5920 = vunpack.c.h.bf16 %v5912
    %v5921 = vunpack.c.h.bf16 %v5913
    %v5922 = vadd.f32 %v5839, %v5914
    %v5923 = vadd.f32 %v5841, %v5915
    %v5924 = vadd.f32 %v5882, %v5916
    %v5925 = vadd.f32 %v5884, %v5917
    %v5926 = vadd.f32 %v5843, %v5918
    %v5927 = vadd.f32 %v5845, %v5919
    %v5928 = vadd.f32 %v5886, %v5920
    %v5929 = vadd.f32 %v5888, %v5921
    %v5930 = vxor.u32 %v5902, 2147483648
    %v5931 = vxor.u32 %v5906, 2147483648
    %v5932 = vmul.f32 %v5930, 1.442695
    %v5933 = vpow.pop %v5932
    %v5934 = vmul.f32 %v5931, 1.442695
    %v5935 = vpow.pop %v5934
    %v5936 = vadd.f32 %v5933, 1.0
    %v5937 = vadd.f32 %v5935, 1.0
    %v5938 = vrcp.pop %v5936
    %v5939 = vmul.f32 1.0, %v5938
    %v5940 = vrcp.pop %v5937
    %v5941 = vmul.f32 1.0, %v5940
    %v5942 = vxor.u32 %v5903, 2147483648
    %v5943 = vxor.u32 %v5907, 2147483648
    %v5944 = vmul.f32 %v5942, 1.442695
    %v5945 = vpow.pop %v5944
    %v5946 = vmul.f32 %v5943, 1.442695
    %v5947 = vpow.pop %v5946
    %v5948 = vadd.f32 %v5945, 1.0
    %v5949 = vadd.f32 %v5947, 1.0
    %v5950 = vrcp.pop %v5948
    %v5951 = vmul.f32 1.0, %v5950
    %v5952 = vrcp.pop %v5949
    %v5953 = vmul.f32 1.0, %v5952
    %v5954 = vtanh.pop %v5904
    %v5955 = vtanh.pop %v5908
    %v5956 = vxor.u32 %v5905, 2147483648
    %v5957 = vxor.u32 %v5909, 2147483648
    %v5958 = vmul.f32 %v5956, 1.442695
    %v5959 = vpow.pop %v5958
    %v5960 = vmul.f32 %v5957, 1.442695
    %v5961 = vpow.pop %v5960
    %v5962 = vadd.f32 %v5959, 1.0
    %v5963 = vadd.f32 %v5961, 1.0
    %v5964 = vrcp.pop %v5962
    %v5965 = vmul.f32 1.0, %v5964
    %v5966 = vrcp.pop %v5963
    %v5967 = vmul.f32 1.0, %v5966
    %v5968 = vmul.f32 %v5951, 0.0
    %v5969 = vmul.f32 %v5953, 0.0
    %v5970 = vmul.f32 %v5939, %v5954
    %v5971 = vmul.f32 %v5941, %v5955
    %v5972 = vadd.f32 %v5968, %v5970
    %v5973 = vadd.f32 %v5969, %v5971
    %v5974 = vtanh.pop %v5972
    %v5975 = vtanh.pop %v5973
    %v5976 = vmul.f32 %v5965, %v5974
    %v5977 = vmul.f32 %v5967, %v5975
    %v5978 = vsel %vm989, %v5972, 0.0
    %v5979 = vsel %vm990, %v5973, 0.0
    %v5980 = vsel %vm989, %v5976, 0.0
    %v5981 = vsel %vm990, %v5977, 0.0
    %v5982 = vxor.u32 %v5922, 2147483648
    %v5983 = vxor.u32 %v5926, 2147483648
    %v5984 = vmul.f32 %v5982, 1.442695
    %v5985 = vpow.pop %v5984
    %v5986 = vmul.f32 %v5983, 1.442695
    %v5987 = vpow.pop %v5986
    %v5988 = vadd.f32 %v5985, 1.0
    %v5989 = vadd.f32 %v5987, 1.0
    %v5990 = vrcp.pop %v5988
    %v5991 = vmul.f32 1.0, %v5990
    %v5992 = vrcp.pop %v5989
    %v5993 = vmul.f32 1.0, %v5992
    %v5994 = vxor.u32 %v5923, 2147483648
    %v5995 = vxor.u32 %v5927, 2147483648
    %v5996 = vmul.f32 %v5994, 1.442695
    %v5997 = vpow.pop %v5996
    %v5998 = vmul.f32 %v5995, 1.442695
    %v5999 = vpow.pop %v5998
    %v6000 = vadd.f32 %v5997, 1.0
    %v6001 = vadd.f32 %v5999, 1.0
    %v6002 = vrcp.pop %v6000
    %v6003 = vmul.f32 1.0, %v6002
    %v6004 = vrcp.pop %v6001
    %v6005 = vmul.f32 1.0, %v6004
    %v6006 = vtanh.pop %v5924
    %v6007 = vtanh.pop %v5928
    %v6008 = vxor.u32 %v5925, 2147483648
    %v6009 = vxor.u32 %v5929, 2147483648
    %v6010 = vmul.f32 %v6008, 1.442695
    %v6011 = vpow.pop %v6010
    %v6012 = vmul.f32 %v6009, 1.442695
    %v6013 = vpow.pop %v6012
    %v6014 = vadd.f32 %v6011, 1.0
    %v6015 = vadd.f32 %v6013, 1.0
    %v6016 = vrcp.pop %v6014
    %v6017 = vmul.f32 1.0, %v6016
    %v6018 = vrcp.pop %v6015
    %v6019 = vmul.f32 1.0, %v6018
    %v6020 = vmul.f32 %v6003, 0.0
    %v6021 = vmul.f32 %v6005, 0.0
    %v6022 = vmul.f32 %v5991, %v6006
    %v6023 = vmul.f32 %v5993, %v6007
    %v6024 = vadd.f32 %v6020, %v6022
    %v6025 = vadd.f32 %v6021, %v6023
    %v6026 = vtanh.pop %v6024
    %v6027 = vtanh.pop %v6025
    %v6028 = vmul.f32 %v6017, %v6026
    %v6029 = vmul.f32 %v6019, %v6027
    %v6030 = vsel %vm1001, %v6024, 0.0
    %v6031 = vsel %vm1002, %v6025, 0.0
    %v6032 = vsel %vm1001, %v6028, 0.0
    %v6033 = vsel %vm1002, %v6029, 0.0
    %v6034 = vpack.c.bf16 %v5981, %v5980
    %6035 = vst [vmem:[#allocation5] sm:$0xff] %v6034
    %v6036 = vpack.c.bf16 %v6033, %v6032
    %s6037 = scalar_lea.vmem [#allocation6], 32
    %6038 = vst [vmem:[%s6037] sm:$0xff] %v6036
    %6039 = vmatprep.subr.bf16.mxu0 %v5463
    %6040 = vmatpush1.bf16.msra.mxu0 %v5462
    %6041 = vmatprep.subr.bf16.mxu0 %v5471
    %6042 = vmatpush1.bf16.msra.mxu0 %v5470
    %6043 = vmatprep.subr.bf16.mxu0 %v5479
    %6044 = vmatpush1.bf16.msra.mxu0 %v5478
    %6045 = vmatprep.subr.bf16.mxu0 %v5487
    %6046 = vmatpush1.bf16.msra.mxu0 %v5486
    %6047 = vmatprep.subr.bf16.mxu0 %v5495
    %6048 = vmatpush1.bf16.msra.mxu0 %v5494
    %6049 = vmatprep.subr.bf16.mxu0 %v5503
    %6050 = vmatpush1.bf16.msra.mxu0 %v5502
    %6051 = vmatprep.subr.bf16.mxu0 %v5511
    %6052 = vmatpush1.bf16.msra.mxu0 %v5510
    %6053 = vmatprep.subr.bf16.mxu0 %v5519
    %6054 = vmatpush1.bf16.msra.mxu0 %v5518
    %6055 = vmatprep.subr.bf16.mxu0 %v5527
    %6056 = vmatpush1.bf16.msra.mxu0 %v5526
    %6057 = vmatprep.subr.bf16.mxu0 %v5535
    %6058 = vmatpush1.bf16.msra.mxu0 %v5534
    %6059 = vmatprep.subr.bf16.mxu0 %v5543
    %6060 = vmatpush1.bf16.msra.mxu0 %v5542
    %6061 = vmatprep.subr.bf16.mxu0 %v5551
    %6062 = vmatpush1.bf16.msra.mxu0 %v5550
    %6063 = vmatprep.subr.bf16.mxu0 %v5559
    %6064 = vmatpush1.bf16.msra.mxu0 %v5558
    %6065 = vmatprep.subr.bf16.mxu0 %v5567
    %6066 = vmatpush1.bf16.msra.mxu0 %v5566
    %6067 = vmatprep.subr.bf16.mxu0 %v5575
    %6068 = vmatpush1.bf16.msra.mxu0 %v5574
    %6069 = vmatprep.subr.bf16.mxu0 %v5583
    %6070 = vmatpush1.bf16.msra.mxu0 %v5582
    %6071 = vmatprep.mubr.bf16.mxu0 %v6036
    %6072 = vmatmul.mubr.bf16.gmra.mrb[0].mxu0 %v6034
    %v6073 = vpop.f32.mrb[0].mxu0
    %v6074 = vadd.f32 0.0, %v6073
    %v6075 = vpop.f32.mrb[0].mxu0
    %v6076 = vadd.f32 0.0, %v6075
    %v6077 = vpop.f32.mrb[0].mxu0
    %v6078 = vadd.f32 0.0, %v6077
    %v6079 = vpop.f32.mrb[0].mxu0
    %v6080 = vadd.f32 0.0, %v6079
    %6081 = vdwg.mxu0
    %6082 = vmatprep.subr.bf16.mxu0 %v5465
    %6083 = vmatpush1.bf16.msra.mxu0 %v5464
    %6084 = vmatprep.subr.bf16.mxu0 %v5473
    %6085 = vmatpush1.bf16.msra.mxu0 %v5472
    %6086 = vmatprep.subr.bf16.mxu0 %v5481
    %6087 = vmatpush1.bf16.msra.mxu0 %v5480
    %6088 = vmatprep.subr.bf16.mxu0 %v5489
    %6089 = vmatpush1.bf16.msra.mxu0 %v5488
    %6090 = vmatprep.subr.bf16.mxu0 %v5497
    %6091 = vmatpush1.bf16.msra.mxu0 %v5496
    %6092 = vmatprep.subr.bf16.mxu0 %v5505
    %6093 = vmatpush1.bf16.msra.mxu0 %v5504
    %6094 = vmatprep.subr.bf16.mxu0 %v5513
    %6095 = vmatpush1.bf16.msra.mxu0 %v5512
    %6096 = vmatprep.subr.bf16.mxu0 %v5521
    %6097 = vmatpush1.bf16.msra.mxu0 %v5520
    %6098 = vmatprep.subr.bf16.mxu0 %v5529
    %6099 = vmatpush1.bf16.msra.mxu0 %v5528
    %6100 = vmatprep.subr.bf16.mxu0 %v5537
    %6101 = vmatpush1.bf16.msra.mxu0 %v5536
    %6102 = vmatprep.subr.bf16.mxu0 %v5545
    %6103 = vmatpush1.bf16.msra.mxu0 %v5544
    %6104 = vmatprep.subr.bf16.mxu0 %v5553
    %6105 = vmatpush1.bf16.msra.mxu0 %v5552
    %6106 = vmatprep.subr.bf16.mxu0 %v5561
    %6107 = vmatpush1.bf16.msra.mxu0 %v5560
    %6108 = vmatprep.subr.bf16.mxu0 %v5569
    %6109 = vmatpush1.bf16.msra.mxu0 %v5568
    %6110 = vmatprep.subr.bf16.mxu0 %v5577
    %6111 = vmatpush1.bf16.msra.mxu0 %v5576
    %6112 = vmatprep.subr.bf16.mxu0 %v5585
    %6113 = vmatpush1.bf16.msra.mxu0 %v5584
    %6114 = vmatprep.mubr.bf16.mxu0 %v6036
    %6115 = vmatmul.mubr.bf16.gmra.mrb[0].mxu0 %v6034
    %v6116 = vpop.f32.mrb[0].mxu0
    %v6117 = vadd.f32 0.0, %v6116
    %v6118 = vpop.f32.mrb[0].mxu0
    %v6119 = vadd.f32 0.0, %v6118
    %v6120 = vpop.f32.mrb[0].mxu0
    %v6121 = vadd.f32 0.0, %v6120
    %v6122 = vpop.f32.mrb[0].mxu0
    %v6123 = vadd.f32 0.0, %v6122
    %6124 = vdwg.mxu0
    %6125 = vmatprep.subr.bf16.mxu0 %v5467
    %6126 = vmatpush1.bf16.msra.mxu0 %v5466
    %6127 = vmatprep.subr.bf16.mxu0 %v5475
    %6128 = vmatpush1.bf16.msra.mxu0 %v5474
    %6129 = vmatprep.subr.bf16.mxu0 %v5483
    %6130 = vmatpush1.bf16.msra.mxu0 %v5482
    %6131 = vmatprep.subr.bf16.mxu0 %v5491
    %6132 = vmatpush1.bf16.msra.mxu0 %v5490
    %6133 = vmatprep.subr.bf16.mxu0 %v5499
    %6134 = vmatpush1.bf16.msra.mxu0 %v5498
    %6135 = vmatprep.subr.bf16.mxu0 %v5507
    %6136 = vmatpush1.bf16.msra.mxu0 %v5506
    %6137 = vmatprep.subr.bf16.mxu0 %v5515
    %6138 = vmatpush1.bf16.msra.mxu0 %v5514
    %6139 = vmatprep.subr.bf16.mxu0 %v5523
    %6140 = vmatpush1.bf16.msra.mxu0 %v5522
    %6141 = vmatprep.subr.bf16.mxu0 %v5531
    %6142 = vmatpush1.bf16.msra.mxu0 %v5530
    %6143 = vmatprep.subr.bf16.mxu0 %v5539
    %6144 = vmatpush1.bf16.msra.mxu0 %v5538
    %6145 = vmatprep.subr.bf16.mxu0 %v5547
    %6146 = vmatpush1.bf16.msra.mxu0 %v5546
    %6147 = vmatprep.subr.bf16.mxu0 %v5555
    %6148 = vmatpush1.bf16.msra.mxu0 %v5554
    %6149 = vmatprep.subr.bf16.mxu0 %v5563
    %6150 = vmatpush1.bf16.msra.mxu0 %v5562
    %6151 = vmatprep.subr.bf16.mxu0 %v5571
    %6152 = vmatpush1.bf16.msra.mxu0 %v5570
    %6153 = vmatprep.subr.bf16.mxu0 %v5579
    %6154 = vmatpush1.bf16.msra.mxu0 %v5578
    %6155 = vmatprep.subr.bf16.mxu0 %v5587
    %6156 = vmatpush1.bf16.msra.mxu0 %v5586
    %6157 = vmatprep.mubr.bf16.mxu0 %v6036
    %6158 = vmatmul.mubr.bf16.gmra.mrb[0].mxu0 %v6034
    %v6159 = vpop.f32.mrb[0].mxu0
    %v6160 = vadd.f32 0.0, %v6159
    %v6161 = vpop.f32.mrb[0].mxu0
    %v6162 = vadd.f32 0.0, %v6161
    %v6163 = vpop.f32.mrb[0].mxu0
    %v6164 = vadd.f32 0.0, %v6163
    %v6165 = vpop.f32.mrb[0].mxu0
    %v6166 = vadd.f32 0.0, %v6165
    %6167 = vdwg.mxu0
    %6168 = vmatprep.subr.bf16.mxu0 %v5469
    %6169 = vmatpush1.bf16.msra.mxu0 %v5468
    %6170 = vmatprep.subr.bf16.mxu0 %v5477
    %6171 = vmatpush1.bf16.msra.mxu0 %v5476
    %6172 = vmatprep.subr.bf16.mxu0 %v5485
    %6173 = vmatpush1.bf16.msra.mxu0 %v5484
    %6174 = vmatprep.subr.bf16.mxu0 %v5493
    %6175 = vmatpush1.bf16.msra.mxu0 %v5492
    %6176 = vmatprep.subr.bf16.mxu0 %v5501
    %6177 = vmatpush1.bf16.msra.mxu0 %v5500
    %6178 = vmatprep.subr.bf16.mxu0 %v5509
    %6179 = vmatpush1.bf16.msra.mxu0 %v5508
    %6180 = vmatprep.subr.bf16.mxu0 %v5517
    %6181 = vmatpush1.bf16.msra.mxu0 %v5516
    %6182 = vmatprep.subr.bf16.mxu0 %v5525
    %6183 = vmatpush1.bf16.msra.mxu0 %v5524
    %6184 = vmatprep.subr.bf16.mxu0 %v5533
    %6185 = vmatpush1.bf16.msra.mxu0 %v5532
    %6186 = vmatprep.subr.bf16.mxu0 %v5541
    %6187 = vmatpush1.bf16.msra.mxu0 %v5540
    %6188 = vmatprep.subr.bf16.mxu0 %v5549
    %6189 = vmatpush1.bf16.msra.mxu0 %v5548
    %6190 = vmatprep.subr.bf16.mxu0 %v5557
    %6191 = vmatpush1.bf16.msra.mxu0 %v5556
    %6192 = vmatprep.subr.bf16.mxu0 %v5565
    %6193 = vmatpush1.bf16.msra.mxu0 %v5564
    %6194 = vmatprep.subr.bf16.mxu0 %v5573
    %6195 = vmatpush1.bf16.msra.mxu0 %v5572
    %6196 = vmatprep.subr.bf16.mxu0 %v5581
    %6197 = vmatpush1.bf16.msra.mxu0 %v5580
    %6198 = vmatprep.subr.bf16.mxu0 %v5589
    %6199 = vmatpush1.bf16.msra.mxu0 %v5588
    %6200 = vmatprep.mubr.bf16.mxu0 %v6036
    %6201 = vmatmul.mubr.bf16.gmra.mrb[0].mxu0 %v6034
    %v6202 = vpop.f32.mrb[0].mxu0
    %v6203 = vadd.f32 0.0, %v6202
    %v6204 = vpop.f32.mrb[0].mxu0
    %v6205 = vadd.f32 0.0, %v6204
    %v6206 = vpop.f32.mrb[0].mxu0
    %v6207 = vadd.f32 0.0, %v6206
    %v6208 = vpop.f32.mrb[0].mxu0
    %v6209 = vadd.f32 0.0, %v6208
    %6210 = vdwg.mxu0
    %v6211 = vld [vmem:[%s2162] sm:$0xff]
    %v6212 = vld [vmem:[%s2162 + $0x8] sm:$0xff]
    %v6213 = vld [vmem:[%s2162 + $0x10] sm:$0xff]
    %v6214 = vld [vmem:[%s2162 + $0x18] sm:$0xff]
    %v6215 = vunpack.c.l.bf16 %v6211
    %v6216 = vunpack.c.l.bf16 %v6212
    %v6217 = vunpack.c.l.bf16 %v6213
    %v6218 = vunpack.c.l.bf16 %v6214
    %v6219 = vunpack.c.h.bf16 %v6211
    %v6220 = vunpack.c.h.bf16 %v6212
    %v6221 = vunpack.c.h.bf16 %v6213
    %v6222 = vunpack.c.h.bf16 %v6214
    %v6223 = vadd.f32 %v6074, %v6215
    %v6224 = vadd.f32 %v6076, %v6216
    %v6225 = vadd.f32 %v6117, %v6217
    %v6226 = vadd.f32 %v6119, %v6218
    %v6227 = vadd.f32 %v6078, %v6219
    %v6228 = vadd.f32 %v6080, %v6220
    %v6229 = vadd.f32 %v6121, %v6221
    %v6230 = vadd.f32 %v6123, %v6222
    %v6231 = vld [vmem:[%s2183 + $0x20] sm:$0xff]
    %v6232 = vld [vmem:[%s2183 + $0x28] sm:$0xff]
    %v6233 = vld [vmem:[%s2183 + $0x30] sm:$0xff]
    %v6234 = vld [vmem:[%s2183 + $0x38] sm:$0xff]
    %v6235 = vunpack.c.l.bf16 %v6231
    %v6236 = vunpack.c.l.bf16 %v6232
    %v6237 = vunpack.c.l.bf16 %v6233
    %v6238 = vunpack.c.l.bf16 %v6234
    %v6239 = vunpack.c.h.bf16 %v6231
    %v6240 = vunpack.c.h.bf16 %v6232
    %v6241 = vunpack.c.h.bf16 %v6233
    %v6242 = vunpack.c.h.bf16 %v6234
    %v6243 = vadd.f32 %v6160, %v6235
    %v6244 = vadd.f32 %v6162, %v6236
    %v6245 = vadd.f32 %v6203, %v6237
    %v6246 = vadd.f32 %v6205, %v6238
    %v6247 = vadd.f32 %v6164, %v6239
    %v6248 = vadd.f32 %v6166, %v6240
    %v6249 = vadd.f32 %v6207, %v6241
    %v6250 = vadd.f32 %v6209, %v6242
    %v6251 = vxor.u32 %v6223, 2147483648
    %v6252 = vxor.u32 %v6227, 2147483648
    %v6253 = vmul.f32 %v6251, 1.442695
    %v6254 = vpow.pop %v6253
    %v6255 = vmul.f32 %v6252, 1.442695
    %v6256 = vpow.pop %v6255
    %v6257 = vadd.f32 %v6254, 1.0
    %v6258 = vadd.f32 %v6256, 1.0
    %v6259 = vrcp.pop %v6257
    %v6260 = vmul.f32 1.0, %v6259
    %v6261 = vrcp.pop %v6258
    %v6262 = vmul.f32 1.0, %v6261
    %v6263 = vxor.u32 %v6224, 2147483648
    %v6264 = vxor.u32 %v6228, 2147483648
    %v6265 = vmul.f32 %v6263, 1.442695
    %v6266 = vpow.pop %v6265
    %v6267 = vmul.f32 %v6264, 1.442695
    %v6268 = vpow.pop %v6267
    %v6269 = vadd.f32 %v6266, 1.0
    %v6270 = vadd.f32 %v6268, 1.0
    %v6271 = vrcp.pop %v6269
    %v6272 = vmul.f32 1.0, %v6271
    %v6273 = vrcp.pop %v6270
    %v6274 = vmul.f32 1.0, %v6273
    %v6275 = vtanh.pop %v6225
    %v6276 = vtanh.pop %v6229
    %v6277 = vxor.u32 %v6226, 2147483648
    %v6278 = vxor.u32 %v6230, 2147483648
    %v6279 = vmul.f32 %v6277, 1.442695
    %v6280 = vpow.pop %v6279
    %v6281 = vmul.f32 %v6278, 1.442695
    %v6282 = vpow.pop %v6281
    %v6283 = vadd.f32 %v6280, 1.0
    %v6284 = vadd.f32 %v6282, 1.0
    %v6285 = vrcp.pop %v6283
    %v6286 = vmul.f32 1.0, %v6285
    %v6287 = vrcp.pop %v6284
    %v6288 = vmul.f32 1.0, %v6287
    %v6289 = vmul.f32 %v6272, %v5978
    %v6290 = vmul.f32 %v6274, %v5979
    %v6291 = vmul.f32 %v6260, %v6275
    %v6292 = vmul.f32 %v6262, %v6276
    %v6293 = vadd.f32 %v6289, %v6291
    %v6294 = vadd.f32 %v6290, %v6292
    %v6295 = vtanh.pop %v6293
    %v6296 = vtanh.pop %v6294
    %v6297 = vmul.f32 %v6286, %v6295
    %v6298 = vmul.f32 %v6288, %v6296
    %v6299 = vsel %vm1976, %v6293, %v5978
    %v6300 = vsel %vm1977, %v6294, %v5979
    %v6301 = vsel %vm1976, %v6297, %v5980
    %v6302 = vsel %vm1977, %v6298, %v5981
    %v6303 = vsel %vm1976, %v6297, 0.0
    %v6304 = vsel %vm1977, %v6298, 0.0
    %v6305 = vxor.u32 %v6243, 2147483648
    %v6306 = vxor.u32 %v6247, 2147483648
    %v6307 = vmul.f32 %v6305, 1.442695
    %v6308 = vpow.pop %v6307
    %v6309 = vmul.f32 %v6306, 1.442695
    %v6310 = vpow.pop %v6309
    %v6311 = vadd.f32 %v6308, 1.0
    %v6312 = vadd.f32 %v6310, 1.0
    %v6313 = vrcp.pop %v6311
    %v6314 = vmul.f32 1.0, %v6313
    %v6315 = vrcp.pop %v6312
    %v6316 = vmul.f32 1.0, %v6315
    %v6317 = vxor.u32 %v6244, 2147483648
    %v6318 = vxor.u32 %v6248, 2147483648
    %v6319 = vmul.f32 %v6317, 1.442695
    %v6320 = vpow.pop %v6319
    %v6321 = vmul.f32 %v6318, 1.442695
    %v6322 = vpow.pop %v6321
    %v6323 = vadd.f32 %v6320, 1.0
    %v6324 = vadd.f32 %v6322, 1.0
    %v6325 = vrcp.pop %v6323
    %v6326 = vmul.f32 1.0, %v6325
    %v6327 = vrcp.pop %v6324
    %v6328 = vmul.f32 1.0, %v6327
    %v6329 = vtanh.pop %v6245
    %v6330 = vtanh.pop %v6249
    %v6331 = vxor.u32 %v6246, 2147483648
    %v6332 = vxor.u32 %v6250, 2147483648
    %v6333 = vmul.f32 %v6331, 1.442695
    %v6334 = vpow.pop %v6333
    %v6335 = vmul.f32 %v6332, 1.442695
    %v6336 = vpow.pop %v6335
    %v6337 = vadd.f32 %v6334, 1.0
    %v6338 = vadd.f32 %v6336, 1.0
    %v6339 = vrcp.pop %v6337
    %v6340 = vmul.f32 1.0, %v6339
    %v6341 = vrcp.pop %v6338
    %v6342 = vmul.f32 1.0, %v6341
    %v6343 = vmul.f32 %v6326, %v6030
    %v6344 = vmul.f32 %v6328, %v6031
    %v6345 = vmul.f32 %v6314, %v6329
    %v6346 = vmul.f32 %v6316, %v6330
    %v6347 = vadd.f32 %v6343, %v6345
    %v6348 = vadd.f32 %v6344, %v6346
    %v6349 = vtanh.pop %v6347
    %v6350 = vtanh.pop %v6348
    %v6351 = vmul.f32 %v6340, %v6349
    %v6352 = vmul.f32 %v6342, %v6350
    %v6353 = vsel %vm1988, %v6347, %v6030
    %v6354 = vsel %vm1989, %v6348, %v6031
    %v6355 = vsel %vm1988, %v6351, %v6032
    %v6356 = vsel %vm1989, %v6352, %v6033
    %v6357 = vsel %vm1988, %v6351, 0.0
    %v6358 = vsel %vm1989, %v6352, 0.0
    %v6359 = vpack.c.bf16 %v6304, %v6303
    %s6360 = scalar_lea.vmem [#allocation5], 8
    %6361 = vst [vmem:[%s6360] sm:$0xff] %v6359
    %v6362 = vpack.c.bf16 %v6358, %v6357
    %s6363 = scalar_lea.vmem [#allocation6], 24
    %6364 = vst [vmem:[%s6363] sm:$0xff] %v6362
    %v6365 = vpack.c.bf16 %v6302, %v6301
    %v6366 = vpack.c.bf16 %v6356, %v6355
    %6367 = vmatprep.subr.bf16.mxu0 %v5463
    %6368 = vmatpush1.bf16.msra.mxu0 %v5462
    %6369 = vmatprep.subr.bf16.mxu0 %v5471
    %6370 = vmatpush1.bf16.msra.mxu0 %v5470
    %6371 = vmatprep.subr.bf16.mxu0 %v5479
    %6372 = vmatpush1.bf16.msra.mxu0 %v5478
    %6373 = vmatprep.subr.bf16.mxu0 %v5487
    %6374 = vmatpush1.bf16.msra.mxu0 %v5486
    %6375 = vmatprep.subr.bf16.mxu0 %v5495
    %6376 = vmatpush1.bf16.msra.mxu0 %v5494
    %6377 = vmatprep.subr.bf16.mxu0 %v5503
    %6378 = vmatpush1.bf16.msra.mxu0 %v5502
    %6379 = vmatprep.subr.bf16.mxu0 %v5511
    %6380 = vmatpush1.bf16.msra.mxu0 %v5510
    %6381 = vmatprep.subr.bf16.mxu0 %v5519
    %6382 = vmatpush1.bf16.msra.mxu0 %v5518
    %6383 = vmatprep.subr.bf16.mxu0 %v5527
    %6384 = vmatpush1.bf16.msra.mxu0 %v5526
    %6385 = vmatprep.subr.bf16.mxu0 %v5535
    %6386 = vmatpush1.bf16.msra.mxu0 %v5534
    %6387 = vmatprep.subr.bf16.mxu0 %v5543
    %6388 = vmatpush1.bf16.msra.mxu0 %v5542
    %6389 = vmatprep.subr.bf16.mxu0 %v5551
    %6390 = vmatpush1.bf16.msra.mxu0 %v5550
    %6391 = vmatprep.subr.bf16.mxu0 %v5559
    %6392 = vmatpush1.bf16.msra.mxu0 %v5558
    %6393 = vmatprep.subr.bf16.mxu0 %v5567
    %6394 = vmatpush1.bf16.msra.mxu0 %v5566
    %6395 = vmatprep.subr.bf16.mxu0 %v5575
    %6396 = vmatpush1.bf16.msra.mxu0 %v5574
    %6397 = vmatprep.subr.bf16.mxu0 %v5583
    %6398 = vmatpush1.bf16.msra.mxu0 %v5582
    %6399 = vmatprep.mubr.bf16.mxu0 %v6366
    %6400 = vmatmul.mubr.bf16.gmra.mrb[0].mxu0 %v6365
    %v6401 = vpop.f32.mrb[0].mxu0
    %v6402 = vadd.f32 0.0, %v6401
    %v6403 = vpop.f32.mrb[0].mxu0
    %v6404 = vadd.f32 0.0, %v6403
    %v6405 = vpop.f32.mrb[0].mxu0
    %v6406 = vadd.f32 0.0, %v6405
    %v6407 = vpop.f32.mrb[0].mxu0
    %v6408 = vadd.f32 0.0, %v6407
    %6409 = vdwg.mxu0
    %6410 = vmatprep.subr.bf16.mxu0 %v5465
    %6411 = vmatpush1.bf16.msra.mxu0 %v5464
    %6412 = vmatprep.subr.bf16.mxu0 %v5473
    %6413 = vmatpush1.bf16.msra.mxu0 %v5472
    %6414 = vmatprep.subr.bf16.mxu0 %v5481
    %6415 = vmatpush1.bf16.msra.mxu0 %v5480
    %6416 = vmatprep.subr.bf16.mxu0 %v5489
    %6417 = vmatpush1.bf16.msra.mxu0 %v5488
    %6418 = vmatprep.subr.bf16.mxu0 %v5497
    %6419 = vmatpush1.bf16.msra.mxu0 %v5496
    %6420 = vmatprep.subr.bf16.mxu0 %v5505
    %6421 = vmatpush1.bf16.msra.mxu0 %v5504
    %6422 = vmatprep.subr.bf16.mxu0 %v5513
    %6423 = vmatpush1.bf16.msra.mxu0 %v5512
    %6424 = vmatprep.subr.bf16.mxu0 %v5521
    %6425 = vmatpush1.bf16.msra.mxu0 %v5520
    %6426 = vmatprep.subr.bf16.mxu0 %v5529
    %6427 = vmatpush1.bf16.msra.mxu0 %v5528
    %6428 = vmatprep.subr.bf16.mxu0 %v5537
    %6429 = vmatpush1.bf16.msra.mxu0 %v5536
    %6430 = vmatprep.subr.bf16.mxu0 %v5545
    %6431 = vmatpush1.bf16.msra.mxu0 %v5544
    %6432 = vmatprep.subr.bf16.mxu0 %v5553
    %6433 = vmatpush1.bf16.msra.mxu0 %v5552
    %6434 = vmatprep.subr.bf16.mxu0 %v5561
    %6435 = vmatpush1.bf16.msra.mxu0 %v5560
    %6436 = vmatprep.subr.bf16.mxu0 %v5569
    %6437 = vmatpush1.bf16.msra.mxu0 %v5568
    %6438 = vmatprep.subr.bf16.mxu0 %v5577
    %6439 = vmatpush1.bf16.msra.mxu0 %v5576
    %6440 = vmatprep.subr.bf16.mxu0 %v5585
    %6441 = vmatpush1.bf16.msra.mxu0 %v5584
    %6442 = vmatprep.mubr.bf16.mxu0 %v6366
    %6443 = vmatmul.mubr.bf16.gmra.mrb[0].mxu0 %v6365
    %v6444 = vpop.f32.mrb[0].mxu0
    %v6445 = vadd.f32 0.0, %v6444
    %v6446 = vpop.f32.mrb[0].mxu0
    %v6447 = vadd.f32 0.0, %v6446
    %v6448 = vpop.f32.mrb[0].mxu0
    %v6449 = vadd.f32 0.0, %v6448
    %v6450 = vpop.f32.mrb[0].mxu0
    %v6451 = vadd.f32 0.0, %v6450
    %6452 = vdwg.mxu0
    %6453 = vmatprep.subr.bf16.mxu0 %v5467
    %6454 = vmatpush1.bf16.msra.mxu0 %v5466
    %6455 = vmatprep.subr.bf16.mxu0 %v5475
    %6456 = vmatpush1.bf16.msra.mxu0 %v5474
    %6457 = vmatprep.subr.bf16.mxu0 %v5483
    %6458 = vmatpush1.bf16.msra.mxu0 %v5482
    %6459 = vmatprep.subr.bf16.mxu0 %v5491
    %6460 = vmatpush1.bf16.msra.mxu0 %v5490
    %6461 = vmatprep.subr.bf16.mxu0 %v5499
    %6462 = vmatpush1.bf16.msra.mxu0 %v5498
    %6463 = vmatprep.subr.bf16.mxu0 %v5507
    %6464 = vmatpush1.bf16.msra.mxu0 %v5506
    %6465 = vmatprep.subr.bf16.mxu0 %v5515
    %6466 = vmatpush1.bf16.msra.mxu0 %v5514
    %6467 = vmatprep.subr.bf16.mxu0 %v5523
    %6468 = vmatpush1.bf16.msra.mxu0 %v5522
    %6469 = vmatprep.subr.bf16.mxu0 %v5531
    %6470 = vmatpush1.bf16.msra.mxu0 %v5530
    %6471 = vmatprep.subr.bf16.mxu0 %v5539
    %6472 = vmatpush1.bf16.msra.mxu0 %v5538
    %6473 = vmatprep.subr.bf16.mxu0 %v5547
    %6474 = vmatpush1.bf16.msra.mxu0 %v5546
    %6475 = vmatprep.subr.bf16.mxu0 %v5555
    %6476 = vmatpush1.bf16.msra.mxu0 %v5554
    %6477 = vmatprep.subr.bf16.mxu0 %v5563
    %6478 = vmatpush1.bf16.msra.mxu0 %v5562
    %6479 = vmatprep.subr.bf16.mxu0 %v5571
    %6480 = vmatpush1.bf16.msra.mxu0 %v5570
    %6481 = vmatprep.subr.bf16.mxu0 %v5579
    %6482 = vmatpush1.bf16.msra.mxu0 %v5578
    %6483 = vmatprep.subr.bf16.mxu0 %v5587
    %6484 = vmatpush1.bf16.msra.mxu0 %v5586
    %6485 = vmatprep.mubr.bf16.mxu0 %v6366
    %6486 = vmatmul.mubr.bf16.gmra.mrb[0].mxu0 %v6365
    %v6487 = vpop.f32.mrb[0].mxu0
    %v6488 = vadd.f32 0.0, %v6487
    %v6489 = vpop.f32.mrb[0].mxu0
    %v6490 = vadd.f32 0.0, %v6489
    %v6491 = vpop.f32.mrb[0].mxu0
    %v6492 = vadd.f32 0.0, %v6491
    %v6493 = vpop.f32.mrb[0].mxu0
    %v6494 = vadd.f32 0.0, %v6493
    %6495 = vdwg.mxu0
    %6496 = vmatprep.subr.bf16.mxu0 %v5469
    %6497 = vmatpush1.bf16.msra.mxu0 %v5468
    %6498 = vmatprep.subr.bf16.mxu0 %v5477
    %6499 = vmatpush1.bf16.msra.mxu0 %v5476
    %6500 = vmatprep.subr.bf16.mxu0 %v5485
    %6501 = vmatpush1.bf16.msra.mxu0 %v5484
    %6502 = vmatprep.subr.bf16.mxu0 %v5493
    %6503 = vmatpush1.bf16.msra.mxu0 %v5492
    %6504 = vmatprep.subr.bf16.mxu0 %v5501
    %6505 = vmatpush1.bf16.msra.mxu0 %v5500
    %6506 = vmatprep.subr.bf16.mxu0 %v5509
    %6507 = vmatpush1.bf16.msra.mxu0 %v5508
    %6508 = vmatprep.subr.bf16.mxu0 %v5517
    %6509 = vmatpush1.bf16.msra.mxu0 %v5516
    %6510 = vmatprep.subr.bf16.mxu0 %v5525
    %6511 = vmatpush1.bf16.msra.mxu0 %v5524
    %6512 = vmatprep.subr.bf16.mxu0 %v5533
    %6513 = vmatpush1.bf16.msra.mxu0 %v5532
    %6514 = vmatprep.subr.bf16.mxu0 %v5541
    %6515 = vmatpush1.bf16.msra.mxu0 %v5540
    %6516 = vmatprep.subr.bf16.mxu0 %v5549
    %6517 = vmatpush1.bf16.msra.mxu0 %v5548
    %6518 = vmatprep.subr.bf16.mxu0 %v5557
    %6519 = vmatpush1.bf16.msra.mxu0 %v5556
    %6520 = vmatprep.subr.bf16.mxu0 %v5565
    %6521 = vmatpush1.bf16.msra.mxu0 %v5564
    %6522 = vmatprep.subr.bf16.mxu0 %v5573
    %6523 = vmatpush1.bf16.msra.mxu0 %v5572
    %6524 = vmatprep.subr.bf16.mxu0 %v5581
    %6525 = vmatpush1.bf16.msra.mxu0 %v5580
    %6526 = vmatprep.subr.bf16.mxu0 %v5589
    %6527 = vmatpush1.bf16.msra.mxu0 %v5588
    %6528 = vmatprep.mubr.bf16.mxu0 %v6366
    %6529 = vmatmul.mubr.bf16.gmra.mrb[0].mxu0 %v6365
    %v6530 = vpop.f32.mrb[0].mxu0
    %v6531 = vadd.f32 0.0, %v6530
    %v6532 = vpop.f32.mrb[0].mxu0
    %v6533 = vadd.f32 0.0, %v6532
    %v6534 = vpop.f32.mrb[0].mxu0
    %v6535 = vadd.f32 0.0, %v6534
    %v6536 = vpop.f32.mrb[0].mxu0
    %v6537 = vadd.f32 0.0, %v6536
    %6538 = vdwg.mxu0
    %v6539 = vld [vmem:[%s2504] sm:$0xff]
    %v6540 = vld [vmem:[%s2504 + $0x8] sm:$0xff]
    %v6541 = vld [vmem:[%s2504 + $0x10] sm:$0xff]
    %v6542 = vld [vmem:[%s2504 + $0x18] sm:$0xff]
    %v6543 = vunpack.c.l.bf16 %v6539
    %v6544 = vunpack.c.l.bf16 %v6540
    %v6545 = vunpack.c.l.bf16 %v6541
    %v6546 = vunpack.c.l.bf16 %v6542
    %v6547 = vunpack.c.h.bf16 %v6539
    %v6548 = vunpack.c.h.bf16 %v6540
    %v6549 = vunpack.c.h.bf16 %v6541
    %v6550 = vunpack.c.h.bf16 %v6542
    %v6551 = vadd.f32 %v6402, %v6543
    %v6552 = vadd.f32 %v6404, %v6544
    %v6553 = vadd.f32 %v6445, %v6545
    %v6554 = vadd.f32 %v6447, %v6546
    %v6555 = vadd.f32 %v6406, %v6547
    %v6556 = vadd.f32 %v6408, %v6548
    %v6557 = vadd.f32 %v6449, %v6549
    %v6558 = vadd.f32 %v6451, %v6550
    %v6559 = vld [vmem:[%s2504 + $0x20] sm:$0xff]
    %v6560 = vld [vmem:[%s2504 + $0x28] sm:$0xff]
    %v6561 = vld [vmem:[%s2504 + $0x30] sm:$0xff]
    %v6562 = vld [vmem:[%s2504 + $0x38] sm:$0xff]
    %v6563 = vunpack.c.l.bf16 %v6559
    %v6564 = vunpack.c.l.bf16 %v6560
    %v6565 = vunpack.c.l.bf16 %v6561
    %v6566 = vunpack.c.l.bf16 %v6562
    %v6567 = vunpack.c.h.bf16 %v6559
    %v6568 = vunpack.c.h.bf16 %v6560
    %v6569 = vunpack.c.h.bf16 %v6561
    %v6570 = vunpack.c.h.bf16 %v6562
    %v6571 = vadd.f32 %v6488, %v6563
    %v6572 = vadd.f32 %v6490, %v6564
    %v6573 = vadd.f32 %v6531, %v6565
    %v6574 = vadd.f32 %v6533, %v6566
    %v6575 = vadd.f32 %v6492, %v6567
    %v6576 = vadd.f32 %v6494, %v6568
    %v6577 = vadd.f32 %v6535, %v6569
    %v6578 = vadd.f32 %v6537, %v6570
    %v6579 = vxor.u32 %v6551, 2147483648
    %v6580 = vxor.u32 %v6555, 2147483648
    %v6581 = vmul.f32 %v6579, 1.442695
    %v6582 = vpow.pop %v6581
    %v6583 = vmul.f32 %v6580, 1.442695
    %v6584 = vpow.pop %v6583
    %v6585 = vadd.f32 %v6582, 1.0
    %v6586 = vadd.f32 %v6584, 1.0
    %v6587 = vrcp.pop %v6585
    %v6588 = vmul.f32 1.0, %v6587
    %v6589 = vrcp.pop %v6586
    %v6590 = vmul.f32 1.0, %v6589
    %v6591 = vxor.u32 %v6552, 2147483648
    %v6592 = vxor.u32 %v6556, 2147483648
    %v6593 = vmul.f32 %v6591, 1.442695
    %v6594 = vpow.pop %v6593
    %v6595 = vmul.f32 %v6592, 1.442695
    %v6596 = vpow.pop %v6595
    %v6597 = vadd.f32 %v6594, 1.0
    %v6598 = vadd.f32 %v6596, 1.0
    %v6599 = vrcp.pop %v6597
    %v6600 = vmul.f32 1.0, %v6599
    %v6601 = vrcp.pop %v6598
    %v6602 = vmul.f32 1.0, %v6601
    %v6603 = vtanh.pop %v6553
    %v6604 = vtanh.pop %v6557
    %v6605 = vxor.u32 %v6554, 2147483648
    %v6606 = vxor.u32 %v6558, 2147483648
    %v6607 = vmul.f32 %v6605, 1.442695
    %v6608 = vpow.pop %v6607
    %v6609 = vmul.f32 %v6606, 1.442695
    %v6610 = vpow.pop %v6609
    %v6611 = vadd.f32 %v6608, 1.0
    %v6612 = vadd.f32 %v6610, 1.0
    %v6613 = vrcp.pop %v6611
    %v6614 = vmul.f32 1.0, %v6613
    %v6615 = vrcp.pop %v6612
    %v6616 = vmul.f32 1.0, %v6615
    %v6617 = vmul.f32 %v6600, %v6299
    %v6618 = vmul.f32 %v6602, %v6300
    %v6619 = vmul.f32 %v6588, %v6603
    %v6620 = vmul.f32 %v6590, %v6604
    %v6621 = vadd.f32 %v6617, %v6619
    %v6622 = vadd.f32 %v6618, %v6620
    %v6623 = vtanh.pop %v6621
    %v6624 = vtanh.pop %v6622
    %v6625 = vmul.f32 %v6614, %v6623
    %v6626 = vmul.f32 %v6616, %v6624
    %v6627 = vsel %vm2328, %v6621, %v6299
    %v6628 = vsel %vm2329, %v6622, %v6300
    %v6629 = vsel %vm2328, %v6625, %v6301
    %v6630 = vsel %vm2329, %v6626, %v6302
    %v6631 = vsel %vm2328, %v6625, 0.0
    %v6632 = vsel %vm2329, %v6626, 0.0
    %v6633 = vxor.u32 %v6571, 2147483648
    %v6634 = vxor.u32 %v6575, 2147483648
    %v6635 = vmul.f32 %v6633, 1.442695
    %v6636 = vpow.pop %v6635
    %v6637 = vmul.f32 %v6634, 1.442695
    %v6638 = vpow.pop %v6637
    %v6639 = vadd.f32 %v6636, 1.0
    %v6640 = vadd.f32 %v6638, 1.0
    %v6641 = vrcp.pop %v6639
    %v6642 = vmul.f32 1.0, %v6641
    %v6643 = vrcp.pop %v6640
    %v6644 = vmul.f32 1.0, %v6643
    %v6645 = vxor.u32 %v6572, 2147483648
    %v6646 = vxor.u32 %v6576, 2147483648
    %v6647 = vmul.f32 %v6645, 1.442695
    %v6648 = vpow.pop %v6647
    %v6649 = vmul.f32 %v6646, 1.442695
    %v6650 = vpow.pop %v6649
    %v6651 = vadd.f32 %v6648, 1.0
    %v6652 = vadd.f32 %v6650, 1.0
    %v6653 = vrcp.pop %v6651
    %v6654 = vmul.f32 1.0, %v6653
    %v6655 = vrcp.pop %v6652
    %v6656 = vmul.f32 1.0, %v6655
    %v6657 = vtanh.pop %v6573
    %v6658 = vtanh.pop %v6577
    %v6659 = vxor.u32 %v6574, 2147483648
    %v6660 = vxor.u32 %v6578, 2147483648
    %v6661 = vmul.f32 %v6659, 1.442695
    %v6662 = vpow.pop %v6661
    %v6663 = vmul.f32 %v6660, 1.442695
    %v6664 = vpow.pop %v6663
    %v6665 = vadd.f32 %v6662, 1.0
    %v6666 = vadd.f32 %v6664, 1.0
    %v6667 = vrcp.pop %v6665
    %v6668 = vmul.f32 1.0, %v6667
    %v6669 = vrcp.pop %v6666
    %v6670 = vmul.f32 1.0, %v6669
    %v6671 = vmul.f32 %v6654, %v6353
    %v6672 = vmul.f32 %v6656, %v6354
    %v6673 = vmul.f32 %v6642, %v6657
    %v6674 = vmul.f32 %v6644, %v6658
    %v6675 = vadd.f32 %v6671, %v6673
    %v6676 = vadd.f32 %v6672, %v6674
    %v6677 = vtanh.pop %v6675
    %v6678 = vtanh.pop %v6676
    %v6679 = vmul.f32 %v6668, %v6677
    %v6680 = vmul.f32 %v6670, %v6678
    %v6681 = vsel %vm2328, %v6675, %v6353
    %v6682 = vsel %vm2329, %v6676, %v6354
    %v6683 = vsel %vm2328, %v6679, %v6355
    %v6684 = vsel %vm2329, %v6680, %v6356
    %v6685 = vsel %vm2328, %v6679, 0.0
    %v6686 = vsel %vm2329, %v6680, 0.0
    %v6687 = vpack.c.bf16 %v6632, %v6631
    %s6688 = scalar_lea.vmem [#allocation5], 16
    %6689 = vst [vmem:[%s6688] sm:$0xff] %v6687
    %v6690 = vpack.c.bf16 %v6686, %v6685
    %s6691 = scalar_lea.vmem [#allocation6], 16
    %6692 = vst [vmem:[%s6691] sm:$0xff] %v6690
    %v6693 = vpack.c.bf16 %v6630, %v6629
    %v6694 = vpack.c.bf16 %v6684, %v6683
    %6695 = vmatprep.subr.bf16.mxu0 %v5463
    %6696 = vmatpush1.bf16.msra.mxu0 %v5462
    %6697 = vmatprep.subr.bf16.mxu0 %v5471
    %6698 = vmatpush1.bf16.msra.mxu0 %v5470
    %6699 = vmatprep.subr.bf16.mxu0 %v5479
    %6700 = vmatpush1.bf16.msra.mxu0 %v5478
    %6701 = vmatprep.subr.bf16.mxu0 %v5487
    %6702 = vmatpush1.bf16.msra.mxu0 %v5486
    %6703 = vmatprep.subr.bf16.mxu0 %v5495
    %6704 = vmatpush1.bf16.msra.mxu0 %v5494
    %6705 = vmatprep.subr.bf16.mxu0 %v5503
    %6706 = vmatpush1.bf16.msra.mxu0 %v5502
    %6707 = vmatprep.subr.bf16.mxu0 %v5511
    %6708 = vmatpush1.bf16.msra.mxu0 %v5510
    %6709 = vmatprep.subr.bf16.mxu0 %v5519
    %6710 = vmatpush1.bf16.msra.mxu0 %v5518
    %6711 = vmatprep.subr.bf16.mxu0 %v5527
    %6712 = vmatpush1.bf16.msra.mxu0 %v5526
    %6713 = vmatprep.subr.bf16.mxu0 %v5535
    %6714 = vmatpush1.bf16.msra.mxu0 %v5534
    %6715 = vmatprep.subr.bf16.mxu0 %v5543
    %6716 = vmatpush1.bf16.msra.mxu0 %v5542
    %6717 = vmatprep.subr.bf16.mxu0 %v5551
    %6718 = vmatpush1.bf16.msra.mxu0 %v5550
    %6719 = vmatprep.subr.bf16.mxu0 %v5559
    %6720 = vmatpush1.bf16.msra.mxu0 %v5558
    %6721 = vmatprep.subr.bf16.mxu0 %v5567
    %6722 = vmatpush1.bf16.msra.mxu0 %v5566
    %6723 = vmatprep.subr.bf16.mxu0 %v5575
    %6724 = vmatpush1.bf16.msra.mxu0 %v5574
    %6725 = vmatprep.subr.bf16.mxu0 %v5583
    %6726 = vmatpush1.bf16.msra.mxu0 %v5582
    %6727 = vmatprep.mubr.bf16.mxu0 %v6694
    %6728 = vmatmul.mubr.bf16.gmra.mrb[0].mxu0 %v6693
    %v6729 = vpop.f32.mrb[0].mxu0
    %v6730 = vadd.f32 0.0, %v6729
    %v6731 = vpop.f32.mrb[0].mxu0
    %v6732 = vadd.f32 0.0, %v6731
    %v6733 = vpop.f32.mrb[0].mxu0
    %v6734 = vadd.f32 0.0, %v6733
    %v6735 = vpop.f32.mrb[0].mxu0
    %v6736 = vadd.f32 0.0, %v6735
    %6737 = vdwg.mxu0
    %6738 = vmatprep.subr.bf16.mxu0 %v5465
    %6739 = vmatpush1.bf16.msra.mxu0 %v5464
    %6740 = vmatprep.subr.bf16.mxu0 %v5473
    %6741 = vmatpush1.bf16.msra.mxu0 %v5472
    %6742 = vmatprep.subr.bf16.mxu0 %v5481
    %6743 = vmatpush1.bf16.msra.mxu0 %v5480
    %6744 = vmatprep.subr.bf16.mxu0 %v5489
    %6745 = vmatpush1.bf16.msra.mxu0 %v5488
    %6746 = vmatprep.subr.bf16.mxu0 %v5497
    %6747 = vmatpush1.bf16.msra.mxu0 %v5496
    %6748 = vmatprep.subr.bf16.mxu0 %v5505
    %6749 = vmatpush1.bf16.msra.mxu0 %v5504
    %6750 = vmatprep.subr.bf16.mxu0 %v5513
    %6751 = vmatpush1.bf16.msra.mxu0 %v5512
    %6752 = vmatprep.subr.bf16.mxu0 %v5521
    %6753 = vmatpush1.bf16.msra.mxu0 %v5520
    %6754 = vmatprep.subr.bf16.mxu0 %v5529
    %6755 = vmatpush1.bf16.msra.mxu0 %v5528
    %6756 = vmatprep.subr.bf16.mxu0 %v5537
    %6757 = vmatpush1.bf16.msra.mxu0 %v5536
    %6758 = vmatprep.subr.bf16.mxu0 %v5545
    %6759 = vmatpush1.bf16.msra.mxu0 %v5544
    %6760 = vmatprep.subr.bf16.mxu0 %v5553
    %6761 = vmatpush1.bf16.msra.mxu0 %v5552
    %6762 = vmatprep.subr.bf16.mxu0 %v5561
    %6763 = vmatpush1.bf16.msra.mxu0 %v5560
    %6764 = vmatprep.subr.bf16.mxu0 %v5569
    %6765 = vmatpush1.bf16.msra.mxu0 %v5568
    %6766 = vmatprep.subr.bf16.mxu0 %v5577
    %6767 = vmatpush1.bf16.msra.mxu0 %v5576
    %6768 = vmatprep.subr.bf16.mxu0 %v5585
    %6769 = vmatpush1.bf16.msra.mxu0 %v5584
    %6770 = vmatprep.mubr.bf16.mxu0 %v6694
    %6771 = vmatmul.mubr.bf16.gmra.mrb[0].mxu0 %v6693
    %v6772 = vpop.f32.mrb[0].mxu0
    %v6773 = vadd.f32 0.0, %v6772
    %v6774 = vpop.f32.mrb[0].mxu0
    %v6775 = vadd.f32 0.0, %v6774
    %v6776 = vpop.f32.mrb[0].mxu0
    %v6777 = vadd.f32 0.0, %v6776
    %v6778 = vpop.f32.mrb[0].mxu0
    %v6779 = vadd.f32 0.0, %v6778
    %6780 = vdwg.mxu0
    %6781 = vmatprep.subr.bf16.mxu0 %v5467
    %6782 = vmatpush1.bf16.msra.mxu0 %v5466
    %6783 = vmatprep.subr.bf16.mxu0 %v5475
    %6784 = vmatpush1.bf16.msra.mxu0 %v5474
    %6785 = vmatprep.subr.bf16.mxu0 %v5483
    %6786 = vmatpush1.bf16.msra.mxu0 %v5482
    %6787 = vmatprep.subr.bf16.mxu0 %v5491
    %6788 = vmatpush1.bf16.msra.mxu0 %v5490
    %6789 = vmatprep.subr.bf16.mxu0 %v5499
    %6790 = vmatpush1.bf16.msra.mxu0 %v5498
    %6791 = vmatprep.subr.bf16.mxu0 %v5507
    %6792 = vmatpush1.bf16.msra.mxu0 %v5506
    %6793 = vmatprep.subr.bf16.mxu0 %v5515
    %6794 = vmatpush1.bf16.msra.mxu0 %v5514
    %6795 = vmatprep.subr.bf16.mxu0 %v5523
    %6796 = vmatpush1.bf16.msra.mxu0 %v5522
    %6797 = vmatprep.subr.bf16.mxu0 %v5531
    %6798 = vmatpush1.bf16.msra.mxu0 %v5530
    %6799 = vmatprep.subr.bf16.mxu0 %v5539
    %6800 = vmatpush1.bf16.msra.mxu0 %v5538
    %6801 = vmatprep.subr.bf16.mxu0 %v5547
    %6802 = vmatpush1.bf16.msra.mxu0 %v5546
    %6803 = vmatprep.subr.bf16.mxu0 %v5555
    %6804 = vmatpush1.bf16.msra.mxu0 %v5554
    %6805 = vmatprep.subr.bf16.mxu0 %v5563
    %6806 = vmatpush1.bf16.msra.mxu0 %v5562
    %6807 = vmatprep.subr.bf16.mxu0 %v5571
    %6808 = vmatpush1.bf16.msra.mxu0 %v5570
    %6809 = vmatprep.subr.bf16.mxu0 %v5579
    %6810 = vmatpush1.bf16.msra.mxu0 %v5578
    %6811 = vmatprep.subr.bf16.mxu0 %v5587
    %6812 = vmatpush1.bf16.msra.mxu0 %v5586
    %6813 = vmatprep.mubr.bf16.mxu0 %v6694
    %6814 = vmatmul.mubr.bf16.gmra.mrb[0].mxu0 %v6693
    %v6815 = vpop.f32.mrb[0].mxu0
    %v6816 = vadd.f32 0.0, %v6815
    %v6817 = vpop.f32.mrb[0].mxu0
    %v6818 = vadd.f32 0.0, %v6817
    %v6819 = vpop.f32.mrb[0].mxu0
    %v6820 = vadd.f32 0.0, %v6819
    %v6821 = vpop.f32.mrb[0].mxu0
    %v6822 = vadd.f32 0.0, %v6821
    %6823 = vdwg.mxu0
    %6824 = vmatprep.subr.bf16.mxu0 %v5469
    %6825 = vmatpush1.bf16.msra.mxu0 %v5468
    %6826 = vmatprep.subr.bf16.mxu0 %v5477
    %6827 = vmatpush1.bf16.msra.mxu0 %v5476
    %6828 = vmatprep.subr.bf16.mxu0 %v5485
    %6829 = vmatpush1.bf16.msra.mxu0 %v5484
    %6830 = vmatprep.subr.bf16.mxu0 %v5493
    %6831 = vmatpush1.bf16.msra.mxu0 %v5492
    %6832 = vmatprep.subr.bf16.mxu0 %v5501
    %6833 = vmatpush1.bf16.msra.mxu0 %v5500
    %6834 = vmatprep.subr.bf16.mxu0 %v5509
    %6835 = vmatpush1.bf16.msra.mxu0 %v5508
    %6836 = vmatprep.subr.bf16.mxu0 %v5517
    %6837 = vmatpush1.bf16.msra.mxu0 %v5516
    %6838 = vmatprep.subr.bf16.mxu0 %v5525
    %6839 = vmatpush1.bf16.msra.mxu0 %v5524
    %6840 = vmatprep.subr.bf16.mxu0 %v5533
    %6841 = vmatpush1.bf16.msra.mxu0 %v5532
    %6842 = vmatprep.subr.bf16.mxu0 %v5541
    %6843 = vmatpush1.bf16.msra.mxu0 %v5540
    %6844 = vmatprep.subr.bf16.mxu0 %v5549
    %6845 = vmatpush1.bf16.msra.mxu0 %v5548
    %6846 = vmatprep.subr.bf16.mxu0 %v5557
    %6847 = vmatpush1.bf16.msra.mxu0 %v5556
    %6848 = vmatprep.subr.bf16.mxu0 %v5565
    %6849 = vmatpush1.bf16.msra.mxu0 %v5564
    %6850 = vmatprep.subr.bf16.mxu0 %v5573
    %6851 = vmatpush1.bf16.msra.mxu0 %v5572
    %6852 = vmatprep.subr.bf16.mxu0 %v5581
    %6853 = vmatpush1.bf16.msra.mxu0 %v5580
    %6854 = vmatprep.subr.bf16.mxu0 %v5589
    %6855 = vmatpush1.bf16.msra.mxu0 %v5588
    %6856 = vmatprep.mubr.bf16.mxu0 %v6694
    %6857 = vmatmul.mubr.bf16.gmra.mrb[0].mxu0 %v6693
    %v6858 = vpop.f32.mrb[0].mxu0
    %v6859 = vadd.f32 0.0, %v6858
    %v6860 = vpop.f32.mrb[0].mxu0
    %v6861 = vadd.f32 0.0, %v6860
    %v6862 = vpop.f32.mrb[0].mxu0
    %v6863 = vadd.f32 0.0, %v6862
    %v6864 = vpop.f32.mrb[0].mxu0
    %v6865 = vadd.f32 0.0, %v6864
    %6866 = vdwg.mxu0
    %v6867 = vld [vmem:[%s2183] sm:$0xff]
    %v6868 = vld [vmem:[%s2183 + $0x8] sm:$0xff]
    %v6869 = vld [vmem:[%s2183 + $0x10] sm:$0xff]
    %v6870 = vld [vmem:[%s2183 + $0x18] sm:$0xff]
    %v6871 = vunpack.c.l.bf16 %v6867
    %v6872 = vunpack.c.l.bf16 %v6868
    %v6873 = vunpack.c.l.bf16 %v6869
    %v6874 = vunpack.c.l.bf16 %v6870
    %v6875 = vunpack.c.h.bf16 %v6867
    %v6876 = vunpack.c.h.bf16 %v6868
    %v6877 = vunpack.c.h.bf16 %v6869
    %v6878 = vunpack.c.h.bf16 %v6870
    %v6879 = vadd.f32 %v6730, %v6871
    %v6880 = vadd.f32 %v6732, %v6872
    %v6881 = vadd.f32 %v6773, %v6873
    %v6882 = vadd.f32 %v6775, %v6874
    %v6883 = vadd.f32 %v6734, %v6875
    %v6884 = vadd.f32 %v6736, %v6876
    %v6885 = vadd.f32 %v6777, %v6877
    %v6886 = vadd.f32 %v6779, %v6878
    %v6887 = vld [vmem:[%s2162 + $0x20] sm:$0xff]
    %v6888 = vld [vmem:[%s2162 + $0x28] sm:$0xff]
    %v6889 = vld [vmem:[%s2162 + $0x30] sm:$0xff]
    %v6890 = vld [vmem:[%s2162 + $0x38] sm:$0xff]
    %v6891 = vunpack.c.l.bf16 %v6887
    %v6892 = vunpack.c.l.bf16 %v6888
    %v6893 = vunpack.c.l.bf16 %v6889
    %v6894 = vunpack.c.l.bf16 %v6890
    %v6895 = vunpack.c.h.bf16 %v6887
    %v6896 = vunpack.c.h.bf16 %v6888
    %v6897 = vunpack.c.h.bf16 %v6889
    %v6898 = vunpack.c.h.bf16 %v6890
    %v6899 = vadd.f32 %v6816, %v6891
    %v6900 = vadd.f32 %v6818, %v6892
    %v6901 = vadd.f32 %v6859, %v6893
    %v6902 = vadd.f32 %v6861, %v6894
    %v6903 = vadd.f32 %v6820, %v6895
    %v6904 = vadd.f32 %v6822, %v6896
    %v6905 = vadd.f32 %v6863, %v6897
    %v6906 = vadd.f32 %v6865, %v6898
    %v6907 = vxor.u32 %v6879, 2147483648
    %v6908 = vxor.u32 %v6883, 2147483648
    %v6909 = vmul.f32 %v6907, 1.442695
    %v6910 = vpow.pop %v6909
    %v6911 = vmul.f32 %v6908, 1.442695
    %v6912 = vpow.pop %v6911
    %v6913 = vadd.f32 %v6910, 1.0
    %v6914 = vadd.f32 %v6912, 1.0
    %v6915 = vrcp.pop %v6913
    %v6916 = vmul.f32 1.0, %v6915
    %v6917 = vrcp.pop %v6914
    %v6918 = vmul.f32 1.0, %v6917
    %v6919 = vxor.u32 %v6880, 2147483648
    %v6920 = vxor.u32 %v6884, 2147483648
    %v6921 = vmul.f32 %v6919, 1.442695
    %v6922 = vpow.pop %v6921
    %v6923 = vmul.f32 %v6920, 1.442695
    %v6924 = vpow.pop %v6923
    %v6925 = vadd.f32 %v6922, 1.0
    %v6926 = vadd.f32 %v6924, 1.0
    %v6927 = vrcp.pop %v6925
    %v6928 = vmul.f32 1.0, %v6927
    %v6929 = vrcp.pop %v6926
    %v6930 = vmul.f32 1.0, %v6929
    %v6931 = vtanh.pop %v6881
    %v6932 = vtanh.pop %v6885
    %v6933 = vxor.u32 %v6882, 2147483648
    %v6934 = vxor.u32 %v6886, 2147483648
    %v6935 = vmul.f32 %v6933, 1.442695
    %v6936 = vpow.pop %v6935
    %v6937 = vmul.f32 %v6934, 1.442695
    %v6938 = vpow.pop %v6937
    %v6939 = vadd.f32 %v6936, 1.0
    %v6940 = vadd.f32 %v6938, 1.0
    %v6941 = vrcp.pop %v6939
    %v6942 = vmul.f32 1.0, %v6941
    %v6943 = vrcp.pop %v6940
    %v6944 = vmul.f32 1.0, %v6943
    %v6945 = vmul.f32 %v6928, %v6627
    %v6946 = vmul.f32 %v6930, %v6628
    %v6947 = vmul.f32 %v6916, %v6931
    %v6948 = vmul.f32 %v6918, %v6932
    %v6949 = vadd.f32 %v6945, %v6947
    %v6950 = vadd.f32 %v6946, %v6948
    %v6951 = vtanh.pop %v6949
    %v6952 = vtanh.pop %v6950
    %v6953 = vmul.f32 %v6942, %v6951
    %v6954 = vmul.f32 %v6944, %v6952
    %v6955 = vsel %vm1988, %v6949, %v6627
    %v6956 = vsel %vm1989, %v6950, %v6628
    %v6957 = vsel %vm1988, %v6953, %v6629
    %v6958 = vsel %vm1989, %v6954, %v6630
    %v6959 = vsel %vm1988, %v6953, 0.0
    %v6960 = vsel %vm1989, %v6954, 0.0
    %v6961 = vxor.u32 %v6899, 2147483648
    %v6962 = vxor.u32 %v6903, 2147483648
    %v6963 = vmul.f32 %v6961, 1.442695
    %v6964 = vpow.pop %v6963
    %v6965 = vmul.f32 %v6962, 1.442695
    %v6966 = vpow.pop %v6965
    %v6967 = vadd.f32 %v6964, 1.0
    %v6968 = vadd.f32 %v6966, 1.0
    %v6969 = vrcp.pop %v6967
    %v6970 = vmul.f32 1.0, %v6969
    %v6971 = vrcp.pop %v6968
    %v6972 = vmul.f32 1.0, %v6971
    %v6973 = vxor.u32 %v6900, 2147483648
    %v6974 = vxor.u32 %v6904, 2147483648
    %v6975 = vmul.f32 %v6973, 1.442695
    %v6976 = vpow.pop %v6975
    %v6977 = vmul.f32 %v6974, 1.442695
    %v6978 = vpow.pop %v6977
    %v6979 = vadd.f32 %v6976, 1.0
    %v6980 = vadd.f32 %v6978, 1.0
    %v6981 = vrcp.pop %v6979
    %v6982 = vmul.f32 1.0, %v6981
    %v6983 = vrcp.pop %v6980
    %v6984 = vmul.f32 1.0, %v6983
    %v6985 = vtanh.pop %v6901
    %v6986 = vtanh.pop %v6905
    %v6987 = vxor.u32 %v6902, 2147483648
    %v6988 = vxor.u32 %v6906, 2147483648
    %v6989 = vmul.f32 %v6987, 1.442695
    %v6990 = vpow.pop %v6989
    %v6991 = vmul.f32 %v6988, 1.442695
    %v6992 = vpow.pop %v6991
    %v6993 = vadd.f32 %v6990, 1.0
    %v6994 = vadd.f32 %v6992, 1.0
    %v6995 = vrcp.pop %v6993
    %v6996 = vmul.f32 1.0, %v6995
    %v6997 = vrcp.pop %v6994
    %v6998 = vmul.f32 1.0, %v6997
    %v6999 = vmul.f32 %v6982, %v6681
    %v7000 = vmul.f32 %v6984, %v6682
    %v7001 = vmul.f32 %v6970, %v6985
    %v7002 = vmul.f32 %v6972, %v6986
    %v7003 = vadd.f32 %v6999, %v7001
    %v7004 = vadd.f32 %v7000, %v7002
    %v7005 = vtanh.pop %v7003
    %v7006 = vtanh.pop %v7004
    %v7007 = vmul.f32 %v6996, %v7005
    %v7008 = vmul.f32 %v6998, %v7006
    %v7009 = vsel %vm1976, %v7003, %v6681
    %v7010 = vsel %vm1977, %v7004, %v6682
    %v7011 = vsel %vm1976, %v7007, %v6683
    %v7012 = vsel %vm1977, %v7008, %v6684
    %v7013 = vsel %vm1976, %v7007, 0.0
    %v7014 = vsel %vm1977, %v7008, 0.0
    %v7015 = vpack.c.bf16 %v6960, %v6959
    %s7016 = scalar_lea.vmem [#allocation5], 24
    %7017 = vst [vmem:[%s7016] sm:$0xff] %v7015
    %v7018 = vpack.c.bf16 %v7014, %v7013
    %s7019 = scalar_lea.vmem [#allocation6], 8
    %7020 = vst [vmem:[%s7019] sm:$0xff] %v7018
    %v7021 = vpack.c.bf16 %v6958, %v6957
    %v7022 = vpack.c.bf16 %v7012, %v7011
    %7023 = vmatprep.subr.bf16.mxu0 %v5463
    %7024 = vmatpush1.bf16.msra.mxu0 %v5462
    %7025 = vmatprep.subr.bf16.mxu0 %v5471
    %7026 = vmatpush1.bf16.msra.mxu0 %v5470
    %7027 = vmatprep.subr.bf16.mxu0 %v5479
    %7028 = vmatpush1.bf16.msra.mxu0 %v5478
    %7029 = vmatprep.subr.bf16.mxu0 %v5487
    %7030 = vmatpush1.bf16.msra.mxu0 %v5486
    %7031 = vmatprep.subr.bf16.mxu0 %v5495
    %7032 = vmatpush1.bf16.msra.mxu0 %v5494
    %7033 = vmatprep.subr.bf16.mxu0 %v5503
    %7034 = vmatpush1.bf16.msra.mxu0 %v5502
    %7035 = vmatprep.subr.bf16.mxu0 %v5511
    %7036 = vmatpush1.bf16.msra.mxu0 %v5510
    %7037 = vmatprep.subr.bf16.mxu0 %v5519
    %7038 = vmatpush1.bf16.msra.mxu0 %v5518
    %7039 = vmatprep.subr.bf16.mxu0 %v5527
    %7040 = vmatpush1.bf16.msra.mxu0 %v5526
    %7041 = vmatprep.subr.bf16.mxu0 %v5535
    %7042 = vmatpush1.bf16.msra.mxu0 %v5534
    %7043 = vmatprep.subr.bf16.mxu0 %v5543
    %7044 = vmatpush1.bf16.msra.mxu0 %v5542
    %7045 = vmatprep.subr.bf16.mxu0 %v5551
    %7046 = vmatpush1.bf16.msra.mxu0 %v5550
    %7047 = vmatprep.subr.bf16.mxu0 %v5559
    %7048 = vmatpush1.bf16.msra.mxu0 %v5558
    %7049 = vmatprep.subr.bf16.mxu0 %v5567
    %7050 = vmatpush1.bf16.msra.mxu0 %v5566
    %7051 = vmatprep.subr.bf16.mxu0 %v5575
    %7052 = vmatpush1.bf16.msra.mxu0 %v5574
    %7053 = vmatprep.subr.bf16.mxu0 %v5583
    %7054 = vmatpush1.bf16.msra.mxu0 %v5582
    %7055 = vmatprep.mubr.bf16.mxu0 %v7022
    %7056 = vmatmul.mubr.bf16.gmra.mrb[0].mxu0 %v7021
    %v7057 = vpop.f32.mrb[0].mxu0
    %v7058 = vadd.f32 0.0, %v7057
    %v7059 = vpop.f32.mrb[0].mxu0
    %v7060 = vadd.f32 0.0, %v7059
    %v7061 = vpop.f32.mrb[0].mxu0
    %v7062 = vadd.f32 0.0, %v7061
    %v7063 = vpop.f32.mrb[0].mxu0
    %v7064 = vadd.f32 0.0, %v7063
    %7065 = vdwg.mxu0
    %7066 = vmatprep.subr.bf16.mxu0 %v5465
    %7067 = vmatpush1.bf16.msra.mxu0 %v5464
    %7068 = vmatprep.subr.bf16.mxu0 %v5473
    %7069 = vmatpush1.bf16.msra.mxu0 %v5472
    %7070 = vmatprep.subr.bf16.mxu0 %v5481
    %7071 = vmatpush1.bf16.msra.mxu0 %v5480
    %7072 = vmatprep.subr.bf16.mxu0 %v5489
    %7073 = vmatpush1.bf16.msra.mxu0 %v5488
    %7074 = vmatprep.subr.bf16.mxu0 %v5497
    %7075 = vmatpush1.bf16.msra.mxu0 %v5496
    %7076 = vmatprep.subr.bf16.mxu0 %v5505
    %7077 = vmatpush1.bf16.msra.mxu0 %v5504
    %7078 = vmatprep.subr.bf16.mxu0 %v5513
    %7079 = vmatpush1.bf16.msra.mxu0 %v5512
    %7080 = vmatprep.subr.bf16.mxu0 %v5521
    %7081 = vmatpush1.bf16.msra.mxu0 %v5520
    %7082 = vmatprep.subr.bf16.mxu0 %v5529
    %7083 = vmatpush1.bf16.msra.mxu0 %v5528
    %7084 = vmatprep.subr.bf16.mxu0 %v5537
    %7085 = vmatpush1.bf16.msra.mxu0 %v5536
    %7086 = vmatprep.subr.bf16.mxu0 %v5545
    %7087 = vmatpush1.bf16.msra.mxu0 %v5544
    %7088 = vmatprep.subr.bf16.mxu0 %v5553
    %7089 = vmatpush1.bf16.msra.mxu0 %v5552
    %7090 = vmatprep.subr.bf16.mxu0 %v5561
    %7091 = vmatpush1.bf16.msra.mxu0 %v5560
    %7092 = vmatprep.subr.bf16.mxu0 %v5569
    %7093 = vmatpush1.bf16.msra.mxu0 %v5568
    %7094 = vmatprep.subr.bf16.mxu0 %v5577
    %7095 = vmatpush1.bf16.msra.mxu0 %v5576
    %7096 = vmatprep.subr.bf16.mxu0 %v5585
    %7097 = vmatpush1.bf16.msra.mxu0 %v5584
    %7098 = vmatprep.mubr.bf16.mxu0 %v7022
    %7099 = vmatmul.mubr.bf16.gmra.mrb[0].mxu0 %v7021
    %v7100 = vpop.f32.mrb[0].mxu0
    %v7101 = vadd.f32 0.0, %v7100
    %v7102 = vpop.f32.mrb[0].mxu0
    %v7103 = vadd.f32 0.0, %v7102
    %v7104 = vpop.f32.mrb[0].mxu0
    %v7105 = vadd.f32 0.0, %v7104
    %v7106 = vpop.f32.mrb[0].mxu0
    %v7107 = vadd.f32 0.0, %v7106
    %7108 = vdwg.mxu0
    %7109 = vmatprep.subr.bf16.mxu0 %v5467
    %7110 = vmatpush1.bf16.msra.mxu0 %v5466
    %7111 = vmatprep.subr.bf16.mxu0 %v5475
    %7112 = vmatpush1.bf16.msra.mxu0 %v5474
    %7113 = vmatprep.subr.bf16.mxu0 %v5483
    %7114 = vmatpush1.bf16.msra.mxu0 %v5482
    %7115 = vmatprep.subr.bf16.mxu0 %v5491
    %7116 = vmatpush1.bf16.msra.mxu0 %v5490
    %7117 = vmatprep.subr.bf16.mxu0 %v5499
    %7118 = vmatpush1.bf16.msra.mxu0 %v5498
    %7119 = vmatprep.subr.bf16.mxu0 %v5507
    %7120 = vmatpush1.bf16.msra.mxu0 %v5506
    %7121 = vmatprep.subr.bf16.mxu0 %v5515
    %7122 = vmatpush1.bf16.msra.mxu0 %v5514
    %7123 = vmatprep.subr.bf16.mxu0 %v5523
    %7124 = vmatpush1.bf16.msra.mxu0 %v5522
    %7125 = vmatprep.subr.bf16.mxu0 %v5531
    %7126 = vmatpush1.bf16.msra.mxu0 %v5530
    %7127 = vmatprep.subr.bf16.mxu0 %v5539
    %7128 = vmatpush1.bf16.msra.mxu0 %v5538
    %7129 = vmatprep.subr.bf16.mxu0 %v5547
    %7130 = vmatpush1.bf16.msra.mxu0 %v5546
    %7131 = vmatprep.subr.bf16.mxu0 %v5555
    %7132 = vmatpush1.bf16.msra.mxu0 %v5554
    %7133 = vmatprep.subr.bf16.mxu0 %v5563
    %7134 = vmatpush1.bf16.msra.mxu0 %v5562
    %7135 = vmatprep.subr.bf16.mxu0 %v5571
    %7136 = vmatpush1.bf16.msra.mxu0 %v5570
    %7137 = vmatprep.subr.bf16.mxu0 %v5579
    %7138 = vmatpush1.bf16.msra.mxu0 %v5578
    %7139 = vmatprep.subr.bf16.mxu0 %v5587
    %7140 = vmatpush1.bf16.msra.mxu0 %v5586
    %7141 = vmatprep.mubr.bf16.mxu0 %v7022
    %7142 = vmatmul.mubr.bf16.gmra.mrb[0].mxu0 %v7021
    %v7143 = vpop.f32.mrb[0].mxu0
    %v7144 = vadd.f32 0.0, %v7143
    %v7145 = vpop.f32.mrb[0].mxu0
    %v7146 = vadd.f32 0.0, %v7145
    %v7147 = vpop.f32.mrb[0].mxu0
    %v7148 = vadd.f32 0.0, %v7147
    %v7149 = vpop.f32.mrb[0].mxu0
    %v7150 = vadd.f32 0.0, %v7149
    %7151 = vdwg.mxu0
    %7152 = vmatprep.subr.bf16.mxu0 %v5469
    %7153 = vmatpush1.bf16.msra.mxu0 %v5468
    %7154 = vmatprep.subr.bf16.mxu0 %v5477
    %7155 = vmatpush1.bf16.msra.mxu0 %v5476
    %7156 = vmatprep.subr.bf16.mxu0 %v5485
    %7157 = vmatpush1.bf16.msra.mxu0 %v5484
    %7158 = vmatprep.subr.bf16.mxu0 %v5493
    %7159 = vmatpush1.bf16.msra.mxu0 %v5492
    %7160 = vmatprep.subr.bf16.mxu0 %v5501
    %7161 = vmatpush1.bf16.msra.mxu0 %v5500
    %7162 = vmatprep.subr.bf16.mxu0 %v5509
    %7163 = vmatpush1.bf16.msra.mxu0 %v5508
    %7164 = vmatprep.subr.bf16.mxu0 %v5517
    %7165 = vmatpush1.bf16.msra.mxu0 %v5516
    %7166 = vmatprep.subr.bf16.mxu0 %v5525
    %7167 = vmatpush1.bf16.msra.mxu0 %v5524
    %7168 = vmatprep.subr.bf16.mxu0 %v5533
    %7169 = vmatpush1.bf16.msra.mxu0 %v5532
    %7170 = vmatprep.subr.bf16.mxu0 %v5541
    %7171 = vmatpush1.bf16.msra.mxu0 %v5540
    %7172 = vmatprep.subr.bf16.mxu0 %v5549
    %7173 = vmatpush1.bf16.msra.mxu0 %v5548
    %7174 = vmatprep.subr.bf16.mxu0 %v5557
    %7175 = vmatpush1.bf16.msra.mxu0 %v5556
    %7176 = vmatprep.subr.bf16.mxu0 %v5565
    %7177 = vmatpush1.bf16.msra.mxu0 %v5564
    %7178 = vmatprep.subr.bf16.mxu0 %v5573
    %7179 = vmatpush1.bf16.msra.mxu0 %v5572
    %7180 = vmatprep.subr.bf16.mxu0 %v5581
    %7181 = vmatpush1.bf16.msra.mxu0 %v5580
    %7182 = vmatprep.subr.bf16.mxu0 %v5589
    %7183 = vmatpush1.bf16.msra.mxu0 %v5588
    %7184 = vmatprep.mubr.bf16.mxu0 %v7022
    %7185 = vmatmul.mubr.bf16.gmra.mrb[0].mxu0 %v7021
    %v7186 = vpop.f32.mrb[0].mxu0
    %v7187 = vadd.f32 0.0, %v7186
    %v7188 = vpop.f32.mrb[0].mxu0
    %v7189 = vadd.f32 0.0, %v7188
    %v7190 = vpop.f32.mrb[0].mxu0
    %v7191 = vadd.f32 0.0, %v7190
    %v7192 = vpop.f32.mrb[0].mxu0
    %v7193 = vadd.f32 0.0, %v7192
    %7194 = vdwg.mxu0
    %v7195 = vld [vmem:[%s1836] sm:$0xff]
    %v7196 = vld [vmem:[%s1836 + $0x8] sm:$0xff]
    %v7197 = vld [vmem:[%s1836 + $0x10] sm:$0xff]
    %v7198 = vld [vmem:[%s1836 + $0x18] sm:$0xff]
    %v7199 = vunpack.c.l.bf16 %v7195
    %v7200 = vunpack.c.l.bf16 %v7196
    %v7201 = vunpack.c.l.bf16 %v7197
    %v7202 = vunpack.c.l.bf16 %v7198
    %v7203 = vunpack.c.h.bf16 %v7195
    %v7204 = vunpack.c.h.bf16 %v7196
    %v7205 = vunpack.c.h.bf16 %v7197
    %v7206 = vunpack.c.h.bf16 %v7198
    %v7207 = vadd.f32 %v7058, %v7199
    %v7208 = vadd.f32 %v7060, %v7200
    %v7209 = vadd.f32 %v7101, %v7201
    %v7210 = vadd.f32 %v7103, %v7202
    %v7211 = vadd.f32 %v7062, %v7203
    %v7212 = vadd.f32 %v7064, %v7204
    %v7213 = vadd.f32 %v7105, %v7205
    %v7214 = vadd.f32 %v7107, %v7206
    %v7215 = vld [vmem:[#allocation2 + $0x20] sm:$0xff]
    %v7216 = vld [vmem:[#allocation2 + $0x28] sm:$0xff]
    %v7217 = vld [vmem:[#allocation2 + $0x30] sm:$0xff]
    %v7218 = vld [vmem:[#allocation2 + $0x38] sm:$0xff]
    %v7219 = vunpack.c.l.bf16 %v7215
    %v7220 = vunpack.c.l.bf16 %v7216
    %v7221 = vunpack.c.l.bf16 %v7217
    %v7222 = vunpack.c.l.bf16 %v7218
    %v7223 = vunpack.c.h.bf16 %v7215
    %v7224 = vunpack.c.h.bf16 %v7216
    %v7225 = vunpack.c.h.bf16 %v7217
    %v7226 = vunpack.c.h.bf16 %v7218
    %v7227 = vadd.f32 %v7144, %v7219
    %v7228 = vadd.f32 %v7146, %v7220
    %v7229 = vadd.f32 %v7187, %v7221
    %v7230 = vadd.f32 %v7189, %v7222
    %v7231 = vadd.f32 %v7148, %v7223
    %v7232 = vadd.f32 %v7150, %v7224
    %v7233 = vadd.f32 %v7191, %v7225
    %v7234 = vadd.f32 %v7193, %v7226
    %v7235 = vxor.u32 %v7207, 2147483648
    %v7236 = vxor.u32 %v7211, 2147483648
    %v7237 = vmul.f32 %v7235, 1.442695
    %v7238 = vpow.pop %v7237
    %v7239 = vmul.f32 %v7236, 1.442695
    %v7240 = vpow.pop %v7239
    %v7241 = vadd.f32 %v7238, 1.0
    %v7242 = vadd.f32 %v7240, 1.0
    %v7243 = vrcp.pop %v7241
    %v7244 = vmul.f32 1.0, %v7243
    %v7245 = vrcp.pop %v7242
    %v7246 = vmul.f32 1.0, %v7245
    %v7247 = vxor.u32 %v7208, 2147483648
    %v7248 = vxor.u32 %v7212, 2147483648
    %v7249 = vmul.f32 %v7247, 1.442695
    %v7250 = vpow.pop %v7249
    %v7251 = vmul.f32 %v7248, 1.442695
    %v7252 = vpow.pop %v7251
    %v7253 = vadd.f32 %v7250, 1.0
    %v7254 = vadd.f32 %v7252, 1.0
    %v7255 = vrcp.pop %v7253
    %v7256 = vmul.f32 1.0, %v7255
    %v7257 = vrcp.pop %v7254
    %v7258 = vmul.f32 1.0, %v7257
    %v7259 = vtanh.pop %v7209
    %v7260 = vtanh.pop %v7213
    %v7261 = vxor.u32 %v7210, 2147483648
    %v7262 = vxor.u32 %v7214, 2147483648
    %v7263 = vmul.f32 %v7261, 1.442695
    %v7264 = vpow.pop %v7263
    %v7265 = vmul.f32 %v7262, 1.442695
    %v7266 = vpow.pop %v7265
    %v7267 = vadd.f32 %v7264, 1.0
    %v7268 = vadd.f32 %v7266, 1.0
    %v7269 = vrcp.pop %v7267
    %v7270 = vmul.f32 1.0, %v7269
    %v7271 = vrcp.pop %v7268
    %v7272 = vmul.f32 1.0, %v7271
    %v7273 = vmul.f32 %v7256, %v6955
    %v7274 = vmul.f32 %v7258, %v6956
    %v7275 = vmul.f32 %v7244, %v7259
    %v7276 = vmul.f32 %v7246, %v7260
    %v7277 = vadd.f32 %v7273, %v7275
    %v7278 = vadd.f32 %v7274, %v7276
    %v7279 = vtanh.pop %v7277
    %v7280 = vtanh.pop %v7278
    %v7281 = vmul.f32 %v7270, %v7279
    %v7282 = vmul.f32 %v7272, %v7280
    %v7283 = vsel %vm1001, %v7281, 0.0
    %v7284 = vsel %vm1002, %v7282, 0.0
    %v7285 = vxor.u32 %v7227, 2147483648
    %v7286 = vxor.u32 %v7231, 2147483648
    %v7287 = vmul.f32 %v7285, 1.442695
    %v7288 = vpow.pop %v7287
    %v7289 = vmul.f32 %v7286, 1.442695
    %v7290 = vpow.pop %v7289
    %v7291 = vadd.f32 %v7288, 1.0
    %v7292 = vadd.f32 %v7290, 1.0
    %v7293 = vrcp.pop %v7291
    %v7294 = vmul.f32 1.0, %v7293
    %v7295 = vrcp.pop %v7292
    %v7296 = vmul.f32 1.0, %v7295
    %v7297 = vxor.u32 %v7228, 2147483648
    %v7298 = vxor.u32 %v7232, 2147483648
    %v7299 = vmul.f32 %v7297, 1.442695
    %v7300 = vpow.pop %v7299
    %v7301 = vmul.f32 %v7298, 1.442695
    %v7302 = vpow.pop %v7301
    %v7303 = vadd.f32 %v7300, 1.0
    %v7304 = vadd.f32 %v7302, 1.0
    %v7305 = vrcp.pop %v7303
    %v7306 = vmul.f32 1.0, %v7305
    %v7307 = vrcp.pop %v7304
    %v7308 = vmul.f32 1.0, %v7307
    %v7309 = vtanh.pop %v7229
    %v7310 = vtanh.pop %v7233
    %v7311 = vxor.u32 %v7230, 2147483648
    %v7312 = vxor.u32 %v7234, 2147483648
    %v7313 = vmul.f32 %v7311, 1.442695
    %v7314 = vpow.pop %v7313
    %v7315 = vmul.f32 %v7312, 1.442695
    %v7316 = vpow.pop %v7315
    %v7317 = vadd.f32 %v7314, 1.0
    %v7318 = vadd.f32 %v7316, 1.0
    %v7319 = vrcp.pop %v7317
    %v7320 = vmul.f32 1.0, %v7319
    %v7321 = vrcp.pop %v7318
    %v7322 = vmul.f32 1.0, %v7321
    %v7323 = vmul.f32 %v7306, %v7009
    %v7324 = vmul.f32 %v7308, %v7010
    %v7325 = vmul.f32 %v7294, %v7309
    %v7326 = vmul.f32 %v7296, %v7310
    %v7327 = vadd.f32 %v7323, %v7325
    %v7328 = vadd.f32 %v7324, %v7326
    %v7329 = vtanh.pop %v7327
    %v7330 = vtanh.pop %v7328
    %v7331 = vmul.f32 %v7320, %v7329
    %v7332 = vmul.f32 %v7322, %v7330
    %v7333 = vsel %vm989, %v7331, 0.0
    %v7334 = vsel %vm990, %v7332, 0.0
    %v7335 = vpack.c.bf16 %v7284, %v7283
    %s7336 = scalar_lea.vmem [#allocation5], 32
    %7337 = vst [vmem:[%s7336] sm:$0xff] %v7335
    %v7338 = vpack.c.bf16 %v7334, %v7333
    %7339 = vst [vmem:[#allocation6] sm:$0xff] %v7338
    %v7340 = vld [vmem:[#allocation5] sm:$0xff]
    %v7341 = vld [vmem:[#allocation5 + $0x8] sm:$0xff]
    %v7342 = vld [vmem:[#allocation5 + $0x10] sm:$0xff]
    %v7343 = vld [vmem:[#allocation5 + $0x18] sm:$0xff]
    %v7344 = vld [vmem:[#allocation5 + $0x20] sm:$0xff]
    %v7345 = vld [vmem:[#allocation6] sm:$0xff]
    %v7346 = vld [vmem:[#allocation6 + $0x8] sm:$0xff]
    %v7347 = vld [vmem:[#allocation6 + $0x10] sm:$0xff]
    %v7348 = vld [vmem:[#allocation6 + $0x18] sm:$0xff]
    %v7349 = vld [vmem:[#allocation6 + $0x20] sm:$0xff]
    %v7350 = vld [vmem:[#allocation18] sm:$0xf]
    %v7351 = vld [vmem:[#allocation18 + $0x4] sm:$0xf]
    %v7352 = vld [vmem:[#allocation18 + $0x8] sm:$0xf]
    %v7353 = vld [vmem:[#allocation18 + $0xc] sm:$0xf]
    %v7354 = vld [vmem:[#allocation18 + $0x10] sm:$0xf]
    %v7355 = vld [vmem:[#allocation18 + $0x14] sm:$0xf]
    %v7356 = vld [vmem:[#allocation18 + $0x18] sm:$0xf]
    %v7357 = vld [vmem:[#allocation18 + $0x1c] sm:$0xf]
    %v7358 = vld [vmem:[#allocation18 + $0x20] sm:$0xf]
    %v7359 = vld [vmem:[#allocation18 + $0x24] sm:$0xf]
    %v7360 = vld [vmem:[#allocation18 + $0x28] sm:$0xf]
    %v7361 = vld [vmem:[#allocation18 + $0x2c] sm:$0xf]
    %v7362 = vld [vmem:[#allocation18 + $0x30] sm:$0xf]
    %v7363 = vld [vmem:[#allocation18 + $0x34] sm:$0xf]
    %v7364 = vld [vmem:[#allocation18 + $0x38] sm:$0xf]
    %v7365 = vld [vmem:[#allocation18 + $0x3c] sm:$0xf]
    %v7366 = vld [vmem:[#allocation19] sm:$0xf]
    %v7367 = vld [vmem:[#allocation19 + $0x4] sm:$0xf]
    %v7368 = vld [vmem:[#allocation19 + $0x8] sm:$0xf]
    %v7369 = vld [vmem:[#allocation19 + $0xc] sm:$0xf]
    %v7370 = vld [vmem:[#allocation19 + $0x10] sm:$0xf]
    %v7371 = vld [vmem:[#allocation19 + $0x14] sm:$0xf]
    %v7372 = vld [vmem:[#allocation19 + $0x18] sm:$0xf]
    %v7373 = vld [vmem:[#allocation19 + $0x1c] sm:$0xf]
    %v7374 = vld [vmem:[#allocation19 + $0x20] sm:$0xf]
    %v7375 = vld [vmem:[#allocation19 + $0x24] sm:$0xf]
    %v7376 = vld [vmem:[#allocation19 + $0x28] sm:$0xf]
    %v7377 = vld [vmem:[#allocation19 + $0x2c] sm:$0xf]
    %v7378 = vld [vmem:[#allocation19 + $0x30] sm:$0xf]
    %v7379 = vld [vmem:[#allocation19 + $0x34] sm:$0xf]
    %v7380 = vld [vmem:[#allocation19 + $0x38] sm:$0xf]
    %v7381 = vld [vmem:[#allocation19 + $0x3c] sm:$0xf]
    %v7398 = vunpack.c.l.b16 %v7366
    %v7399 = vunpack.c.l.b16 %v7367
    %v7400 = vunpack.c.l.b16 %v7368
    %v7401 = vunpack.c.l.b16 %v7369
    %v7402 = vunpack.c.l.b16 %v7370
    %v7403 = vunpack.c.l.b16 %v7371
    %v7404 = vunpack.c.l.b16 %v7372
    %v7405 = vunpack.c.l.b16 %v7373
    %v7406 = vunpack.c.l.b16 %v7374
    %v7407 = vunpack.c.l.b16 %v7375
    %v7408 = vunpack.c.l.b16 %v7376
    %v7409 = vunpack.c.l.b16 %v7377
    %v7410 = vunpack.c.l.b16 %v7378
    %v7411 = vunpack.c.l.b16 %v7379
    %v7412 = vunpack.c.l.b16 %v7380
    %v7413 = vunpack.c.l.b16 %v7381
    %v7414 = vpack.c.b16 %v7399, %v7398
    %v7415 = vpack.c.b16 %v7401, %v7400
    %v7416 = vpack.c.b16 %v7403, %v7402
    %v7417 = vpack.c.b16 %v7405, %v7404
    %v7418 = vpack.c.b16 %v7407, %v7406
    %v7419 = vpack.c.b16 %v7409, %v7408
    %v7420 = vpack.c.b16 %v7411, %v7410
    %v7421 = vpack.c.b16 %v7413, %v7412
    %7430 = vmatprep.subr.bf16.mxu0 0
    %7431 = vmatpush1.bf16.msra.mxu0 %v7414
    %7432 = vmatprep.subr.bf16.mxu0 0
    %7433 = vmatpush1.bf16.msra.mxu0 %v7415
    %7434 = vmatprep.subr.bf16.mxu0 0
    %7435 = vmatpush1.bf16.msra.mxu0 %v7416
    %7436 = vmatprep.subr.bf16.mxu0 0
    %7437 = vmatpush1.bf16.msra.mxu0 %v7417
    %7438 = vmatprep.subr.bf16.mxu0 0
    %7439 = vmatpush1.bf16.msra.mxu0 %v7418
    %7440 = vmatprep.subr.bf16.mxu0 0
    %7441 = vmatpush1.bf16.msra.mxu0 %v7419
    %7442 = vmatprep.subr.bf16.mxu0 0
    %7443 = vmatpush1.bf16.msra.mxu0 %v7420
    %7444 = vmatprep.subr.bf16.mxu0 0
    %7445 = vmatpush1.bf16.msra.mxu0 %v7421
    %7446 = vmatprep.subr.bf16.mxu0 0
    %7447 = vmatpush1.bf16.msra.mxu0 0
    %7448 = vmatprep.subr.bf16.mxu0 0
    %7449 = vmatpush1.bf16.msra.mxu0 0
    %7450 = vmatprep.subr.bf16.mxu0 0
    %7451 = vmatpush1.bf16.msra.mxu0 0
    %7452 = vmatprep.subr.bf16.mxu0 0
    %7453 = vmatpush1.bf16.msra.mxu0 0
    %7454 = vmatprep.subr.bf16.mxu0 0
    %7455 = vmatpush1.bf16.msra.mxu0 0
    %7456 = vmatprep.subr.bf16.mxu0 0
    %7457 = vmatpush1.bf16.msra.mxu0 0
    %7458 = vmatprep.subr.bf16.mxu0 0
    %7459 = vmatpush1.bf16.msra.mxu0 0
    %7460 = vmatprep.subr.bf16.mxu0 0
    %7461 = vmatpush1.bf16.msra.mxu0 0
    %7462 = vmatprep.mubr.bf16.mxu0 0
    %7463 = vmatmul.mubr.bf16.gmra.mrb[0].mxu0 %v7345
    %v7464 = vpop.f32.mrb[0].mxu0
    %v7465 = vadd.f32 0.0, %v7464
    %v7466 = vpop.f32.mrb[0].mxu0
    %v7467 = vpop.f32.mrb[0].mxu0
    %v7468 = vadd.f32 0.0, %v7467
    %v7469 = vpop.f32.mrb[0].mxu0
    %7470 = vmatprep.mubr.bf16.mxu0 0
    %7471 = vmatmul.mubr.bf16.gmra.mrb[0].mxu0 %v7346
    %v7472 = vpop.f32.mrb[0].mxu0
    %v7473 = vadd.f32 0.0, %v7472
    %v7474 = vpop.f32.mrb[0].mxu0
    %v7475 = vpop.f32.mrb[0].mxu0
    %v7476 = vadd.f32 0.0, %v7475
    %v7477 = vpop.f32.mrb[0].mxu0
    %7478 = vmatprep.mubr.bf16.mxu0 0
    %7479 = vmatmul.mubr.bf16.gmra.mrb[0].mxu0 %v7347
    %v7480 = vpop.f32.mrb[0].mxu0
    %v7481 = vadd.f32 0.0, %v7480
    %v7482 = vpop.f32.mrb[0].mxu0
    %v7483 = vpop.f32.mrb[0].mxu0
    %v7484 = vadd.f32 0.0, %v7483
    %v7485 = vpop.f32.mrb[0].mxu0
    %7486 = vmatprep.mubr.bf16.mxu0 0
    %7487 = vmatmul.mubr.bf16.gmra.mrb[0].mxu0 %v7348
    %v7488 = vpop.f32.mrb[0].mxu0
    %v7489 = vadd.f32 0.0, %v7488
    %v7490 = vpop.f32.mrb[0].mxu0
    %v7491 = vpop.f32.mrb[0].mxu0
    %v7492 = vadd.f32 0.0, %v7491
    %v7493 = vpop.f32.mrb[0].mxu0
    %7494 = vmatprep.mubr.bf16.mxu0 0
    %7495 = vmatmul.mubr.bf16.gmra.mrb[0].mxu0 %v7349
    %v7496 = vpop.f32.mrb[0].mxu0
    %v7497 = vadd.f32 0.0, %v7496
    %v7498 = vpop.f32.mrb[0].mxu0
    %v7499 = vpop.f32.mrb[0].mxu0
    %v7500 = vadd.f32 0.0, %v7499
    %v7501 = vpop.f32.mrb[0].mxu0
    %7502 = vdwg.mxu0
    %v7519 = vunpack.c.l.b16 %v7350
    %v7520 = vunpack.c.l.b16 %v7351
    %v7521 = vunpack.c.l.b16 %v7352
    %v7522 = vunpack.c.l.b16 %v7353
    %v7523 = vunpack.c.l.b16 %v7354
    %v7524 = vunpack.c.l.b16 %v7355
    %v7525 = vunpack.c.l.b16 %v7356
    %v7526 = vunpack.c.l.b16 %v7357
    %v7527 = vunpack.c.l.b16 %v7358
    %v7528 = vunpack.c.l.b16 %v7359
    %v7529 = vunpack.c.l.b16 %v7360
    %v7530 = vunpack.c.l.b16 %v7361
    %v7531 = vunpack.c.l.b16 %v7362
    %v7532 = vunpack.c.l.b16 %v7363
    %v7533 = vunpack.c.l.b16 %v7364
    %v7534 = vunpack.c.l.b16 %v7365
    %v7535 = vpack.c.b16 %v7520, %v7519
    %v7536 = vpack.c.b16 %v7522, %v7521
    %v7537 = vpack.c.b16 %v7524, %v7523
    %v7538 = vpack.c.b16 %v7526, %v7525
    %v7539 = vpack.c.b16 %v7528, %v7527
    %v7540 = vpack.c.b16 %v7530, %v7529
    %v7541 = vpack.c.b16 %v7532, %v7531
    %v7542 = vpack.c.b16 %v7534, %v7533
    %7551 = vmatprep.subr.bf16.mxu0 0
    %7552 = vmatpush1.bf16.msra.mxu0 %v7535
    %7553 = vmatprep.subr.bf16.mxu0 0
    %7554 = vmatpush1.bf16.msra.mxu0 %v7536
    %7555 = vmatprep.subr.bf16.mxu0 0
    %7556 = vmatpush1.bf16.msra.mxu0 %v7537
    %7557 = vmatprep.subr.bf16.mxu0 0
    %7558 = vmatpush1.bf16.msra.mxu0 %v7538
    %7559 = vmatprep.subr.bf16.mxu0 0
    %7560 = vmatpush1.bf16.msra.mxu0 %v7539
    %7561 = vmatprep.subr.bf16.mxu0 0
    %7562 = vmatpush1.bf16.msra.mxu0 %v7540
    %7563 = vmatprep.subr.bf16.mxu0 0
    %7564 = vmatpush1.bf16.msra.mxu0 %v7541
    %7565 = vmatprep.subr.bf16.mxu0 0
    %7566 = vmatpush1.bf16.msra.mxu0 %v7542
    %7567 = vmatprep.subr.bf16.mxu0 0
    %7568 = vmatpush1.bf16.msra.mxu0 0
    %7569 = vmatprep.subr.bf16.mxu0 0
    %7570 = vmatpush1.bf16.msra.mxu0 0
    %7571 = vmatprep.subr.bf16.mxu0 0
    %7572 = vmatpush1.bf16.msra.mxu0 0
    %7573 = vmatprep.subr.bf16.mxu0 0
    %7574 = vmatpush1.bf16.msra.mxu0 0
    %7575 = vmatprep.subr.bf16.mxu0 0
    %7576 = vmatpush1.bf16.msra.mxu0 0
    %7577 = vmatprep.subr.bf16.mxu0 0
    %7578 = vmatpush1.bf16.msra.mxu0 0
    %7579 = vmatprep.subr.bf16.mxu0 0
    %7580 = vmatpush1.bf16.msra.mxu0 0
    %7581 = vmatprep.subr.bf16.mxu0 0
    %7582 = vmatpush1.bf16.msra.mxu0 0
    %7583 = vmatprep.mubr.bf16.mxu0 0
    %7584 = vmatmul.mubr.bf16.gmra.mrb[0].mxu0 %v7340
    %v7585 = vpop.f32.mrb[0].mxu0
    %v7586 = vadd.f32 %v7465, %v7585
    %v7587 = vpop.f32.mrb[0].mxu0
    %v7588 = vpop.f32.mrb[0].mxu0
    %v7589 = vadd.f32 %v7468, %v7588
    %v7590 = vpop.f32.mrb[0].mxu0
    %7591 = vmatprep.mubr.bf16.mxu0 0
    %7592 = vmatmul.mubr.bf16.gmra.mrb[0].mxu0 %v7341
    %v7593 = vpop.f32.mrb[0].mxu0
    %v7594 = vadd.f32 %v7473, %v7593
    %v7595 = vpop.f32.mrb[0].mxu0
    %v7596 = vpop.f32.mrb[0].mxu0
    %v7597 = vadd.f32 %v7476, %v7596
    %v7598 = vpop.f32.mrb[0].mxu0
    %7599 = vmatprep.mubr.bf16.mxu0 0
    %7600 = vmatmul.mubr.bf16.gmra.mrb[0].mxu0 %v7342
    %v7601 = vpop.f32.mrb[0].mxu0
    %v7602 = vadd.f32 %v7481, %v7601
    %v7603 = vpop.f32.mrb[0].mxu0
    %v7604 = vpop.f32.mrb[0].mxu0
    %v7605 = vadd.f32 %v7484, %v7604
    %v7606 = vpop.f32.mrb[0].mxu0
    %7607 = vmatprep.mubr.bf16.mxu0 0
    %7608 = vmatmul.mubr.bf16.gmra.mrb[0].mxu0 %v7343
    %v7609 = vpop.f32.mrb[0].mxu0
    %v7610 = vadd.f32 %v7489, %v7609
    %v7611 = vpop.f32.mrb[0].mxu0
    %v7612 = vpop.f32.mrb[0].mxu0
    %v7613 = vadd.f32 %v7492, %v7612
    %v7614 = vpop.f32.mrb[0].mxu0
    %7615 = vmatprep.mubr.bf16.mxu0 0
    %7616 = vmatmul.mubr.bf16.gmra.mrb[0].mxu0 %v7344
    %v7617 = vpop.f32.mrb[0].mxu0
    %v7618 = vadd.f32 %v7497, %v7617
    %v7619 = vpop.f32.mrb[0].mxu0
    %v7620 = vpop.f32.mrb[0].mxu0
    %v7621 = vadd.f32 %v7500, %v7620
    %v7622 = vpop.f32.mrb[0].mxu0
    %7623 = vdwg.mxu0
    %v7624 = vld [vmem:[%s11] sm:$0x1]
    %v7626 = vlaneseq
    %v7627 = vshrl.u32 %v7626, 7
    %v7628 = vsub.s32 0, %v7627
    %v7629 = vrot.slane %v7624, %v7628
    %v7631 = vadd.f32 %v7586, %v7629
    %v7632 = vadd.f32 %v7589, %v7629
    %v7633 = vadd.f32 %v7594, %v7629
    %v7634 = vadd.f32 %v7597, %v7629
    %v7635 = vadd.f32 %v7602, %v7629
    %v7636 = vadd.f32 %v7605, %v7629
    %v7637 = vadd.f32 %v7610, %v7629
    %v7638 = vadd.f32 %v7613, %v7629
    %v7639 = vadd.f32 %v7618, %v7629
    %v7640 = vadd.f32 %v7621, %v7629
    %7641 = vst [vmem:[#allocation21] sm:$0xff] %v7631
    %7642 = vst [vmem:[#allocation21 + $0x8] sm:$0xff] %v7632
    %7643 = vst [vmem:[#allocation21 + $0x10] sm:$0xff] %v7633
    %7644 = vst [vmem:[#allocation21 + $0x18] sm:$0xff] %v7634
    %7645 = vst [vmem:[#allocation21 + $0x20] sm:$0xff] %v7635
    %7646 = vst [vmem:[#allocation21 + $0x28] sm:$0xff] %v7636
    %7647 = vst [vmem:[#allocation21 + $0x30] sm:$0xff] %v7637
    %7648 = vst [vmem:[#allocation21 + $0x38] sm:$0xff] %v7638
    %7649 = vst [vmem:[#allocation21 + $0x40] sm:$0xff] %v7639
    %7650 = vst [vmem:[#allocation21 + $0x48] sm:$0xff] %v7640
    // Predicated region
    $region82: #{tpu_custom_call.1} parent=1 // pred_check
      _
    $region83: #{tpu_custom_call.1} parent=1 // pred_check_branch
      %7652 = sbr.rel (0) target = $region85
    $region84: #{tpu_custom_call.1} parent=1 // pred_region
      %s7654 = ssub.s32 1280, 1280
      %7655 = vsyncadd [#allocation9], %s7654
      %s7656 = sshll.u32 [#allocation21], 4
      %s7657 = int_to_ptr.vmem [resolvable:$true] %s7656
      %7662 = dma.vmem_to_hbm [thread:$0]  %s7657, 1280, %s12, [#allocation9], 128, 128, 8
    $region85: #{tpu_custom_call.1} parent=1 // pred_fallthru
      _
    // Predicated region
    $region86: #{tpu_custom_call.1} parent=1 // pred_check
      _
    $region87: #{tpu_custom_call.1} parent=1 // pred_check_branch
      %7664 = sbr.rel (0) target = $region89
    $region88: #{tpu_custom_call.1} parent=1 // pred_region
      %7665 = dma.done [#allocation9], 1280
    $region89: #{tpu_custom_call.1} parent=1 // pred_fallthru
      _
    %7666 = vsyncpa [#allocation8], 1
    %7667 = vsyncpa [#allocation11], 1
    %7668 = vsyncpa [#allocation14], 1
    %7669 = vsyncpa [#allocation17], 1
    %7670 = vsyncpa [#allocation20], 1
    %7671 = vsyncpa [#allocation9], 1

</llo_original>
